<compile_context>
chip_gen: v7x
topology: tpu7x:2x2x1
jax: 0.10.0
libtpu: 0.0.40
codegen_flags: <defaults>
</compile_context>

<pallas_src>
import functools

import jax
import jax.numpy as jnp
import numpy as np
from jax.experimental import pallas as pl
from jax.experimental.pallas import tpu as pltpu

LANE = 128
SUBLANE = 8
NEG_BIG = -1e30        # finite mask value (avoids 0*inf NaNs)
BISECT_ITERS = 16      # tau bisection steps
REFINE_ITERS = 2       # exact fixed-point refinements of tau
MAX_B_TILE = 128       # batch-tile upper bound (MXU rows)
MAX_T_BLK = 4          # timesteps fused per grid step


def _round_up(x, m):
    return (x + m - 1) // m * m


def _choose_batch_tiling(B):
    """Pick (B_TILE, B_pad): as large as MAX_B_TILE, but keep >= 2 batch blocks
    when the batch allows it so the 'parallel' axis shards across v7x's 2 TCs."""
    b8 = _round_up(B, SUBLANE)
    tile = min(MAX_B_TILE, b8)
    if b8 > SUBLANE and b8 // tile < 2:
        tile = _round_up((b8 + 1) // 2, SUBLANE)
    return tile, _round_up(b8, tile)


def _vmem_limit_bytes():
    """Generation-aware VMEM budget: ~7/8 of physical, capped at 100 MiB
    (=> ~100 MiB on v5e/v6e's 128 MiB, ~56 MiB on v7x's 64 MiB)."""
    try:
        cap = int(pltpu.get_tpu_info().vmem_capacity_bytes)
    except Exception:
        cap = 64 * 1024 * 1024
    return int(min(cap - cap // 8, 100 * 1024 * 1024))


def _nmt_decoder_kernel(T_BLK,
                        gi_ref, enc_ref, encT_ref, hinit_ref, embT_ref,
                        wihcT_ref, whhT_ref, bhh_ref,
                        wclsT_ref, bcls_ref, smask_ref, vmask_ref,
                        out_ref, att_ref,
                        h_sc, ctx_sc):
    Bt, H = h_sc.shape
    t_blk = pl.program_id(1)

    # ---- recurrence init (once per batch block) ------------------------------
    @pl.when(t_blk == 0)
    def _():
        h_sc[...] = hinit_ref[...]
        ctx_sc[...] = jnp.zeros_like(ctx_sc)

    # Hoisted loads (constant across the fused timesteps).
    enc = enc_ref[...]            # (Bt, S_pad, H) bf16  (ctx contraction layout)
    encT = encT_ref[...]          # (Bt, H, S_pad) bf16  (scores layout: no XLU transpose)
    embT = embT_ref[...]          # (E, V_pad)     bf16
    wihcT = wihcT_ref[...]        # (H, 3H)        bf16
    whhT = whhT_ref[...]          # (H, 3H)        bf16
    bhh = bhh_ref[...]            # (1, 3H)        f32
    wclsT = wclsT_ref[...]        # (H, E)         bf16
    bcls = bcls_ref[...]          # (1, E)         f32
    s_mask = smask_ref[...]       # (1, S_pad)     f32  {0, NEG_BIG}
    v_mask = vmask_ref[...]       # (1, V_pad)     f32  {0, NEG_BIG}

    h = h_sc[...]                 # (Bt, H) f32
    ctx = ctx_sc[...]             # (Bt, H) f32

    # Statically unrolled fused-timestep loop: only h/ctx are loop-carried, so
    # the scheduler can overlap step t's tail with step t+1's GRU.
    for tt in range(T_BLK):
        # ---- GRUCell (PyTorch gate order r, z, n) ----------------------------
        # Input-side embedding pre-activation (incl. b_ih) was hoisted to one
        # wrapper GEMM and streamed in as bf16.
        gi = (gi_ref[tt].astype(jnp.float32)
              + jnp.dot(ctx.astype(jnp.bfloat16), wihcT,
                        preferred_element_type=jnp.float32))            # (Bt, 3H)
        gh = jnp.dot(h.astype(jnp.bfloat16), whhT,
                     preferred_element_type=jnp.float32) + bhh          # (Bt, 3H)
        r = jax.nn.sigmoid(gi[:, 0:H] + gh[:, 0:H])
        z = jax.nn.sigmoid(gi[:, H:2 * H] + gh[:, H:2 * H])
        n = jnp.tanh(gi[:, 2 * H:3 * H] + r * gh[:, 2 * H:3 * H])
        h = (1.0 - z) * n + z * h                                        # (Bt, H)

        # ---- dot-product attention (MXU, q-length 1; pre-transposed enc) -----
        scores = jnp.einsum('bqh,bhk->bqk',
                            h[:, None, :].astype(jnp.bfloat16), encT,
                            preferred_element_type=jnp.float32)[:, 0, :]  # (Bt, S_pad)
        scores = scores + s_mask                                          # additive pad mask
        m = jnp.max(scores, axis=-1, keepdims=True)
        e = jnp.exp(scores - m)
        denom = jnp.sum(e, axis=-1, keepdims=True)
        inv = pl.reciprocal(denom, approx=True)                           # EUP
        inv = inv * (2.0 - denom * inv)                                   # Newton step on (Bt,1)
        p_attn = e * inv                                                  # (Bt, S_pad)
        ctx = jnp.einsum('bqk,bkh->bqh',
                         p_attn[:, None, :].astype(jnp.bfloat16), enc,
                         preferred_element_type=jnp.float32)[:, 0, :]     # (Bt, H)

        # ---- classifier (eval-mode dropout == identity) + vocab similarity ---
        emb_pred = (jnp.dot(h.astype(jnp.bfloat16), wclsT,
                            preferred_element_type=jnp.float32) + bcls)   # (Bt, E)
        zs = jnp.dot(emb_pred.astype(jnp.bfloat16), embT,
                     preferred_element_type=jnp.float32)                  # (Bt, V_pad)
        zs = zs + v_mask                                                  # additive pad mask

        # ---- Sparsemax(dim=-1): bisection on tau + exact refinement ----------
        zmax = jnp.max(zs, axis=-1, keepdims=True)
        lo = zmax - 1.0            # f(lo) >= 0
        hi = zmax                  # f(hi)  = -1
        for _ in range(BISECT_ITERS):
            mid = 0.5 * (lo + hi)
            f = jnp.sum(jnp.maximum(zs - mid, 0.0), axis=-1, keepdims=True) - 1.0
            go_up = f > 0.0
            lo = jnp.where(go_up, mid, lo)
            hi = jnp.where(go_up, hi, mid)
        tau = 0.5 * (lo + hi)
        for _ in range(REFINE_ITERS):
            support = (zs >= tau).astype(jnp.float32)
            k = jnp.maximum(jnp.sum(support, axis=-1, keepdims=True), 1.0)
            ssum = jnp.sum(zs * support, axis=-1, keepdims=True)
            tau = (ssum - 1.0) / k          # (Bt,1) divide: negligible
        p_out = jnp.maximum(zs - tau, 0.0)                                # (Bt, V_pad)

        # ---- emit this timestep ----------------------------------------------
        out_ref[tt] = p_out
        att_ref[tt] = p_attn

    # ---- carry recurrence across grid steps -----------------------------------
    h_sc[...] = h
    ctx_sc[...] = ctx


@jax.jit
def nmt_decoder_forward(params, encoder_state, initial_hidden_state, target_sequence):
    """Eval-mode forward (sample_probability=0.0, training_mode=False).

    Returns (output_vectors (B, T, V), stacked_attentions (B, S, T))."""
    B, S, H = encoder_state.shape
    T = target_sequence.shape[1]
    V, E = params["embedding"].shape

    B_TILE, B_pad = _choose_batch_tiling(B)
    n_b = B_pad // B_TILE
    T_BLK = min(MAX_T_BLK, T)
    T_pad = _round_up(T, T_BLK)
    n_t = T_pad // T_BLK
    S_pad = _round_up(S, LANE)
    V_pad = _round_up(V, LANE)

    emb = params["embedding"].astype(jnp.float32)
    w_ih = params["gru_w_ih"]                       # (3H, E+H): [embedding | context] cols

    # --- hoisted (non-recurrent) work: one big GEMM instead of T tiny ones ----
    tgt_tm = jnp.transpose(target_sequence.astype(jnp.int32), (1, 0))      # (T, B)
    y_emb = jnp.take(emb, tgt_tm, axis=0)                                  # (T, B, E)
    gi_emb = (jnp.einsum('tbe,ge->tbg', y_emb, w_ih[:, :E])
              + params["gru_b_ih"])                                        # (T, B, 3H)
    h_init = (initial_hidden_state.astype(jnp.float32)
              @ params["hidden_map_w"].T + params["hidden_map_b"])         # (B, H)

    # --- pad to TPU-friendly sublane/lane sizes --------------------------------
    gi_emb_p = jnp.pad(gi_emb, ((0, T_pad - T), (0, B_pad - B), (0, 0))
                       ).astype(jnp.bfloat16)                              # (T_pad,B_pad,3H)
    enc_p = jnp.pad(encoder_state.astype(jnp.float32),
                    ((0, B_pad - B), (0, S_pad - S), (0, 0))).astype(jnp.bfloat16)
    encT_p = jnp.swapaxes(enc_p, 1, 2)                                     # (B_pad,H,S_pad)
    h_init_p = jnp.pad(h_init, ((0, B_pad - B), (0, 0))).astype(jnp.float32)
    embT_p = jnp.pad(emb, ((0, V_pad - V), (0, 0))).T.astype(jnp.bfloat16)  # (E, V_pad)

    wihcT = w_ih[:, E:].T.astype(jnp.bfloat16)                  # (H, 3H)
    whhT = params["gru_w_hh"].T.astype(jnp.bfloat16)            # (H, 3H)
    bhh = params["gru_b_hh"][None, :].astype(jnp.float32)       # (1, 3H)
    wclsT = params["classifier_w"].T.astype(jnp.bfloat16)       # (H, E)
    bcls = params["classifier_b"][None, :].astype(jnp.float32)  # (1, E)
    s_mask = jnp.where(jnp.arange(S_pad) < S, 0.0, NEG_BIG
                       ).astype(jnp.float32)[None, :]           # (1, S_pad)
    v_mask = jnp.where(jnp.arange(V_pad) < V, 0.0, NEG_BIG
                       ).astype(jnp.float32)[None, :]           # (1, V_pad)

    kernel = functools.partial(_nmt_decoder_kernel, T_BLK)

    # Constant-index operands: single-buffered (re-fetched at most once per batch block).
    def const(shape):
        return pl.BlockSpec(shape, lambda b, t: tuple(0 for _ in shape),
                            pipeline_mode=pl.Buffered(1))

    grid_spec = pltpu.PrefetchScalarGridSpec(
        num_scalar_prefetch=0,
        grid=(n_b, n_t),
        in_specs=[
            pl.BlockSpec((T_BLK, B_TILE, 3 * H), lambda b, t: (t, b, 0)),    # gi_emb (bf16)
            pl.BlockSpec((B_TILE, S_pad, H), lambda b, t: (b, 0, 0),
                         pipeline_mode=pl.Buffered(1)),                      # encoder
            pl.BlockSpec((B_TILE, H, S_pad), lambda b, t: (b, 0, 0),
                         pipeline_mode=pl.Buffered(1)),                      # encoder^T
            pl.BlockSpec((B_TILE, H), lambda b, t: (b, 0),
                         pipeline_mode=pl.Buffered(1)),                      # h_init
            const((E, V_pad)),                                               # emb^T
            const((H, 3 * H)),                                               # W_ih (ctx)^T
            const((H, 3 * H)),                                               # W_hh^T
            const((1, 3 * H)),                                               # b_hh
            const((H, E)),                                                   # W_cls^T
            const((1, E)),                                                   # b_cls
            const((1, S_pad)),                                               # seq pad mask
            const((1, V_pad)),                                               # vocab pad mask
        ],
        out_specs=[
            pl.BlockSpec((T_BLK, B_TILE, V_pad), lambda b, t: (t, b, 0)),
            pl.BlockSpec((T_BLK, B_TILE, S_pad), lambda b, t: (t, b, 0)),
        ],
        scratch_shapes=[pltpu.VMEM((B_TILE, H), jnp.float32),   # h_t
                        pltpu.VMEM((B_TILE, H), jnp.float32)],  # context vectors
    )

    out_t, att_t = pl.pallas_call(
        kernel,
        out_shape=(jax.ShapeDtypeStruct((T_pad, B_pad, V_pad), jnp.float32),
                   jax.ShapeDtypeStruct((T_pad, B_pad, S_pad), jnp.float32)),
        grid_spec=grid_spec,
        compiler_params=pltpu.CompilerParams(
            dimension_semantics=("parallel", "arbitrary"),
            vmem_limit_bytes=_vmem_limit_bytes()),
    )(gi_emb_p, enc_p, encT_p, h_init_p, embT_p, wihcT, whhT, bhh, wclsT, bcls,
      s_mask, v_mask)

    # Slice padding away BEFORE the transposes (cuts the XLA transpose traffic).
    output_vectors = jnp.transpose(out_t[:T, :B, :V], (1, 0, 2))      # (B, T, V)
    stacked_attentions = jnp.transpose(att_t[:T, :B, :S], (1, 2, 0))  # (B, S, T)
    return output_vectors, stacked_attentions


def init_params(key, num_embeddings, embedding_size, rnn_hidden_size):
    V, E, H = num_embeddings, embedding_size, rnn_hidden_size
    ks = jax.random.split(key, 9)
    sc = H ** -0.5

    def u(k, shape):
        return jax.random.uniform(k, shape, jnp.float32, -sc, sc)

    emb = jax.random.normal(ks[0], (V, E), jnp.float32) * 0.5
    emb = emb.at[0].set(0.0)  # padding_idx=0 (frozen embedding)
    return {
        "embedding": emb,
        "hidden_map_w": u(ks[1], (H, H)),
        "hidden_map_b": u(ks[2], (H,)),
        "gru_w_ih": u(ks[3], (3 * H, E + H)),
        "gru_w_hh": u(ks[4], (3 * H, H)),
        "gru_b_ih": u(ks[5], (3 * H,)),
        "gru_b_hh": u(ks[6], (3 * H,)),
        "classifier_w": u(ks[7], (E, H)),
        "classifier_b": u(ks[8], (E,)),
    }


if __name__ == "__main__":
    B, S, T = 2, 8, 6
    H, E, V = 32, 32, 32            # rnn_hidden_size, embedding_size, num_embeddings
    # bos_index is irrelevant under full teacher forcing (sample_probability=0.0)

    key = jax.random.PRNGKey(0)
    k_p, k_enc, k_h0, k_tgt = jax.random.split(key, 4)
    params = init_params(k_p, V, E, H)
    encoder_state = jax.random.normal(k_enc, (B, S, H), jnp.float32)
    initial_hidden_state = jax.random.normal(k_h0, (B, H), jnp.float32)
    target_sequence = jax.random.randint(k_tgt, (B, T), 1, V).astype(jnp.int32)

    out_vecs, attn = nmt_decoder_forward(params, encoder_state,
                                         initial_hidden_state, target_sequence)
    out_vecs, attn = jax.block_until_ready((out_vecs, attn))

    out_np = np.asarray(out_vecs)
    attn_np = np.asarray(attn)
    assert out_np.shape == (B, T, V), out_np.shape
    assert attn_np.shape == (B, S, T), attn_np.shape
    assert np.all(np.isfinite(out_np)) and np.all(np.isfinite(attn_np))
    # Sparsemax rows and softmax attention columns are probability simplices.
    assert np.allclose(out_np.sum(axis=-1), 1.0, atol=1e-3)
    assert np.allclose(attn_np.sum(axis=1), 1.0, atol=1e-3)
    assert np.all(out_np >= 0.0) and np.all(attn_np >= 0.0)

    print("KERNEL_OK")
</pallas_src>

<mosaic_0001>
module attributes {stable_mosaic.version = 11 : i64} {
  func.func @_nmt_decoder_kernel(%arg0: i32, %arg1: i32, %arg2: memref<4x8x96xbf16, #tpu.memory_space<vmem>>, %arg3: memref<8x128x32xbf16, #tpu.memory_space<vmem>>, %arg4: memref<8x32x128xbf16, #tpu.memory_space<vmem>>, %arg5: memref<8x32xf32, #tpu.memory_space<vmem>>, %arg6: memref<32x128xbf16, #tpu.memory_space<vmem>>, %arg7: memref<32x96xbf16, #tpu.memory_space<vmem>>, %arg8: memref<32x96xbf16, #tpu.memory_space<vmem>>, %arg9: memref<1x96xf32, #tpu.memory_space<vmem>>, %arg10: memref<32x32xbf16, #tpu.memory_space<vmem>>, %arg11: memref<1x32xf32, #tpu.memory_space<vmem>>, %arg12: memref<1x128xf32, #tpu.memory_space<vmem>>, %arg13: memref<1x128xf32, #tpu.memory_space<vmem>>, %arg14: memref<4x8x128xf32, #tpu.memory_space<vmem>>, %arg15: memref<4x8x128xf32, #tpu.memory_space<vmem>>, %arg16: memref<8x32xf32, #tpu.memory_space<vmem>>, %arg17: memref<8x32xf32, #tpu.memory_space<vmem>>) attributes {dimension_semantics = [#tpu.dimension_semantics<parallel>, #tpu.dimension_semantics<arbitrary>], iteration_bounds = array<i64: 1, 2>, scalar_prefetch = 0 : i64, scratch_operands = 2 : i64, tpu.core_type = #tpu.core_type<tc>, window_params = [{transform_indices = @transform_0, window_bounds = array<i64: 4, 8, 96>}, {pipeline_mode = #tpu.pipeline_mode<synchronous>, transform_indices = @transform_1, window_bounds = array<i64: 8, 128, 32>}, {pipeline_mode = #tpu.pipeline_mode<synchronous>, transform_indices = @transform_2, window_bounds = array<i64: 8, 32, 128>}, {pipeline_mode = #tpu.pipeline_mode<synchronous>, transform_indices = @transform_3, window_bounds = array<i64: 8, 32>}, {pipeline_mode = #tpu.pipeline_mode<synchronous>, transform_indices = @transform_4, window_bounds = array<i64: 32, 128>}, {pipeline_mode = #tpu.pipeline_mode<synchronous>, transform_indices = @transform_5, window_bounds = array<i64: 32, 96>}, {pipeline_mode = #tpu.pipeline_mode<synchronous>, transform_indices = @transform_6, window_bounds = array<i64: 32, 96>}, {pipeline_mode = #tpu.pipeline_mode<synchronous>, transform_indices = @transform_7, window_bounds = array<i64: 1, 96>}, {pipeline_mode = #tpu.pipeline_mode<synchronous>, transform_indices = @transform_8, window_bounds = array<i64: 32, 32>}, {pipeline_mode = #tpu.pipeline_mode<synchronous>, transform_indices = @transform_9, window_bounds = array<i64: 1, 32>}, {pipeline_mode = #tpu.pipeline_mode<synchronous>, transform_indices = @transform_10, window_bounds = array<i64: 1, 128>}, {pipeline_mode = #tpu.pipeline_mode<synchronous>, transform_indices = @transform_11, window_bounds = array<i64: 1, 128>}, {transform_indices = @transform_12, window_bounds = array<i64: 4, 8, 128>}, {transform_indices = @transform_13, window_bounds = array<i64: 4, 8, 128>}]} {
    %c0_i32 = arith.constant 0 : i32
    %0 = arith.cmpi eq, %arg1, %c0_i32 : i32
    %1 = arith.extui %0 : i1 to i32
    %c0_i32_0 = arith.constant 0 : i32
    %2 = arith.cmpi ne, %1, %c0_i32_0 : i32
    scf.if %2 {
      %c0_478 = arith.constant 0 : index
      %c0_479 = arith.constant 0 : index
      %1429 = vector.load %arg5[%c0_478, %c0_479] : memref<8x32xf32, #tpu.memory_space<vmem>>, vector<8x32xf32>
      %c0_480 = arith.constant 0 : index
      %c0_481 = arith.constant 0 : index
      %1430 = vector.load %arg16[%c0_480, %c0_481] : memref<8x32xf32, #tpu.memory_space<vmem>>, vector<8x32xf32>
      tpu.vector_store %arg16[%c0_480, %c0_481], %1429 {strides = array<i32>} : memref<8x32xf32, #tpu.memory_space<vmem>>, vector<8x32xf32>,
      %cst_482 = arith.constant 0.000000e+00 : f32
      %1431 = vector.broadcast %cst_482 : f32 to vector<8x32xf32>
      %c0_483 = arith.constant 0 : index
      %c0_484 = arith.constant 0 : index
      %1432 = vector.load %arg17[%c0_483, %c0_484] : memref<8x32xf32, #tpu.memory_space<vmem>>, vector<8x32xf32>
      tpu.vector_store %arg17[%c0_483, %c0_484], %1431 {strides = array<i32>} : memref<8x32xf32, #tpu.memory_space<vmem>>, vector<8x32xf32>,
    } else {
    }
    %c0 = arith.constant 0 : index
    %c0_1 = arith.constant 0 : index
    %c0_2 = arith.constant 0 : index
    %3 = vector.load %arg3[%c0, %c0_1, %c0_2] : memref<8x128x32xbf16, #tpu.memory_space<vmem>>, vector<8x128x32xbf16>
    %c0_3 = arith.constant 0 : index
    %c0_4 = arith.constant 0 : index
    %c0_5 = arith.constant 0 : index
    %4 = vector.load %arg4[%c0_3, %c0_4, %c0_5] : memref<8x32x128xbf16, #tpu.memory_space<vmem>>, vector<8x32x128xbf16>
    %c0_6 = arith.constant 0 : index
    %c0_7 = arith.constant 0 : index
    %5 = vector.load %arg6[%c0_6, %c0_7] : memref<32x128xbf16, #tpu.memory_space<vmem>>, vector<32x128xbf16>
    %c0_8 = arith.constant 0 : index
    %c0_9 = arith.constant 0 : index
    %6 = vector.load %arg7[%c0_8, %c0_9] : memref<32x96xbf16, #tpu.memory_space<vmem>>, vector<32x96xbf16>
    %c0_10 = arith.constant 0 : index
    %c0_11 = arith.constant 0 : index
    %7 = vector.load %arg8[%c0_10, %c0_11] : memref<32x96xbf16, #tpu.memory_space<vmem>>, vector<32x96xbf16>
    %c0_12 = arith.constant 0 : index
    %c0_13 = arith.constant 0 : index
    %8 = vector.load %arg9[%c0_12, %c0_13] : memref<1x96xf32, #tpu.memory_space<vmem>>, vector<1x96xf32>
    %c0_14 = arith.constant 0 : index
    %c0_15 = arith.constant 0 : index
    %9 = vector.load %arg10[%c0_14, %c0_15] : memref<32x32xbf16, #tpu.memory_space<vmem>>, vector<32x32xbf16>
    %c0_16 = arith.constant 0 : index
    %c0_17 = arith.constant 0 : index
    %10 = vector.load %arg11[%c0_16, %c0_17] : memref<1x32xf32, #tpu.memory_space<vmem>>, vector<1x32xf32>
    %c0_18 = arith.constant 0 : index
    %c0_19 = arith.constant 0 : index
    %11 = vector.load %arg12[%c0_18, %c0_19] : memref<1x128xf32, #tpu.memory_space<vmem>>, vector<1x128xf32>
    %c0_20 = arith.constant 0 : index
    %c0_21 = arith.constant 0 : index
    %12 = vector.load %arg13[%c0_20, %c0_21] : memref<1x128xf32, #tpu.memory_space<vmem>>, vector<1x128xf32>
    %c0_22 = arith.constant 0 : index
    %c0_23 = arith.constant 0 : index
    %13 = vector.load %arg16[%c0_22, %c0_23] : memref<8x32xf32, #tpu.memory_space<vmem>>, vector<8x32xf32>
    %c0_24 = arith.constant 0 : index
    %c0_25 = arith.constant 0 : index
    %14 = vector.load %arg17[%c0_24, %c0_25] : memref<8x32xf32, #tpu.memory_space<vmem>>, vector<8x32xf32>
    %c0_26 = arith.constant 0 : index
    %c0_27 = arith.constant 0 : index
    %c0_28 = arith.constant 0 : index
    %15 = vector.load %arg2[%c0_26, %c0_27, %c0_28] : memref<4x8x96xbf16, #tpu.memory_space<vmem>>, vector<1x8x96xbf16>
    %16 = vector.shape_cast %15 : vector<1x8x96xbf16> to vector<8x96xbf16>
    %17 = arith.extf %16 : vector<8x96xbf16> to vector<8x96xf32>
    %18 = arith.truncf %14 : vector<8x32xf32> to vector<8x32xbf16>
    %cst = arith.constant dense<0.000000e+00> : vector<8x96xf32>
    %19 = tpu.matmul %18, %6, %cst {dimension_numbers = #tpu.dot_dimension_numbers<[1], [0], [0], [1], [0, 0, 1, 1], [], []>} : vector<8x32xbf16>, vector<32x96xbf16>, vector<8x96xf32> -> vector<8x96xf32>
    %20 = arith.addf %17, %19 : vector<8x96xf32>
    %21 = arith.truncf %13 : vector<8x32xf32> to vector<8x32xbf16>
    %cst_29 = arith.constant dense<0.000000e+00> : vector<8x96xf32>
    %22 = tpu.matmul %21, %7, %cst_29 {dimension_numbers = #tpu.dot_dimension_numbers<[1], [0], [0], [1], [0, 0, 1, 1], [], []>} : vector<8x32xbf16>, vector<32x96xbf16>, vector<8x96xf32> -> vector<8x96xf32>
    %23 = vector.broadcast %8 : vector<1x96xf32> to vector<8x96xf32>
    %24 = arith.addf %22, %23 : vector<8x96xf32>
    %25 = vector.extract_strided_slice %20 {offsets = [0, 0], sizes = [8, 32], strides = [1, 1]} : vector<8x96xf32> to vector<8x32xf32>
    %26 = vector.extract_strided_slice %24 {offsets = [0, 0], sizes = [8, 32], strides = [1, 1]} : vector<8x96xf32> to vector<8x32xf32>
    %27 = arith.addf %25, %26 : vector<8x32xf32>
    %28 = arith.negf %27 : vector<8x32xf32>
    %29 = math.exp %28 : vector<8x32xf32>
    %cst_30 = arith.constant 1.000000e+00 : f32
    %30 = vector.broadcast %cst_30 : f32 to vector<8x32xf32>
    %31 = arith.addf %30, %29 : vector<8x32xf32>
    %32 = arith.divf %30, %31 : vector<8x32xf32>
    %33 = vector.extract_strided_slice %20 {offsets = [0, 32], sizes = [8, 32], strides = [1, 1]} : vector<8x96xf32> to vector<8x32xf32>
    %34 = vector.extract_strided_slice %24 {offsets = [0, 32], sizes = [8, 32], strides = [1, 1]} : vector<8x96xf32> to vector<8x32xf32>
    %35 = arith.addf %33, %34 : vector<8x32xf32>
    %36 = arith.negf %35 : vector<8x32xf32>
    %37 = math.exp %36 : vector<8x32xf32>
    %cst_31 = arith.constant 1.000000e+00 : f32
    %38 = vector.broadcast %cst_31 : f32 to vector<8x32xf32>
    %39 = arith.addf %38, %37 : vector<8x32xf32>
    %40 = arith.divf %38, %39 : vector<8x32xf32>
    %41 = vector.extract_strided_slice %20 {offsets = [0, 64], sizes = [8, 32], strides = [1, 1]} : vector<8x96xf32> to vector<8x32xf32>
    %42 = vector.extract_strided_slice %24 {offsets = [0, 64], sizes = [8, 32], strides = [1, 1]} : vector<8x96xf32> to vector<8x32xf32>
    %43 = arith.mulf %32, %42 : vector<8x32xf32>
    %44 = arith.addf %41, %43 : vector<8x32xf32>
    %45 = math.tanh %44 : vector<8x32xf32>
    %cst_32 = arith.constant 1.000000e+00 : f32
    %46 = vector.broadcast %cst_32 : f32 to vector<8x32xf32>
    %47 = arith.subf %46, %40 : vector<8x32xf32>
    %48 = arith.mulf %47, %45 : vector<8x32xf32>
    %49 = arith.mulf %40, %13 : vector<8x32xf32>
    %50 = arith.addf %48, %49 : vector<8x32xf32>
    %51 = vector.shape_cast %50 : vector<8x32xf32> to vector<8x1x32xf32>
    %52 = arith.truncf %51 : vector<8x1x32xf32> to vector<8x1x32xbf16>
    "tpu.trace_start"() <{level = 10 : i32, message = "bqh,bhk->bqk"}> : () -> ()
    %cst_33 = arith.constant dense<0.000000e+00> : vector<8x1x128xf32>
    %53 = tpu.matmul %52, %4, %cst_33 {dimension_numbers = #tpu.dot_dimension_numbers<[2], [1], [1], [2], [0, 0, 0, 1, 1, 2], [0], [0]>} : vector<8x1x32xbf16>, vector<8x32x128xbf16>, vector<8x1x128xf32> -> vector<8x1x128xf32>
    "tpu.trace_stop"() : () -> ()
    %54 = vector.shape_cast %53 : vector<8x1x128xf32> to vector<8x128xf32>
    %55 = vector.broadcast %11 : vector<1x128xf32> to vector<8x128xf32>
    %56 = arith.addf %54, %55 : vector<8x128xf32>
    %cst_34 = arith.constant dense<0xFF800000> : vector<8xf32>
    %57 = vector.multi_reduction <maximumf>, %56, %cst_34 [1] : vector<8x128xf32> to vector<8xf32>
    %58 = vector.shape_cast %57 : vector<8xf32> to vector<8x1xf32>
    %59 = vector.broadcast %58 : vector<8x1xf32> to vector<8x128xf32>
    %60 = arith.subf %56, %59 : vector<8x128xf32>
    %61 = math.exp %60 : vector<8x128xf32>
    %cst_35 = arith.constant dense<0.000000e+00> : vector<8xf32>
    %62 = vector.multi_reduction <add>, %61, %cst_35 [1] : vector<8x128xf32> to vector<8xf32>
    %63 = vector.shape_cast %62 : vector<8xf32> to vector<8x1xf32>
    %64 = tpu.reciprocal %63 {approx = true} : vector<8x1xf32> -> vector<8x1xf32>
    %65 = arith.mulf %63, %64 : vector<8x1xf32>
    %cst_36 = arith.constant 2.000000e+00 : f32
    %66 = vector.broadcast %cst_36 : f32 to vector<8x1xf32>
    %67 = arith.subf %66, %65 : vector<8x1xf32>
    %68 = arith.mulf %64, %67 : vector<8x1xf32>
    %69 = vector.broadcast %68 : vector<8x1xf32> to vector<8x128xf32>
    %70 = arith.mulf %61, %69 : vector<8x128xf32>
    %71 = vector.shape_cast %70 : vector<8x128xf32> to vector<8x1x128xf32>
    %72 = arith.truncf %71 : vector<8x1x128xf32> to vector<8x1x128xbf16>
    "tpu.trace_start"() <{level = 10 : i32, message = "bqk,bkh->bqh"}> : () -> ()
    %cst_37 = arith.constant dense<0.000000e+00> : vector<8x1x32xf32>
    %73 = tpu.matmul %72, %3, %cst_37 {dimension_numbers = #tpu.dot_dimension_numbers<[2], [1], [1], [2], [0, 0, 0, 1, 1, 2], [0], [0]>} : vector<8x1x128xbf16>, vector<8x128x32xbf16>, vector<8x1x32xf32> -> vector<8x1x32xf32>
    "tpu.trace_stop"() : () -> ()
    %74 = vector.shape_cast %73 : vector<8x1x32xf32> to vector<8x32xf32>
    %75 = arith.truncf %50 : vector<8x32xf32> to vector<8x32xbf16>
    %cst_38 = arith.constant dense<0.000000e+00> : vector<8x32xf32>
    %76 = tpu.matmul %75, %9, %cst_38 {dimension_numbers = #tpu.dot_dimension_numbers<[1], [0], [0], [1], [0, 0, 1, 1], [], []>} : vector<8x32xbf16>, vector<32x32xbf16>, vector<8x32xf32> -> vector<8x32xf32>
    %77 = vector.broadcast %10 : vector<1x32xf32> to vector<8x32xf32>
    %78 = arith.addf %76, %77 : vector<8x32xf32>
    %79 = arith.truncf %78 : vector<8x32xf32> to vector<8x32xbf16>
    %cst_39 = arith.constant dense<0.000000e+00> : vector<8x128xf32>
    %80 = tpu.matmul %79, %5, %cst_39 {dimension_numbers = #tpu.dot_dimension_numbers<[1], [0], [0], [1], [0, 0, 1, 1], [], []>} : vector<8x32xbf16>, vector<32x128xbf16>, vector<8x128xf32> -> vector<8x128xf32>
    %81 = vector.broadcast %12 : vector<1x128xf32> to vector<8x128xf32>
    %82 = arith.addf %80, %81 : vector<8x128xf32>
    %cst_40 = arith.constant dense<0xFF800000> : vector<8xf32>
    %83 = vector.multi_reduction <maximumf>, %82, %cst_40 [1] : vector<8x128xf32> to vector<8xf32>
    %84 = vector.shape_cast %83 : vector<8xf32> to vector<8x1xf32>
    %cst_41 = arith.constant 1.000000e+00 : f32
    %85 = vector.broadcast %cst_41 : f32 to vector<8x1xf32>
    %86 = arith.subf %84, %85 : vector<8x1xf32>
    %87 = arith.addf %86, %84 : vector<8x1xf32>
    %cst_42 = arith.constant 5.000000e-01 : f32
    %88 = vector.broadcast %cst_42 : f32 to vector<8x1xf32>
    %89 = arith.mulf %88, %87 : vector<8x1xf32>
    %90 = vector.broadcast %89 : vector<8x1xf32> to vector<8x128xf32>
    %91 = arith.subf %82, %90 : vector<8x128xf32>
    %cst_43 = arith.constant 0.000000e+00 : f32
    %92 = vector.broadcast %cst_43 : f32 to vector<8x128xf32>
    %93 = arith.maximumf %91, %92 : vector<8x128xf32>
    %cst_44 = arith.constant dense<0.000000e+00> : vector<8xf32>
    %94 = vector.multi_reduction <add>, %93, %cst_44 [1] : vector<8x128xf32> to vector<8xf32>
    %95 = vector.shape_cast %94 : vector<8xf32> to vector<8x1xf32>
    %cst_45 = arith.constant 1.000000e+00 : f32
    %96 = vector.broadcast %cst_45 : f32 to vector<8x1xf32>
    %97 = arith.subf %95, %96 : vector<8x1xf32>
    %cst_46 = arith.constant 0.000000e+00 : f32
    %98 = vector.broadcast %cst_46 : f32 to vector<8x1xf32>
    %99 = arith.cmpf ogt, %97, %98 : vector<8x1xf32>
    %100 = arith.select %99, %89, %86 : vector<8x1xi1>, vector<8x1xf32>
    %101 = arith.select %99, %84, %89 : vector<8x1xi1>, vector<8x1xf32>
    %102 = arith.addf %100, %101 : vector<8x1xf32>
    %cst_47 = arith.constant 5.000000e-01 : f32
    %103 = vector.broadcast %cst_47 : f32 to vector<8x1xf32>
    %104 = arith.mulf %103, %102 : vector<8x1xf32>
    %105 = vector.broadcast %104 : vector<8x1xf32> to vector<8x128xf32>
    %106 = arith.subf %82, %105 : vector<8x128xf32>
    %cst_48 = arith.constant 0.000000e+00 : f32
    %107 = vector.broadcast %cst_48 : f32 to vector<8x128xf32>
    %108 = arith.maximumf %106, %107 : vector<8x128xf32>
    %cst_49 = arith.constant dense<0.000000e+00> : vector<8xf32>
    %109 = vector.multi_reduction <add>, %108, %cst_49 [1] : vector<8x128xf32> to vector<8xf32>
    %110 = vector.shape_cast %109 : vector<8xf32> to vector<8x1xf32>
    %cst_50 = arith.constant 1.000000e+00 : f32
    %111 = vector.broadcast %cst_50 : f32 to vector<8x1xf32>
    %112 = arith.subf %110, %111 : vector<8x1xf32>
    %cst_51 = arith.constant 0.000000e+00 : f32
    %113 = vector.broadcast %cst_51 : f32 to vector<8x1xf32>
    %114 = arith.cmpf ogt, %112, %113 : vector<8x1xf32>
    %115 = arith.select %114, %104, %100 : vector<8x1xi1>, vector<8x1xf32>
    %116 = arith.select %114, %101, %104 : vector<8x1xi1>, vector<8x1xf32>
    %117 = arith.addf %115, %116 : vector<8x1xf32>
    %cst_52 = arith.constant 5.000000e-01 : f32
    %118 = vector.broadcast %cst_52 : f32 to vector<8x1xf32>
    %119 = arith.mulf %118, %117 : vector<8x1xf32>
    %120 = vector.broadcast %119 : vector<8x1xf32> to vector<8x128xf32>
    %121 = arith.subf %82, %120 : vector<8x128xf32>
    %cst_53 = arith.constant 0.000000e+00 : f32
    %122 = vector.broadcast %cst_53 : f32 to vector<8x128xf32>
    %123 = arith.maximumf %121, %122 : vector<8x128xf32>
    %cst_54 = arith.constant dense<0.000000e+00> : vector<8xf32>
    %124 = vector.multi_reduction <add>, %123, %cst_54 [1] : vector<8x128xf32> to vector<8xf32>
    %125 = vector.shape_cast %124 : vector<8xf32> to vector<8x1xf32>
    %cst_55 = arith.constant 1.000000e+00 : f32
    %126 = vector.broadcast %cst_55 : f32 to vector<8x1xf32>
    %127 = arith.subf %125, %126 : vector<8x1xf32>
    %cst_56 = arith.constant 0.000000e+00 : f32
    %128 = vector.broadcast %cst_56 : f32 to vector<8x1xf32>
    %129 = arith.cmpf ogt, %127, %128 : vector<8x1xf32>
    %130 = arith.select %129, %119, %115 : vector<8x1xi1>, vector<8x1xf32>
    %131 = arith.select %129, %116, %119 : vector<8x1xi1>, vector<8x1xf32>
    %132 = arith.addf %130, %131 : vector<8x1xf32>
    %cst_57 = arith.constant 5.000000e-01 : f32
    %133 = vector.broadcast %cst_57 : f32 to vector<8x1xf32>
    %134 = arith.mulf %133, %132 : vector<8x1xf32>
    %135 = vector.broadcast %134 : vector<8x1xf32> to vector<8x128xf32>
    %136 = arith.subf %82, %135 : vector<8x128xf32>
    %cst_58 = arith.constant 0.000000e+00 : f32
    %137 = vector.broadcast %cst_58 : f32 to vector<8x128xf32>
    %138 = arith.maximumf %136, %137 : vector<8x128xf32>
    %cst_59 = arith.constant dense<0.000000e+00> : vector<8xf32>
    %139 = vector.multi_reduction <add>, %138, %cst_59 [1] : vector<8x128xf32> to vector<8xf32>
    %140 = vector.shape_cast %139 : vector<8xf32> to vector<8x1xf32>
    %cst_60 = arith.constant 1.000000e+00 : f32
    %141 = vector.broadcast %cst_60 : f32 to vector<8x1xf32>
    %142 = arith.subf %140, %141 : vector<8x1xf32>
    %cst_61 = arith.constant 0.000000e+00 : f32
    %143 = vector.broadcast %cst_61 : f32 to vector<8x1xf32>
    %144 = arith.cmpf ogt, %142, %143 : vector<8x1xf32>
    %145 = arith.select %144, %134, %130 : vector<8x1xi1>, vector<8x1xf32>
    %146 = arith.select %144, %131, %134 : vector<8x1xi1>, vector<8x1xf32>
    %147 = arith.addf %145, %146 : vector<8x1xf32>
    %cst_62 = arith.constant 5.000000e-01 : f32
    %148 = vector.broadcast %cst_62 : f32 to vector<8x1xf32>
    %149 = arith.mulf %148, %147 : vector<8x1xf32>
    %150 = vector.broadcast %149 : vector<8x1xf32> to vector<8x128xf32>
    %151 = arith.subf %82, %150 : vector<8x128xf32>
    %cst_63 = arith.constant 0.000000e+00 : f32
    %152 = vector.broadcast %cst_63 : f32 to vector<8x128xf32>
    %153 = arith.maximumf %151, %152 : vector<8x128xf32>
    %cst_64 = arith.constant dense<0.000000e+00> : vector<8xf32>
    %154 = vector.multi_reduction <add>, %153, %cst_64 [1] : vector<8x128xf32> to vector<8xf32>
    %155 = vector.shape_cast %154 : vector<8xf32> to vector<8x1xf32>
    %cst_65 = arith.constant 1.000000e+00 : f32
    %156 = vector.broadcast %cst_65 : f32 to vector<8x1xf32>
    %157 = arith.subf %155, %156 : vector<8x1xf32>
    %cst_66 = arith.constant 0.000000e+00 : f32
    %158 = vector.broadcast %cst_66 : f32 to vector<8x1xf32>
    %159 = arith.cmpf ogt, %157, %158 : vector<8x1xf32>
    %160 = arith.select %159, %149, %145 : vector<8x1xi1>, vector<8x1xf32>
    %161 = arith.select %159, %146, %149 : vector<8x1xi1>, vector<8x1xf32>
    %162 = arith.addf %160, %161 : vector<8x1xf32>
    %cst_67 = arith.constant 5.000000e-01 : f32
    %163 = vector.broadcast %cst_67 : f32 to vector<8x1xf32>
    %164 = arith.mulf %163, %162 : vector<8x1xf32>
    %165 = vector.broadcast %164 : vector<8x1xf32> to vector<8x128xf32>
    %166 = arith.subf %82, %165 : vector<8x128xf32>
    %cst_68 = arith.constant 0.000000e+00 : f32
    %167 = vector.broadcast %cst_68 : f32 to vector<8x128xf32>
    %168 = arith.maximumf %166, %167 : vector<8x128xf32>
    %cst_69 = arith.constant dense<0.000000e+00> : vector<8xf32>
    %169 = vector.multi_reduction <add>, %168, %cst_69 [1] : vector<8x128xf32> to vector<8xf32>
    %170 = vector.shape_cast %169 : vector<8xf32> to vector<8x1xf32>
    %cst_70 = arith.constant 1.000000e+00 : f32
    %171 = vector.broadcast %cst_70 : f32 to vector<8x1xf32>
    %172 = arith.subf %170, %171 : vector<8x1xf32>
    %cst_71 = arith.constant 0.000000e+00 : f32
    %173 = vector.broadcast %cst_71 : f32 to vector<8x1xf32>
    %174 = arith.cmpf ogt, %172, %173 : vector<8x1xf32>
    %175 = arith.select %174, %164, %160 : vector<8x1xi1>, vector<8x1xf32>
    %176 = arith.select %174, %161, %164 : vector<8x1xi1>, vector<8x1xf32>
    %177 = arith.addf %175, %176 : vector<8x1xf32>
    %cst_72 = arith.constant 5.000000e-01 : f32
    %178 = vector.broadcast %cst_72 : f32 to vector<8x1xf32>
    %179 = arith.mulf %178, %177 : vector<8x1xf32>
    %180 = vector.broadcast %179 : vector<8x1xf32> to vector<8x128xf32>
    %181 = arith.subf %82, %180 : vector<8x128xf32>
    %cst_73 = arith.constant 0.000000e+00 : f32
    %182 = vector.broadcast %cst_73 : f32 to vector<8x128xf32>
    %183 = arith.maximumf %181, %182 : vector<8x128xf32>
    %cst_74 = arith.constant dense<0.000000e+00> : vector<8xf32>
    %184 = vector.multi_reduction <add>, %183, %cst_74 [1] : vector<8x128xf32> to vector<8xf32>
    %185 = vector.shape_cast %184 : vector<8xf32> to vector<8x1xf32>
    %cst_75 = arith.constant 1.000000e+00 : f32
    %186 = vector.broadcast %cst_75 : f32 to vector<8x1xf32>
    %187 = arith.subf %185, %186 : vector<8x1xf32>
    %cst_76 = arith.constant 0.000000e+00 : f32
    %188 = vector.broadcast %cst_76 : f32 to vector<8x1xf32>
    %189 = arith.cmpf ogt, %187, %188 : vector<8x1xf32>
    %190 = arith.select %189, %179, %175 : vector<8x1xi1>, vector<8x1xf32>
    %191 = arith.select %189, %176, %179 : vector<8x1xi1>, vector<8x1xf32>
    %192 = arith.addf %190, %191 : vector<8x1xf32>
    %cst_77 = arith.constant 5.000000e-01 : f32
    %193 = vector.broadcast %cst_77 : f32 to vector<8x1xf32>
    %194 = arith.mulf %193, %192 : vector<8x1xf32>
    %195 = vector.broadcast %194 : vector<8x1xf32> to vector<8x128xf32>
    %196 = arith.subf %82, %195 : vector<8x128xf32>
    %cst_78 = arith.constant 0.000000e+00 : f32
    %197 = vector.broadcast %cst_78 : f32 to vector<8x128xf32>
    %198 = arith.maximumf %196, %197 : vector<8x128xf32>
    %cst_79 = arith.constant dense<0.000000e+00> : vector<8xf32>
    %199 = vector.multi_reduction <add>, %198, %cst_79 [1] : vector<8x128xf32> to vector<8xf32>
    %200 = vector.shape_cast %199 : vector<8xf32> to vector<8x1xf32>
    %cst_80 = arith.constant 1.000000e+00 : f32
    %201 = vector.broadcast %cst_80 : f32 to vector<8x1xf32>
    %202 = arith.subf %200, %201 : vector<8x1xf32>
    %cst_81 = arith.constant 0.000000e+00 : f32
    %203 = vector.broadcast %cst_81 : f32 to vector<8x1xf32>
    %204 = arith.cmpf ogt, %202, %203 : vector<8x1xf32>
    %205 = arith.select %204, %194, %190 : vector<8x1xi1>, vector<8x1xf32>
    %206 = arith.select %204, %191, %194 : vector<8x1xi1>, vector<8x1xf32>
    %207 = arith.addf %205, %206 : vector<8x1xf32>
    %cst_82 = arith.constant 5.000000e-01 : f32
    %208 = vector.broadcast %cst_82 : f32 to vector<8x1xf32>
    %209 = arith.mulf %208, %207 : vector<8x1xf32>
    %210 = vector.broadcast %209 : vector<8x1xf32> to vector<8x128xf32>
    %211 = arith.subf %82, %210 : vector<8x128xf32>
    %cst_83 = arith.constant 0.000000e+00 : f32
    %212 = vector.broadcast %cst_83 : f32 to vector<8x128xf32>
    %213 = arith.maximumf %211, %212 : vector<8x128xf32>
    %cst_84 = arith.constant dense<0.000000e+00> : vector<8xf32>
    %214 = vector.multi_reduction <add>, %213, %cst_84 [1] : vector<8x128xf32> to vector<8xf32>
    %215 = vector.shape_cast %214 : vector<8xf32> to vector<8x1xf32>
    %cst_85 = arith.constant 1.000000e+00 : f32
    %216 = vector.broadcast %cst_85 : f32 to vector<8x1xf32>
    %217 = arith.subf %215, %216 : vector<8x1xf32>
    %cst_86 = arith.constant 0.000000e+00 : f32
    %218 = vector.broadcast %cst_86 : f32 to vector<8x1xf32>
    %219 = arith.cmpf ogt, %217, %218 : vector<8x1xf32>
    %220 = arith.select %219, %209, %205 : vector<8x1xi1>, vector<8x1xf32>
    %221 = arith.select %219, %206, %209 : vector<8x1xi1>, vector<8x1xf32>
    %222 = arith.addf %220, %221 : vector<8x1xf32>
    %cst_87 = arith.constant 5.000000e-01 : f32
    %223 = vector.broadcast %cst_87 : f32 to vector<8x1xf32>
    %224 = arith.mulf %223, %222 : vector<8x1xf32>
    %225 = vector.broadcast %224 : vector<8x1xf32> to vector<8x128xf32>
    %226 = arith.subf %82, %225 : vector<8x128xf32>
    %cst_88 = arith.constant 0.000000e+00 : f32
    %227 = vector.broadcast %cst_88 : f32 to vector<8x128xf32>
    %228 = arith.maximumf %226, %227 : vector<8x128xf32>
    %cst_89 = arith.constant dense<0.000000e+00> : vector<8xf32>
    %229 = vector.multi_reduction <add>, %228, %cst_89 [1] : vector<8x128xf32> to vector<8xf32>
    %230 = vector.shape_cast %229 : vector<8xf32> to vector<8x1xf32>
    %cst_90 = arith.constant 1.000000e+00 : f32
    %231 = vector.broadcast %cst_90 : f32 to vector<8x1xf32>
    %232 = arith.subf %230, %231 : vector<8x1xf32>
    %cst_91 = arith.constant 0.000000e+00 : f32
    %233 = vector.broadcast %cst_91 : f32 to vector<8x1xf32>
    %234 = arith.cmpf ogt, %232, %233 : vector<8x1xf32>
    %235 = arith.select %234, %224, %220 : vector<8x1xi1>, vector<8x1xf32>
    %236 = arith.select %234, %221, %224 : vector<8x1xi1>, vector<8x1xf32>
    %237 = arith.addf %235, %236 : vector<8x1xf32>
    %cst_92 = arith.constant 5.000000e-01 : f32
    %238 = vector.broadcast %cst_92 : f32 to vector<8x1xf32>
    %239 = arith.mulf %238, %237 : vector<8x1xf32>
    %240 = vector.broadcast %239 : vector<8x1xf32> to vector<8x128xf32>
    %241 = arith.subf %82, %240 : vector<8x128xf32>
    %cst_93 = arith.constant 0.000000e+00 : f32
    %242 = vector.broadcast %cst_93 : f32 to vector<8x128xf32>
    %243 = arith.maximumf %241, %242 : vector<8x128xf32>
    %cst_94 = arith.constant dense<0.000000e+00> : vector<8xf32>
    %244 = vector.multi_reduction <add>, %243, %cst_94 [1] : vector<8x128xf32> to vector<8xf32>
    %245 = vector.shape_cast %244 : vector<8xf32> to vector<8x1xf32>
    %cst_95 = arith.constant 1.000000e+00 : f32
    %246 = vector.broadcast %cst_95 : f32 to vector<8x1xf32>
    %247 = arith.subf %245, %246 : vector<8x1xf32>
    %cst_96 = arith.constant 0.000000e+00 : f32
    %248 = vector.broadcast %cst_96 : f32 to vector<8x1xf32>
    %249 = arith.cmpf ogt, %247, %248 : vector<8x1xf32>
    %250 = arith.select %249, %239, %235 : vector<8x1xi1>, vector<8x1xf32>
    %251 = arith.select %249, %236, %239 : vector<8x1xi1>, vector<8x1xf32>
    %252 = arith.addf %250, %251 : vector<8x1xf32>
    %cst_97 = arith.constant 5.000000e-01 : f32
    %253 = vector.broadcast %cst_97 : f32 to vector<8x1xf32>
    %254 = arith.mulf %253, %252 : vector<8x1xf32>
    %255 = vector.broadcast %254 : vector<8x1xf32> to vector<8x128xf32>
    %256 = arith.subf %82, %255 : vector<8x128xf32>
    %cst_98 = arith.constant 0.000000e+00 : f32
    %257 = vector.broadcast %cst_98 : f32 to vector<8x128xf32>
    %258 = arith.maximumf %256, %257 : vector<8x128xf32>
    %cst_99 = arith.constant dense<0.000000e+00> : vector<8xf32>
    %259 = vector.multi_reduction <add>, %258, %cst_99 [1] : vector<8x128xf32> to vector<8xf32>
    %260 = vector.shape_cast %259 : vector<8xf32> to vector<8x1xf32>
    %cst_100 = arith.constant 1.000000e+00 : f32
    %261 = vector.broadcast %cst_100 : f32 to vector<8x1xf32>
    %262 = arith.subf %260, %261 : vector<8x1xf32>
    %cst_101 = arith.constant 0.000000e+00 : f32
    %263 = vector.broadcast %cst_101 : f32 to vector<8x1xf32>
    %264 = arith.cmpf ogt, %262, %263 : vector<8x1xf32>
    %265 = arith.select %264, %254, %250 : vector<8x1xi1>, vector<8x1xf32>
    %266 = arith.select %264, %251, %254 : vector<8x1xi1>, vector<8x1xf32>
    %267 = arith.addf %265, %266 : vector<8x1xf32>
    %cst_102 = arith.constant 5.000000e-01 : f32
    %268 = vector.broadcast %cst_102 : f32 to vector<8x1xf32>
    %269 = arith.mulf %268, %267 : vector<8x1xf32>
    %270 = vector.broadcast %269 : vector<8x1xf32> to vector<8x128xf32>
    %271 = arith.subf %82, %270 : vector<8x128xf32>
    %cst_103 = arith.constant 0.000000e+00 : f32
    %272 = vector.broadcast %cst_103 : f32 to vector<8x128xf32>
    %273 = arith.maximumf %271, %272 : vector<8x128xf32>
    %cst_104 = arith.constant dense<0.000000e+00> : vector<8xf32>
    %274 = vector.multi_reduction <add>, %273, %cst_104 [1] : vector<8x128xf32> to vector<8xf32>
    %275 = vector.shape_cast %274 : vector<8xf32> to vector<8x1xf32>
    %cst_105 = arith.constant 1.000000e+00 : f32
    %276 = vector.broadcast %cst_105 : f32 to vector<8x1xf32>
    %277 = arith.subf %275, %276 : vector<8x1xf32>
    %cst_106 = arith.constant 0.000000e+00 : f32
    %278 = vector.broadcast %cst_106 : f32 to vector<8x1xf32>
    %279 = arith.cmpf ogt, %277, %278 : vector<8x1xf32>
    %280 = arith.select %279, %269, %265 : vector<8x1xi1>, vector<8x1xf32>
    %281 = arith.select %279, %266, %269 : vector<8x1xi1>, vector<8x1xf32>
    %282 = arith.addf %280, %281 : vector<8x1xf32>
    %cst_107 = arith.constant 5.000000e-01 : f32
    %283 = vector.broadcast %cst_107 : f32 to vector<8x1xf32>
    %284 = arith.mulf %283, %282 : vector<8x1xf32>
    %285 = vector.broadcast %284 : vector<8x1xf32> to vector<8x128xf32>
    %286 = arith.subf %82, %285 : vector<8x128xf32>
    %cst_108 = arith.constant 0.000000e+00 : f32
    %287 = vector.broadcast %cst_108 : f32 to vector<8x128xf32>
    %288 = arith.maximumf %286, %287 : vector<8x128xf32>
    %cst_109 = arith.constant dense<0.000000e+00> : vector<8xf32>
    %289 = vector.multi_reduction <add>, %288, %cst_109 [1] : vector<8x128xf32> to vector<8xf32>
    %290 = vector.shape_cast %289 : vector<8xf32> to vector<8x1xf32>
    %cst_110 = arith.constant 1.000000e+00 : f32
    %291 = vector.broadcast %cst_110 : f32 to vector<8x1xf32>
    %292 = arith.subf %290, %291 : vector<8x1xf32>
    %cst_111 = arith.constant 0.000000e+00 : f32
    %293 = vector.broadcast %cst_111 : f32 to vector<8x1xf32>
    %294 = arith.cmpf ogt, %292, %293 : vector<8x1xf32>
    %295 = arith.select %294, %284, %280 : vector<8x1xi1>, vector<8x1xf32>
    %296 = arith.select %294, %281, %284 : vector<8x1xi1>, vector<8x1xf32>
    %297 = arith.addf %295, %296 : vector<8x1xf32>
    %cst_112 = arith.constant 5.000000e-01 : f32
    %298 = vector.broadcast %cst_112 : f32 to vector<8x1xf32>
    %299 = arith.mulf %298, %297 : vector<8x1xf32>
    %300 = vector.broadcast %299 : vector<8x1xf32> to vector<8x128xf32>
    %301 = arith.subf %82, %300 : vector<8x128xf32>
    %cst_113 = arith.constant 0.000000e+00 : f32
    %302 = vector.broadcast %cst_113 : f32 to vector<8x128xf32>
    %303 = arith.maximumf %301, %302 : vector<8x128xf32>
    %cst_114 = arith.constant dense<0.000000e+00> : vector<8xf32>
    %304 = vector.multi_reduction <add>, %303, %cst_114 [1] : vector<8x128xf32> to vector<8xf32>
    %305 = vector.shape_cast %304 : vector<8xf32> to vector<8x1xf32>
    %cst_115 = arith.constant 1.000000e+00 : f32
    %306 = vector.broadcast %cst_115 : f32 to vector<8x1xf32>
    %307 = arith.subf %305, %306 : vector<8x1xf32>
    %cst_116 = arith.constant 0.000000e+00 : f32
    %308 = vector.broadcast %cst_116 : f32 to vector<8x1xf32>
    %309 = arith.cmpf ogt, %307, %308 : vector<8x1xf32>
    %310 = arith.select %309, %299, %295 : vector<8x1xi1>, vector<8x1xf32>
    %311 = arith.select %309, %296, %299 : vector<8x1xi1>, vector<8x1xf32>
    %312 = arith.addf %310, %311 : vector<8x1xf32>
    %cst_117 = arith.constant 5.000000e-01 : f32
    %313 = vector.broadcast %cst_117 : f32 to vector<8x1xf32>
    %314 = arith.mulf %313, %312 : vector<8x1xf32>
    %315 = vector.broadcast %314 : vector<8x1xf32> to vector<8x128xf32>
    %316 = arith.subf %82, %315 : vector<8x128xf32>
    %cst_118 = arith.constant 0.000000e+00 : f32
    %317 = vector.broadcast %cst_118 : f32 to vector<8x128xf32>
    %318 = arith.maximumf %316, %317 : vector<8x128xf32>
    %cst_119 = arith.constant dense<0.000000e+00> : vector<8xf32>
    %319 = vector.multi_reduction <add>, %318, %cst_119 [1] : vector<8x128xf32> to vector<8xf32>
    %320 = vector.shape_cast %319 : vector<8xf32> to vector<8x1xf32>
    %cst_120 = arith.constant 1.000000e+00 : f32
    %321 = vector.broadcast %cst_120 : f32 to vector<8x1xf32>
    %322 = arith.subf %320, %321 : vector<8x1xf32>
    %cst_121 = arith.constant 0.000000e+00 : f32
    %323 = vector.broadcast %cst_121 : f32 to vector<8x1xf32>
    %324 = arith.cmpf ogt, %322, %323 : vector<8x1xf32>
    %325 = arith.select %324, %314, %310 : vector<8x1xi1>, vector<8x1xf32>
    %326 = arith.select %324, %311, %314 : vector<8x1xi1>, vector<8x1xf32>
    %327 = arith.addf %325, %326 : vector<8x1xf32>
    %cst_122 = arith.constant 5.000000e-01 : f32
    %328 = vector.broadcast %cst_122 : f32 to vector<8x1xf32>
    %329 = arith.mulf %328, %327 : vector<8x1xf32>
    %330 = vector.broadcast %329 : vector<8x1xf32> to vector<8x128xf32>
    %331 = arith.cmpf oge, %82, %330 : vector<8x128xf32>
    %332 = arith.extui %331 : vector<8x128xi1> to vector<8x128xi32>
    %333 = arith.sitofp %332 : vector<8x128xi32> to vector<8x128xf32>
    %cst_123 = arith.constant dense<0.000000e+00> : vector<8xf32>
    %334 = vector.multi_reduction <add>, %333, %cst_123 [1] : vector<8x128xf32> to vector<8xf32>
    %335 = vector.shape_cast %334 : vector<8xf32> to vector<8x1xf32>
    %cst_124 = arith.constant 1.000000e+00 : f32
    %336 = vector.broadcast %cst_124 : f32 to vector<8x1xf32>
    %337 = arith.maximumf %335, %336 : vector<8x1xf32>
    %338 = arith.mulf %82, %333 : vector<8x128xf32>
    %cst_125 = arith.constant dense<0.000000e+00> : vector<8xf32>
    %339 = vector.multi_reduction <add>, %338, %cst_125 [1] : vector<8x128xf32> to vector<8xf32>
    %340 = vector.shape_cast %339 : vector<8xf32> to vector<8x1xf32>
    %cst_126 = arith.constant 1.000000e+00 : f32
    %341 = vector.broadcast %cst_126 : f32 to vector<8x1xf32>
    %342 = arith.subf %340, %341 : vector<8x1xf32>
    %343 = arith.divf %342, %337 : vector<8x1xf32>
    %344 = vector.broadcast %343 : vector<8x1xf32> to vector<8x128xf32>
    %345 = arith.cmpf oge, %82, %344 : vector<8x128xf32>
    %346 = arith.extui %345 : vector<8x128xi1> to vector<8x128xi32>
    %347 = arith.sitofp %346 : vector<8x128xi32> to vector<8x128xf32>
    %cst_127 = arith.constant dense<0.000000e+00> : vector<8xf32>
    %348 = vector.multi_reduction <add>, %347, %cst_127 [1] : vector<8x128xf32> to vector<8xf32>
    %349 = vector.shape_cast %348 : vector<8xf32> to vector<8x1xf32>
    %cst_128 = arith.constant 1.000000e+00 : f32
    %350 = vector.broadcast %cst_128 : f32 to vector<8x1xf32>
    %351 = arith.maximumf %349, %350 : vector<8x1xf32>
    %352 = arith.mulf %82, %347 : vector<8x128xf32>
    %cst_129 = arith.constant dense<0.000000e+00> : vector<8xf32>
    %353 = vector.multi_reduction <add>, %352, %cst_129 [1] : vector<8x128xf32> to vector<8xf32>
    %354 = vector.shape_cast %353 : vector<8xf32> to vector<8x1xf32>
    %cst_130 = arith.constant 1.000000e+00 : f32
    %355 = vector.broadcast %cst_130 : f32 to vector<8x1xf32>
    %356 = arith.subf %354, %355 : vector<8x1xf32>
    %357 = arith.divf %356, %351 : vector<8x1xf32>
    %358 = vector.broadcast %357 : vector<8x1xf32> to vector<8x128xf32>
    %359 = arith.subf %82, %358 : vector<8x128xf32>
    %cst_131 = arith.constant 0.000000e+00 : f32
    %360 = vector.broadcast %cst_131 : f32 to vector<8x128xf32>
    %361 = arith.maximumf %359, %360 : vector<8x128xf32>
    %c0_132 = arith.constant 0 : index
    %c0_133 = arith.constant 0 : index
    %c0_134 = arith.constant 0 : index
    %362 = vector.load %arg14[%c0_132, %c0_133, %c0_134] : memref<4x8x128xf32, #tpu.memory_space<vmem>>, vector<1x8x128xf32>
    %363 = vector.shape_cast %362 : vector<1x8x128xf32> to vector<8x128xf32>
    %364 = vector.shape_cast %361 : vector<8x128xf32> to vector<1x8x128xf32>
    tpu.vector_store %arg14[%c0_132, %c0_133, %c0_134], %364 {strides = array<i32>} : memref<4x8x128xf32, #tpu.memory_space<vmem>>, vector<1x8x128xf32>,
    %c0_135 = arith.constant 0 : index
    %c0_136 = arith.constant 0 : index
    %c0_137 = arith.constant 0 : index
    %365 = vector.load %arg15[%c0_135, %c0_136, %c0_137] : memref<4x8x128xf32, #tpu.memory_space<vmem>>, vector<1x8x128xf32>
    %366 = vector.shape_cast %365 : vector<1x8x128xf32> to vector<8x128xf32>
    %367 = vector.shape_cast %70 : vector<8x128xf32> to vector<1x8x128xf32>
    tpu.vector_store %arg15[%c0_135, %c0_136, %c0_137], %367 {strides = array<i32>} : memref<4x8x128xf32, #tpu.memory_space<vmem>>, vector<1x8x128xf32>,
    %c1 = arith.constant 1 : index
    %c0_138 = arith.constant 0 : index
    %c0_139 = arith.constant 0 : index
    %368 = vector.load %arg2[%c1, %c0_138, %c0_139] : memref<4x8x96xbf16, #tpu.memory_space<vmem>>, vector<1x8x96xbf16>
    %369 = vector.shape_cast %368 : vector<1x8x96xbf16> to vector<8x96xbf16>
    %370 = arith.extf %369 : vector<8x96xbf16> to vector<8x96xf32>
    %371 = arith.truncf %74 : vector<8x32xf32> to vector<8x32xbf16>
    %cst_140 = arith.constant dense<0.000000e+00> : vector<8x96xf32>
    %372 = tpu.matmul %371, %6, %cst_140 {dimension_numbers = #tpu.dot_dimension_numbers<[1], [0], [0], [1], [0, 0, 1, 1], [], []>} : vector<8x32xbf16>, vector<32x96xbf16>, vector<8x96xf32> -> vector<8x96xf32>
    %373 = arith.addf %370, %372 : vector<8x96xf32>
    %374 = arith.truncf %50 : vector<8x32xf32> to vector<8x32xbf16>
    %cst_141 = arith.constant dense<0.000000e+00> : vector<8x96xf32>
    %375 = tpu.matmul %374, %7, %cst_141 {dimension_numbers = #tpu.dot_dimension_numbers<[1], [0], [0], [1], [0, 0, 1, 1], [], []>} : vector<8x32xbf16>, vector<32x96xbf16>, vector<8x96xf32> -> vector<8x96xf32>
    %376 = vector.broadcast %8 : vector<1x96xf32> to vector<8x96xf32>
    %377 = arith.addf %375, %376 : vector<8x96xf32>
    %378 = vector.extract_strided_slice %373 {offsets = [0, 0], sizes = [8, 32], strides = [1, 1]} : vector<8x96xf32> to vector<8x32xf32>
    %379 = vector.extract_strided_slice %377 {offsets = [0, 0], sizes = [8, 32], strides = [1, 1]} : vector<8x96xf32> to vector<8x32xf32>
    %380 = arith.addf %378, %379 : vector<8x32xf32>
    %381 = arith.negf %380 : vector<8x32xf32>
    %382 = math.exp %381 : vector<8x32xf32>
    %cst_142 = arith.constant 1.000000e+00 : f32
    %383 = vector.broadcast %cst_142 : f32 to vector<8x32xf32>
    %384 = arith.addf %383, %382 : vector<8x32xf32>
    %385 = arith.divf %383, %384 : vector<8x32xf32>
    %386 = vector.extract_strided_slice %373 {offsets = [0, 32], sizes = [8, 32], strides = [1, 1]} : vector<8x96xf32> to vector<8x32xf32>
    %387 = vector.extract_strided_slice %377 {offsets = [0, 32], sizes = [8, 32], strides = [1, 1]} : vector<8x96xf32> to vector<8x32xf32>
    %388 = arith.addf %386, %387 : vector<8x32xf32>
    %389 = arith.negf %388 : vector<8x32xf32>
    %390 = math.exp %389 : vector<8x32xf32>
    %cst_143 = arith.constant 1.000000e+00 : f32
    %391 = vector.broadcast %cst_143 : f32 to vector<8x32xf32>
    %392 = arith.addf %391, %390 : vector<8x32xf32>
    %393 = arith.divf %391, %392 : vector<8x32xf32>
    %394 = vector.extract_strided_slice %373 {offsets = [0, 64], sizes = [8, 32], strides = [1, 1]} : vector<8x96xf32> to vector<8x32xf32>
    %395 = vector.extract_strided_slice %377 {offsets = [0, 64], sizes = [8, 32], strides = [1, 1]} : vector<8x96xf32> to vector<8x32xf32>
    %396 = arith.mulf %385, %395 : vector<8x32xf32>
    %397 = arith.addf %394, %396 : vector<8x32xf32>
    %398 = math.tanh %397 : vector<8x32xf32>
    %cst_144 = arith.constant 1.000000e+00 : f32
    %399 = vector.broadcast %cst_144 : f32 to vector<8x32xf32>
    %400 = arith.subf %399, %393 : vector<8x32xf32>
    %401 = arith.mulf %400, %398 : vector<8x32xf32>
    %402 = arith.mulf %393, %50 : vector<8x32xf32>
    %403 = arith.addf %401, %402 : vector<8x32xf32>
    %404 = vector.shape_cast %403 : vector<8x32xf32> to vector<8x1x32xf32>
    %405 = arith.truncf %404 : vector<8x1x32xf32> to vector<8x1x32xbf16>
    "tpu.trace_start"() <{level = 10 : i32, message = "bqh,bhk->bqk"}> : () -> ()
    %cst_145 = arith.constant dense<0.000000e+00> : vector<8x1x128xf32>
    %406 = tpu.matmul %405, %4, %cst_145 {dimension_numbers = #tpu.dot_dimension_numbers<[2], [1], [1], [2], [0, 0, 0, 1, 1, 2], [0], [0]>} : vector<8x1x32xbf16>, vector<8x32x128xbf16>, vector<8x1x128xf32> -> vector<8x1x128xf32>
    "tpu.trace_stop"() : () -> ()
    %407 = vector.shape_cast %406 : vector<8x1x128xf32> to vector<8x128xf32>
    %408 = vector.broadcast %11 : vector<1x128xf32> to vector<8x128xf32>
    %409 = arith.addf %407, %408 : vector<8x128xf32>
    %cst_146 = arith.constant dense<0xFF800000> : vector<8xf32>
    %410 = vector.multi_reduction <maximumf>, %409, %cst_146 [1] : vector<8x128xf32> to vector<8xf32>
    %411 = vector.shape_cast %410 : vector<8xf32> to vector<8x1xf32>
    %412 = vector.broadcast %411 : vector<8x1xf32> to vector<8x128xf32>
    %413 = arith.subf %409, %412 : vector<8x128xf32>
    %414 = math.exp %413 : vector<8x128xf32>
    %cst_147 = arith.constant dense<0.000000e+00> : vector<8xf32>
    %415 = vector.multi_reduction <add>, %414, %cst_147 [1] : vector<8x128xf32> to vector<8xf32>
    %416 = vector.shape_cast %415 : vector<8xf32> to vector<8x1xf32>
    %417 = tpu.reciprocal %416 {approx = true} : vector<8x1xf32> -> vector<8x1xf32>
    %418 = arith.mulf %416, %417 : vector<8x1xf32>
    %cst_148 = arith.constant 2.000000e+00 : f32
    %419 = vector.broadcast %cst_148 : f32 to vector<8x1xf32>
    %420 = arith.subf %419, %418 : vector<8x1xf32>
    %421 = arith.mulf %417, %420 : vector<8x1xf32>
    %422 = vector.broadcast %421 : vector<8x1xf32> to vector<8x128xf32>
    %423 = arith.mulf %414, %422 : vector<8x128xf32>
    %424 = vector.shape_cast %423 : vector<8x128xf32> to vector<8x1x128xf32>
    %425 = arith.truncf %424 : vector<8x1x128xf32> to vector<8x1x128xbf16>
    "tpu.trace_start"() <{level = 10 : i32, message = "bqk,bkh->bqh"}> : () -> ()
    %cst_149 = arith.constant dense<0.000000e+00> : vector<8x1x32xf32>
    %426 = tpu.matmul %425, %3, %cst_149 {dimension_numbers = #tpu.dot_dimension_numbers<[2], [1], [1], [2], [0, 0, 0, 1, 1, 2], [0], [0]>} : vector<8x1x128xbf16>, vector<8x128x32xbf16>, vector<8x1x32xf32> -> vector<8x1x32xf32>
    "tpu.trace_stop"() : () -> ()
    %427 = vector.shape_cast %426 : vector<8x1x32xf32> to vector<8x32xf32>
    %428 = arith.truncf %403 : vector<8x32xf32> to vector<8x32xbf16>
    %cst_150 = arith.constant dense<0.000000e+00> : vector<8x32xf32>
    %429 = tpu.matmul %428, %9, %cst_150 {dimension_numbers = #tpu.dot_dimension_numbers<[1], [0], [0], [1], [0, 0, 1, 1], [], []>} : vector<8x32xbf16>, vector<32x32xbf16>, vector<8x32xf32> -> vector<8x32xf32>
    %430 = vector.broadcast %10 : vector<1x32xf32> to vector<8x32xf32>
    %431 = arith.addf %429, %430 : vector<8x32xf32>
    %432 = arith.truncf %431 : vector<8x32xf32> to vector<8x32xbf16>
    %cst_151 = arith.constant dense<0.000000e+00> : vector<8x128xf32>
    %433 = tpu.matmul %432, %5, %cst_151 {dimension_numbers = #tpu.dot_dimension_numbers<[1], [0], [0], [1], [0, 0, 1, 1], [], []>} : vector<8x32xbf16>, vector<32x128xbf16>, vector<8x128xf32> -> vector<8x128xf32>
    %434 = vector.broadcast %12 : vector<1x128xf32> to vector<8x128xf32>
    %435 = arith.addf %433, %434 : vector<8x128xf32>
    %cst_152 = arith.constant dense<0xFF800000> : vector<8xf32>
    %436 = vector.multi_reduction <maximumf>, %435, %cst_152 [1] : vector<8x128xf32> to vector<8xf32>
    %437 = vector.shape_cast %436 : vector<8xf32> to vector<8x1xf32>
    %cst_153 = arith.constant 1.000000e+00 : f32
    %438 = vector.broadcast %cst_153 : f32 to vector<8x1xf32>
    %439 = arith.subf %437, %438 : vector<8x1xf32>
    %440 = arith.addf %439, %437 : vector<8x1xf32>
    %cst_154 = arith.constant 5.000000e-01 : f32
    %441 = vector.broadcast %cst_154 : f32 to vector<8x1xf32>
    %442 = arith.mulf %441, %440 : vector<8x1xf32>
    %443 = vector.broadcast %442 : vector<8x1xf32> to vector<8x128xf32>
    %444 = arith.subf %435, %443 : vector<8x128xf32>
    %cst_155 = arith.constant 0.000000e+00 : f32
    %445 = vector.broadcast %cst_155 : f32 to vector<8x128xf32>
    %446 = arith.maximumf %444, %445 : vector<8x128xf32>
    %cst_156 = arith.constant dense<0.000000e+00> : vector<8xf32>
    %447 = vector.multi_reduction <add>, %446, %cst_156 [1] : vector<8x128xf32> to vector<8xf32>
    %448 = vector.shape_cast %447 : vector<8xf32> to vector<8x1xf32>
    %cst_157 = arith.constant 1.000000e+00 : f32
    %449 = vector.broadcast %cst_157 : f32 to vector<8x1xf32>
    %450 = arith.subf %448, %449 : vector<8x1xf32>
    %cst_158 = arith.constant 0.000000e+00 : f32
    %451 = vector.broadcast %cst_158 : f32 to vector<8x1xf32>
    %452 = arith.cmpf ogt, %450, %451 : vector<8x1xf32>
    %453 = arith.select %452, %442, %439 : vector<8x1xi1>, vector<8x1xf32>
    %454 = arith.select %452, %437, %442 : vector<8x1xi1>, vector<8x1xf32>
    %455 = arith.addf %453, %454 : vector<8x1xf32>
    %cst_159 = arith.constant 5.000000e-01 : f32
    %456 = vector.broadcast %cst_159 : f32 to vector<8x1xf32>
    %457 = arith.mulf %456, %455 : vector<8x1xf32>
    %458 = vector.broadcast %457 : vector<8x1xf32> to vector<8x128xf32>
    %459 = arith.subf %435, %458 : vector<8x128xf32>
    %cst_160 = arith.constant 0.000000e+00 : f32
    %460 = vector.broadcast %cst_160 : f32 to vector<8x128xf32>
    %461 = arith.maximumf %459, %460 : vector<8x128xf32>
    %cst_161 = arith.constant dense<0.000000e+00> : vector<8xf32>
    %462 = vector.multi_reduction <add>, %461, %cst_161 [1] : vector<8x128xf32> to vector<8xf32>
    %463 = vector.shape_cast %462 : vector<8xf32> to vector<8x1xf32>
    %cst_162 = arith.constant 1.000000e+00 : f32
    %464 = vector.broadcast %cst_162 : f32 to vector<8x1xf32>
    %465 = arith.subf %463, %464 : vector<8x1xf32>
    %cst_163 = arith.constant 0.000000e+00 : f32
    %466 = vector.broadcast %cst_163 : f32 to vector<8x1xf32>
    %467 = arith.cmpf ogt, %465, %466 : vector<8x1xf32>
    %468 = arith.select %467, %457, %453 : vector<8x1xi1>, vector<8x1xf32>
    %469 = arith.select %467, %454, %457 : vector<8x1xi1>, vector<8x1xf32>
    %470 = arith.addf %468, %469 : vector<8x1xf32>
    %cst_164 = arith.constant 5.000000e-01 : f32
    %471 = vector.broadcast %cst_164 : f32 to vector<8x1xf32>
    %472 = arith.mulf %471, %470 : vector<8x1xf32>
    %473 = vector.broadcast %472 : vector<8x1xf32> to vector<8x128xf32>
    %474 = arith.subf %435, %473 : vector<8x128xf32>
    %cst_165 = arith.constant 0.000000e+00 : f32
    %475 = vector.broadcast %cst_165 : f32 to vector<8x128xf32>
    %476 = arith.maximumf %474, %475 : vector<8x128xf32>
    %cst_166 = arith.constant dense<0.000000e+00> : vector<8xf32>
    %477 = vector.multi_reduction <add>, %476, %cst_166 [1] : vector<8x128xf32> to vector<8xf32>
    %478 = vector.shape_cast %477 : vector<8xf32> to vector<8x1xf32>
    %cst_167 = arith.constant 1.000000e+00 : f32
    %479 = vector.broadcast %cst_167 : f32 to vector<8x1xf32>
    %480 = arith.subf %478, %479 : vector<8x1xf32>
    %cst_168 = arith.constant 0.000000e+00 : f32
    %481 = vector.broadcast %cst_168 : f32 to vector<8x1xf32>
    %482 = arith.cmpf ogt, %480, %481 : vector<8x1xf32>
    %483 = arith.select %482, %472, %468 : vector<8x1xi1>, vector<8x1xf32>
    %484 = arith.select %482, %469, %472 : vector<8x1xi1>, vector<8x1xf32>
    %485 = arith.addf %483, %484 : vector<8x1xf32>
    %cst_169 = arith.constant 5.000000e-01 : f32
    %486 = vector.broadcast %cst_169 : f32 to vector<8x1xf32>
    %487 = arith.mulf %486, %485 : vector<8x1xf32>
    %488 = vector.broadcast %487 : vector<8x1xf32> to vector<8x128xf32>
    %489 = arith.subf %435, %488 : vector<8x128xf32>
    %cst_170 = arith.constant 0.000000e+00 : f32
    %490 = vector.broadcast %cst_170 : f32 to vector<8x128xf32>
    %491 = arith.maximumf %489, %490 : vector<8x128xf32>
    %cst_171 = arith.constant dense<0.000000e+00> : vector<8xf32>
    %492 = vector.multi_reduction <add>, %491, %cst_171 [1] : vector<8x128xf32> to vector<8xf32>
    %493 = vector.shape_cast %492 : vector<8xf32> to vector<8x1xf32>
    %cst_172 = arith.constant 1.000000e+00 : f32
    %494 = vector.broadcast %cst_172 : f32 to vector<8x1xf32>
    %495 = arith.subf %493, %494 : vector<8x1xf32>
    %cst_173 = arith.constant 0.000000e+00 : f32
    %496 = vector.broadcast %cst_173 : f32 to vector<8x1xf32>
    %497 = arith.cmpf ogt, %495, %496 : vector<8x1xf32>
    %498 = arith.select %497, %487, %483 : vector<8x1xi1>, vector<8x1xf32>
    %499 = arith.select %497, %484, %487 : vector<8x1xi1>, vector<8x1xf32>
    %500 = arith.addf %498, %499 : vector<8x1xf32>
    %cst_174 = arith.constant 5.000000e-01 : f32
    %501 = vector.broadcast %cst_174 : f32 to vector<8x1xf32>
    %502 = arith.mulf %501, %500 : vector<8x1xf32>
    %503 = vector.broadcast %502 : vector<8x1xf32> to vector<8x128xf32>
    %504 = arith.subf %435, %503 : vector<8x128xf32>
    %cst_175 = arith.constant 0.000000e+00 : f32
    %505 = vector.broadcast %cst_175 : f32 to vector<8x128xf32>
    %506 = arith.maximumf %504, %505 : vector<8x128xf32>
    %cst_176 = arith.constant dense<0.000000e+00> : vector<8xf32>
    %507 = vector.multi_reduction <add>, %506, %cst_176 [1] : vector<8x128xf32> to vector<8xf32>
    %508 = vector.shape_cast %507 : vector<8xf32> to vector<8x1xf32>
    %cst_177 = arith.constant 1.000000e+00 : f32
    %509 = vector.broadcast %cst_177 : f32 to vector<8x1xf32>
    %510 = arith.subf %508, %509 : vector<8x1xf32>
    %cst_178 = arith.constant 0.000000e+00 : f32
    %511 = vector.broadcast %cst_178 : f32 to vector<8x1xf32>
    %512 = arith.cmpf ogt, %510, %511 : vector<8x1xf32>
    %513 = arith.select %512, %502, %498 : vector<8x1xi1>, vector<8x1xf32>
    %514 = arith.select %512, %499, %502 : vector<8x1xi1>, vector<8x1xf32>
    %515 = arith.addf %513, %514 : vector<8x1xf32>
    %cst_179 = arith.constant 5.000000e-01 : f32
    %516 = vector.broadcast %cst_179 : f32 to vector<8x1xf32>
    %517 = arith.mulf %516, %515 : vector<8x1xf32>
    %518 = vector.broadcast %517 : vector<8x1xf32> to vector<8x128xf32>
    %519 = arith.subf %435, %518 : vector<8x128xf32>
    %cst_180 = arith.constant 0.000000e+00 : f32
    %520 = vector.broadcast %cst_180 : f32 to vector<8x128xf32>
    %521 = arith.maximumf %519, %520 : vector<8x128xf32>
    %cst_181 = arith.constant dense<0.000000e+00> : vector<8xf32>
    %522 = vector.multi_reduction <add>, %521, %cst_181 [1] : vector<8x128xf32> to vector<8xf32>
    %523 = vector.shape_cast %522 : vector<8xf32> to vector<8x1xf32>
    %cst_182 = arith.constant 1.000000e+00 : f32
    %524 = vector.broadcast %cst_182 : f32 to vector<8x1xf32>
    %525 = arith.subf %523, %524 : vector<8x1xf32>
    %cst_183 = arith.constant 0.000000e+00 : f32
    %526 = vector.broadcast %cst_183 : f32 to vector<8x1xf32>
    %527 = arith.cmpf ogt, %525, %526 : vector<8x1xf32>
    %528 = arith.select %527, %517, %513 : vector<8x1xi1>, vector<8x1xf32>
    %529 = arith.select %527, %514, %517 : vector<8x1xi1>, vector<8x1xf32>
    %530 = arith.addf %528, %529 : vector<8x1xf32>
    %cst_184 = arith.constant 5.000000e-01 : f32
    %531 = vector.broadcast %cst_184 : f32 to vector<8x1xf32>
    %532 = arith.mulf %531, %530 : vector<8x1xf32>
    %533 = vector.broadcast %532 : vector<8x1xf32> to vector<8x128xf32>
    %534 = arith.subf %435, %533 : vector<8x128xf32>
    %cst_185 = arith.constant 0.000000e+00 : f32
    %535 = vector.broadcast %cst_185 : f32 to vector<8x128xf32>
    %536 = arith.maximumf %534, %535 : vector<8x128xf32>
    %cst_186 = arith.constant dense<0.000000e+00> : vector<8xf32>
    %537 = vector.multi_reduction <add>, %536, %cst_186 [1] : vector<8x128xf32> to vector<8xf32>
    %538 = vector.shape_cast %537 : vector<8xf32> to vector<8x1xf32>
    %cst_187 = arith.constant 1.000000e+00 : f32
    %539 = vector.broadcast %cst_187 : f32 to vector<8x1xf32>
    %540 = arith.subf %538, %539 : vector<8x1xf32>
    %cst_188 = arith.constant 0.000000e+00 : f32
    %541 = vector.broadcast %cst_188 : f32 to vector<8x1xf32>
    %542 = arith.cmpf ogt, %540, %541 : vector<8x1xf32>
    %543 = arith.select %542, %532, %528 : vector<8x1xi1>, vector<8x1xf32>
    %544 = arith.select %542, %529, %532 : vector<8x1xi1>, vector<8x1xf32>
    %545 = arith.addf %543, %544 : vector<8x1xf32>
    %cst_189 = arith.constant 5.000000e-01 : f32
    %546 = vector.broadcast %cst_189 : f32 to vector<8x1xf32>
    %547 = arith.mulf %546, %545 : vector<8x1xf32>
    %548 = vector.broadcast %547 : vector<8x1xf32> to vector<8x128xf32>
    %549 = arith.subf %435, %548 : vector<8x128xf32>
    %cst_190 = arith.constant 0.000000e+00 : f32
    %550 = vector.broadcast %cst_190 : f32 to vector<8x128xf32>
    %551 = arith.maximumf %549, %550 : vector<8x128xf32>
    %cst_191 = arith.constant dense<0.000000e+00> : vector<8xf32>
    %552 = vector.multi_reduction <add>, %551, %cst_191 [1] : vector<8x128xf32> to vector<8xf32>
    %553 = vector.shape_cast %552 : vector<8xf32> to vector<8x1xf32>
    %cst_192 = arith.constant 1.000000e+00 : f32
    %554 = vector.broadcast %cst_192 : f32 to vector<8x1xf32>
    %555 = arith.subf %553, %554 : vector<8x1xf32>
    %cst_193 = arith.constant 0.000000e+00 : f32
    %556 = vector.broadcast %cst_193 : f32 to vector<8x1xf32>
    %557 = arith.cmpf ogt, %555, %556 : vector<8x1xf32>
    %558 = arith.select %557, %547, %543 : vector<8x1xi1>, vector<8x1xf32>
    %559 = arith.select %557, %544, %547 : vector<8x1xi1>, vector<8x1xf32>
    %560 = arith.addf %558, %559 : vector<8x1xf32>
    %cst_194 = arith.constant 5.000000e-01 : f32
    %561 = vector.broadcast %cst_194 : f32 to vector<8x1xf32>
    %562 = arith.mulf %561, %560 : vector<8x1xf32>
    %563 = vector.broadcast %562 : vector<8x1xf32> to vector<8x128xf32>
    %564 = arith.subf %435, %563 : vector<8x128xf32>
    %cst_195 = arith.constant 0.000000e+00 : f32
    %565 = vector.broadcast %cst_195 : f32 to vector<8x128xf32>
    %566 = arith.maximumf %564, %565 : vector<8x128xf32>
    %cst_196 = arith.constant dense<0.000000e+00> : vector<8xf32>
    %567 = vector.multi_reduction <add>, %566, %cst_196 [1] : vector<8x128xf32> to vector<8xf32>
    %568 = vector.shape_cast %567 : vector<8xf32> to vector<8x1xf32>
    %cst_197 = arith.constant 1.000000e+00 : f32
    %569 = vector.broadcast %cst_197 : f32 to vector<8x1xf32>
    %570 = arith.subf %568, %569 : vector<8x1xf32>
    %cst_198 = arith.constant 0.000000e+00 : f32
    %571 = vector.broadcast %cst_198 : f32 to vector<8x1xf32>
    %572 = arith.cmpf ogt, %570, %571 : vector<8x1xf32>
    %573 = arith.select %572, %562, %558 : vector<8x1xi1>, vector<8x1xf32>
    %574 = arith.select %572, %559, %562 : vector<8x1xi1>, vector<8x1xf32>
    %575 = arith.addf %573, %574 : vector<8x1xf32>
    %cst_199 = arith.constant 5.000000e-01 : f32
    %576 = vector.broadcast %cst_199 : f32 to vector<8x1xf32>
    %577 = arith.mulf %576, %575 : vector<8x1xf32>
    %578 = vector.broadcast %577 : vector<8x1xf32> to vector<8x128xf32>
    %579 = arith.subf %435, %578 : vector<8x128xf32>
    %cst_200 = arith.constant 0.000000e+00 : f32
    %580 = vector.broadcast %cst_200 : f32 to vector<8x128xf32>
    %581 = arith.maximumf %579, %580 : vector<8x128xf32>
    %cst_201 = arith.constant dense<0.000000e+00> : vector<8xf32>
    %582 = vector.multi_reduction <add>, %581, %cst_201 [1] : vector<8x128xf32> to vector<8xf32>
    %583 = vector.shape_cast %582 : vector<8xf32> to vector<8x1xf32>
    %cst_202 = arith.constant 1.000000e+00 : f32
    %584 = vector.broadcast %cst_202 : f32 to vector<8x1xf32>
    %585 = arith.subf %583, %584 : vector<8x1xf32>
    %cst_203 = arith.constant 0.000000e+00 : f32
    %586 = vector.broadcast %cst_203 : f32 to vector<8x1xf32>
    %587 = arith.cmpf ogt, %585, %586 : vector<8x1xf32>
    %588 = arith.select %587, %577, %573 : vector<8x1xi1>, vector<8x1xf32>
    %589 = arith.select %587, %574, %577 : vector<8x1xi1>, vector<8x1xf32>
    %590 = arith.addf %588, %589 : vector<8x1xf32>
    %cst_204 = arith.constant 5.000000e-01 : f32
    %591 = vector.broadcast %cst_204 : f32 to vector<8x1xf32>
    %592 = arith.mulf %591, %590 : vector<8x1xf32>
    %593 = vector.broadcast %592 : vector<8x1xf32> to vector<8x128xf32>
    %594 = arith.subf %435, %593 : vector<8x128xf32>
    %cst_205 = arith.constant 0.000000e+00 : f32
    %595 = vector.broadcast %cst_205 : f32 to vector<8x128xf32>
    %596 = arith.maximumf %594, %595 : vector<8x128xf32>
    %cst_206 = arith.constant dense<0.000000e+00> : vector<8xf32>
    %597 = vector.multi_reduction <add>, %596, %cst_206 [1] : vector<8x128xf32> to vector<8xf32>
    %598 = vector.shape_cast %597 : vector<8xf32> to vector<8x1xf32>
    %cst_207 = arith.constant 1.000000e+00 : f32
    %599 = vector.broadcast %cst_207 : f32 to vector<8x1xf32>
    %600 = arith.subf %598, %599 : vector<8x1xf32>
    %cst_208 = arith.constant 0.000000e+00 : f32
    %601 = vector.broadcast %cst_208 : f32 to vector<8x1xf32>
    %602 = arith.cmpf ogt, %600, %601 : vector<8x1xf32>
    %603 = arith.select %602, %592, %588 : vector<8x1xi1>, vector<8x1xf32>
    %604 = arith.select %602, %589, %592 : vector<8x1xi1>, vector<8x1xf32>
    %605 = arith.addf %603, %604 : vector<8x1xf32>
    %cst_209 = arith.constant 5.000000e-01 : f32
    %606 = vector.broadcast %cst_209 : f32 to vector<8x1xf32>
    %607 = arith.mulf %606, %605 : vector<8x1xf32>
    %608 = vector.broadcast %607 : vector<8x1xf32> to vector<8x128xf32>
    %609 = arith.subf %435, %608 : vector<8x128xf32>
    %cst_210 = arith.constant 0.000000e+00 : f32
    %610 = vector.broadcast %cst_210 : f32 to vector<8x128xf32>
    %611 = arith.maximumf %609, %610 : vector<8x128xf32>
    %cst_211 = arith.constant dense<0.000000e+00> : vector<8xf32>
    %612 = vector.multi_reduction <add>, %611, %cst_211 [1] : vector<8x128xf32> to vector<8xf32>
    %613 = vector.shape_cast %612 : vector<8xf32> to vector<8x1xf32>
    %cst_212 = arith.constant 1.000000e+00 : f32
    %614 = vector.broadcast %cst_212 : f32 to vector<8x1xf32>
    %615 = arith.subf %613, %614 : vector<8x1xf32>
    %cst_213 = arith.constant 0.000000e+00 : f32
    %616 = vector.broadcast %cst_213 : f32 to vector<8x1xf32>
    %617 = arith.cmpf ogt, %615, %616 : vector<8x1xf32>
    %618 = arith.select %617, %607, %603 : vector<8x1xi1>, vector<8x1xf32>
    %619 = arith.select %617, %604, %607 : vector<8x1xi1>, vector<8x1xf32>
    %620 = arith.addf %618, %619 : vector<8x1xf32>
    %cst_214 = arith.constant 5.000000e-01 : f32
    %621 = vector.broadcast %cst_214 : f32 to vector<8x1xf32>
    %622 = arith.mulf %621, %620 : vector<8x1xf32>
    %623 = vector.broadcast %622 : vector<8x1xf32> to vector<8x128xf32>
    %624 = arith.subf %435, %623 : vector<8x128xf32>
    %cst_215 = arith.constant 0.000000e+00 : f32
    %625 = vector.broadcast %cst_215 : f32 to vector<8x128xf32>
    %626 = arith.maximumf %624, %625 : vector<8x128xf32>
    %cst_216 = arith.constant dense<0.000000e+00> : vector<8xf32>
    %627 = vector.multi_reduction <add>, %626, %cst_216 [1] : vector<8x128xf32> to vector<8xf32>
    %628 = vector.shape_cast %627 : vector<8xf32> to vector<8x1xf32>
    %cst_217 = arith.constant 1.000000e+00 : f32
    %629 = vector.broadcast %cst_217 : f32 to vector<8x1xf32>
    %630 = arith.subf %628, %629 : vector<8x1xf32>
    %cst_218 = arith.constant 0.000000e+00 : f32
    %631 = vector.broadcast %cst_218 : f32 to vector<8x1xf32>
    %632 = arith.cmpf ogt, %630, %631 : vector<8x1xf32>
    %633 = arith.select %632, %622, %618 : vector<8x1xi1>, vector<8x1xf32>
    %634 = arith.select %632, %619, %622 : vector<8x1xi1>, vector<8x1xf32>
    %635 = arith.addf %633, %634 : vector<8x1xf32>
    %cst_219 = arith.constant 5.000000e-01 : f32
    %636 = vector.broadcast %cst_219 : f32 to vector<8x1xf32>
    %637 = arith.mulf %636, %635 : vector<8x1xf32>
    %638 = vector.broadcast %637 : vector<8x1xf32> to vector<8x128xf32>
    %639 = arith.subf %435, %638 : vector<8x128xf32>
    %cst_220 = arith.constant 0.000000e+00 : f32
    %640 = vector.broadcast %cst_220 : f32 to vector<8x128xf32>
    %641 = arith.maximumf %639, %640 : vector<8x128xf32>
    %cst_221 = arith.constant dense<0.000000e+00> : vector<8xf32>
    %642 = vector.multi_reduction <add>, %641, %cst_221 [1] : vector<8x128xf32> to vector<8xf32>
    %643 = vector.shape_cast %642 : vector<8xf32> to vector<8x1xf32>
    %cst_222 = arith.constant 1.000000e+00 : f32
    %644 = vector.broadcast %cst_222 : f32 to vector<8x1xf32>
    %645 = arith.subf %643, %644 : vector<8x1xf32>
    %cst_223 = arith.constant 0.000000e+00 : f32
    %646 = vector.broadcast %cst_223 : f32 to vector<8x1xf32>
    %647 = arith.cmpf ogt, %645, %646 : vector<8x1xf32>
    %648 = arith.select %647, %637, %633 : vector<8x1xi1>, vector<8x1xf32>
    %649 = arith.select %647, %634, %637 : vector<8x1xi1>, vector<8x1xf32>
    %650 = arith.addf %648, %649 : vector<8x1xf32>
    %cst_224 = arith.constant 5.000000e-01 : f32
    %651 = vector.broadcast %cst_224 : f32 to vector<8x1xf32>
    %652 = arith.mulf %651, %650 : vector<8x1xf32>
    %653 = vector.broadcast %652 : vector<8x1xf32> to vector<8x128xf32>
    %654 = arith.subf %435, %653 : vector<8x128xf32>
    %cst_225 = arith.constant 0.000000e+00 : f32
    %655 = vector.broadcast %cst_225 : f32 to vector<8x128xf32>
    %656 = arith.maximumf %654, %655 : vector<8x128xf32>
    %cst_226 = arith.constant dense<0.000000e+00> : vector<8xf32>
    %657 = vector.multi_reduction <add>, %656, %cst_226 [1] : vector<8x128xf32> to vector<8xf32>
    %658 = vector.shape_cast %657 : vector<8xf32> to vector<8x1xf32>
    %cst_227 = arith.constant 1.000000e+00 : f32
    %659 = vector.broadcast %cst_227 : f32 to vector<8x1xf32>
    %660 = arith.subf %658, %659 : vector<8x1xf32>
    %cst_228 = arith.constant 0.000000e+00 : f32
    %661 = vector.broadcast %cst_228 : f32 to vector<8x1xf32>
    %662 = arith.cmpf ogt, %660, %661 : vector<8x1xf32>
    %663 = arith.select %662, %652, %648 : vector<8x1xi1>, vector<8x1xf32>
    %664 = arith.select %662, %649, %652 : vector<8x1xi1>, vector<8x1xf32>
    %665 = arith.addf %663, %664 : vector<8x1xf32>
    %cst_229 = arith.constant 5.000000e-01 : f32
    %666 = vector.broadcast %cst_229 : f32 to vector<8x1xf32>
    %667 = arith.mulf %666, %665 : vector<8x1xf32>
    %668 = vector.broadcast %667 : vector<8x1xf32> to vector<8x128xf32>
    %669 = arith.subf %435, %668 : vector<8x128xf32>
    %cst_230 = arith.constant 0.000000e+00 : f32
    %670 = vector.broadcast %cst_230 : f32 to vector<8x128xf32>
    %671 = arith.maximumf %669, %670 : vector<8x128xf32>
    %cst_231 = arith.constant dense<0.000000e+00> : vector<8xf32>
    %672 = vector.multi_reduction <add>, %671, %cst_231 [1] : vector<8x128xf32> to vector<8xf32>
    %673 = vector.shape_cast %672 : vector<8xf32> to vector<8x1xf32>
    %cst_232 = arith.constant 1.000000e+00 : f32
    %674 = vector.broadcast %cst_232 : f32 to vector<8x1xf32>
    %675 = arith.subf %673, %674 : vector<8x1xf32>
    %cst_233 = arith.constant 0.000000e+00 : f32
    %676 = vector.broadcast %cst_233 : f32 to vector<8x1xf32>
    %677 = arith.cmpf ogt, %675, %676 : vector<8x1xf32>
    %678 = arith.select %677, %667, %663 : vector<8x1xi1>, vector<8x1xf32>
    %679 = arith.select %677, %664, %667 : vector<8x1xi1>, vector<8x1xf32>
    %680 = arith.addf %678, %679 : vector<8x1xf32>
    %cst_234 = arith.constant 5.000000e-01 : f32
    %681 = vector.broadcast %cst_234 : f32 to vector<8x1xf32>
    %682 = arith.mulf %681, %680 : vector<8x1xf32>
    %683 = vector.broadcast %682 : vector<8x1xf32> to vector<8x128xf32>
    %684 = arith.cmpf oge, %435, %683 : vector<8x128xf32>
    %685 = arith.extui %684 : vector<8x128xi1> to vector<8x128xi32>
    %686 = arith.sitofp %685 : vector<8x128xi32> to vector<8x128xf32>
    %cst_235 = arith.constant dense<0.000000e+00> : vector<8xf32>
    %687 = vector.multi_reduction <add>, %686, %cst_235 [1] : vector<8x128xf32> to vector<8xf32>
    %688 = vector.shape_cast %687 : vector<8xf32> to vector<8x1xf32>
    %cst_236 = arith.constant 1.000000e+00 : f32
    %689 = vector.broadcast %cst_236 : f32 to vector<8x1xf32>
    %690 = arith.maximumf %688, %689 : vector<8x1xf32>
    %691 = arith.mulf %435, %686 : vector<8x128xf32>
    %cst_237 = arith.constant dense<0.000000e+00> : vector<8xf32>
    %692 = vector.multi_reduction <add>, %691, %cst_237 [1] : vector<8x128xf32> to vector<8xf32>
    %693 = vector.shape_cast %692 : vector<8xf32> to vector<8x1xf32>
    %cst_238 = arith.constant 1.000000e+00 : f32
    %694 = vector.broadcast %cst_238 : f32 to vector<8x1xf32>
    %695 = arith.subf %693, %694 : vector<8x1xf32>
    %696 = arith.divf %695, %690 : vector<8x1xf32>
    %697 = vector.broadcast %696 : vector<8x1xf32> to vector<8x128xf32>
    %698 = arith.cmpf oge, %435, %697 : vector<8x128xf32>
    %699 = arith.extui %698 : vector<8x128xi1> to vector<8x128xi32>
    %700 = arith.sitofp %699 : vector<8x128xi32> to vector<8x128xf32>
    %cst_239 = arith.constant dense<0.000000e+00> : vector<8xf32>
    %701 = vector.multi_reduction <add>, %700, %cst_239 [1] : vector<8x128xf32> to vector<8xf32>
    %702 = vector.shape_cast %701 : vector<8xf32> to vector<8x1xf32>
    %cst_240 = arith.constant 1.000000e+00 : f32
    %703 = vector.broadcast %cst_240 : f32 to vector<8x1xf32>
    %704 = arith.maximumf %702, %703 : vector<8x1xf32>
    %705 = arith.mulf %435, %700 : vector<8x128xf32>
    %cst_241 = arith.constant dense<0.000000e+00> : vector<8xf32>
    %706 = vector.multi_reduction <add>, %705, %cst_241 [1] : vector<8x128xf32> to vector<8xf32>
    %707 = vector.shape_cast %706 : vector<8xf32> to vector<8x1xf32>
    %cst_242 = arith.constant 1.000000e+00 : f32
    %708 = vector.broadcast %cst_242 : f32 to vector<8x1xf32>
    %709 = arith.subf %707, %708 : vector<8x1xf32>
    %710 = arith.divf %709, %704 : vector<8x1xf32>
    %711 = vector.broadcast %710 : vector<8x1xf32> to vector<8x128xf32>
    %712 = arith.subf %435, %711 : vector<8x128xf32>
    %cst_243 = arith.constant 0.000000e+00 : f32
    %713 = vector.broadcast %cst_243 : f32 to vector<8x128xf32>
    %714 = arith.maximumf %712, %713 : vector<8x128xf32>
    %c1_244 = arith.constant 1 : index
    %c0_245 = arith.constant 0 : index
    %c0_246 = arith.constant 0 : index
    %715 = vector.load %arg14[%c1_244, %c0_245, %c0_246] : memref<4x8x128xf32, #tpu.memory_space<vmem>>, vector<1x8x128xf32>
    %716 = vector.shape_cast %715 : vector<1x8x128xf32> to vector<8x128xf32>
    %717 = vector.shape_cast %714 : vector<8x128xf32> to vector<1x8x128xf32>
    tpu.vector_store %arg14[%c1_244, %c0_245, %c0_246], %717 {strides = array<i32>} : memref<4x8x128xf32, #tpu.memory_space<vmem>>, vector<1x8x128xf32>,
    %c1_247 = arith.constant 1 : index
    %c0_248 = arith.constant 0 : index
    %c0_249 = arith.constant 0 : index
    %718 = vector.load %arg15[%c1_247, %c0_248, %c0_249] : memref<4x8x128xf32, #tpu.memory_space<vmem>>, vector<1x8x128xf32>
    %719 = vector.shape_cast %718 : vector<1x8x128xf32> to vector<8x128xf32>
    %720 = vector.shape_cast %423 : vector<8x128xf32> to vector<1x8x128xf32>
    tpu.vector_store %arg15[%c1_247, %c0_248, %c0_249], %720 {strides = array<i32>} : memref<4x8x128xf32, #tpu.memory_space<vmem>>, vector<1x8x128xf32>,
    %c2 = arith.constant 2 : index
    %c0_250 = arith.constant 0 : index
    %c0_251 = arith.constant 0 : index
    %721 = vector.load %arg2[%c2, %c0_250, %c0_251] : memref<4x8x96xbf16, #tpu.memory_space<vmem>>, vector<1x8x96xbf16>
    %722 = vector.shape_cast %721 : vector<1x8x96xbf16> to vector<8x96xbf16>
    %723 = arith.extf %722 : vector<8x96xbf16> to vector<8x96xf32>
    %724 = arith.truncf %427 : vector<8x32xf32> to vector<8x32xbf16>
    %cst_252 = arith.constant dense<0.000000e+00> : vector<8x96xf32>
    %725 = tpu.matmul %724, %6, %cst_252 {dimension_numbers = #tpu.dot_dimension_numbers<[1], [0], [0], [1], [0, 0, 1, 1], [], []>} : vector<8x32xbf16>, vector<32x96xbf16>, vector<8x96xf32> -> vector<8x96xf32>
    %726 = arith.addf %723, %725 : vector<8x96xf32>
    %727 = arith.truncf %403 : vector<8x32xf32> to vector<8x32xbf16>
    %cst_253 = arith.constant dense<0.000000e+00> : vector<8x96xf32>
    %728 = tpu.matmul %727, %7, %cst_253 {dimension_numbers = #tpu.dot_dimension_numbers<[1], [0], [0], [1], [0, 0, 1, 1], [], []>} : vector<8x32xbf16>, vector<32x96xbf16>, vector<8x96xf32> -> vector<8x96xf32>
    %729 = vector.broadcast %8 : vector<1x96xf32> to vector<8x96xf32>
    %730 = arith.addf %728, %729 : vector<8x96xf32>
    %731 = vector.extract_strided_slice %726 {offsets = [0, 0], sizes = [8, 32], strides = [1, 1]} : vector<8x96xf32> to vector<8x32xf32>
    %732 = vector.extract_strided_slice %730 {offsets = [0, 0], sizes = [8, 32], strides = [1, 1]} : vector<8x96xf32> to vector<8x32xf32>
    %733 = arith.addf %731, %732 : vector<8x32xf32>
    %734 = arith.negf %733 : vector<8x32xf32>
    %735 = math.exp %734 : vector<8x32xf32>
    %cst_254 = arith.constant 1.000000e+00 : f32
    %736 = vector.broadcast %cst_254 : f32 to vector<8x32xf32>
    %737 = arith.addf %736, %735 : vector<8x32xf32>
    %738 = arith.divf %736, %737 : vector<8x32xf32>
    %739 = vector.extract_strided_slice %726 {offsets = [0, 32], sizes = [8, 32], strides = [1, 1]} : vector<8x96xf32> to vector<8x32xf32>
    %740 = vector.extract_strided_slice %730 {offsets = [0, 32], sizes = [8, 32], strides = [1, 1]} : vector<8x96xf32> to vector<8x32xf32>
    %741 = arith.addf %739, %740 : vector<8x32xf32>
    %742 = arith.negf %741 : vector<8x32xf32>
    %743 = math.exp %742 : vector<8x32xf32>
    %cst_255 = arith.constant 1.000000e+00 : f32
    %744 = vector.broadcast %cst_255 : f32 to vector<8x32xf32>
    %745 = arith.addf %744, %743 : vector<8x32xf32>
    %746 = arith.divf %744, %745 : vector<8x32xf32>
    %747 = vector.extract_strided_slice %726 {offsets = [0, 64], sizes = [8, 32], strides = [1, 1]} : vector<8x96xf32> to vector<8x32xf32>
    %748 = vector.extract_strided_slice %730 {offsets = [0, 64], sizes = [8, 32], strides = [1, 1]} : vector<8x96xf32> to vector<8x32xf32>
    %749 = arith.mulf %738, %748 : vector<8x32xf32>
    %750 = arith.addf %747, %749 : vector<8x32xf32>
    %751 = math.tanh %750 : vector<8x32xf32>
    %cst_256 = arith.constant 1.000000e+00 : f32
    %752 = vector.broadcast %cst_256 : f32 to vector<8x32xf32>
    %753 = arith.subf %752, %746 : vector<8x32xf32>
    %754 = arith.mulf %753, %751 : vector<8x32xf32>
    %755 = arith.mulf %746, %403 : vector<8x32xf32>
    %756 = arith.addf %754, %755 : vector<8x32xf32>
    %757 = vector.shape_cast %756 : vector<8x32xf32> to vector<8x1x32xf32>
    %758 = arith.truncf %757 : vector<8x1x32xf32> to vector<8x1x32xbf16>
    "tpu.trace_start"() <{level = 10 : i32, message = "bqh,bhk->bqk"}> : () -> ()
    %cst_257 = arith.constant dense<0.000000e+00> : vector<8x1x128xf32>
    %759 = tpu.matmul %758, %4, %cst_257 {dimension_numbers = #tpu.dot_dimension_numbers<[2], [1], [1], [2], [0, 0, 0, 1, 1, 2], [0], [0]>} : vector<8x1x32xbf16>, vector<8x32x128xbf16>, vector<8x1x128xf32> -> vector<8x1x128xf32>
    "tpu.trace_stop"() : () -> ()
    %760 = vector.shape_cast %759 : vector<8x1x128xf32> to vector<8x128xf32>
    %761 = vector.broadcast %11 : vector<1x128xf32> to vector<8x128xf32>
    %762 = arith.addf %760, %761 : vector<8x128xf32>
    %cst_258 = arith.constant dense<0xFF800000> : vector<8xf32>
    %763 = vector.multi_reduction <maximumf>, %762, %cst_258 [1] : vector<8x128xf32> to vector<8xf32>
    %764 = vector.shape_cast %763 : vector<8xf32> to vector<8x1xf32>
    %765 = vector.broadcast %764 : vector<8x1xf32> to vector<8x128xf32>
    %766 = arith.subf %762, %765 : vector<8x128xf32>
    %767 = math.exp %766 : vector<8x128xf32>
    %cst_259 = arith.constant dense<0.000000e+00> : vector<8xf32>
    %768 = vector.multi_reduction <add>, %767, %cst_259 [1] : vector<8x128xf32> to vector<8xf32>
    %769 = vector.shape_cast %768 : vector<8xf32> to vector<8x1xf32>
    %770 = tpu.reciprocal %769 {approx = true} : vector<8x1xf32> -> vector<8x1xf32>
    %771 = arith.mulf %769, %770 : vector<8x1xf32>
    %cst_260 = arith.constant 2.000000e+00 : f32
    %772 = vector.broadcast %cst_260 : f32 to vector<8x1xf32>
    %773 = arith.subf %772, %771 : vector<8x1xf32>
    %774 = arith.mulf %770, %773 : vector<8x1xf32>
    %775 = vector.broadcast %774 : vector<8x1xf32> to vector<8x128xf32>
    %776 = arith.mulf %767, %775 : vector<8x128xf32>
    %777 = vector.shape_cast %776 : vector<8x128xf32> to vector<8x1x128xf32>
    %778 = arith.truncf %777 : vector<8x1x128xf32> to vector<8x1x128xbf16>
    "tpu.trace_start"() <{level = 10 : i32, message = "bqk,bkh->bqh"}> : () -> ()
    %cst_261 = arith.constant dense<0.000000e+00> : vector<8x1x32xf32>
    %779 = tpu.matmul %778, %3, %cst_261 {dimension_numbers = #tpu.dot_dimension_numbers<[2], [1], [1], [2], [0, 0, 0, 1, 1, 2], [0], [0]>} : vector<8x1x128xbf16>, vector<8x128x32xbf16>, vector<8x1x32xf32> -> vector<8x1x32xf32>
    "tpu.trace_stop"() : () -> ()
    %780 = vector.shape_cast %779 : vector<8x1x32xf32> to vector<8x32xf32>
    %781 = arith.truncf %756 : vector<8x32xf32> to vector<8x32xbf16>
    %cst_262 = arith.constant dense<0.000000e+00> : vector<8x32xf32>
    %782 = tpu.matmul %781, %9, %cst_262 {dimension_numbers = #tpu.dot_dimension_numbers<[1], [0], [0], [1], [0, 0, 1, 1], [], []>} : vector<8x32xbf16>, vector<32x32xbf16>, vector<8x32xf32> -> vector<8x32xf32>
    %783 = vector.broadcast %10 : vector<1x32xf32> to vector<8x32xf32>
    %784 = arith.addf %782, %783 : vector<8x32xf32>
    %785 = arith.truncf %784 : vector<8x32xf32> to vector<8x32xbf16>
    %cst_263 = arith.constant dense<0.000000e+00> : vector<8x128xf32>
    %786 = tpu.matmul %785, %5, %cst_263 {dimension_numbers = #tpu.dot_dimension_numbers<[1], [0], [0], [1], [0, 0, 1, 1], [], []>} : vector<8x32xbf16>, vector<32x128xbf16>, vector<8x128xf32> -> vector<8x128xf32>
    %787 = vector.broadcast %12 : vector<1x128xf32> to vector<8x128xf32>
    %788 = arith.addf %786, %787 : vector<8x128xf32>
    %cst_264 = arith.constant dense<0xFF800000> : vector<8xf32>
    %789 = vector.multi_reduction <maximumf>, %788, %cst_264 [1] : vector<8x128xf32> to vector<8xf32>
    %790 = vector.shape_cast %789 : vector<8xf32> to vector<8x1xf32>
    %cst_265 = arith.constant 1.000000e+00 : f32
    %791 = vector.broadcast %cst_265 : f32 to vector<8x1xf32>
    %792 = arith.subf %790, %791 : vector<8x1xf32>
    %793 = arith.addf %792, %790 : vector<8x1xf32>
    %cst_266 = arith.constant 5.000000e-01 : f32
    %794 = vector.broadcast %cst_266 : f32 to vector<8x1xf32>
    %795 = arith.mulf %794, %793 : vector<8x1xf32>
    %796 = vector.broadcast %795 : vector<8x1xf32> to vector<8x128xf32>
    %797 = arith.subf %788, %796 : vector<8x128xf32>
    %cst_267 = arith.constant 0.000000e+00 : f32
    %798 = vector.broadcast %cst_267 : f32 to vector<8x128xf32>
    %799 = arith.maximumf %797, %798 : vector<8x128xf32>
    %cst_268 = arith.constant dense<0.000000e+00> : vector<8xf32>
    %800 = vector.multi_reduction <add>, %799, %cst_268 [1] : vector<8x128xf32> to vector<8xf32>
    %801 = vector.shape_cast %800 : vector<8xf32> to vector<8x1xf32>
    %cst_269 = arith.constant 1.000000e+00 : f32
    %802 = vector.broadcast %cst_269 : f32 to vector<8x1xf32>
    %803 = arith.subf %801, %802 : vector<8x1xf32>
    %cst_270 = arith.constant 0.000000e+00 : f32
    %804 = vector.broadcast %cst_270 : f32 to vector<8x1xf32>
    %805 = arith.cmpf ogt, %803, %804 : vector<8x1xf32>
    %806 = arith.select %805, %795, %792 : vector<8x1xi1>, vector<8x1xf32>
    %807 = arith.select %805, %790, %795 : vector<8x1xi1>, vector<8x1xf32>
    %808 = arith.addf %806, %807 : vector<8x1xf32>
    %cst_271 = arith.constant 5.000000e-01 : f32
    %809 = vector.broadcast %cst_271 : f32 to vector<8x1xf32>
    %810 = arith.mulf %809, %808 : vector<8x1xf32>
    %811 = vector.broadcast %810 : vector<8x1xf32> to vector<8x128xf32>
    %812 = arith.subf %788, %811 : vector<8x128xf32>
    %cst_272 = arith.constant 0.000000e+00 : f32
    %813 = vector.broadcast %cst_272 : f32 to vector<8x128xf32>
    %814 = arith.maximumf %812, %813 : vector<8x128xf32>
    %cst_273 = arith.constant dense<0.000000e+00> : vector<8xf32>
    %815 = vector.multi_reduction <add>, %814, %cst_273 [1] : vector<8x128xf32> to vector<8xf32>
    %816 = vector.shape_cast %815 : vector<8xf32> to vector<8x1xf32>
    %cst_274 = arith.constant 1.000000e+00 : f32
    %817 = vector.broadcast %cst_274 : f32 to vector<8x1xf32>
    %818 = arith.subf %816, %817 : vector<8x1xf32>
    %cst_275 = arith.constant 0.000000e+00 : f32
    %819 = vector.broadcast %cst_275 : f32 to vector<8x1xf32>
    %820 = arith.cmpf ogt, %818, %819 : vector<8x1xf32>
    %821 = arith.select %820, %810, %806 : vector<8x1xi1>, vector<8x1xf32>
    %822 = arith.select %820, %807, %810 : vector<8x1xi1>, vector<8x1xf32>
    %823 = arith.addf %821, %822 : vector<8x1xf32>
    %cst_276 = arith.constant 5.000000e-01 : f32
    %824 = vector.broadcast %cst_276 : f32 to vector<8x1xf32>
    %825 = arith.mulf %824, %823 : vector<8x1xf32>
    %826 = vector.broadcast %825 : vector<8x1xf32> to vector<8x128xf32>
    %827 = arith.subf %788, %826 : vector<8x128xf32>
    %cst_277 = arith.constant 0.000000e+00 : f32
    %828 = vector.broadcast %cst_277 : f32 to vector<8x128xf32>
    %829 = arith.maximumf %827, %828 : vector<8x128xf32>
    %cst_278 = arith.constant dense<0.000000e+00> : vector<8xf32>
    %830 = vector.multi_reduction <add>, %829, %cst_278 [1] : vector<8x128xf32> to vector<8xf32>
    %831 = vector.shape_cast %830 : vector<8xf32> to vector<8x1xf32>
    %cst_279 = arith.constant 1.000000e+00 : f32
    %832 = vector.broadcast %cst_279 : f32 to vector<8x1xf32>
    %833 = arith.subf %831, %832 : vector<8x1xf32>
    %cst_280 = arith.constant 0.000000e+00 : f32
    %834 = vector.broadcast %cst_280 : f32 to vector<8x1xf32>
    %835 = arith.cmpf ogt, %833, %834 : vector<8x1xf32>
    %836 = arith.select %835, %825, %821 : vector<8x1xi1>, vector<8x1xf32>
    %837 = arith.select %835, %822, %825 : vector<8x1xi1>, vector<8x1xf32>
    %838 = arith.addf %836, %837 : vector<8x1xf32>
    %cst_281 = arith.constant 5.000000e-01 : f32
    %839 = vector.broadcast %cst_281 : f32 to vector<8x1xf32>
    %840 = arith.mulf %839, %838 : vector<8x1xf32>
    %841 = vector.broadcast %840 : vector<8x1xf32> to vector<8x128xf32>
    %842 = arith.subf %788, %841 : vector<8x128xf32>
    %cst_282 = arith.constant 0.000000e+00 : f32
    %843 = vector.broadcast %cst_282 : f32 to vector<8x128xf32>
    %844 = arith.maximumf %842, %843 : vector<8x128xf32>
    %cst_283 = arith.constant dense<0.000000e+00> : vector<8xf32>
    %845 = vector.multi_reduction <add>, %844, %cst_283 [1] : vector<8x128xf32> to vector<8xf32>
    %846 = vector.shape_cast %845 : vector<8xf32> to vector<8x1xf32>
    %cst_284 = arith.constant 1.000000e+00 : f32
    %847 = vector.broadcast %cst_284 : f32 to vector<8x1xf32>
    %848 = arith.subf %846, %847 : vector<8x1xf32>
    %cst_285 = arith.constant 0.000000e+00 : f32
    %849 = vector.broadcast %cst_285 : f32 to vector<8x1xf32>
    %850 = arith.cmpf ogt, %848, %849 : vector<8x1xf32>
    %851 = arith.select %850, %840, %836 : vector<8x1xi1>, vector<8x1xf32>
    %852 = arith.select %850, %837, %840 : vector<8x1xi1>, vector<8x1xf32>
    %853 = arith.addf %851, %852 : vector<8x1xf32>
    %cst_286 = arith.constant 5.000000e-01 : f32
    %854 = vector.broadcast %cst_286 : f32 to vector<8x1xf32>
    %855 = arith.mulf %854, %853 : vector<8x1xf32>
    %856 = vector.broadcast %855 : vector<8x1xf32> to vector<8x128xf32>
    %857 = arith.subf %788, %856 : vector<8x128xf32>
    %cst_287 = arith.constant 0.000000e+00 : f32
    %858 = vector.broadcast %cst_287 : f32 to vector<8x128xf32>
    %859 = arith.maximumf %857, %858 : vector<8x128xf32>
    %cst_288 = arith.constant dense<0.000000e+00> : vector<8xf32>
    %860 = vector.multi_reduction <add>, %859, %cst_288 [1] : vector<8x128xf32> to vector<8xf32>
    %861 = vector.shape_cast %860 : vector<8xf32> to vector<8x1xf32>
    %cst_289 = arith.constant 1.000000e+00 : f32
    %862 = vector.broadcast %cst_289 : f32 to vector<8x1xf32>
    %863 = arith.subf %861, %862 : vector<8x1xf32>
    %cst_290 = arith.constant 0.000000e+00 : f32
    %864 = vector.broadcast %cst_290 : f32 to vector<8x1xf32>
    %865 = arith.cmpf ogt, %863, %864 : vector<8x1xf32>
    %866 = arith.select %865, %855, %851 : vector<8x1xi1>, vector<8x1xf32>
    %867 = arith.select %865, %852, %855 : vector<8x1xi1>, vector<8x1xf32>
    %868 = arith.addf %866, %867 : vector<8x1xf32>
    %cst_291 = arith.constant 5.000000e-01 : f32
    %869 = vector.broadcast %cst_291 : f32 to vector<8x1xf32>
    %870 = arith.mulf %869, %868 : vector<8x1xf32>
    %871 = vector.broadcast %870 : vector<8x1xf32> to vector<8x128xf32>
    %872 = arith.subf %788, %871 : vector<8x128xf32>
    %cst_292 = arith.constant 0.000000e+00 : f32
    %873 = vector.broadcast %cst_292 : f32 to vector<8x128xf32>
    %874 = arith.maximumf %872, %873 : vector<8x128xf32>
    %cst_293 = arith.constant dense<0.000000e+00> : vector<8xf32>
    %875 = vector.multi_reduction <add>, %874, %cst_293 [1] : vector<8x128xf32> to vector<8xf32>
    %876 = vector.shape_cast %875 : vector<8xf32> to vector<8x1xf32>
    %cst_294 = arith.constant 1.000000e+00 : f32
    %877 = vector.broadcast %cst_294 : f32 to vector<8x1xf32>
    %878 = arith.subf %876, %877 : vector<8x1xf32>
    %cst_295 = arith.constant 0.000000e+00 : f32
    %879 = vector.broadcast %cst_295 : f32 to vector<8x1xf32>
    %880 = arith.cmpf ogt, %878, %879 : vector<8x1xf32>
    %881 = arith.select %880, %870, %866 : vector<8x1xi1>, vector<8x1xf32>
    %882 = arith.select %880, %867, %870 : vector<8x1xi1>, vector<8x1xf32>
    %883 = arith.addf %881, %882 : vector<8x1xf32>
    %cst_296 = arith.constant 5.000000e-01 : f32
    %884 = vector.broadcast %cst_296 : f32 to vector<8x1xf32>
    %885 = arith.mulf %884, %883 : vector<8x1xf32>
    %886 = vector.broadcast %885 : vector<8x1xf32> to vector<8x128xf32>
    %887 = arith.subf %788, %886 : vector<8x128xf32>
    %cst_297 = arith.constant 0.000000e+00 : f32
    %888 = vector.broadcast %cst_297 : f32 to vector<8x128xf32>
    %889 = arith.maximumf %887, %888 : vector<8x128xf32>
    %cst_298 = arith.constant dense<0.000000e+00> : vector<8xf32>
    %890 = vector.multi_reduction <add>, %889, %cst_298 [1] : vector<8x128xf32> to vector<8xf32>
    %891 = vector.shape_cast %890 : vector<8xf32> to vector<8x1xf32>
    %cst_299 = arith.constant 1.000000e+00 : f32
    %892 = vector.broadcast %cst_299 : f32 to vector<8x1xf32>
    %893 = arith.subf %891, %892 : vector<8x1xf32>
    %cst_300 = arith.constant 0.000000e+00 : f32
    %894 = vector.broadcast %cst_300 : f32 to vector<8x1xf32>
    %895 = arith.cmpf ogt, %893, %894 : vector<8x1xf32>
    %896 = arith.select %895, %885, %881 : vector<8x1xi1>, vector<8x1xf32>
    %897 = arith.select %895, %882, %885 : vector<8x1xi1>, vector<8x1xf32>
    %898 = arith.addf %896, %897 : vector<8x1xf32>
    %cst_301 = arith.constant 5.000000e-01 : f32
    %899 = vector.broadcast %cst_301 : f32 to vector<8x1xf32>
    %900 = arith.mulf %899, %898 : vector<8x1xf32>
    %901 = vector.broadcast %900 : vector<8x1xf32> to vector<8x128xf32>
    %902 = arith.subf %788, %901 : vector<8x128xf32>
    %cst_302 = arith.constant 0.000000e+00 : f32
    %903 = vector.broadcast %cst_302 : f32 to vector<8x128xf32>
    %904 = arith.maximumf %902, %903 : vector<8x128xf32>
    %cst_303 = arith.constant dense<0.000000e+00> : vector<8xf32>
    %905 = vector.multi_reduction <add>, %904, %cst_303 [1] : vector<8x128xf32> to vector<8xf32>
    %906 = vector.shape_cast %905 : vector<8xf32> to vector<8x1xf32>
    %cst_304 = arith.constant 1.000000e+00 : f32
    %907 = vector.broadcast %cst_304 : f32 to vector<8x1xf32>
    %908 = arith.subf %906, %907 : vector<8x1xf32>
    %cst_305 = arith.constant 0.000000e+00 : f32
    %909 = vector.broadcast %cst_305 : f32 to vector<8x1xf32>
    %910 = arith.cmpf ogt, %908, %909 : vector<8x1xf32>
    %911 = arith.select %910, %900, %896 : vector<8x1xi1>, vector<8x1xf32>
    %912 = arith.select %910, %897, %900 : vector<8x1xi1>, vector<8x1xf32>
    %913 = arith.addf %911, %912 : vector<8x1xf32>
    %cst_306 = arith.constant 5.000000e-01 : f32
    %914 = vector.broadcast %cst_306 : f32 to vector<8x1xf32>
    %915 = arith.mulf %914, %913 : vector<8x1xf32>
    %916 = vector.broadcast %915 : vector<8x1xf32> to vector<8x128xf32>
    %917 = arith.subf %788, %916 : vector<8x128xf32>
    %cst_307 = arith.constant 0.000000e+00 : f32
    %918 = vector.broadcast %cst_307 : f32 to vector<8x128xf32>
    %919 = arith.maximumf %917, %918 : vector<8x128xf32>
    %cst_308 = arith.constant dense<0.000000e+00> : vector<8xf32>
    %920 = vector.multi_reduction <add>, %919, %cst_308 [1] : vector<8x128xf32> to vector<8xf32>
    %921 = vector.shape_cast %920 : vector<8xf32> to vector<8x1xf32>
    %cst_309 = arith.constant 1.000000e+00 : f32
    %922 = vector.broadcast %cst_309 : f32 to vector<8x1xf32>
    %923 = arith.subf %921, %922 : vector<8x1xf32>
    %cst_310 = arith.constant 0.000000e+00 : f32
    %924 = vector.broadcast %cst_310 : f32 to vector<8x1xf32>
    %925 = arith.cmpf ogt, %923, %924 : vector<8x1xf32>
    %926 = arith.select %925, %915, %911 : vector<8x1xi1>, vector<8x1xf32>
    %927 = arith.select %925, %912, %915 : vector<8x1xi1>, vector<8x1xf32>
    %928 = arith.addf %926, %927 : vector<8x1xf32>
    %cst_311 = arith.constant 5.000000e-01 : f32
    %929 = vector.broadcast %cst_311 : f32 to vector<8x1xf32>
    %930 = arith.mulf %929, %928 : vector<8x1xf32>
    %931 = vector.broadcast %930 : vector<8x1xf32> to vector<8x128xf32>
    %932 = arith.subf %788, %931 : vector<8x128xf32>
    %cst_312 = arith.constant 0.000000e+00 : f32
    %933 = vector.broadcast %cst_312 : f32 to vector<8x128xf32>
    %934 = arith.maximumf %932, %933 : vector<8x128xf32>
    %cst_313 = arith.constant dense<0.000000e+00> : vector<8xf32>
    %935 = vector.multi_reduction <add>, %934, %cst_313 [1] : vector<8x128xf32> to vector<8xf32>
    %936 = vector.shape_cast %935 : vector<8xf32> to vector<8x1xf32>
    %cst_314 = arith.constant 1.000000e+00 : f32
    %937 = vector.broadcast %cst_314 : f32 to vector<8x1xf32>
    %938 = arith.subf %936, %937 : vector<8x1xf32>
    %cst_315 = arith.constant 0.000000e+00 : f32
    %939 = vector.broadcast %cst_315 : f32 to vector<8x1xf32>
    %940 = arith.cmpf ogt, %938, %939 : vector<8x1xf32>
    %941 = arith.select %940, %930, %926 : vector<8x1xi1>, vector<8x1xf32>
    %942 = arith.select %940, %927, %930 : vector<8x1xi1>, vector<8x1xf32>
    %943 = arith.addf %941, %942 : vector<8x1xf32>
    %cst_316 = arith.constant 5.000000e-01 : f32
    %944 = vector.broadcast %cst_316 : f32 to vector<8x1xf32>
    %945 = arith.mulf %944, %943 : vector<8x1xf32>
    %946 = vector.broadcast %945 : vector<8x1xf32> to vector<8x128xf32>
    %947 = arith.subf %788, %946 : vector<8x128xf32>
    %cst_317 = arith.constant 0.000000e+00 : f32
    %948 = vector.broadcast %cst_317 : f32 to vector<8x128xf32>
    %949 = arith.maximumf %947, %948 : vector<8x128xf32>
    %cst_318 = arith.constant dense<0.000000e+00> : vector<8xf32>
    %950 = vector.multi_reduction <add>, %949, %cst_318 [1] : vector<8x128xf32> to vector<8xf32>
    %951 = vector.shape_cast %950 : vector<8xf32> to vector<8x1xf32>
    %cst_319 = arith.constant 1.000000e+00 : f32
    %952 = vector.broadcast %cst_319 : f32 to vector<8x1xf32>
    %953 = arith.subf %951, %952 : vector<8x1xf32>
    %cst_320 = arith.constant 0.000000e+00 : f32
    %954 = vector.broadcast %cst_320 : f32 to vector<8x1xf32>
    %955 = arith.cmpf ogt, %953, %954 : vector<8x1xf32>
    %956 = arith.select %955, %945, %941 : vector<8x1xi1>, vector<8x1xf32>
    %957 = arith.select %955, %942, %945 : vector<8x1xi1>, vector<8x1xf32>
    %958 = arith.addf %956, %957 : vector<8x1xf32>
    %cst_321 = arith.constant 5.000000e-01 : f32
    %959 = vector.broadcast %cst_321 : f32 to vector<8x1xf32>
    %960 = arith.mulf %959, %958 : vector<8x1xf32>
    %961 = vector.broadcast %960 : vector<8x1xf32> to vector<8x128xf32>
    %962 = arith.subf %788, %961 : vector<8x128xf32>
    %cst_322 = arith.constant 0.000000e+00 : f32
    %963 = vector.broadcast %cst_322 : f32 to vector<8x128xf32>
    %964 = arith.maximumf %962, %963 : vector<8x128xf32>
    %cst_323 = arith.constant dense<0.000000e+00> : vector<8xf32>
    %965 = vector.multi_reduction <add>, %964, %cst_323 [1] : vector<8x128xf32> to vector<8xf32>
    %966 = vector.shape_cast %965 : vector<8xf32> to vector<8x1xf32>
    %cst_324 = arith.constant 1.000000e+00 : f32
    %967 = vector.broadcast %cst_324 : f32 to vector<8x1xf32>
    %968 = arith.subf %966, %967 : vector<8x1xf32>
    %cst_325 = arith.constant 0.000000e+00 : f32
    %969 = vector.broadcast %cst_325 : f32 to vector<8x1xf32>
    %970 = arith.cmpf ogt, %968, %969 : vector<8x1xf32>
    %971 = arith.select %970, %960, %956 : vector<8x1xi1>, vector<8x1xf32>
    %972 = arith.select %970, %957, %960 : vector<8x1xi1>, vector<8x1xf32>
    %973 = arith.addf %971, %972 : vector<8x1xf32>
    %cst_326 = arith.constant 5.000000e-01 : f32
    %974 = vector.broadcast %cst_326 : f32 to vector<8x1xf32>
    %975 = arith.mulf %974, %973 : vector<8x1xf32>
    %976 = vector.broadcast %975 : vector<8x1xf32> to vector<8x128xf32>
    %977 = arith.subf %788, %976 : vector<8x128xf32>
    %cst_327 = arith.constant 0.000000e+00 : f32
    %978 = vector.broadcast %cst_327 : f32 to vector<8x128xf32>
    %979 = arith.maximumf %977, %978 : vector<8x128xf32>
    %cst_328 = arith.constant dense<0.000000e+00> : vector<8xf32>
    %980 = vector.multi_reduction <add>, %979, %cst_328 [1] : vector<8x128xf32> to vector<8xf32>
    %981 = vector.shape_cast %980 : vector<8xf32> to vector<8x1xf32>
    %cst_329 = arith.constant 1.000000e+00 : f32
    %982 = vector.broadcast %cst_329 : f32 to vector<8x1xf32>
    %983 = arith.subf %981, %982 : vector<8x1xf32>
    %cst_330 = arith.constant 0.000000e+00 : f32
    %984 = vector.broadcast %cst_330 : f32 to vector<8x1xf32>
    %985 = arith.cmpf ogt, %983, %984 : vector<8x1xf32>
    %986 = arith.select %985, %975, %971 : vector<8x1xi1>, vector<8x1xf32>
    %987 = arith.select %985, %972, %975 : vector<8x1xi1>, vector<8x1xf32>
    %988 = arith.addf %986, %987 : vector<8x1xf32>
    %cst_331 = arith.constant 5.000000e-01 : f32
    %989 = vector.broadcast %cst_331 : f32 to vector<8x1xf32>
    %990 = arith.mulf %989, %988 : vector<8x1xf32>
    %991 = vector.broadcast %990 : vector<8x1xf32> to vector<8x128xf32>
    %992 = arith.subf %788, %991 : vector<8x128xf32>
    %cst_332 = arith.constant 0.000000e+00 : f32
    %993 = vector.broadcast %cst_332 : f32 to vector<8x128xf32>
    %994 = arith.maximumf %992, %993 : vector<8x128xf32>
    %cst_333 = arith.constant dense<0.000000e+00> : vector<8xf32>
    %995 = vector.multi_reduction <add>, %994, %cst_333 [1] : vector<8x128xf32> to vector<8xf32>
    %996 = vector.shape_cast %995 : vector<8xf32> to vector<8x1xf32>
    %cst_334 = arith.constant 1.000000e+00 : f32
    %997 = vector.broadcast %cst_334 : f32 to vector<8x1xf32>
    %998 = arith.subf %996, %997 : vector<8x1xf32>
    %cst_335 = arith.constant 0.000000e+00 : f32
    %999 = vector.broadcast %cst_335 : f32 to vector<8x1xf32>
    %1000 = arith.cmpf ogt, %998, %999 : vector<8x1xf32>
    %1001 = arith.select %1000, %990, %986 : vector<8x1xi1>, vector<8x1xf32>
    %1002 = arith.select %1000, %987, %990 : vector<8x1xi1>, vector<8x1xf32>
    %1003 = arith.addf %1001, %1002 : vector<8x1xf32>
    %cst_336 = arith.constant 5.000000e-01 : f32
    %1004 = vector.broadcast %cst_336 : f32 to vector<8x1xf32>
    %1005 = arith.mulf %1004, %1003 : vector<8x1xf32>
    %1006 = vector.broadcast %1005 : vector<8x1xf32> to vector<8x128xf32>
    %1007 = arith.subf %788, %1006 : vector<8x128xf32>
    %cst_337 = arith.constant 0.000000e+00 : f32
    %1008 = vector.broadcast %cst_337 : f32 to vector<8x128xf32>
    %1009 = arith.maximumf %1007, %1008 : vector<8x128xf32>
    %cst_338 = arith.constant dense<0.000000e+00> : vector<8xf32>
    %1010 = vector.multi_reduction <add>, %1009, %cst_338 [1] : vector<8x128xf32> to vector<8xf32>
    %1011 = vector.shape_cast %1010 : vector<8xf32> to vector<8x1xf32>
    %cst_339 = arith.constant 1.000000e+00 : f32
    %1012 = vector.broadcast %cst_339 : f32 to vector<8x1xf32>
    %1013 = arith.subf %1011, %1012 : vector<8x1xf32>
    %cst_340 = arith.constant 0.000000e+00 : f32
    %1014 = vector.broadcast %cst_340 : f32 to vector<8x1xf32>
    %1015 = arith.cmpf ogt, %1013, %1014 : vector<8x1xf32>
    %1016 = arith.select %1015, %1005, %1001 : vector<8x1xi1>, vector<8x1xf32>
    %1017 = arith.select %1015, %1002, %1005 : vector<8x1xi1>, vector<8x1xf32>
    %1018 = arith.addf %1016, %1017 : vector<8x1xf32>
    %cst_341 = arith.constant 5.000000e-01 : f32
    %1019 = vector.broadcast %cst_341 : f32 to vector<8x1xf32>
    %1020 = arith.mulf %1019, %1018 : vector<8x1xf32>
    %1021 = vector.broadcast %1020 : vector<8x1xf32> to vector<8x128xf32>
    %1022 = arith.subf %788, %1021 : vector<8x128xf32>
    %cst_342 = arith.constant 0.000000e+00 : f32
    %1023 = vector.broadcast %cst_342 : f32 to vector<8x128xf32>
    %1024 = arith.maximumf %1022, %1023 : vector<8x128xf32>
    %cst_343 = arith.constant dense<0.000000e+00> : vector<8xf32>
    %1025 = vector.multi_reduction <add>, %1024, %cst_343 [1] : vector<8x128xf32> to vector<8xf32>
    %1026 = vector.shape_cast %1025 : vector<8xf32> to vector<8x1xf32>
    %cst_344 = arith.constant 1.000000e+00 : f32
    %1027 = vector.broadcast %cst_344 : f32 to vector<8x1xf32>
    %1028 = arith.subf %1026, %1027 : vector<8x1xf32>
    %cst_345 = arith.constant 0.000000e+00 : f32
    %1029 = vector.broadcast %cst_345 : f32 to vector<8x1xf32>
    %1030 = arith.cmpf ogt, %1028, %1029 : vector<8x1xf32>
    %1031 = arith.select %1030, %1020, %1016 : vector<8x1xi1>, vector<8x1xf32>
    %1032 = arith.select %1030, %1017, %1020 : vector<8x1xi1>, vector<8x1xf32>
    %1033 = arith.addf %1031, %1032 : vector<8x1xf32>
    %cst_346 = arith.constant 5.000000e-01 : f32
    %1034 = vector.broadcast %cst_346 : f32 to vector<8x1xf32>
    %1035 = arith.mulf %1034, %1033 : vector<8x1xf32>
    %1036 = vector.broadcast %1035 : vector<8x1xf32> to vector<8x128xf32>
    %1037 = arith.cmpf oge, %788, %1036 : vector<8x128xf32>
    %1038 = arith.extui %1037 : vector<8x128xi1> to vector<8x128xi32>
    %1039 = arith.sitofp %1038 : vector<8x128xi32> to vector<8x128xf32>
    %cst_347 = arith.constant dense<0.000000e+00> : vector<8xf32>
    %1040 = vector.multi_reduction <add>, %1039, %cst_347 [1] : vector<8x128xf32> to vector<8xf32>
    %1041 = vector.shape_cast %1040 : vector<8xf32> to vector<8x1xf32>
    %cst_348 = arith.constant 1.000000e+00 : f32
    %1042 = vector.broadcast %cst_348 : f32 to vector<8x1xf32>
    %1043 = arith.maximumf %1041, %1042 : vector<8x1xf32>
    %1044 = arith.mulf %788, %1039 : vector<8x128xf32>
    %cst_349 = arith.constant dense<0.000000e+00> : vector<8xf32>
    %1045 = vector.multi_reduction <add>, %1044, %cst_349 [1] : vector<8x128xf32> to vector<8xf32>
    %1046 = vector.shape_cast %1045 : vector<8xf32> to vector<8x1xf32>
    %cst_350 = arith.constant 1.000000e+00 : f32
    %1047 = vector.broadcast %cst_350 : f32 to vector<8x1xf32>
    %1048 = arith.subf %1046, %1047 : vector<8x1xf32>
    %1049 = arith.divf %1048, %1043 : vector<8x1xf32>
    %1050 = vector.broadcast %1049 : vector<8x1xf32> to vector<8x128xf32>
    %1051 = arith.cmpf oge, %788, %1050 : vector<8x128xf32>
    %1052 = arith.extui %1051 : vector<8x128xi1> to vector<8x128xi32>
    %1053 = arith.sitofp %1052 : vector<8x128xi32> to vector<8x128xf32>
    %cst_351 = arith.constant dense<0.000000e+00> : vector<8xf32>
    %1054 = vector.multi_reduction <add>, %1053, %cst_351 [1] : vector<8x128xf32> to vector<8xf32>
    %1055 = vector.shape_cast %1054 : vector<8xf32> to vector<8x1xf32>
    %cst_352 = arith.constant 1.000000e+00 : f32
    %1056 = vector.broadcast %cst_352 : f32 to vector<8x1xf32>
    %1057 = arith.maximumf %1055, %1056 : vector<8x1xf32>
    %1058 = arith.mulf %788, %1053 : vector<8x128xf32>
    %cst_353 = arith.constant dense<0.000000e+00> : vector<8xf32>
    %1059 = vector.multi_reduction <add>, %1058, %cst_353 [1] : vector<8x128xf32> to vector<8xf32>
    %1060 = vector.shape_cast %1059 : vector<8xf32> to vector<8x1xf32>
    %cst_354 = arith.constant 1.000000e+00 : f32
    %1061 = vector.broadcast %cst_354 : f32 to vector<8x1xf32>
    %1062 = arith.subf %1060, %1061 : vector<8x1xf32>
    %1063 = arith.divf %1062, %1057 : vector<8x1xf32>
    %1064 = vector.broadcast %1063 : vector<8x1xf32> to vector<8x128xf32>
    %1065 = arith.subf %788, %1064 : vector<8x128xf32>
    %cst_355 = arith.constant 0.000000e+00 : f32
    %1066 = vector.broadcast %cst_355 : f32 to vector<8x128xf32>
    %1067 = arith.maximumf %1065, %1066 : vector<8x128xf32>
    %c2_356 = arith.constant 2 : index
    %c0_357 = arith.constant 0 : index
    %c0_358 = arith.constant 0 : index
    %1068 = vector.load %arg14[%c2_356, %c0_357, %c0_358] : memref<4x8x128xf32, #tpu.memory_space<vmem>>, vector<1x8x128xf32>
    %1069 = vector.shape_cast %1068 : vector<1x8x128xf32> to vector<8x128xf32>
    %1070 = vector.shape_cast %1067 : vector<8x128xf32> to vector<1x8x128xf32>
    tpu.vector_store %arg14[%c2_356, %c0_357, %c0_358], %1070 {strides = array<i32>} : memref<4x8x128xf32, #tpu.memory_space<vmem>>, vector<1x8x128xf32>,
    %c2_359 = arith.constant 2 : index
    %c0_360 = arith.constant 0 : index
    %c0_361 = arith.constant 0 : index
    %1071 = vector.load %arg15[%c2_359, %c0_360, %c0_361] : memref<4x8x128xf32, #tpu.memory_space<vmem>>, vector<1x8x128xf32>
    %1072 = vector.shape_cast %1071 : vector<1x8x128xf32> to vector<8x128xf32>
    %1073 = vector.shape_cast %776 : vector<8x128xf32> to vector<1x8x128xf32>
    tpu.vector_store %arg15[%c2_359, %c0_360, %c0_361], %1073 {strides = array<i32>} : memref<4x8x128xf32, #tpu.memory_space<vmem>>, vector<1x8x128xf32>,
    %c3 = arith.constant 3 : index
    %c0_362 = arith.constant 0 : index
    %c0_363 = arith.constant 0 : index
    %1074 = vector.load %arg2[%c3, %c0_362, %c0_363] : memref<4x8x96xbf16, #tpu.memory_space<vmem>>, vector<1x8x96xbf16>
    %1075 = vector.shape_cast %1074 : vector<1x8x96xbf16> to vector<8x96xbf16>
    %1076 = arith.extf %1075 : vector<8x96xbf16> to vector<8x96xf32>
    %1077 = arith.truncf %780 : vector<8x32xf32> to vector<8x32xbf16>
    %cst_364 = arith.constant dense<0.000000e+00> : vector<8x96xf32>
    %1078 = tpu.matmul %1077, %6, %cst_364 {dimension_numbers = #tpu.dot_dimension_numbers<[1], [0], [0], [1], [0, 0, 1, 1], [], []>} : vector<8x32xbf16>, vector<32x96xbf16>, vector<8x96xf32> -> vector<8x96xf32>
    %1079 = arith.addf %1076, %1078 : vector<8x96xf32>
    %1080 = arith.truncf %756 : vector<8x32xf32> to vector<8x32xbf16>
    %cst_365 = arith.constant dense<0.000000e+00> : vector<8x96xf32>
    %1081 = tpu.matmul %1080, %7, %cst_365 {dimension_numbers = #tpu.dot_dimension_numbers<[1], [0], [0], [1], [0, 0, 1, 1], [], []>} : vector<8x32xbf16>, vector<32x96xbf16>, vector<8x96xf32> -> vector<8x96xf32>
    %1082 = vector.broadcast %8 : vector<1x96xf32> to vector<8x96xf32>
    %1083 = arith.addf %1081, %1082 : vector<8x96xf32>
    %1084 = vector.extract_strided_slice %1079 {offsets = [0, 0], sizes = [8, 32], strides = [1, 1]} : vector<8x96xf32> to vector<8x32xf32>
    %1085 = vector.extract_strided_slice %1083 {offsets = [0, 0], sizes = [8, 32], strides = [1, 1]} : vector<8x96xf32> to vector<8x32xf32>
    %1086 = arith.addf %1084, %1085 : vector<8x32xf32>
    %1087 = arith.negf %1086 : vector<8x32xf32>
    %1088 = math.exp %1087 : vector<8x32xf32>
    %cst_366 = arith.constant 1.000000e+00 : f32
    %1089 = vector.broadcast %cst_366 : f32 to vector<8x32xf32>
    %1090 = arith.addf %1089, %1088 : vector<8x32xf32>
    %1091 = arith.divf %1089, %1090 : vector<8x32xf32>
    %1092 = vector.extract_strided_slice %1079 {offsets = [0, 32], sizes = [8, 32], strides = [1, 1]} : vector<8x96xf32> to vector<8x32xf32>
    %1093 = vector.extract_strided_slice %1083 {offsets = [0, 32], sizes = [8, 32], strides = [1, 1]} : vector<8x96xf32> to vector<8x32xf32>
    %1094 = arith.addf %1092, %1093 : vector<8x32xf32>
    %1095 = arith.negf %1094 : vector<8x32xf32>
    %1096 = math.exp %1095 : vector<8x32xf32>
    %cst_367 = arith.constant 1.000000e+00 : f32
    %1097 = vector.broadcast %cst_367 : f32 to vector<8x32xf32>
    %1098 = arith.addf %1097, %1096 : vector<8x32xf32>
    %1099 = arith.divf %1097, %1098 : vector<8x32xf32>
    %1100 = vector.extract_strided_slice %1079 {offsets = [0, 64], sizes = [8, 32], strides = [1, 1]} : vector<8x96xf32> to vector<8x32xf32>
    %1101 = vector.extract_strided_slice %1083 {offsets = [0, 64], sizes = [8, 32], strides = [1, 1]} : vector<8x96xf32> to vector<8x32xf32>
    %1102 = arith.mulf %1091, %1101 : vector<8x32xf32>
    %1103 = arith.addf %1100, %1102 : vector<8x32xf32>
    %1104 = math.tanh %1103 : vector<8x32xf32>
    %cst_368 = arith.constant 1.000000e+00 : f32
    %1105 = vector.broadcast %cst_368 : f32 to vector<8x32xf32>
    %1106 = arith.subf %1105, %1099 : vector<8x32xf32>
    %1107 = arith.mulf %1106, %1104 : vector<8x32xf32>
    %1108 = arith.mulf %1099, %756 : vector<8x32xf32>
    %1109 = arith.addf %1107, %1108 : vector<8x32xf32>
    %1110 = vector.shape_cast %1109 : vector<8x32xf32> to vector<8x1x32xf32>
    %1111 = arith.truncf %1110 : vector<8x1x32xf32> to vector<8x1x32xbf16>
    "tpu.trace_start"() <{level = 10 : i32, message = "bqh,bhk->bqk"}> : () -> ()
    %cst_369 = arith.constant dense<0.000000e+00> : vector<8x1x128xf32>
    %1112 = tpu.matmul %1111, %4, %cst_369 {dimension_numbers = #tpu.dot_dimension_numbers<[2], [1], [1], [2], [0, 0, 0, 1, 1, 2], [0], [0]>} : vector<8x1x32xbf16>, vector<8x32x128xbf16>, vector<8x1x128xf32> -> vector<8x1x128xf32>
    "tpu.trace_stop"() : () -> ()
    %1113 = vector.shape_cast %1112 : vector<8x1x128xf32> to vector<8x128xf32>
    %1114 = vector.broadcast %11 : vector<1x128xf32> to vector<8x128xf32>
    %1115 = arith.addf %1113, %1114 : vector<8x128xf32>
    %cst_370 = arith.constant dense<0xFF800000> : vector<8xf32>
    %1116 = vector.multi_reduction <maximumf>, %1115, %cst_370 [1] : vector<8x128xf32> to vector<8xf32>
    %1117 = vector.shape_cast %1116 : vector<8xf32> to vector<8x1xf32>
    %1118 = vector.broadcast %1117 : vector<8x1xf32> to vector<8x128xf32>
    %1119 = arith.subf %1115, %1118 : vector<8x128xf32>
    %1120 = math.exp %1119 : vector<8x128xf32>
    %cst_371 = arith.constant dense<0.000000e+00> : vector<8xf32>
    %1121 = vector.multi_reduction <add>, %1120, %cst_371 [1] : vector<8x128xf32> to vector<8xf32>
    %1122 = vector.shape_cast %1121 : vector<8xf32> to vector<8x1xf32>
    %1123 = tpu.reciprocal %1122 {approx = true} : vector<8x1xf32> -> vector<8x1xf32>
    %1124 = arith.mulf %1122, %1123 : vector<8x1xf32>
    %cst_372 = arith.constant 2.000000e+00 : f32
    %1125 = vector.broadcast %cst_372 : f32 to vector<8x1xf32>
    %1126 = arith.subf %1125, %1124 : vector<8x1xf32>
    %1127 = arith.mulf %1123, %1126 : vector<8x1xf32>
    %1128 = vector.broadcast %1127 : vector<8x1xf32> to vector<8x128xf32>
    %1129 = arith.mulf %1120, %1128 : vector<8x128xf32>
    %1130 = vector.shape_cast %1129 : vector<8x128xf32> to vector<8x1x128xf32>
    %1131 = arith.truncf %1130 : vector<8x1x128xf32> to vector<8x1x128xbf16>
    "tpu.trace_start"() <{level = 10 : i32, message = "bqk,bkh->bqh"}> : () -> ()
    %cst_373 = arith.constant dense<0.000000e+00> : vector<8x1x32xf32>
    %1132 = tpu.matmul %1131, %3, %cst_373 {dimension_numbers = #tpu.dot_dimension_numbers<[2], [1], [1], [2], [0, 0, 0, 1, 1, 2], [0], [0]>} : vector<8x1x128xbf16>, vector<8x128x32xbf16>, vector<8x1x32xf32> -> vector<8x1x32xf32>
    "tpu.trace_stop"() : () -> ()
    %1133 = vector.shape_cast %1132 : vector<8x1x32xf32> to vector<8x32xf32>
    %1134 = arith.truncf %1109 : vector<8x32xf32> to vector<8x32xbf16>
    %cst_374 = arith.constant dense<0.000000e+00> : vector<8x32xf32>
    %1135 = tpu.matmul %1134, %9, %cst_374 {dimension_numbers = #tpu.dot_dimension_numbers<[1], [0], [0], [1], [0, 0, 1, 1], [], []>} : vector<8x32xbf16>, vector<32x32xbf16>, vector<8x32xf32> -> vector<8x32xf32>
    %1136 = vector.broadcast %10 : vector<1x32xf32> to vector<8x32xf32>
    %1137 = arith.addf %1135, %1136 : vector<8x32xf32>
    %1138 = arith.truncf %1137 : vector<8x32xf32> to vector<8x32xbf16>
    %cst_375 = arith.constant dense<0.000000e+00> : vector<8x128xf32>
    %1139 = tpu.matmul %1138, %5, %cst_375 {dimension_numbers = #tpu.dot_dimension_numbers<[1], [0], [0], [1], [0, 0, 1, 1], [], []>} : vector<8x32xbf16>, vector<32x128xbf16>, vector<8x128xf32> -> vector<8x128xf32>
    %1140 = vector.broadcast %12 : vector<1x128xf32> to vector<8x128xf32>
    %1141 = arith.addf %1139, %1140 : vector<8x128xf32>
    %cst_376 = arith.constant dense<0xFF800000> : vector<8xf32>
    %1142 = vector.multi_reduction <maximumf>, %1141, %cst_376 [1] : vector<8x128xf32> to vector<8xf32>
    %1143 = vector.shape_cast %1142 : vector<8xf32> to vector<8x1xf32>
    %cst_377 = arith.constant 1.000000e+00 : f32
    %1144 = vector.broadcast %cst_377 : f32 to vector<8x1xf32>
    %1145 = arith.subf %1143, %1144 : vector<8x1xf32>
    %1146 = arith.addf %1145, %1143 : vector<8x1xf32>
    %cst_378 = arith.constant 5.000000e-01 : f32
    %1147 = vector.broadcast %cst_378 : f32 to vector<8x1xf32>
    %1148 = arith.mulf %1147, %1146 : vector<8x1xf32>
    %1149 = vector.broadcast %1148 : vector<8x1xf32> to vector<8x128xf32>
    %1150 = arith.subf %1141, %1149 : vector<8x128xf32>
    %cst_379 = arith.constant 0.000000e+00 : f32
    %1151 = vector.broadcast %cst_379 : f32 to vector<8x128xf32>
    %1152 = arith.maximumf %1150, %1151 : vector<8x128xf32>
    %cst_380 = arith.constant dense<0.000000e+00> : vector<8xf32>
    %1153 = vector.multi_reduction <add>, %1152, %cst_380 [1] : vector<8x128xf32> to vector<8xf32>
    %1154 = vector.shape_cast %1153 : vector<8xf32> to vector<8x1xf32>
    %cst_381 = arith.constant 1.000000e+00 : f32
    %1155 = vector.broadcast %cst_381 : f32 to vector<8x1xf32>
    %1156 = arith.subf %1154, %1155 : vector<8x1xf32>
    %cst_382 = arith.constant 0.000000e+00 : f32
    %1157 = vector.broadcast %cst_382 : f32 to vector<8x1xf32>
    %1158 = arith.cmpf ogt, %1156, %1157 : vector<8x1xf32>
    %1159 = arith.select %1158, %1148, %1145 : vector<8x1xi1>, vector<8x1xf32>
    %1160 = arith.select %1158, %1143, %1148 : vector<8x1xi1>, vector<8x1xf32>
    %1161 = arith.addf %1159, %1160 : vector<8x1xf32>
    %cst_383 = arith.constant 5.000000e-01 : f32
    %1162 = vector.broadcast %cst_383 : f32 to vector<8x1xf32>
    %1163 = arith.mulf %1162, %1161 : vector<8x1xf32>
    %1164 = vector.broadcast %1163 : vector<8x1xf32> to vector<8x128xf32>
    %1165 = arith.subf %1141, %1164 : vector<8x128xf32>
    %cst_384 = arith.constant 0.000000e+00 : f32
    %1166 = vector.broadcast %cst_384 : f32 to vector<8x128xf32>
    %1167 = arith.maximumf %1165, %1166 : vector<8x128xf32>
    %cst_385 = arith.constant dense<0.000000e+00> : vector<8xf32>
    %1168 = vector.multi_reduction <add>, %1167, %cst_385 [1] : vector<8x128xf32> to vector<8xf32>
    %1169 = vector.shape_cast %1168 : vector<8xf32> to vector<8x1xf32>
    %cst_386 = arith.constant 1.000000e+00 : f32
    %1170 = vector.broadcast %cst_386 : f32 to vector<8x1xf32>
    %1171 = arith.subf %1169, %1170 : vector<8x1xf32>
    %cst_387 = arith.constant 0.000000e+00 : f32
    %1172 = vector.broadcast %cst_387 : f32 to vector<8x1xf32>
    %1173 = arith.cmpf ogt, %1171, %1172 : vector<8x1xf32>
    %1174 = arith.select %1173, %1163, %1159 : vector<8x1xi1>, vector<8x1xf32>
    %1175 = arith.select %1173, %1160, %1163 : vector<8x1xi1>, vector<8x1xf32>
    %1176 = arith.addf %1174, %1175 : vector<8x1xf32>
    %cst_388 = arith.constant 5.000000e-01 : f32
    %1177 = vector.broadcast %cst_388 : f32 to vector<8x1xf32>
    %1178 = arith.mulf %1177, %1176 : vector<8x1xf32>
    %1179 = vector.broadcast %1178 : vector<8x1xf32> to vector<8x128xf32>
    %1180 = arith.subf %1141, %1179 : vector<8x128xf32>
    %cst_389 = arith.constant 0.000000e+00 : f32
    %1181 = vector.broadcast %cst_389 : f32 to vector<8x128xf32>
    %1182 = arith.maximumf %1180, %1181 : vector<8x128xf32>
    %cst_390 = arith.constant dense<0.000000e+00> : vector<8xf32>
    %1183 = vector.multi_reduction <add>, %1182, %cst_390 [1] : vector<8x128xf32> to vector<8xf32>
    %1184 = vector.shape_cast %1183 : vector<8xf32> to vector<8x1xf32>
    %cst_391 = arith.constant 1.000000e+00 : f32
    %1185 = vector.broadcast %cst_391 : f32 to vector<8x1xf32>
    %1186 = arith.subf %1184, %1185 : vector<8x1xf32>
    %cst_392 = arith.constant 0.000000e+00 : f32
    %1187 = vector.broadcast %cst_392 : f32 to vector<8x1xf32>
    %1188 = arith.cmpf ogt, %1186, %1187 : vector<8x1xf32>
    %1189 = arith.select %1188, %1178, %1174 : vector<8x1xi1>, vector<8x1xf32>
    %1190 = arith.select %1188, %1175, %1178 : vector<8x1xi1>, vector<8x1xf32>
    %1191 = arith.addf %1189, %1190 : vector<8x1xf32>
    %cst_393 = arith.constant 5.000000e-01 : f32
    %1192 = vector.broadcast %cst_393 : f32 to vector<8x1xf32>
    %1193 = arith.mulf %1192, %1191 : vector<8x1xf32>
    %1194 = vector.broadcast %1193 : vector<8x1xf32> to vector<8x128xf32>
    %1195 = arith.subf %1141, %1194 : vector<8x128xf32>
    %cst_394 = arith.constant 0.000000e+00 : f32
    %1196 = vector.broadcast %cst_394 : f32 to vector<8x128xf32>
    %1197 = arith.maximumf %1195, %1196 : vector<8x128xf32>
    %cst_395 = arith.constant dense<0.000000e+00> : vector<8xf32>
    %1198 = vector.multi_reduction <add>, %1197, %cst_395 [1] : vector<8x128xf32> to vector<8xf32>
    %1199 = vector.shape_cast %1198 : vector<8xf32> to vector<8x1xf32>
    %cst_396 = arith.constant 1.000000e+00 : f32
    %1200 = vector.broadcast %cst_396 : f32 to vector<8x1xf32>
    %1201 = arith.subf %1199, %1200 : vector<8x1xf32>
    %cst_397 = arith.constant 0.000000e+00 : f32
    %1202 = vector.broadcast %cst_397 : f32 to vector<8x1xf32>
    %1203 = arith.cmpf ogt, %1201, %1202 : vector<8x1xf32>
    %1204 = arith.select %1203, %1193, %1189 : vector<8x1xi1>, vector<8x1xf32>
    %1205 = arith.select %1203, %1190, %1193 : vector<8x1xi1>, vector<8x1xf32>
    %1206 = arith.addf %1204, %1205 : vector<8x1xf32>
    %cst_398 = arith.constant 5.000000e-01 : f32
    %1207 = vector.broadcast %cst_398 : f32 to vector<8x1xf32>
    %1208 = arith.mulf %1207, %1206 : vector<8x1xf32>
    %1209 = vector.broadcast %1208 : vector<8x1xf32> to vector<8x128xf32>
    %1210 = arith.subf %1141, %1209 : vector<8x128xf32>
    %cst_399 = arith.constant 0.000000e+00 : f32
    %1211 = vector.broadcast %cst_399 : f32 to vector<8x128xf32>
    %1212 = arith.maximumf %1210, %1211 : vector<8x128xf32>
    %cst_400 = arith.constant dense<0.000000e+00> : vector<8xf32>
    %1213 = vector.multi_reduction <add>, %1212, %cst_400 [1] : vector<8x128xf32> to vector<8xf32>
    %1214 = vector.shape_cast %1213 : vector<8xf32> to vector<8x1xf32>
    %cst_401 = arith.constant 1.000000e+00 : f32
    %1215 = vector.broadcast %cst_401 : f32 to vector<8x1xf32>
    %1216 = arith.subf %1214, %1215 : vector<8x1xf32>
    %cst_402 = arith.constant 0.000000e+00 : f32
    %1217 = vector.broadcast %cst_402 : f32 to vector<8x1xf32>
    %1218 = arith.cmpf ogt, %1216, %1217 : vector<8x1xf32>
    %1219 = arith.select %1218, %1208, %1204 : vector<8x1xi1>, vector<8x1xf32>
    %1220 = arith.select %1218, %1205, %1208 : vector<8x1xi1>, vector<8x1xf32>
    %1221 = arith.addf %1219, %1220 : vector<8x1xf32>
    %cst_403 = arith.constant 5.000000e-01 : f32
    %1222 = vector.broadcast %cst_403 : f32 to vector<8x1xf32>
    %1223 = arith.mulf %1222, %1221 : vector<8x1xf32>
    %1224 = vector.broadcast %1223 : vector<8x1xf32> to vector<8x128xf32>
    %1225 = arith.subf %1141, %1224 : vector<8x128xf32>
    %cst_404 = arith.constant 0.000000e+00 : f32
    %1226 = vector.broadcast %cst_404 : f32 to vector<8x128xf32>
    %1227 = arith.maximumf %1225, %1226 : vector<8x128xf32>
    %cst_405 = arith.constant dense<0.000000e+00> : vector<8xf32>
    %1228 = vector.multi_reduction <add>, %1227, %cst_405 [1] : vector<8x128xf32> to vector<8xf32>
    %1229 = vector.shape_cast %1228 : vector<8xf32> to vector<8x1xf32>
    %cst_406 = arith.constant 1.000000e+00 : f32
    %1230 = vector.broadcast %cst_406 : f32 to vector<8x1xf32>
    %1231 = arith.subf %1229, %1230 : vector<8x1xf32>
    %cst_407 = arith.constant 0.000000e+00 : f32
    %1232 = vector.broadcast %cst_407 : f32 to vector<8x1xf32>
    %1233 = arith.cmpf ogt, %1231, %1232 : vector<8x1xf32>
    %1234 = arith.select %1233, %1223, %1219 : vector<8x1xi1>, vector<8x1xf32>
    %1235 = arith.select %1233, %1220, %1223 : vector<8x1xi1>, vector<8x1xf32>
    %1236 = arith.addf %1234, %1235 : vector<8x1xf32>
    %cst_408 = arith.constant 5.000000e-01 : f32
    %1237 = vector.broadcast %cst_408 : f32 to vector<8x1xf32>
    %1238 = arith.mulf %1237, %1236 : vector<8x1xf32>
    %1239 = vector.broadcast %1238 : vector<8x1xf32> to vector<8x128xf32>
    %1240 = arith.subf %1141, %1239 : vector<8x128xf32>
    %cst_409 = arith.constant 0.000000e+00 : f32
    %1241 = vector.broadcast %cst_409 : f32 to vector<8x128xf32>
    %1242 = arith.maximumf %1240, %1241 : vector<8x128xf32>
    %cst_410 = arith.constant dense<0.000000e+00> : vector<8xf32>
    %1243 = vector.multi_reduction <add>, %1242, %cst_410 [1] : vector<8x128xf32> to vector<8xf32>
    %1244 = vector.shape_cast %1243 : vector<8xf32> to vector<8x1xf32>
    %cst_411 = arith.constant 1.000000e+00 : f32
    %1245 = vector.broadcast %cst_411 : f32 to vector<8x1xf32>
    %1246 = arith.subf %1244, %1245 : vector<8x1xf32>
    %cst_412 = arith.constant 0.000000e+00 : f32
    %1247 = vector.broadcast %cst_412 : f32 to vector<8x1xf32>
    %1248 = arith.cmpf ogt, %1246, %1247 : vector<8x1xf32>
    %1249 = arith.select %1248, %1238, %1234 : vector<8x1xi1>, vector<8x1xf32>
    %1250 = arith.select %1248, %1235, %1238 : vector<8x1xi1>, vector<8x1xf32>
    %1251 = arith.addf %1249, %1250 : vector<8x1xf32>
    %cst_413 = arith.constant 5.000000e-01 : f32
    %1252 = vector.broadcast %cst_413 : f32 to vector<8x1xf32>
    %1253 = arith.mulf %1252, %1251 : vector<8x1xf32>
    %1254 = vector.broadcast %1253 : vector<8x1xf32> to vector<8x128xf32>
    %1255 = arith.subf %1141, %1254 : vector<8x128xf32>
    %cst_414 = arith.constant 0.000000e+00 : f32
    %1256 = vector.broadcast %cst_414 : f32 to vector<8x128xf32>
    %1257 = arith.maximumf %1255, %1256 : vector<8x128xf32>
    %cst_415 = arith.constant dense<0.000000e+00> : vector<8xf32>
    %1258 = vector.multi_reduction <add>, %1257, %cst_415 [1] : vector<8x128xf32> to vector<8xf32>
    %1259 = vector.shape_cast %1258 : vector<8xf32> to vector<8x1xf32>
    %cst_416 = arith.constant 1.000000e+00 : f32
    %1260 = vector.broadcast %cst_416 : f32 to vector<8x1xf32>
    %1261 = arith.subf %1259, %1260 : vector<8x1xf32>
    %cst_417 = arith.constant 0.000000e+00 : f32
    %1262 = vector.broadcast %cst_417 : f32 to vector<8x1xf32>
    %1263 = arith.cmpf ogt, %1261, %1262 : vector<8x1xf32>
    %1264 = arith.select %1263, %1253, %1249 : vector<8x1xi1>, vector<8x1xf32>
    %1265 = arith.select %1263, %1250, %1253 : vector<8x1xi1>, vector<8x1xf32>
    %1266 = arith.addf %1264, %1265 : vector<8x1xf32>
    %cst_418 = arith.constant 5.000000e-01 : f32
    %1267 = vector.broadcast %cst_418 : f32 to vector<8x1xf32>
    %1268 = arith.mulf %1267, %1266 : vector<8x1xf32>
    %1269 = vector.broadcast %1268 : vector<8x1xf32> to vector<8x128xf32>
    %1270 = arith.subf %1141, %1269 : vector<8x128xf32>
    %cst_419 = arith.constant 0.000000e+00 : f32
    %1271 = vector.broadcast %cst_419 : f32 to vector<8x128xf32>
    %1272 = arith.maximumf %1270, %1271 : vector<8x128xf32>
    %cst_420 = arith.constant dense<0.000000e+00> : vector<8xf32>
    %1273 = vector.multi_reduction <add>, %1272, %cst_420 [1] : vector<8x128xf32> to vector<8xf32>
    %1274 = vector.shape_cast %1273 : vector<8xf32> to vector<8x1xf32>
    %cst_421 = arith.constant 1.000000e+00 : f32
    %1275 = vector.broadcast %cst_421 : f32 to vector<8x1xf32>
    %1276 = arith.subf %1274, %1275 : vector<8x1xf32>
    %cst_422 = arith.constant 0.000000e+00 : f32
    %1277 = vector.broadcast %cst_422 : f32 to vector<8x1xf32>
    %1278 = arith.cmpf ogt, %1276, %1277 : vector<8x1xf32>
    %1279 = arith.select %1278, %1268, %1264 : vector<8x1xi1>, vector<8x1xf32>
    %1280 = arith.select %1278, %1265, %1268 : vector<8x1xi1>, vector<8x1xf32>
    %1281 = arith.addf %1279, %1280 : vector<8x1xf32>
    %cst_423 = arith.constant 5.000000e-01 : f32
    %1282 = vector.broadcast %cst_423 : f32 to vector<8x1xf32>
    %1283 = arith.mulf %1282, %1281 : vector<8x1xf32>
    %1284 = vector.broadcast %1283 : vector<8x1xf32> to vector<8x128xf32>
    %1285 = arith.subf %1141, %1284 : vector<8x128xf32>
    %cst_424 = arith.constant 0.000000e+00 : f32
    %1286 = vector.broadcast %cst_424 : f32 to vector<8x128xf32>
    %1287 = arith.maximumf %1285, %1286 : vector<8x128xf32>
    %cst_425 = arith.constant dense<0.000000e+00> : vector<8xf32>
    %1288 = vector.multi_reduction <add>, %1287, %cst_425 [1] : vector<8x128xf32> to vector<8xf32>
    %1289 = vector.shape_cast %1288 : vector<8xf32> to vector<8x1xf32>
    %cst_426 = arith.constant 1.000000e+00 : f32
    %1290 = vector.broadcast %cst_426 : f32 to vector<8x1xf32>
    %1291 = arith.subf %1289, %1290 : vector<8x1xf32>
    %cst_427 = arith.constant 0.000000e+00 : f32
    %1292 = vector.broadcast %cst_427 : f32 to vector<8x1xf32>
    %1293 = arith.cmpf ogt, %1291, %1292 : vector<8x1xf32>
    %1294 = arith.select %1293, %1283, %1279 : vector<8x1xi1>, vector<8x1xf32>
    %1295 = arith.select %1293, %1280, %1283 : vector<8x1xi1>, vector<8x1xf32>
    %1296 = arith.addf %1294, %1295 : vector<8x1xf32>
    %cst_428 = arith.constant 5.000000e-01 : f32
    %1297 = vector.broadcast %cst_428 : f32 to vector<8x1xf32>
    %1298 = arith.mulf %1297, %1296 : vector<8x1xf32>
    %1299 = vector.broadcast %1298 : vector<8x1xf32> to vector<8x128xf32>
    %1300 = arith.subf %1141, %1299 : vector<8x128xf32>
    %cst_429 = arith.constant 0.000000e+00 : f32
    %1301 = vector.broadcast %cst_429 : f32 to vector<8x128xf32>
    %1302 = arith.maximumf %1300, %1301 : vector<8x128xf32>
    %cst_430 = arith.constant dense<0.000000e+00> : vector<8xf32>
    %1303 = vector.multi_reduction <add>, %1302, %cst_430 [1] : vector<8x128xf32> to vector<8xf32>
    %1304 = vector.shape_cast %1303 : vector<8xf32> to vector<8x1xf32>
    %cst_431 = arith.constant 1.000000e+00 : f32
    %1305 = vector.broadcast %cst_431 : f32 to vector<8x1xf32>
    %1306 = arith.subf %1304, %1305 : vector<8x1xf32>
    %cst_432 = arith.constant 0.000000e+00 : f32
    %1307 = vector.broadcast %cst_432 : f32 to vector<8x1xf32>
    %1308 = arith.cmpf ogt, %1306, %1307 : vector<8x1xf32>
    %1309 = arith.select %1308, %1298, %1294 : vector<8x1xi1>, vector<8x1xf32>
    %1310 = arith.select %1308, %1295, %1298 : vector<8x1xi1>, vector<8x1xf32>
    %1311 = arith.addf %1309, %1310 : vector<8x1xf32>
    %cst_433 = arith.constant 5.000000e-01 : f32
    %1312 = vector.broadcast %cst_433 : f32 to vector<8x1xf32>
    %1313 = arith.mulf %1312, %1311 : vector<8x1xf32>
    %1314 = vector.broadcast %1313 : vector<8x1xf32> to vector<8x128xf32>
    %1315 = arith.subf %1141, %1314 : vector<8x128xf32>
    %cst_434 = arith.constant 0.000000e+00 : f32
    %1316 = vector.broadcast %cst_434 : f32 to vector<8x128xf32>
    %1317 = arith.maximumf %1315, %1316 : vector<8x128xf32>
    %cst_435 = arith.constant dense<0.000000e+00> : vector<8xf32>
    %1318 = vector.multi_reduction <add>, %1317, %cst_435 [1] : vector<8x128xf32> to vector<8xf32>
    %1319 = vector.shape_cast %1318 : vector<8xf32> to vector<8x1xf32>
    %cst_436 = arith.constant 1.000000e+00 : f32
    %1320 = vector.broadcast %cst_436 : f32 to vector<8x1xf32>
    %1321 = arith.subf %1319, %1320 : vector<8x1xf32>
    %cst_437 = arith.constant 0.000000e+00 : f32
    %1322 = vector.broadcast %cst_437 : f32 to vector<8x1xf32>
    %1323 = arith.cmpf ogt, %1321, %1322 : vector<8x1xf32>
    %1324 = arith.select %1323, %1313, %1309 : vector<8x1xi1>, vector<8x1xf32>
    %1325 = arith.select %1323, %1310, %1313 : vector<8x1xi1>, vector<8x1xf32>
    %1326 = arith.addf %1324, %1325 : vector<8x1xf32>
    %cst_438 = arith.constant 5.000000e-01 : f32
    %1327 = vector.broadcast %cst_438 : f32 to vector<8x1xf32>
    %1328 = arith.mulf %1327, %1326 : vector<8x1xf32>
    %1329 = vector.broadcast %1328 : vector<8x1xf32> to vector<8x128xf32>
    %1330 = arith.subf %1141, %1329 : vector<8x128xf32>
    %cst_439 = arith.constant 0.000000e+00 : f32
    %1331 = vector.broadcast %cst_439 : f32 to vector<8x128xf32>
    %1332 = arith.maximumf %1330, %1331 : vector<8x128xf32>
    %cst_440 = arith.constant dense<0.000000e+00> : vector<8xf32>
    %1333 = vector.multi_reduction <add>, %1332, %cst_440 [1] : vector<8x128xf32> to vector<8xf32>
    %1334 = vector.shape_cast %1333 : vector<8xf32> to vector<8x1xf32>
    %cst_441 = arith.constant 1.000000e+00 : f32
    %1335 = vector.broadcast %cst_441 : f32 to vector<8x1xf32>
    %1336 = arith.subf %1334, %1335 : vector<8x1xf32>
    %cst_442 = arith.constant 0.000000e+00 : f32
    %1337 = vector.broadcast %cst_442 : f32 to vector<8x1xf32>
    %1338 = arith.cmpf ogt, %1336, %1337 : vector<8x1xf32>
    %1339 = arith.select %1338, %1328, %1324 : vector<8x1xi1>, vector<8x1xf32>
    %1340 = arith.select %1338, %1325, %1328 : vector<8x1xi1>, vector<8x1xf32>
    %1341 = arith.addf %1339, %1340 : vector<8x1xf32>
    %cst_443 = arith.constant 5.000000e-01 : f32
    %1342 = vector.broadcast %cst_443 : f32 to vector<8x1xf32>
    %1343 = arith.mulf %1342, %1341 : vector<8x1xf32>
    %1344 = vector.broadcast %1343 : vector<8x1xf32> to vector<8x128xf32>
    %1345 = arith.subf %1141, %1344 : vector<8x128xf32>
    %cst_444 = arith.constant 0.000000e+00 : f32
    %1346 = vector.broadcast %cst_444 : f32 to vector<8x128xf32>
    %1347 = arith.maximumf %1345, %1346 : vector<8x128xf32>
    %cst_445 = arith.constant dense<0.000000e+00> : vector<8xf32>
    %1348 = vector.multi_reduction <add>, %1347, %cst_445 [1] : vector<8x128xf32> to vector<8xf32>
    %1349 = vector.shape_cast %1348 : vector<8xf32> to vector<8x1xf32>
    %cst_446 = arith.constant 1.000000e+00 : f32
    %1350 = vector.broadcast %cst_446 : f32 to vector<8x1xf32>
    %1351 = arith.subf %1349, %1350 : vector<8x1xf32>
    %cst_447 = arith.constant 0.000000e+00 : f32
    %1352 = vector.broadcast %cst_447 : f32 to vector<8x1xf32>
    %1353 = arith.cmpf ogt, %1351, %1352 : vector<8x1xf32>
    %1354 = arith.select %1353, %1343, %1339 : vector<8x1xi1>, vector<8x1xf32>
    %1355 = arith.select %1353, %1340, %1343 : vector<8x1xi1>, vector<8x1xf32>
    %1356 = arith.addf %1354, %1355 : vector<8x1xf32>
    %cst_448 = arith.constant 5.000000e-01 : f32
    %1357 = vector.broadcast %cst_448 : f32 to vector<8x1xf32>
    %1358 = arith.mulf %1357, %1356 : vector<8x1xf32>
    %1359 = vector.broadcast %1358 : vector<8x1xf32> to vector<8x128xf32>
    %1360 = arith.subf %1141, %1359 : vector<8x128xf32>
    %cst_449 = arith.constant 0.000000e+00 : f32
    %1361 = vector.broadcast %cst_449 : f32 to vector<8x128xf32>
    %1362 = arith.maximumf %1360, %1361 : vector<8x128xf32>
    %cst_450 = arith.constant dense<0.000000e+00> : vector<8xf32>
    %1363 = vector.multi_reduction <add>, %1362, %cst_450 [1] : vector<8x128xf32> to vector<8xf32>
    %1364 = vector.shape_cast %1363 : vector<8xf32> to vector<8x1xf32>
    %cst_451 = arith.constant 1.000000e+00 : f32
    %1365 = vector.broadcast %cst_451 : f32 to vector<8x1xf32>
    %1366 = arith.subf %1364, %1365 : vector<8x1xf32>
    %cst_452 = arith.constant 0.000000e+00 : f32
    %1367 = vector.broadcast %cst_452 : f32 to vector<8x1xf32>
    %1368 = arith.cmpf ogt, %1366, %1367 : vector<8x1xf32>
    %1369 = arith.select %1368, %1358, %1354 : vector<8x1xi1>, vector<8x1xf32>
    %1370 = arith.select %1368, %1355, %1358 : vector<8x1xi1>, vector<8x1xf32>
    %1371 = arith.addf %1369, %1370 : vector<8x1xf32>
    %cst_453 = arith.constant 5.000000e-01 : f32
    %1372 = vector.broadcast %cst_453 : f32 to vector<8x1xf32>
    %1373 = arith.mulf %1372, %1371 : vector<8x1xf32>
    %1374 = vector.broadcast %1373 : vector<8x1xf32> to vector<8x128xf32>
    %1375 = arith.subf %1141, %1374 : vector<8x128xf32>
    %cst_454 = arith.constant 0.000000e+00 : f32
    %1376 = vector.broadcast %cst_454 : f32 to vector<8x128xf32>
    %1377 = arith.maximumf %1375, %1376 : vector<8x128xf32>
    %cst_455 = arith.constant dense<0.000000e+00> : vector<8xf32>
    %1378 = vector.multi_reduction <add>, %1377, %cst_455 [1] : vector<8x128xf32> to vector<8xf32>
    %1379 = vector.shape_cast %1378 : vector<8xf32> to vector<8x1xf32>
    %cst_456 = arith.constant 1.000000e+00 : f32
    %1380 = vector.broadcast %cst_456 : f32 to vector<8x1xf32>
    %1381 = arith.subf %1379, %1380 : vector<8x1xf32>
    %cst_457 = arith.constant 0.000000e+00 : f32
    %1382 = vector.broadcast %cst_457 : f32 to vector<8x1xf32>
    %1383 = arith.cmpf ogt, %1381, %1382 : vector<8x1xf32>
    %1384 = arith.select %1383, %1373, %1369 : vector<8x1xi1>, vector<8x1xf32>
    %1385 = arith.select %1383, %1370, %1373 : vector<8x1xi1>, vector<8x1xf32>
    %1386 = arith.addf %1384, %1385 : vector<8x1xf32>
    %cst_458 = arith.constant 5.000000e-01 : f32
    %1387 = vector.broadcast %cst_458 : f32 to vector<8x1xf32>
    %1388 = arith.mulf %1387, %1386 : vector<8x1xf32>
    %1389 = vector.broadcast %1388 : vector<8x1xf32> to vector<8x128xf32>
    %1390 = arith.cmpf oge, %1141, %1389 : vector<8x128xf32>
    %1391 = arith.extui %1390 : vector<8x128xi1> to vector<8x128xi32>
    %1392 = arith.sitofp %1391 : vector<8x128xi32> to vector<8x128xf32>
    %cst_459 = arith.constant dense<0.000000e+00> : vector<8xf32>
    %1393 = vector.multi_reduction <add>, %1392, %cst_459 [1] : vector<8x128xf32> to vector<8xf32>
    %1394 = vector.shape_cast %1393 : vector<8xf32> to vector<8x1xf32>
    %cst_460 = arith.constant 1.000000e+00 : f32
    %1395 = vector.broadcast %cst_460 : f32 to vector<8x1xf32>
    %1396 = arith.maximumf %1394, %1395 : vector<8x1xf32>
    %1397 = arith.mulf %1141, %1392 : vector<8x128xf32>
    %cst_461 = arith.constant dense<0.000000e+00> : vector<8xf32>
    %1398 = vector.multi_reduction <add>, %1397, %cst_461 [1] : vector<8x128xf32> to vector<8xf32>
    %1399 = vector.shape_cast %1398 : vector<8xf32> to vector<8x1xf32>
    %cst_462 = arith.constant 1.000000e+00 : f32
    %1400 = vector.broadcast %cst_462 : f32 to vector<8x1xf32>
    %1401 = arith.subf %1399, %1400 : vector<8x1xf32>
    %1402 = arith.divf %1401, %1396 : vector<8x1xf32>
    %1403 = vector.broadcast %1402 : vector<8x1xf32> to vector<8x128xf32>
    %1404 = arith.cmpf oge, %1141, %1403 : vector<8x128xf32>
    %1405 = arith.extui %1404 : vector<8x128xi1> to vector<8x128xi32>
    %1406 = arith.sitofp %1405 : vector<8x128xi32> to vector<8x128xf32>
    %cst_463 = arith.constant dense<0.000000e+00> : vector<8xf32>
    %1407 = vector.multi_reduction <add>, %1406, %cst_463 [1] : vector<8x128xf32> to vector<8xf32>
    %1408 = vector.shape_cast %1407 : vector<8xf32> to vector<8x1xf32>
    %cst_464 = arith.constant 1.000000e+00 : f32
    %1409 = vector.broadcast %cst_464 : f32 to vector<8x1xf32>
    %1410 = arith.maximumf %1408, %1409 : vector<8x1xf32>
    %1411 = arith.mulf %1141, %1406 : vector<8x128xf32>
    %cst_465 = arith.constant dense<0.000000e+00> : vector<8xf32>
    %1412 = vector.multi_reduction <add>, %1411, %cst_465 [1] : vector<8x128xf32> to vector<8xf32>
    %1413 = vector.shape_cast %1412 : vector<8xf32> to vector<8x1xf32>
    %cst_466 = arith.constant 1.000000e+00 : f32
    %1414 = vector.broadcast %cst_466 : f32 to vector<8x1xf32>
    %1415 = arith.subf %1413, %1414 : vector<8x1xf32>
    %1416 = arith.divf %1415, %1410 : vector<8x1xf32>
    %1417 = vector.broadcast %1416 : vector<8x1xf32> to vector<8x128xf32>
    %1418 = arith.subf %1141, %1417 : vector<8x128xf32>
    %cst_467 = arith.constant 0.000000e+00 : f32
    %1419 = vector.broadcast %cst_467 : f32 to vector<8x128xf32>
    %1420 = arith.maximumf %1418, %1419 : vector<8x128xf32>
    %c3_468 = arith.constant 3 : index
    %c0_469 = arith.constant 0 : index
    %c0_470 = arith.constant 0 : index
    %1421 = vector.load %arg14[%c3_468, %c0_469, %c0_470] : memref<4x8x128xf32, #tpu.memory_space<vmem>>, vector<1x8x128xf32>
    %1422 = vector.shape_cast %1421 : vector<1x8x128xf32> to vector<8x128xf32>
    %1423 = vector.shape_cast %1420 : vector<8x128xf32> to vector<1x8x128xf32>
    tpu.vector_store %arg14[%c3_468, %c0_469, %c0_470], %1423 {strides = array<i32>} : memref<4x8x128xf32, #tpu.memory_space<vmem>>, vector<1x8x128xf32>,
    %c3_471 = arith.constant 3 : index
    %c0_472 = arith.constant 0 : index
    %c0_473 = arith.constant 0 : index
    %1424 = vector.load %arg15[%c3_471, %c0_472, %c0_473] : memref<4x8x128xf32, #tpu.memory_space<vmem>>, vector<1x8x128xf32>
    %1425 = vector.shape_cast %1424 : vector<1x8x128xf32> to vector<8x128xf32>
    %1426 = vector.shape_cast %1129 : vector<8x128xf32> to vector<1x8x128xf32>
    tpu.vector_store %arg15[%c3_471, %c0_472, %c0_473], %1426 {strides = array<i32>} : memref<4x8x128xf32, #tpu.memory_space<vmem>>, vector<1x8x128xf32>,
    %c0_474 = arith.constant 0 : index
    %c0_475 = arith.constant 0 : index
    %1427 = vector.load %arg16[%c0_474, %c0_475] : memref<8x32xf32, #tpu.memory_space<vmem>>, vector<8x32xf32>
    tpu.vector_store %arg16[%c0_474, %c0_475], %1109 {strides = array<i32>} : memref<8x32xf32, #tpu.memory_space<vmem>>, vector<8x32xf32>,
    %c0_476 = arith.constant 0 : index
    %c0_477 = arith.constant 0 : index
    %1428 = vector.load %arg17[%c0_476, %c0_477] : memref<8x32xf32, #tpu.memory_space<vmem>>, vector<8x32xf32>
    tpu.vector_store %arg17[%c0_476, %c0_477], %1133 {strides = array<i32>} : memref<8x32xf32, #tpu.memory_space<vmem>>, vector<8x32xf32>,
    return
  }
  func.func @transform_0(%arg0: i32, %arg1: i32) -> (i32, i32, i32) {
    %c0_i32 = arith.constant 0 : i32
    %c0_i32_0 = arith.constant 0 : i32
    return %arg1, %arg0, %c0_i32 : i32, i32, i32
  }
  func.func @transform_1(%arg0: i32, %arg1: i32) -> (i32, i32, i32) {
    %c0_i32 = arith.constant 0 : i32
    %c0_i32_0 = arith.constant 0 : i32
    %c0_i32_1 = arith.constant 0 : i32
    return %arg0, %c0_i32, %c0_i32_0 : i32, i32, i32
  }
  func.func @transform_2(%arg0: i32, %arg1: i32) -> (i32, i32, i32) {
    %c0_i32 = arith.constant 0 : i32
    %c0_i32_0 = arith.constant 0 : i32
    %c0_i32_1 = arith.constant 0 : i32
    return %arg0, %c0_i32, %c0_i32_0 : i32, i32, i32
  }
  func.func @transform_3(%arg0: i32, %arg1: i32) -> (i32, i32) {
    %c0_i32 = arith.constant 0 : i32
    %c0_i32_0 = arith.constant 0 : i32
    return %arg0, %c0_i32 : i32, i32
  }
  func.func @transform_4(%arg0: i32, %arg1: i32) -> (i32, i32) {
    %c0_i32 = arith.constant 0 : i32
    %c0_i32_0 = arith.constant 0 : i32
    %c0_i32_1 = arith.constant 0 : i32
    return %c0_i32, %c0_i32_0 : i32, i32
  }
  func.func @transform_5(%arg0: i32, %arg1: i32) -> (i32, i32) {
    %c0_i32 = arith.constant 0 : i32
    %c0_i32_0 = arith.constant 0 : i32
    %c0_i32_1 = arith.constant 0 : i32
    return %c0_i32, %c0_i32_0 : i32, i32
  }
  func.func @transform_6(%arg0: i32, %arg1: i32) -> (i32, i32) {
    %c0_i32 = arith.constant 0 : i32
    %c0_i32_0 = arith.constant 0 : i32
    %c0_i32_1 = arith.constant 0 : i32
    return %c0_i32, %c0_i32_0 : i32, i32
  }
  func.func @transform_7(%arg0: i32, %arg1: i32) -> (i32, i32) {
    %c0_i32 = arith.constant 0 : i32
    %c0_i32_0 = arith.constant 0 : i32
    %c0_i32_1 = arith.constant 0 : i32
    return %c0_i32, %c0_i32_0 : i32, i32
  }
  func.func @transform_8(%arg0: i32, %arg1: i32) -> (i32, i32) {
    %c0_i32 = arith.constant 0 : i32
    %c0_i32_0 = arith.constant 0 : i32
    %c0_i32_1 = arith.constant 0 : i32
    return %c0_i32, %c0_i32_0 : i32, i32
  }
  func.func @transform_9(%arg0: i32, %arg1: i32) -> (i32, i32) {
    %c0_i32 = arith.constant 0 : i32
    %c0_i32_0 = arith.constant 0 : i32
    %c0_i32_1 = arith.constant 0 : i32
    return %c0_i32, %c0_i32_0 : i32, i32
  }
  func.func @transform_10(%arg0: i32, %arg1: i32) -> (i32, i32) {
    %c0_i32 = arith.constant 0 : i32
    %c0_i32_0 = arith.constant 0 : i32
    %c0_i32_1 = arith.constant 0 : i32
    return %c0_i32, %c0_i32_0 : i32, i32
  }
  func.func @transform_11(%arg0: i32, %arg1: i32) -> (i32, i32) {
    %c0_i32 = arith.constant 0 : i32
    %c0_i32_0 = arith.constant 0 : i32
    %c0_i32_1 = arith.constant 0 : i32
    return %c0_i32, %c0_i32_0 : i32, i32
  }
  func.func @transform_12(%arg0: i32, %arg1: i32) -> (i32, i32, i32) {
    %c0_i32 = arith.constant 0 : i32
    %c0_i32_0 = arith.constant 0 : i32
    return %arg1, %arg0, %c0_i32 : i32, i32, i32
  }
  func.func @transform_13(%arg0: i32, %arg1: i32) -> (i32, i32, i32) {
    %c0_i32 = arith.constant 0 : i32
    %c0_i32_0 = arith.constant 0 : i32
    return %arg1, %arg0, %c0_i32 : i32, i32, i32
  }
}

</mosaic_0001>

<llo_original>
// kernel: nmt_decoder_forward.1
$region0: #{nmt_decoder_forward.1}
  #allocation0 [shape = 'u32[]', space=smem, size = 0x4, offset = 0x4, fixed_abs, tag = 'smem constant byte address 0x4 - core index']
  #allocation1 [shape = 'u32[144,128]{1,0:T(1,128)}', space=vmem, size = 0x12000, scoped, tag = 'internal scratch']
  #allocation2 [shape = 'f32[8,32]{1,0:T(8,128)}', space=vmem, size = 0x1000, scoped, tag = 'scratch operand']
  #allocation3 [shape = 'f32[8,32]{1,0:T(8,128)}', space=vmem, size = 0x1000, scoped, tag = 'scratch operand']
  %s0 = inlined_call_operand.vmem [shape: bf16[8,8,96], index: 0, kind: input, shape index: {}]
  %s1 = inlined_call_operand.vmem [shape: bf16[8,128,32], index: 1, kind: input, shape index: {}]
  %s2 = inlined_call_operand.vmem [shape: bf16[8,32,128], index: 2, kind: input, shape index: {}]
  %s3 = inlined_call_operand.vmem [shape: f32[8,32], index: 3, kind: input, shape index: {}]
  %s4 = inlined_call_operand.vmem [shape: bf16[32,128], index: 4, kind: input, shape index: {}]
  %s5 = inlined_call_operand.vmem [shape: bf16[32,96], index: 5, kind: input, shape index: {}]
  %s6 = inlined_call_operand.vmem [shape: bf16[32,96], index: 6, kind: input, shape index: {}]
  %s7 = inlined_call_operand.vmem [shape: f32[1,96], index: 7, kind: input, shape index: {}]
  %s8 = inlined_call_operand.vmem [shape: bf16[32,32], index: 8, kind: input, shape index: {}]
  %s9 = inlined_call_operand.vmem [shape: f32[1,32], index: 9, kind: input, shape index: {}]
  %s10 = inlined_call_operand.vmem [shape: f32[1,128], index: 10, kind: input, shape index: {}]
  %s11 = inlined_call_operand.vmem [shape: f32[1,128], index: 11, kind: input, shape index: {}]
  %s12 = inlined_call_operand.vmem [shape: f32[8,8,128], index: 12, kind: output, shape index: {0}]
  %s13 = inlined_call_operand.vmem [shape: f32[8,8,128], index: 13, kind: output, shape index: {1}]
  %14 = xla_tuple %s12, %s13
  %s15 = sld [smem:[#allocation0]]
  $region93: #{nmt_decoder_forward.1} parent=0
    _
  %s17 = ssub.s32 1, %s15
  %s18 = scalar_select 0, %s17, %s15
  loop: start=0, step=1, limit=4
  $region2: #{nmt_decoder_forward.1} parent=0 // loop_pre_header
    _
  $region3: #{nmt_decoder_forward.1} parent=0 // loop_header
    %s20 = sphi 0, %s24
    %p21 = scmp.ge.s32.totalorder %s20, 4
    %s27 = sphi 0, %s39
    %s28 = sphi 0, %s35
    %s29 = sphi 0, %s27
    %s30 = sphi 0, %s28
    %s31 = sphi 0, %s29
    %s32 = sphi 0, %s30
    %s44 = sphi 0, %s46
    %s47 = sphi 0, %s44
    %s48 = sphi 0, %s47
    %s64 = sphi 0, %s48
    %s70 = sphi 0, %s72
    %s73 = sphi 0, %s70
    %s74 = sphi 0, %s73
    %s90 = sphi 0, %s74
    %s96 = sphi 0, %s98
    %s99 = sphi 0, %s96
    %s100 = sphi 0, %s99
    %s116 = sphi 0, %s100
    %s122 = sphi 0, %s124
    %s125 = sphi 0, %s122
    %s126 = sphi 0, %s125
    %s142 = sphi 0, %s126
    %s146 = sphi 0, %s146
    %s148 = sphi 0, %s146
    %s149 = sphi 0, %s148
    %s163 = sphi 0, %s149
    %s167 = sphi 0, %s167
    %s169 = sphi 0, %s167
    %s170 = sphi 0, %s169
    %s184 = sphi 0, %s170
    %s188 = sphi 0, %s188
    %s190 = sphi 0, %s188
    %s191 = sphi 0, %s190
    %s205 = sphi 0, %s191
    %s209 = sphi 0, %s209
    %s211 = sphi 0, %s209
    %s212 = sphi 0, %s211
    %s226 = sphi 0, %s212
    %s230 = sphi 0, %s230
    %s232 = sphi 0, %s230
    %s233 = sphi 0, %s232
    %s247 = sphi 0, %s233
    %s251 = sphi 0, %s251
    %s253 = sphi 0, %s251
    %s254 = sphi 0, %s253
    %s268 = sphi 0, %s254
    %s272 = sphi 0, %s272
    %s274 = sphi 0, %s272
    %s275 = sphi 0, %s274
    %s289 = sphi 0, %s275
    %s293 = sphi 0, %s293
    %s295 = sphi 0, %s293
    %s296 = sphi 0, %s295
    %s310 = sphi 0, %s296
    %s318 = sphi 0, %s320
    %s321 = sphi 0, %s318
    %s322 = sphi 0, %s321
    %s338 = sphi 0, %s322
    %s346 = sphi 0, %s348
    %s349 = sphi 0, %s346
    %s350 = sphi 0, %s349
    %s366 = sphi 0, %s350
  $region4: #{nmt_decoder_forward.1} parent=0 // loop_header_branch
    %23 = sbr.rel (%p21) target = $region8
  $region5: #{nmt_decoder_forward.1} parent=0 // loop_body
    %s25 = ssub.s32 %s20, 1
    %s26 = ssub.s32 %s20, 2
    %s33 = sadd.s32 1, %s28
    %p34 = scmp.ge.s32.totalorder %s33, 2
    %s35 = scalar_select %p34, 0, %s33
    %s36 = sadd.s32 1, %s27
    %s37 = scalar_select %p34, %s36, %s27
    %p38 = scmp.ge.s32.totalorder %s37, 1
    %s39 = scalar_select %p38, 0, %s37
    %s40 = ssub.s32 %s28, %s35
    %s41 = ssub.s32 %s27, %s39
    %s42 = sor.u32 %s40, %s41
    %p43 = scmp.eq.s32.totalorder %s42, 0
    %s45 = sadd.s32 %s44, 1
    %s46 = scalar_select %p43, %s44, %s45
    %p49 = pneg %p43
    %p50 = scmp.eq.s32.totalorder %s20, 1
    %p51 = por %p49, %p50
    %p52 = scmp.ne.s32.totalorder %s44, %s47
    %p53 = scmp.eq.s32.totalorder %s20, 0
    %p54 = por %p52, %p53
    %p55 = scmp.ne.s32.totalorder %s44, %s47
    %p56 = scmp.eq.s32.totalorder %s25, 1
    %p57 = por %p55, %p56
    %p58 = scmp.ne.s32.totalorder %s47, %s48
    %p59 = scmp.eq.s32.totalorder %s25, 0
    %p60 = por %p58, %p59
    %p61 = scmp.ne.s32.totalorder %s47, %s48
    %p62 = scmp.eq.s32.totalorder %s26, 1
    %p63 = por %p61, %p62
    %p65 = scmp.ne.s32.totalorder %s48, %s64
    %p66 = scmp.eq.s32.totalorder %s26, 0
    %p67 = por %p65, %p66
    %s68 = ssub.s32 %s27, %s39
    %p69 = scmp.eq.s32.totalorder %s68, 0
    %s71 = sadd.s32 %s70, 1
    %s72 = scalar_select %p69, %s70, %s71
    %p75 = pneg %p69
    %p76 = scmp.eq.s32.totalorder %s20, 1
    %p77 = por %p75, %p76
    %p78 = scmp.ne.s32.totalorder %s70, %s73
    %p79 = scmp.eq.s32.totalorder %s20, 0
    %p80 = por %p78, %p79
    %p81 = scmp.ne.s32.totalorder %s70, %s73
    %p82 = scmp.eq.s32.totalorder %s25, 1
    %p83 = por %p81, %p82
    %p84 = scmp.ne.s32.totalorder %s73, %s74
    %p85 = scmp.eq.s32.totalorder %s25, 0
    %p86 = por %p84, %p85
    %p87 = scmp.ne.s32.totalorder %s73, %s74
    %p88 = scmp.eq.s32.totalorder %s26, 1
    %p89 = por %p87, %p88
    %p91 = scmp.ne.s32.totalorder %s74, %s90
    %p92 = scmp.eq.s32.totalorder %s26, 0
    %p93 = por %p91, %p92
    %s94 = ssub.s32 %s27, %s39
    %p95 = scmp.eq.s32.totalorder %s94, 0
    %s97 = sadd.s32 %s96, 1
    %s98 = scalar_select %p95, %s96, %s97
    %p101 = pneg %p95
    %p102 = scmp.eq.s32.totalorder %s20, 1
    %p103 = por %p101, %p102
    %p104 = scmp.ne.s32.totalorder %s96, %s99
    %p105 = scmp.eq.s32.totalorder %s20, 0
    %p106 = por %p104, %p105
    %p107 = scmp.ne.s32.totalorder %s96, %s99
    %p108 = scmp.eq.s32.totalorder %s25, 1
    %p109 = por %p107, %p108
    %p110 = scmp.ne.s32.totalorder %s99, %s100
    %p111 = scmp.eq.s32.totalorder %s25, 0
    %p112 = por %p110, %p111
    %p113 = scmp.ne.s32.totalorder %s99, %s100
    %p114 = scmp.eq.s32.totalorder %s26, 1
    %p115 = por %p113, %p114
    %p117 = scmp.ne.s32.totalorder %s100, %s116
    %p118 = scmp.eq.s32.totalorder %s26, 0
    %p119 = por %p117, %p118
    %s120 = ssub.s32 %s27, %s39
    %p121 = scmp.eq.s32.totalorder %s120, 0
    %s123 = sadd.s32 %s122, 1
    %s124 = scalar_select %p121, %s122, %s123
    %p127 = pneg %p121
    %p128 = scmp.eq.s32.totalorder %s20, 1
    %p129 = por %p127, %p128
    %p130 = scmp.ne.s32.totalorder %s122, %s125
    %p131 = scmp.eq.s32.totalorder %s20, 0
    %p132 = por %p130, %p131
    %p133 = scmp.ne.s32.totalorder %s122, %s125
    %p134 = scmp.eq.s32.totalorder %s25, 1
    %p135 = por %p133, %p134
    %p136 = scmp.ne.s32.totalorder %s125, %s126
    %p137 = scmp.eq.s32.totalorder %s25, 0
    %p138 = por %p136, %p137
    %p139 = scmp.ne.s32.totalorder %s125, %s126
    %p140 = scmp.eq.s32.totalorder %s26, 1
    %p141 = por %p139, %p140
    %p143 = scmp.ne.s32.totalorder %s126, %s142
    %p144 = scmp.eq.s32.totalorder %s26, 0
    %p145 = por %p143, %p144
    %s147 = sadd.s32 %s146, 1
    %p150 = scmp.eq.s32.totalorder %s20, 1
    %p151 = scmp.ne.s32.totalorder %s146, %s148
    %p152 = scmp.eq.s32.totalorder %s20, 0
    %p153 = por %p151, %p152
    %p154 = scmp.ne.s32.totalorder %s146, %s148
    %p155 = scmp.eq.s32.totalorder %s25, 1
    %p156 = por %p154, %p155
    %p157 = scmp.ne.s32.totalorder %s148, %s149
    %p158 = scmp.eq.s32.totalorder %s25, 0
    %p159 = por %p157, %p158
    %p160 = scmp.ne.s32.totalorder %s148, %s149
    %p161 = scmp.eq.s32.totalorder %s26, 1
    %p162 = por %p160, %p161
    %p164 = scmp.ne.s32.totalorder %s149, %s163
    %p165 = scmp.eq.s32.totalorder %s26, 0
    %p166 = por %p164, %p165
    %s168 = sadd.s32 %s167, 1
    %p171 = scmp.eq.s32.totalorder %s20, 1
    %p172 = scmp.ne.s32.totalorder %s167, %s169
    %p173 = scmp.eq.s32.totalorder %s20, 0
    %p174 = por %p172, %p173
    %p175 = scmp.ne.s32.totalorder %s167, %s169
    %p176 = scmp.eq.s32.totalorder %s25, 1
    %p177 = por %p175, %p176
    %p178 = scmp.ne.s32.totalorder %s169, %s170
    %p179 = scmp.eq.s32.totalorder %s25, 0
    %p180 = por %p178, %p179
    %p181 = scmp.ne.s32.totalorder %s169, %s170
    %p182 = scmp.eq.s32.totalorder %s26, 1
    %p183 = por %p181, %p182
    %p185 = scmp.ne.s32.totalorder %s170, %s184
    %p186 = scmp.eq.s32.totalorder %s26, 0
    %p187 = por %p185, %p186
    %s189 = sadd.s32 %s188, 1
    %p192 = scmp.eq.s32.totalorder %s20, 1
    %p193 = scmp.ne.s32.totalorder %s188, %s190
    %p194 = scmp.eq.s32.totalorder %s20, 0
    %p195 = por %p193, %p194
    %p196 = scmp.ne.s32.totalorder %s188, %s190
    %p197 = scmp.eq.s32.totalorder %s25, 1
    %p198 = por %p196, %p197
    %p199 = scmp.ne.s32.totalorder %s190, %s191
    %p200 = scmp.eq.s32.totalorder %s25, 0
    %p201 = por %p199, %p200
    %p202 = scmp.ne.s32.totalorder %s190, %s191
    %p203 = scmp.eq.s32.totalorder %s26, 1
    %p204 = por %p202, %p203
    %p206 = scmp.ne.s32.totalorder %s191, %s205
    %p207 = scmp.eq.s32.totalorder %s26, 0
    %p208 = por %p206, %p207
    %s210 = sadd.s32 %s209, 1
    %p213 = scmp.eq.s32.totalorder %s20, 1
    %p214 = scmp.ne.s32.totalorder %s209, %s211
    %p215 = scmp.eq.s32.totalorder %s20, 0
    %p216 = por %p214, %p215
    %p217 = scmp.ne.s32.totalorder %s209, %s211
    %p218 = scmp.eq.s32.totalorder %s25, 1
    %p219 = por %p217, %p218
    %p220 = scmp.ne.s32.totalorder %s211, %s212
    %p221 = scmp.eq.s32.totalorder %s25, 0
    %p222 = por %p220, %p221
    %p223 = scmp.ne.s32.totalorder %s211, %s212
    %p224 = scmp.eq.s32.totalorder %s26, 1
    %p225 = por %p223, %p224
    %p227 = scmp.ne.s32.totalorder %s212, %s226
    %p228 = scmp.eq.s32.totalorder %s26, 0
    %p229 = por %p227, %p228
    %s231 = sadd.s32 %s230, 1
    %p234 = scmp.eq.s32.totalorder %s20, 1
    %p235 = scmp.ne.s32.totalorder %s230, %s232
    %p236 = scmp.eq.s32.totalorder %s20, 0
    %p237 = por %p235, %p236
    %p238 = scmp.ne.s32.totalorder %s230, %s232
    %p239 = scmp.eq.s32.totalorder %s25, 1
    %p240 = por %p238, %p239
    %p241 = scmp.ne.s32.totalorder %s232, %s233
    %p242 = scmp.eq.s32.totalorder %s25, 0
    %p243 = por %p241, %p242
    %p244 = scmp.ne.s32.totalorder %s232, %s233
    %p245 = scmp.eq.s32.totalorder %s26, 1
    %p246 = por %p244, %p245
    %p248 = scmp.ne.s32.totalorder %s233, %s247
    %p249 = scmp.eq.s32.totalorder %s26, 0
    %p250 = por %p248, %p249
    %s252 = sadd.s32 %s251, 1
    %p255 = scmp.eq.s32.totalorder %s20, 1
    %p256 = scmp.ne.s32.totalorder %s251, %s253
    %p257 = scmp.eq.s32.totalorder %s20, 0
    %p258 = por %p256, %p257
    %p259 = scmp.ne.s32.totalorder %s251, %s253
    %p260 = scmp.eq.s32.totalorder %s25, 1
    %p261 = por %p259, %p260
    %p262 = scmp.ne.s32.totalorder %s253, %s254
    %p263 = scmp.eq.s32.totalorder %s25, 0
    %p264 = por %p262, %p263
    %p265 = scmp.ne.s32.totalorder %s253, %s254
    %p266 = scmp.eq.s32.totalorder %s26, 1
    %p267 = por %p265, %p266
    %p269 = scmp.ne.s32.totalorder %s254, %s268
    %p270 = scmp.eq.s32.totalorder %s26, 0
    %p271 = por %p269, %p270
    %s273 = sadd.s32 %s272, 1
    %p276 = scmp.eq.s32.totalorder %s20, 1
    %p277 = scmp.ne.s32.totalorder %s272, %s274
    %p278 = scmp.eq.s32.totalorder %s20, 0
    %p279 = por %p277, %p278
    %p280 = scmp.ne.s32.totalorder %s272, %s274
    %p281 = scmp.eq.s32.totalorder %s25, 1
    %p282 = por %p280, %p281
    %p283 = scmp.ne.s32.totalorder %s274, %s275
    %p284 = scmp.eq.s32.totalorder %s25, 0
    %p285 = por %p283, %p284
    %p286 = scmp.ne.s32.totalorder %s274, %s275
    %p287 = scmp.eq.s32.totalorder %s26, 1
    %p288 = por %p286, %p287
    %p290 = scmp.ne.s32.totalorder %s275, %s289
    %p291 = scmp.eq.s32.totalorder %s26, 0
    %p292 = por %p290, %p291
    %s294 = sadd.s32 %s293, 1
    %p297 = scmp.eq.s32.totalorder %s20, 1
    %p298 = scmp.ne.s32.totalorder %s293, %s295
    %p299 = scmp.eq.s32.totalorder %s20, 0
    %p300 = por %p298, %p299
    %p301 = scmp.ne.s32.totalorder %s293, %s295
    %p302 = scmp.eq.s32.totalorder %s25, 1
    %p303 = por %p301, %p302
    %p304 = scmp.ne.s32.totalorder %s295, %s296
    %p305 = scmp.eq.s32.totalorder %s25, 0
    %p306 = por %p304, %p305
    %p307 = scmp.ne.s32.totalorder %s295, %s296
    %p308 = scmp.eq.s32.totalorder %s26, 1
    %p309 = por %p307, %p308
    %p311 = scmp.ne.s32.totalorder %s296, %s310
    %p312 = scmp.eq.s32.totalorder %s26, 0
    %p313 = por %p311, %p312
    %s314 = ssub.s32 %s28, %s35
    %s315 = ssub.s32 %s27, %s39
    %s316 = sor.u32 %s314, %s315
    %p317 = scmp.eq.s32.totalorder %s316, 0
    %s319 = sadd.s32 %s318, 1
    %s320 = scalar_select %p317, %s318, %s319
    %p323 = pneg %p317
    %p324 = scmp.eq.s32.totalorder %s20, 1
    %p325 = por %p323, %p324
    %p326 = scmp.ne.s32.totalorder %s318, %s321
    %p327 = scmp.eq.s32.totalorder %s20, 0
    %p328 = por %p326, %p327
    %p329 = scmp.ne.s32.totalorder %s318, %s321
    %p330 = scmp.eq.s32.totalorder %s25, 1
    %p331 = por %p329, %p330
    %p332 = scmp.ne.s32.totalorder %s321, %s322
    %p333 = scmp.eq.s32.totalorder %s25, 0
    %p334 = por %p332, %p333
    %p335 = scmp.ne.s32.totalorder %s321, %s322
    %p336 = scmp.eq.s32.totalorder %s26, 1
    %p337 = por %p335, %p336
    %p339 = scmp.ne.s32.totalorder %s322, %s338
    %p340 = scmp.eq.s32.totalorder %s26, 0
    %p341 = por %p339, %p340
    %s342 = ssub.s32 %s28, %s35
    %s343 = ssub.s32 %s27, %s39
    %s344 = sor.u32 %s342, %s343
    %p345 = scmp.eq.s32.totalorder %s344, 0
    %s347 = sadd.s32 %s346, 1
    %s348 = scalar_select %p345, %s346, %s347
    %p351 = pneg %p345
    %p352 = scmp.eq.s32.totalorder %s20, 1
    %p353 = por %p351, %p352
    %p354 = scmp.ne.s32.totalorder %s346, %s349
    %p355 = scmp.eq.s32.totalorder %s20, 0
    %p356 = por %p354, %p355
    %p357 = scmp.ne.s32.totalorder %s346, %s349
    %p358 = scmp.eq.s32.totalorder %s25, 1
    %p359 = por %p357, %p358
    %p360 = scmp.ne.s32.totalorder %s349, %s350
    %p361 = scmp.eq.s32.totalorder %s25, 0
    %p362 = por %p360, %p361
    %p363 = scmp.ne.s32.totalorder %s349, %s350
    %p364 = scmp.eq.s32.totalorder %s26, 1
    %p365 = por %p363, %p364
    %p367 = scmp.ne.s32.totalorder %s350, %s366
    %p368 = scmp.eq.s32.totalorder %s26, 0
    %p369 = por %p367, %p368
    %p370 = scmp.le.s32.totalorder 1, %s20
    %p371 = scmp.lt.s32.totalorder %s20, 3
    %p372 = pnand %p370, %p371
    %p373 = pneg %p372
    // Predicated region
    $region9: #{nmt_decoder_forward.1} parent=5 // pred_check
      _
    $region10: #{nmt_decoder_forward.1} parent=5 // pred_check_branch
      %375 = sbr.rel (%p372) target = $region12
    $region11: #{nmt_decoder_forward.1} parent=5 // pred_region
      %s376 = ssub.s32 %s20, 1
      // Predicated region
      $region13: #{nmt_decoder_forward.1} parent=11 // pred_check
        %p377 = pneg %p86
      $region14: #{nmt_decoder_forward.1} parent=11 // pred_check_branch
        %379 = sbr.rel (%p377) target = $region16
      $region15: #{nmt_decoder_forward.1} parent=11 // pred_region
        %s380 = smul.u32 8, %s29
        %p381 = scmp.lt.s32.totalorder %s380, 7
        %s382 = scalar_select %p381, %s380, 7
        %s383 = smul.addr %s382, 16
        %s384 = smul.addr %s383, 4
        %s385 = scalar_lea.vmem %s1, %s384
        %s386 = smul.u32 8, %s29
      $region16: #{nmt_decoder_forward.1} parent=11 // pred_fallthru
        _
      // Predicated region
      $region17: #{nmt_decoder_forward.1} parent=11 // pred_check
        %p387 = pneg %p112
      $region18: #{nmt_decoder_forward.1} parent=11 // pred_check_branch
        %389 = sbr.rel (%p387) target = $region20
      $region19: #{nmt_decoder_forward.1} parent=11 // pred_region
        %s390 = smul.u32 8, %s29
        %p391 = scmp.lt.s32.totalorder %s390, 7
        %s392 = scalar_select %p391, %s390, 7
        %s393 = smul.addr %s392, 4
        %s394 = smul.addr %s393, 4
        %s395 = scalar_lea.vmem %s2, %s394
        %s396 = smul.u32 8, %s29
      $region20: #{nmt_decoder_forward.1} parent=11 // pred_fallthru
        _
      // Predicated region
      $region21: #{nmt_decoder_forward.1} parent=11 // pred_check
        %p397 = pneg %p138
      $region22: #{nmt_decoder_forward.1} parent=11 // pred_check_branch
        %399 = sbr.rel (%p397) target = $region24
      $region23: #{nmt_decoder_forward.1} parent=11 // pred_region
        %p400 = scmp.lt.s32.totalorder %s29, 0
        %s401 = scalar_select %p400, %s29, 0
        %s402 = smul.addr %s401, 8
        %s403 = scalar_lea.vmem %s3, %s402
      $region24: #{nmt_decoder_forward.1} parent=11 // pred_fallthru
        _
      // Predicated region
      $region25: #{nmt_decoder_forward.1} parent=11 // pred_check
        %p404 = pneg %p159
      $region26: #{nmt_decoder_forward.1} parent=11 // pred_check_branch
        %406 = sbr.rel (%p404) target = $region28
      $region27: #{nmt_decoder_forward.1} parent=11 // pred_region
        _
      $region28: #{nmt_decoder_forward.1} parent=11 // pred_fallthru
        _
      // Predicated region
      $region29: #{nmt_decoder_forward.1} parent=11 // pred_check
        %p407 = pneg %p180
      $region30: #{nmt_decoder_forward.1} parent=11 // pred_check_branch
        %409 = sbr.rel (%p407) target = $region32
      $region31: #{nmt_decoder_forward.1} parent=11 // pred_region
        _
      $region32: #{nmt_decoder_forward.1} parent=11 // pred_fallthru
        _
      // Predicated region
      $region33: #{nmt_decoder_forward.1} parent=11 // pred_check
        %p410 = pneg %p201
      $region34: #{nmt_decoder_forward.1} parent=11 // pred_check_branch
        %412 = sbr.rel (%p410) target = $region36
      $region35: #{nmt_decoder_forward.1} parent=11 // pred_region
        _
      $region36: #{nmt_decoder_forward.1} parent=11 // pred_fallthru
        _
      // Predicated region
      $region37: #{nmt_decoder_forward.1} parent=11 // pred_check
        %p413 = pneg %p222
      $region38: #{nmt_decoder_forward.1} parent=11 // pred_check_branch
        %415 = sbr.rel (%p413) target = $region40
      $region39: #{nmt_decoder_forward.1} parent=11 // pred_region
        _
      $region40: #{nmt_decoder_forward.1} parent=11 // pred_fallthru
        _
      // Predicated region
      $region41: #{nmt_decoder_forward.1} parent=11 // pred_check
        %p416 = pneg %p243
      $region42: #{nmt_decoder_forward.1} parent=11 // pred_check_branch
        %418 = sbr.rel (%p416) target = $region44
      $region43: #{nmt_decoder_forward.1} parent=11 // pred_region
        _
      $region44: #{nmt_decoder_forward.1} parent=11 // pred_fallthru
        _
      // Predicated region
      $region45: #{nmt_decoder_forward.1} parent=11 // pred_check
        %p419 = pneg %p264
      $region46: #{nmt_decoder_forward.1} parent=11 // pred_check_branch
        %421 = sbr.rel (%p419) target = $region48
      $region47: #{nmt_decoder_forward.1} parent=11 // pred_region
        _
      $region48: #{nmt_decoder_forward.1} parent=11 // pred_fallthru
        _
      // Predicated region
      $region49: #{nmt_decoder_forward.1} parent=11 // pred_check
        %p422 = pneg %p285
      $region50: #{nmt_decoder_forward.1} parent=11 // pred_check_branch
        %424 = sbr.rel (%p422) target = $region52
      $region51: #{nmt_decoder_forward.1} parent=11 // pred_region
        _
      $region52: #{nmt_decoder_forward.1} parent=11 // pred_fallthru
        _
      // Predicated region
      $region53: #{nmt_decoder_forward.1} parent=11 // pred_check
        %p425 = pneg %p306
      $region54: #{nmt_decoder_forward.1} parent=11 // pred_check_branch
        %427 = sbr.rel (%p425) target = $region56
      $region55: #{nmt_decoder_forward.1} parent=11 // pred_region
        _
      $region56: #{nmt_decoder_forward.1} parent=11 // pred_fallthru
        _
    $region12: #{nmt_decoder_forward.1} parent=5 // pred_fallthru
      _
    %p428 = scmp.lt.s32.totalorder %s20, 2
    // Predicated region
    $region57: #{nmt_decoder_forward.1} parent=5 // pred_check
      %p429 = pneg %p428
    $region58: #{nmt_decoder_forward.1} parent=5 // pred_check_branch
      %431 = sbr.rel (%p429) target = $region60
    $region59: #{nmt_decoder_forward.1} parent=5 // pred_region
      // Predicated region
      $region61: #{nmt_decoder_forward.1} parent=59 // pred_check
        %p432 = pneg %p54
      $region62: #{nmt_decoder_forward.1} parent=59 // pred_check_branch
        %434 = sbr.rel (%p432) target = $region64
      $region63: #{nmt_decoder_forward.1} parent=59 // pred_region
        %s435 = smul.u32 4, %s28
        %p436 = scmp.lt.s32.totalorder %s435, 7
        %s437 = scalar_select %p436, %s435, 7
        %p438 = scmp.lt.s32.totalorder %s27, 0
        %s439 = scalar_select %p438, %s27, 0
        %s440 = sadd.s32 %s439, %s437
        %s441 = smul.addr %s440, 4
        %s442 = scalar_lea.vmem %s0, %s441
        %s443 = smul.u32 4, %s28
      $region64: #{nmt_decoder_forward.1} parent=59 // pred_fallthru
        _
    $region60: #{nmt_decoder_forward.1} parent=5 // pred_fallthru
      _
    %p444 = scmp.le.s32.totalorder 1, %s20
    %p445 = scmp.lt.s32.totalorder %s20, 3
    %p446 = pnand %p444, %p445
    %p447 = pneg %p446
    // Predicated region
    $region65: #{nmt_decoder_forward.1} parent=5 // pred_check
      _
    $region66: #{nmt_decoder_forward.1} parent=5 // pred_check_branch
      %449 = sbr.rel (%p446) target = $region68
    $region67: #{nmt_decoder_forward.1} parent=5 // pred_region
      %s450 = ssub.s32 %s20, 1
      %s451 = smul.u32 4, %s30
      %p452 = scmp.lt.s32.totalorder %s451, 7
      %s453 = scalar_select %p452, %s451, 7
      %p454 = scmp.lt.s32.totalorder %s29, 0
      %s455 = scalar_select %p454, %s29, 0
      %s456 = sadd.s32 %s455, %s453
      %s457 = smul.addr %s456, 4
      %s458 = scalar_lea.vmem %s0, %s457
      %p459 = pneg %p60
      %p460 = pneg %p57
      %s461 = smul.u32 8, %s29
      %p462 = scmp.lt.s32.totalorder %s461, 7
      %s463 = scalar_select %p462, %s461, 7
      %s464 = smul.addr %s463, 16
      %s465 = smul.addr %s464, 4
      %s466 = scalar_lea.vmem %s1, %s465
      %p467 = pneg %p86
      %p468 = pneg %p83
      %s469 = smul.u32 8, %s29
      %p470 = scmp.lt.s32.totalorder %s469, 7
      %s471 = scalar_select %p470, %s469, 7
      %s472 = smul.addr %s471, 4
      %s473 = smul.addr %s472, 4
      %s474 = scalar_lea.vmem %s2, %s473
      %p475 = pneg %p112
      %p476 = pneg %p109
      %p477 = scmp.lt.s32.totalorder %s29, 0
      %s478 = scalar_select %p477, %s29, 0
      %s479 = smul.addr %s478, 8
      %s480 = scalar_lea.vmem %s3, %s479
      %p481 = pneg %p138
      %p482 = pneg %p135
      %p483 = pneg %p159
      %p484 = pneg %p156
      %p485 = pneg %p180
      %p486 = pneg %p177
      %p487 = pneg %p201
      %p488 = pneg %p198
      %p489 = pneg %p222
      %p490 = pneg %p219
      %p491 = pneg %p243
      %p492 = pneg %p240
      %p493 = pneg %p264
      %p494 = pneg %p261
      %p495 = pneg %p285
      %p496 = pneg %p282
      %p497 = pneg %p306
      %p498 = pneg %p303
      %p499 = pneg %p334
      %p500 = pneg %p331
      %s501 = smul.u32 4, %s30
      %p502 = scmp.lt.s32.totalorder %s501, 7
      %s503 = scalar_select %p502, %s501, 7
      %p504 = scmp.lt.s32.totalorder %s29, 0
      %s505 = scalar_select %p504, %s29, 0
      %s506 = sadd.s32 %s505, %s503
      %s507 = smul.addr %s506, 8
      %s508 = scalar_lea.vmem %s12, %s507
      %p509 = pneg %p362
      %p510 = pneg %p359
      %s511 = smul.u32 4, %s30
      %p512 = scmp.lt.s32.totalorder %s511, 7
      %s513 = scalar_select %p512, %s511, 7
      %p514 = scmp.lt.s32.totalorder %s29, 0
      %s515 = scalar_select %p514, %s29, 0
      %s516 = sadd.s32 %s515, %s513
      %s517 = smul.addr %s516, 8
      %s518 = scalar_lea.vmem %s13, %s517
      %s519 = smul.u32 4, %s30
      %p520 = scmp.lt.s32.totalorder %s519, 7
      %s521 = scalar_select %p520, %s519, 7
      %p522 = scmp.lt.s32.totalorder %s29, 0
      %s523 = scalar_select %p522, %s29, 0
      %s524 = sadd.s32 %s523, %s521
      %s525 = smul.addr %s524, 4
      %s526 = scalar_lea.vmem %s0, %s525
      %s527 = smul.u32 4, %s30
      %s528 = smul.u32 8, %s29
      %p529 = scmp.lt.s32.totalorder %s528, 7
      %s530 = scalar_select %p529, %s528, 7
      %s531 = smul.addr %s530, 16
      %s532 = smul.addr %s531, 4
      %s533 = scalar_lea.vmem %s1, %s532
      %s534 = smul.u32 8, %s29
      %s535 = smul.u32 8, %s29
      %p536 = scmp.lt.s32.totalorder %s535, 7
      %s537 = scalar_select %p536, %s535, 7
      %s538 = smul.addr %s537, 4
      %s539 = smul.addr %s538, 4
      %s540 = scalar_lea.vmem %s2, %s539
      %s541 = smul.u32 8, %s29
      %p542 = scmp.lt.s32.totalorder %s29, 0
      %s543 = scalar_select %p542, %s29, 0
      %s544 = smul.addr %s543, 8
      %s545 = scalar_lea.vmem %s3, %s544
      %s546 = smul.u32 4, %s30
      %p547 = scmp.lt.s32.totalorder %s546, 7
      %s548 = scalar_select %p547, %s546, 7
      %p549 = scmp.lt.s32.totalorder %s29, 0
      %s550 = scalar_select %p549, %s29, 0
      %s551 = sadd.s32 %s550, %s548
      %s552 = smul.addr %s551, 8
      %s553 = scalar_lea.vmem %s12, %s552
      %s554 = smul.u32 4, %s30
      %s555 = smul.u32 4, %s30
      %p556 = scmp.lt.s32.totalorder %s555, 7
      %s557 = scalar_select %p556, %s555, 7
      %p558 = scmp.lt.s32.totalorder %s29, 0
      %s559 = scalar_select %p558, %s29, 0
      %s560 = sadd.s32 %s559, %s557
      %s561 = smul.addr %s560, 8
      %s562 = scalar_lea.vmem %s13, %s561
      %s563 = smul.u32 4, %s30
      %p565 = scmp.eq.s32.totalorder %s30, 0
      // Predicated region
      $region69: #{nmt_decoder_forward.1} parent=67 // pred_check
        %p566 = pneg %p565
      $region70: #{nmt_decoder_forward.1} parent=67 // pred_check_branch
        %568 = sbr.rel (%p566) target = $region72
      $region71: #{nmt_decoder_forward.1} parent=67 // pred_region
        %v569 = vld [vmem:[%s545] sm:$0xff]
        %vm570 = vcmask 261120
        %571 = vst.msk [vmem:[#allocation2] sm:$0xff] %vm570, %v569
        %572 = vst.msk [vmem:[#allocation3] sm:$0xff] %vm570, 0.0
      $region72: #{nmt_decoder_forward.1} parent=67 // pred_fallthru
        _
      %v573 = vld [vmem:[%s533] sm:$0xf]
      %v574 = vld [vmem:[%s533 + $0x4] sm:$0xf]
      %v575 = vld [vmem:[%s533 + $0x8] sm:$0xf]
      %v576 = vld [vmem:[%s533 + $0xc] sm:$0xf]
      %v577 = vld [vmem:[%s533 + $0x10] sm:$0xf]
      %v578 = vld [vmem:[%s533 + $0x14] sm:$0xf]
      %v579 = vld [vmem:[%s533 + $0x18] sm:$0xf]
      %v580 = vld [vmem:[%s533 + $0x1c] sm:$0xf]
      %v581 = vld [vmem:[%s533 + $0x20] sm:$0xf]
      %v582 = vld [vmem:[%s533 + $0x24] sm:$0xf]
      %v583 = vld [vmem:[%s533 + $0x28] sm:$0xf]
      %v584 = vld [vmem:[%s533 + $0x2c] sm:$0xf]
      %v585 = vld [vmem:[%s533 + $0x30] sm:$0xf]
      %v586 = vld [vmem:[%s533 + $0x34] sm:$0xf]
      %v587 = vld [vmem:[%s533 + $0x38] sm:$0xf]
      %v588 = vld [vmem:[%s533 + $0x3c] sm:$0xf]
      %v589 = vld [vmem:[%s533 + $0x40] sm:$0xf]
      %v590 = vld [vmem:[%s533 + $0x44] sm:$0xf]
      %v591 = vld [vmem:[%s533 + $0x48] sm:$0xf]
      %v592 = vld [vmem:[%s533 + $0x4c] sm:$0xf]
      %v593 = vld [vmem:[%s533 + $0x50] sm:$0xf]
      %v594 = vld [vmem:[%s533 + $0x54] sm:$0xf]
      %v595 = vld [vmem:[%s533 + $0x58] sm:$0xf]
      %v596 = vld [vmem:[%s533 + $0x5c] sm:$0xf]
      %v597 = vld [vmem:[%s533 + $0x60] sm:$0xf]
      %v598 = vld [vmem:[%s533 + $0x64] sm:$0xf]
      %v599 = vld [vmem:[%s533 + $0x68] sm:$0xf]
      %v600 = vld [vmem:[%s533 + $0x6c] sm:$0xf]
      %v601 = vld [vmem:[%s533 + $0x70] sm:$0xf]
      %v602 = vld [vmem:[%s533 + $0x74] sm:$0xf]
      %v603 = vld [vmem:[%s533 + $0x78] sm:$0xf]
      %v604 = vld [vmem:[%s533 + $0x7c] sm:$0xf]
      %v605 = vld [vmem:[%s533 + $0x80] sm:$0xf]
      %v606 = vld [vmem:[%s533 + $0x84] sm:$0xf]
      %v607 = vld [vmem:[%s533 + $0x88] sm:$0xf]
      %v608 = vld [vmem:[%s533 + $0x8c] sm:$0xf]
      %v609 = vld [vmem:[%s533 + $0x90] sm:$0xf]
      %v610 = vld [vmem:[%s533 + $0x94] sm:$0xf]
      %v611 = vld [vmem:[%s533 + $0x98] sm:$0xf]
      %v612 = vld [vmem:[%s533 + $0x9c] sm:$0xf]
      %v613 = vld [vmem:[%s533 + $0xa0] sm:$0xf]
      %v614 = vld [vmem:[%s533 + $0xa4] sm:$0xf]
      %v615 = vld [vmem:[%s533 + $0xa8] sm:$0xf]
      %v616 = vld [vmem:[%s533 + $0xac] sm:$0xf]
      %v617 = vld [vmem:[%s533 + $0xb0] sm:$0xf]
      %v618 = vld [vmem:[%s533 + $0xb4] sm:$0xf]
      %v619 = vld [vmem:[%s533 + $0xb8] sm:$0xf]
      %v620 = vld [vmem:[%s533 + $0xbc] sm:$0xf]
      %v621 = vld [vmem:[%s533 + $0xc0] sm:$0xf]
      %v622 = vld [vmem:[%s533 + $0xc4] sm:$0xf]
      %v623 = vld [vmem:[%s533 + $0xc8] sm:$0xf]
      %v624 = vld [vmem:[%s533 + $0xcc] sm:$0xf]
      %v625 = vld [vmem:[%s533 + $0xd0] sm:$0xf]
      %v626 = vld [vmem:[%s533 + $0xd4] sm:$0xf]
      %v627 = vld [vmem:[%s533 + $0xd8] sm:$0xf]
      %v628 = vld [vmem:[%s533 + $0xdc] sm:$0xf]
      %v629 = vld [vmem:[%s533 + $0xe0] sm:$0xf]
      %v630 = vld [vmem:[%s533 + $0xe4] sm:$0xf]
      %v631 = vld [vmem:[%s533 + $0xe8] sm:$0xf]
      %v632 = vld [vmem:[%s533 + $0xec] sm:$0xf]
      %v633 = vld [vmem:[%s533 + $0xf0] sm:$0xf]
      %v634 = vld [vmem:[%s533 + $0xf4] sm:$0xf]
      %v635 = vld [vmem:[%s533 + $0xf8] sm:$0xf]
      %v636 = vld [vmem:[%s533 + $0xfc] sm:$0xf]
      %v637 = vld [vmem:[%s533 + $0x100] sm:$0xf]
      %v638 = vld [vmem:[%s533 + $0x104] sm:$0xf]
      %v639 = vld [vmem:[%s533 + $0x108] sm:$0xf]
      %v640 = vld [vmem:[%s533 + $0x10c] sm:$0xf]
      %v641 = vld [vmem:[%s533 + $0x110] sm:$0xf]
      %v642 = vld [vmem:[%s533 + $0x114] sm:$0xf]
      %v643 = vld [vmem:[%s533 + $0x118] sm:$0xf]
      %v644 = vld [vmem:[%s533 + $0x11c] sm:$0xf]
      %v645 = vld [vmem:[%s533 + $0x120] sm:$0xf]
      %v646 = vld [vmem:[%s533 + $0x124] sm:$0xf]
      %v647 = vld [vmem:[%s533 + $0x128] sm:$0xf]
      %v648 = vld [vmem:[%s533 + $0x12c] sm:$0xf]
      %v649 = vld [vmem:[%s533 + $0x130] sm:$0xf]
      %v650 = vld [vmem:[%s533 + $0x134] sm:$0xf]
      %v651 = vld [vmem:[%s533 + $0x138] sm:$0xf]
      %v652 = vld [vmem:[%s533 + $0x13c] sm:$0xf]
      %v653 = vld [vmem:[%s533 + $0x140] sm:$0xf]
      %v654 = vld [vmem:[%s533 + $0x144] sm:$0xf]
      %v655 = vld [vmem:[%s533 + $0x148] sm:$0xf]
      %v656 = vld [vmem:[%s533 + $0x14c] sm:$0xf]
      %v657 = vld [vmem:[%s533 + $0x150] sm:$0xf]
      %v658 = vld [vmem:[%s533 + $0x154] sm:$0xf]
      %v659 = vld [vmem:[%s533 + $0x158] sm:$0xf]
      %v660 = vld [vmem:[%s533 + $0x15c] sm:$0xf]
      %v661 = vld [vmem:[%s533 + $0x160] sm:$0xf]
      %v662 = vld [vmem:[%s533 + $0x164] sm:$0xf]
      %v663 = vld [vmem:[%s533 + $0x168] sm:$0xf]
      %v664 = vld [vmem:[%s533 + $0x16c] sm:$0xf]
      %v665 = vld [vmem:[%s533 + $0x170] sm:$0xf]
      %v666 = vld [vmem:[%s533 + $0x174] sm:$0xf]
      %v667 = vld [vmem:[%s533 + $0x178] sm:$0xf]
      %v668 = vld [vmem:[%s533 + $0x17c] sm:$0xf]
      %v669 = vld [vmem:[%s533 + $0x180] sm:$0xf]
      %v670 = vld [vmem:[%s533 + $0x184] sm:$0xf]
      %v671 = vld [vmem:[%s533 + $0x188] sm:$0xf]
      %v672 = vld [vmem:[%s533 + $0x18c] sm:$0xf]
      %v673 = vld [vmem:[%s533 + $0x190] sm:$0xf]
      %v674 = vld [vmem:[%s533 + $0x194] sm:$0xf]
      %v675 = vld [vmem:[%s533 + $0x198] sm:$0xf]
      %v676 = vld [vmem:[%s533 + $0x19c] sm:$0xf]
      %v677 = vld [vmem:[%s533 + $0x1a0] sm:$0xf]
      %v678 = vld [vmem:[%s533 + $0x1a4] sm:$0xf]
      %v679 = vld [vmem:[%s533 + $0x1a8] sm:$0xf]
      %v680 = vld [vmem:[%s533 + $0x1ac] sm:$0xf]
      %v681 = vld [vmem:[%s533 + $0x1b0] sm:$0xf]
      %v682 = vld [vmem:[%s533 + $0x1b4] sm:$0xf]
      %v683 = vld [vmem:[%s533 + $0x1b8] sm:$0xf]
      %v684 = vld [vmem:[%s533 + $0x1bc] sm:$0xf]
      %v685 = vld [vmem:[%s533 + $0x1c0] sm:$0xf]
      %v686 = vld [vmem:[%s533 + $0x1c4] sm:$0xf]
      %v687 = vld [vmem:[%s533 + $0x1c8] sm:$0xf]
      %v688 = vld [vmem:[%s533 + $0x1cc] sm:$0xf]
      %v689 = vld [vmem:[%s533 + $0x1d0] sm:$0xf]
      %v690 = vld [vmem:[%s533 + $0x1d4] sm:$0xf]
      %v691 = vld [vmem:[%s533 + $0x1d8] sm:$0xf]
      %v692 = vld [vmem:[%s533 + $0x1dc] sm:$0xf]
      %v693 = vld [vmem:[%s533 + $0x1e0] sm:$0xf]
      %v694 = vld [vmem:[%s533 + $0x1e4] sm:$0xf]
      %v695 = vld [vmem:[%s533 + $0x1e8] sm:$0xf]
      %v696 = vld [vmem:[%s533 + $0x1ec] sm:$0xf]
      %v697 = vld [vmem:[%s533 + $0x1f0] sm:$0xf]
      %v698 = vld [vmem:[%s533 + $0x1f4] sm:$0xf]
      %v699 = vld [vmem:[%s533 + $0x1f8] sm:$0xf]
      %v700 = vld [vmem:[%s533 + $0x1fc] sm:$0xf]
      %v701 = vld [vmem:[%s540] sm:$0xf]
      %v702 = vld [vmem:[%s540 + $0x4] sm:$0xf]
      %v703 = vld [vmem:[%s540 + $0x8] sm:$0xf]
      %v704 = vld [vmem:[%s540 + $0xc] sm:$0xf]
      %v705 = vld [vmem:[%s540 + $0x10] sm:$0xf]
      %v706 = vld [vmem:[%s540 + $0x14] sm:$0xf]
      %v707 = vld [vmem:[%s540 + $0x18] sm:$0xf]
      %v708 = vld [vmem:[%s540 + $0x1c] sm:$0xf]
      %v709 = vld [vmem:[%s540 + $0x20] sm:$0xf]
      %v710 = vld [vmem:[%s540 + $0x24] sm:$0xf]
      %v711 = vld [vmem:[%s540 + $0x28] sm:$0xf]
      %v712 = vld [vmem:[%s540 + $0x2c] sm:$0xf]
      %v713 = vld [vmem:[%s540 + $0x30] sm:$0xf]
      %v714 = vld [vmem:[%s540 + $0x34] sm:$0xf]
      %v715 = vld [vmem:[%s540 + $0x38] sm:$0xf]
      %v716 = vld [vmem:[%s540 + $0x3c] sm:$0xf]
      %v717 = vld [vmem:[%s540 + $0x40] sm:$0xf]
      %v718 = vld [vmem:[%s540 + $0x44] sm:$0xf]
      %v719 = vld [vmem:[%s540 + $0x48] sm:$0xf]
      %v720 = vld [vmem:[%s540 + $0x4c] sm:$0xf]
      %v721 = vld [vmem:[%s540 + $0x50] sm:$0xf]
      %v722 = vld [vmem:[%s540 + $0x54] sm:$0xf]
      %v723 = vld [vmem:[%s540 + $0x58] sm:$0xf]
      %v724 = vld [vmem:[%s540 + $0x5c] sm:$0xf]
      %v725 = vld [vmem:[%s540 + $0x60] sm:$0xf]
      %v726 = vld [vmem:[%s540 + $0x64] sm:$0xf]
      %v727 = vld [vmem:[%s540 + $0x68] sm:$0xf]
      %v728 = vld [vmem:[%s540 + $0x6c] sm:$0xf]
      %v729 = vld [vmem:[%s540 + $0x70] sm:$0xf]
      %v730 = vld [vmem:[%s540 + $0x74] sm:$0xf]
      %v731 = vld [vmem:[%s540 + $0x78] sm:$0xf]
      %v732 = vld [vmem:[%s540 + $0x7c] sm:$0xf]
      %v733 = vld [vmem:[%s4] sm:$0xf]
      %v734 = vld [vmem:[%s4 + $0x4] sm:$0xf]
      %v735 = vld [vmem:[%s4 + $0x8] sm:$0xf]
      %v736 = vld [vmem:[%s4 + $0xc] sm:$0xf]
      %v737 = vld [vmem:[%s5] sm:$0xf]
      %v738 = vld [vmem:[%s5 + $0x4] sm:$0xf]
      %v739 = vld [vmem:[%s5 + $0x8] sm:$0xf]
      %v740 = vld [vmem:[%s5 + $0xc] sm:$0xf]
      %v741 = vld [vmem:[%s6] sm:$0xf]
      %v742 = vld [vmem:[%s6 + $0x4] sm:$0xf]
      %v743 = vld [vmem:[%s6 + $0x8] sm:$0xf]
      %v744 = vld [vmem:[%s6 + $0xc] sm:$0xf]
      %v745 = vld [vmem:[%s7] sm:$0x1]
      %v746 = vld [vmem:[%s8] sm:$0xf]
      %v747 = vld [vmem:[%s8 + $0x4] sm:$0xf]
      %v748 = vld [vmem:[%s8 + $0x8] sm:$0xf]
      %v749 = vld [vmem:[%s8 + $0xc] sm:$0xf]
      %v750 = vld [vmem:[%s9] sm:$0x1]
      %v751 = vld [vmem:[%s10] sm:$0x1]
      %v752 = vld [vmem:[%s11] sm:$0x1]
      %v753 = vld [vmem:[#allocation2] sm:$0xff]
      %v754 = vld [vmem:[#allocation3] sm:$0xff]
      %v755 = vld [vmem:[%s526] sm:$0xf]
      %v756 = vunpack.c.l.bf16 %v755
      %v757 = vpack.c.bf16 %v754, %v754
      %v762 = vunpack.c.l.b16 %v737
      %v763 = vunpack.c.l.b16 %v738
      %v764 = vunpack.c.l.b16 %v739
      %v765 = vunpack.c.l.b16 %v740
      %v766 = vpack.c.b16 %v763, %v762
      %v767 = vpack.c.b16 %v765, %v764
      %vm770 = vcmask 261120
      %v772 = vsel %vm770, %v757, 0
      %774 = vmatprep.subr.bf16.mxu0 0
      %775 = vmatpush1.bf16.msra.mxu0 %v766
      %776 = vmatprep.subr.bf16.mxu0 0
      %777 = vmatpush1.bf16.msra.mxu0 %v767
      %778 = vmatprep.subr.bf16.mxu0 0
      %779 = vmatpush1.bf16.msra.mxu0 0
      %780 = vmatprep.subr.bf16.mxu0 0
      %781 = vmatpush1.bf16.msra.mxu0 0
      %782 = vmatprep.subr.bf16.mxu0 0
      %783 = vmatpush1.bf16.msra.mxu0 0
      %784 = vmatprep.subr.bf16.mxu0 0
      %785 = vmatpush1.bf16.msra.mxu0 0
      %786 = vmatprep.subr.bf16.mxu0 0
      %787 = vmatpush1.bf16.msra.mxu0 0
      %788 = vmatprep.subr.bf16.mxu0 0
      %789 = vmatpush1.bf16.msra.mxu0 0
      %790 = vmatprep.subr.bf16.mxu0 0
      %791 = vmatpush1.bf16.msra.mxu0 0
      %792 = vmatprep.subr.bf16.mxu0 0
      %793 = vmatpush1.bf16.msra.mxu0 0
      %794 = vmatprep.subr.bf16.mxu0 0
      %795 = vmatpush1.bf16.msra.mxu0 0
      %796 = vmatprep.subr.bf16.mxu0 0
      %797 = vmatpush1.bf16.msra.mxu0 0
      %798 = vmatprep.subr.bf16.mxu0 0
      %799 = vmatpush1.bf16.msra.mxu0 0
      %800 = vmatprep.subr.bf16.mxu0 0
      %801 = vmatpush1.bf16.msra.mxu0 0
      %802 = vmatprep.subr.bf16.mxu0 0
      %803 = vmatpush1.bf16.msra.mxu0 0
      %804 = vmatprep.subr.bf16.mxu0 0
      %805 = vmatpush1.bf16.msra.mxu0 0
      %806 = vmatprep.mubr.bf16.mxu0 0
      %807 = vmatmul.mubr.bf16.gmra.mrb[0].mxu0 %v772
      %v808 = vpop.f32.mrb[0].mxu0
      %v809 = vadd.f32 0.0, %v808
      %v810 = vpop.f32.mrb[0].mxu0
      %v811 = vpop.f32.mrb[0].mxu0
      %v812 = vpop.f32.mrb[0].mxu0
      %813 = vdwg.mxu0
      %v814 = vadd.f32 %v756, %v809
      %v815 = vpack.c.bf16 %v753, %v753
      %v817 = vlaneseq
      %v818 = vshrl.u32 %v817, 7
      %v819 = vsub.s32 0, %v818
      %v820 = vrot.slane %v745, %v819
      %v826 = vunpack.c.l.b16 %v741
      %v827 = vunpack.c.l.b16 %v742
      %v828 = vunpack.c.l.b16 %v743
      %v829 = vunpack.c.l.b16 %v744
      %v830 = vpack.c.b16 %v827, %v826
      %v831 = vpack.c.b16 %v829, %v828
      %v835 = vsel %vm770, %v815, 0
      %837 = vmatprep.subr.bf16.mxu0 0
      %838 = vmatpush1.bf16.msra.mxu0 %v830
      %839 = vmatprep.subr.bf16.mxu0 0
      %840 = vmatpush1.bf16.msra.mxu0 %v831
      %841 = vmatprep.subr.bf16.mxu0 0
      %842 = vmatpush1.bf16.msra.mxu0 0
      %843 = vmatprep.subr.bf16.mxu0 0
      %844 = vmatpush1.bf16.msra.mxu0 0
      %845 = vmatprep.subr.bf16.mxu0 0
      %846 = vmatpush1.bf16.msra.mxu0 0
      %847 = vmatprep.subr.bf16.mxu0 0
      %848 = vmatpush1.bf16.msra.mxu0 0
      %849 = vmatprep.subr.bf16.mxu0 0
      %850 = vmatpush1.bf16.msra.mxu0 0
      %851 = vmatprep.subr.bf16.mxu0 0
      %852 = vmatpush1.bf16.msra.mxu0 0
      %853 = vmatprep.subr.bf16.mxu0 0
      %854 = vmatpush1.bf16.msra.mxu0 0
      %855 = vmatprep.subr.bf16.mxu0 0
      %856 = vmatpush1.bf16.msra.mxu0 0
      %857 = vmatprep.subr.bf16.mxu0 0
      %858 = vmatpush1.bf16.msra.mxu0 0
      %859 = vmatprep.subr.bf16.mxu0 0
      %860 = vmatpush1.bf16.msra.mxu0 0
      %861 = vmatprep.subr.bf16.mxu0 0
      %862 = vmatpush1.bf16.msra.mxu0 0
      %863 = vmatprep.subr.bf16.mxu0 0
      %864 = vmatpush1.bf16.msra.mxu0 0
      %865 = vmatprep.subr.bf16.mxu0 0
      %866 = vmatpush1.bf16.msra.mxu0 0
      %867 = vmatprep.subr.bf16.mxu0 0
      %868 = vmatpush1.bf16.msra.mxu0 0
      %869 = vmatprep.mubr.bf16.mxu0 0
      %870 = vmatmul.mubr.bf16.gmra.mrb[0].mxu0 %v835
      %v871 = vpop.f32.mrb[0].mxu0
      %v872 = vadd.f32 %v820, %v871
      %v873 = vpop.f32.mrb[0].mxu0
      %v874 = vpop.f32.mrb[0].mxu0
      %v875 = vpop.f32.mrb[0].mxu0
      %876 = vdwg.mxu0
      %v877 = vadd.f32 %v814, %v872
      %v878 = vxor.u32 %v877, 2147483648
      %v879 = vmul.f32 %v878, 1.442695
      %v880 = vpow.pop %v879
      %v881 = vadd.f32 %v880, 1.0
      %v882 = vrcp.pop %v881
      %v883 = vmul.f32 1.0, %v882
      %885 = vrot.lane.b32.xlu0 %v872, 64
      %v886 = vpop.permute.xlu0 %885
      %v888 = vmul.f32 %v883, %v886
      %890 = vrot.lane.b32.xlu0 %v888, 64
      %v891 = vpop.permute.xlu0 %890
      %v893 = vadd.f32 %v814, %v891
      %v894 = vtanh.pop %v893
      %v895 = vsub.f32 1.0, %v883
      %897 = vrot.lane.b32.xlu0 %v894, 96
      %v898 = vpop.permute.xlu0 %897
      %v900 = vmul.f32 %v895, %v898
      %902 = vrot.lane.b32.xlu0 %v753, 32
      %v903 = vpop.permute.xlu0 %902
      %v905 = vmul.f32 %v883, %v903
      %v906 = vadd.f32 %v900, %v905
      %v908 = vcombine.high %v906, %v906
      %v910 = vunpack.c.l.s4 1966171168
      %v911 = vunpack.c.0.s8 %v910
      %v912 = vlaneseq
      %v913 = vshrl.u32 %v912, 7
      %v914 = vsub.s32 %v911, %v913
      %v915 = vrot.slane %v906, %v914
      %v917 = vunpack.c.l.s4 1966171168
      %v918 = vunpack.c.0.s8 %v917
      %v919 = vlaneseq
      %v920 = vshrl.u32 %v919, 7
      %v921 = vsub.s32 %v918, %v920
      %v922 = vrot.slane %v908, %v921
      %v923 = vcombine.high %v915, %v915
      %v924 = vcombine.high %v922, %v922
      %v926 = vunpack.c.l.s4 1966171168
      %v927 = vunpack.c.0.s8 %v926
      %v928 = vlaneseq
      %v929 = vshrl.u32 %v928, 7
      %v930 = vsub.s32 %v927, %v929
      %v931 = vrot.slane %v915, %v930
      %v933 = vunpack.c.l.s4 1966171168
      %v934 = vunpack.c.0.s8 %v933
      %v935 = vlaneseq
      %v936 = vshrl.u32 %v935, 7
      %v937 = vsub.s32 %v934, %v936
      %v938 = vrot.slane %v922, %v937
      %v940 = vunpack.c.l.s4 1966171168
      %v941 = vunpack.c.0.s8 %v940
      %v942 = vlaneseq
      %v943 = vshrl.u32 %v942, 7
      %v944 = vsub.s32 %v941, %v943
      %v945 = vrot.slane %v923, %v944
      %v947 = vunpack.c.l.s4 1966171168
      %v948 = vunpack.c.0.s8 %v947
      %v949 = vlaneseq
      %v950 = vshrl.u32 %v949, 7
      %v951 = vsub.s32 %v948, %v950
      %v952 = vrot.slane %v924, %v951
      %v953 = vcombine.high %v931, %v931
      %v954 = vcombine.high %v938, %v938
      %v955 = vcombine.high %v945, %v945
      %v956 = vcombine.high %v952, %v952
      %v965 = vpack.c.bf16 %v931, %v931
      %v966 = vpack.c.bf16 %v945, %v945
      %v967 = vpack.c.bf16 %v953, %v953
      %v968 = vpack.c.bf16 %v955, %v955
      %v969 = vpack.c.bf16 %v938, %v938
      %v970 = vpack.c.bf16 %v952, %v952
      %v971 = vpack.c.bf16 %v954, %v954
      %v972 = vpack.c.bf16 %v956, %v956
      %974 = vrot.lane.b32.xlu0 %v965, 96
      %v975 = vpop.permute.xlu0 %974
      %v980 = vunpack.c.l.b16 %v701
      %v981 = vunpack.c.l.b16 %v702
      %v982 = vunpack.c.l.b16 %v703
      %v983 = vunpack.c.l.b16 %v704
      %v984 = vpack.c.b16 %v981, %v980
      %v985 = vpack.c.b16 %v983, %v982
      %v989 = vsel %vm770, %v975, 0
      %991 = vmatprep.subr.bf16.mxu0 0
      %992 = vmatpush1.bf16.msra.mxu0 %v984
      %993 = vmatprep.subr.bf16.mxu0 0
      %994 = vmatpush1.bf16.msra.mxu0 %v985
      %995 = vmatprep.subr.bf16.mxu0 0
      %996 = vmatpush1.bf16.msra.mxu0 0
      %997 = vmatprep.subr.bf16.mxu0 0
      %998 = vmatpush1.bf16.msra.mxu0 0
      %999 = vmatprep.subr.bf16.mxu0 0
      %1000 = vmatpush1.bf16.msra.mxu0 0
      %1001 = vmatprep.subr.bf16.mxu0 0
      %1002 = vmatpush1.bf16.msra.mxu0 0
      %1003 = vmatprep.subr.bf16.mxu0 0
      %1004 = vmatpush1.bf16.msra.mxu0 0
      %1005 = vmatprep.subr.bf16.mxu0 0
      %1006 = vmatpush1.bf16.msra.mxu0 0
      %1007 = vmatprep.subr.bf16.mxu0 0
      %1008 = vmatpush1.bf16.msra.mxu0 0
      %1009 = vmatprep.subr.bf16.mxu0 0
      %1010 = vmatpush1.bf16.msra.mxu0 0
      %1011 = vmatprep.subr.bf16.mxu0 0
      %1012 = vmatpush1.bf16.msra.mxu0 0
      %1013 = vmatprep.subr.bf16.mxu0 0
      %1014 = vmatpush1.bf16.msra.mxu0 0
      %1015 = vmatprep.subr.bf16.mxu0 0
      %1016 = vmatpush1.bf16.msra.mxu0 0
      %1017 = vmatprep.subr.bf16.mxu0 0
      %1018 = vmatpush1.bf16.msra.mxu0 0
      %1019 = vmatprep.subr.bf16.mxu0 0
      %1020 = vmatpush1.bf16.msra.mxu0 0
      %1021 = vmatprep.subr.bf16.mxu0 0
      %1022 = vmatpush1.bf16.msra.mxu0 0
      %1023 = vmatprep.mubr.bf16.mxu0 0
      %1024 = vmatmul.mubr.bf16.gmra.mrb[0].mxu0 %v989
      %v1025 = vpop.f32.mrb[0].mxu0
      %v1026 = vadd.f32 0.0, %v1025
      %v1027 = vpop.f32.mrb[0].mxu0
      %v1028 = vpop.f32.mrb[0].mxu0
      %v1029 = vpop.f32.mrb[0].mxu0
      %1030 = vdwg.mxu0
      %1032 = vrot.lane.b32.xlu0 %v966, 96
      %v1033 = vpop.permute.xlu0 %1032
      %v1038 = vunpack.c.l.b16 %v705
      %v1039 = vunpack.c.l.b16 %v706
      %v1040 = vunpack.c.l.b16 %v707
      %v1041 = vunpack.c.l.b16 %v708
      %v1042 = vpack.c.b16 %v1039, %v1038
      %v1043 = vpack.c.b16 %v1041, %v1040
      %v1047 = vsel %vm770, %v1033, 0
      %1049 = vmatprep.subr.bf16.mxu0 0
      %1050 = vmatpush1.bf16.msra.mxu0 %v1042
      %1051 = vmatprep.subr.bf16.mxu0 0
      %1052 = vmatpush1.bf16.msra.mxu0 %v1043
      %1053 = vmatprep.subr.bf16.mxu0 0
      %1054 = vmatpush1.bf16.msra.mxu0 0
      %1055 = vmatprep.subr.bf16.mxu0 0
      %1056 = vmatpush1.bf16.msra.mxu0 0
      %1057 = vmatprep.subr.bf16.mxu0 0
      %1058 = vmatpush1.bf16.msra.mxu0 0
      %1059 = vmatprep.subr.bf16.mxu0 0
      %1060 = vmatpush1.bf16.msra.mxu0 0
      %1061 = vmatprep.subr.bf16.mxu0 0
      %1062 = vmatpush1.bf16.msra.mxu0 0
      %1063 = vmatprep.subr.bf16.mxu0 0
      %1064 = vmatpush1.bf16.msra.mxu0 0
      %1065 = vmatprep.subr.bf16.mxu0 0
      %1066 = vmatpush1.bf16.msra.mxu0 0
      %1067 = vmatprep.subr.bf16.mxu0 0
      %1068 = vmatpush1.bf16.msra.mxu0 0
      %1069 = vmatprep.subr.bf16.mxu0 0
      %1070 = vmatpush1.bf16.msra.mxu0 0
      %1071 = vmatprep.subr.bf16.mxu0 0
      %1072 = vmatpush1.bf16.msra.mxu0 0
      %1073 = vmatprep.subr.bf16.mxu0 0
      %1074 = vmatpush1.bf16.msra.mxu0 0
      %1075 = vmatprep.subr.bf16.mxu0 0
      %1076 = vmatpush1.bf16.msra.mxu0 0
      %1077 = vmatprep.subr.bf16.mxu0 0
      %1078 = vmatpush1.bf16.msra.mxu0 0
      %1079 = vmatprep.subr.bf16.mxu0 0
      %1080 = vmatpush1.bf16.msra.mxu0 0
      %1081 = vmatprep.mubr.bf16.mxu0 0
      %1082 = vmatmul.mubr.bf16.gmra.mrb[0].mxu0 %v1047
      %v1083 = vpop.f32.mrb[0].mxu0
      %v1084 = vadd.f32 0.0, %v1083
      %v1085 = vpop.f32.mrb[0].mxu0
      %v1086 = vpop.f32.mrb[0].mxu0
      %v1087 = vpop.f32.mrb[0].mxu0
      %1088 = vdwg.mxu0
      %1090 = vrot.lane.b32.xlu0 %v967, 96
      %v1091 = vpop.permute.xlu0 %1090
      %v1096 = vunpack.c.l.b16 %v709
      %v1097 = vunpack.c.l.b16 %v710
      %v1098 = vunpack.c.l.b16 %v711
      %v1099 = vunpack.c.l.b16 %v712
      %v1100 = vpack.c.b16 %v1097, %v1096
      %v1101 = vpack.c.b16 %v1099, %v1098
      %v1105 = vsel %vm770, %v1091, 0
      %1107 = vmatprep.subr.bf16.mxu0 0
      %1108 = vmatpush1.bf16.msra.mxu0 %v1100
      %1109 = vmatprep.subr.bf16.mxu0 0
      %1110 = vmatpush1.bf16.msra.mxu0 %v1101
      %1111 = vmatprep.subr.bf16.mxu0 0
      %1112 = vmatpush1.bf16.msra.mxu0 0
      %1113 = vmatprep.subr.bf16.mxu0 0
      %1114 = vmatpush1.bf16.msra.mxu0 0
      %1115 = vmatprep.subr.bf16.mxu0 0
      %1116 = vmatpush1.bf16.msra.mxu0 0
      %1117 = vmatprep.subr.bf16.mxu0 0
      %1118 = vmatpush1.bf16.msra.mxu0 0
      %1119 = vmatprep.subr.bf16.mxu0 0
      %1120 = vmatpush1.bf16.msra.mxu0 0
      %1121 = vmatprep.subr.bf16.mxu0 0
      %1122 = vmatpush1.bf16.msra.mxu0 0
      %1123 = vmatprep.subr.bf16.mxu0 0
      %1124 = vmatpush1.bf16.msra.mxu0 0
      %1125 = vmatprep.subr.bf16.mxu0 0
      %1126 = vmatpush1.bf16.msra.mxu0 0
      %1127 = vmatprep.subr.bf16.mxu0 0
      %1128 = vmatpush1.bf16.msra.mxu0 0
      %1129 = vmatprep.subr.bf16.mxu0 0
      %1130 = vmatpush1.bf16.msra.mxu0 0
      %1131 = vmatprep.subr.bf16.mxu0 0
      %1132 = vmatpush1.bf16.msra.mxu0 0
      %1133 = vmatprep.subr.bf16.mxu0 0
      %1134 = vmatpush1.bf16.msra.mxu0 0
      %1135 = vmatprep.subr.bf16.mxu0 0
      %1136 = vmatpush1.bf16.msra.mxu0 0
      %1137 = vmatprep.subr.bf16.mxu0 0
      %1138 = vmatpush1.bf16.msra.mxu0 0
      %1139 = vmatprep.mubr.bf16.mxu0 0
      %1140 = vmatmul.mubr.bf16.gmra.mrb[0].mxu0 %v1105
      %v1141 = vpop.f32.mrb[0].mxu0
      %v1142 = vadd.f32 0.0, %v1141
      %v1143 = vpop.f32.mrb[0].mxu0
      %v1144 = vpop.f32.mrb[0].mxu0
      %v1145 = vpop.f32.mrb[0].mxu0
      %1146 = vdwg.mxu0
      %1148 = vrot.lane.b32.xlu0 %v968, 96
      %v1149 = vpop.permute.xlu0 %1148
      %v1154 = vunpack.c.l.b16 %v713
      %v1155 = vunpack.c.l.b16 %v714
      %v1156 = vunpack.c.l.b16 %v715
      %v1157 = vunpack.c.l.b16 %v716
      %v1158 = vpack.c.b16 %v1155, %v1154
      %v1159 = vpack.c.b16 %v1157, %v1156
      %v1163 = vsel %vm770, %v1149, 0
      %1165 = vmatprep.subr.bf16.mxu0 0
      %1166 = vmatpush1.bf16.msra.mxu0 %v1158
      %1167 = vmatprep.subr.bf16.mxu0 0
      %1168 = vmatpush1.bf16.msra.mxu0 %v1159
      %1169 = vmatprep.subr.bf16.mxu0 0
      %1170 = vmatpush1.bf16.msra.mxu0 0
      %1171 = vmatprep.subr.bf16.mxu0 0
      %1172 = vmatpush1.bf16.msra.mxu0 0
      %1173 = vmatprep.subr.bf16.mxu0 0
      %1174 = vmatpush1.bf16.msra.mxu0 0
      %1175 = vmatprep.subr.bf16.mxu0 0
      %1176 = vmatpush1.bf16.msra.mxu0 0
      %1177 = vmatprep.subr.bf16.mxu0 0
      %1178 = vmatpush1.bf16.msra.mxu0 0
      %1179 = vmatprep.subr.bf16.mxu0 0
      %1180 = vmatpush1.bf16.msra.mxu0 0
      %1181 = vmatprep.subr.bf16.mxu0 0
      %1182 = vmatpush1.bf16.msra.mxu0 0
      %1183 = vmatprep.subr.bf16.mxu0 0
      %1184 = vmatpush1.bf16.msra.mxu0 0
      %1185 = vmatprep.subr.bf16.mxu0 0
      %1186 = vmatpush1.bf16.msra.mxu0 0
      %1187 = vmatprep.subr.bf16.mxu0 0
      %1188 = vmatpush1.bf16.msra.mxu0 0
      %1189 = vmatprep.subr.bf16.mxu0 0
      %1190 = vmatpush1.bf16.msra.mxu0 0
      %1191 = vmatprep.subr.bf16.mxu0 0
      %1192 = vmatpush1.bf16.msra.mxu0 0
      %1193 = vmatprep.subr.bf16.mxu0 0
      %1194 = vmatpush1.bf16.msra.mxu0 0
      %1195 = vmatprep.subr.bf16.mxu0 0
      %1196 = vmatpush1.bf16.msra.mxu0 0
      %1197 = vmatprep.mubr.bf16.mxu0 0
      %1198 = vmatmul.mubr.bf16.gmra.mrb[0].mxu0 %v1163
      %v1199 = vpop.f32.mrb[0].mxu0
      %v1200 = vadd.f32 0.0, %v1199
      %v1201 = vpop.f32.mrb[0].mxu0
      %v1202 = vpop.f32.mrb[0].mxu0
      %v1203 = vpop.f32.mrb[0].mxu0
      %1204 = vdwg.mxu0
      %1206 = vrot.lane.b32.xlu0 %v969, 96
      %v1207 = vpop.permute.xlu0 %1206
      %v1212 = vunpack.c.l.b16 %v717
      %v1213 = vunpack.c.l.b16 %v718
      %v1214 = vunpack.c.l.b16 %v719
      %v1215 = vunpack.c.l.b16 %v720
      %v1216 = vpack.c.b16 %v1213, %v1212
      %v1217 = vpack.c.b16 %v1215, %v1214
      %v1221 = vsel %vm770, %v1207, 0
      %1223 = vmatprep.subr.bf16.mxu0 0
      %1224 = vmatpush1.bf16.msra.mxu0 %v1216
      %1225 = vmatprep.subr.bf16.mxu0 0
      %1226 = vmatpush1.bf16.msra.mxu0 %v1217
      %1227 = vmatprep.subr.bf16.mxu0 0
      %1228 = vmatpush1.bf16.msra.mxu0 0
      %1229 = vmatprep.subr.bf16.mxu0 0
      %1230 = vmatpush1.bf16.msra.mxu0 0
      %1231 = vmatprep.subr.bf16.mxu0 0
      %1232 = vmatpush1.bf16.msra.mxu0 0
      %1233 = vmatprep.subr.bf16.mxu0 0
      %1234 = vmatpush1.bf16.msra.mxu0 0
      %1235 = vmatprep.subr.bf16.mxu0 0
      %1236 = vmatpush1.bf16.msra.mxu0 0
      %1237 = vmatprep.subr.bf16.mxu0 0
      %1238 = vmatpush1.bf16.msra.mxu0 0
      %1239 = vmatprep.subr.bf16.mxu0 0
      %1240 = vmatpush1.bf16.msra.mxu0 0
      %1241 = vmatprep.subr.bf16.mxu0 0
      %1242 = vmatpush1.bf16.msra.mxu0 0
      %1243 = vmatprep.subr.bf16.mxu0 0
      %1244 = vmatpush1.bf16.msra.mxu0 0
      %1245 = vmatprep.subr.bf16.mxu0 0
      %1246 = vmatpush1.bf16.msra.mxu0 0
      %1247 = vmatprep.subr.bf16.mxu0 0
      %1248 = vmatpush1.bf16.msra.mxu0 0
      %1249 = vmatprep.subr.bf16.mxu0 0
      %1250 = vmatpush1.bf16.msra.mxu0 0
      %1251 = vmatprep.subr.bf16.mxu0 0
      %1252 = vmatpush1.bf16.msra.mxu0 0
      %1253 = vmatprep.subr.bf16.mxu0 0
      %1254 = vmatpush1.bf16.msra.mxu0 0
      %1255 = vmatprep.mubr.bf16.mxu0 0
      %1256 = vmatmul.mubr.bf16.gmra.mrb[0].mxu0 %v1221
      %v1257 = vpop.f32.mrb[0].mxu0
      %v1258 = vadd.f32 0.0, %v1257
      %v1259 = vpop.f32.mrb[0].mxu0
      %v1260 = vpop.f32.mrb[0].mxu0
      %v1261 = vpop.f32.mrb[0].mxu0
      %1262 = vdwg.mxu0
      %1264 = vrot.lane.b32.xlu0 %v970, 96
      %v1265 = vpop.permute.xlu0 %1264
      %v1270 = vunpack.c.l.b16 %v721
      %v1271 = vunpack.c.l.b16 %v722
      %v1272 = vunpack.c.l.b16 %v723
      %v1273 = vunpack.c.l.b16 %v724
      %v1274 = vpack.c.b16 %v1271, %v1270
      %v1275 = vpack.c.b16 %v1273, %v1272
      %v1279 = vsel %vm770, %v1265, 0
      %1281 = vmatprep.subr.bf16.mxu0 0
      %1282 = vmatpush1.bf16.msra.mxu0 %v1274
      %1283 = vmatprep.subr.bf16.mxu0 0
      %1284 = vmatpush1.bf16.msra.mxu0 %v1275
      %1285 = vmatprep.subr.bf16.mxu0 0
      %1286 = vmatpush1.bf16.msra.mxu0 0
      %1287 = vmatprep.subr.bf16.mxu0 0
      %1288 = vmatpush1.bf16.msra.mxu0 0
      %1289 = vmatprep.subr.bf16.mxu0 0
      %1290 = vmatpush1.bf16.msra.mxu0 0
      %1291 = vmatprep.subr.bf16.mxu0 0
      %1292 = vmatpush1.bf16.msra.mxu0 0
      %1293 = vmatprep.subr.bf16.mxu0 0
      %1294 = vmatpush1.bf16.msra.mxu0 0
      %1295 = vmatprep.subr.bf16.mxu0 0
      %1296 = vmatpush1.bf16.msra.mxu0 0
      %1297 = vmatprep.subr.bf16.mxu0 0
      %1298 = vmatpush1.bf16.msra.mxu0 0
      %1299 = vmatprep.subr.bf16.mxu0 0
      %1300 = vmatpush1.bf16.msra.mxu0 0
      %1301 = vmatprep.subr.bf16.mxu0 0
      %1302 = vmatpush1.bf16.msra.mxu0 0
      %1303 = vmatprep.subr.bf16.mxu0 0
      %1304 = vmatpush1.bf16.msra.mxu0 0
      %1305 = vmatprep.subr.bf16.mxu0 0
      %1306 = vmatpush1.bf16.msra.mxu0 0
      %1307 = vmatprep.subr.bf16.mxu0 0
      %1308 = vmatpush1.bf16.msra.mxu0 0
      %1309 = vmatprep.subr.bf16.mxu0 0
      %1310 = vmatpush1.bf16.msra.mxu0 0
      %1311 = vmatprep.subr.bf16.mxu0 0
      %1312 = vmatpush1.bf16.msra.mxu0 0
      %1313 = vmatprep.mubr.bf16.mxu0 0
      %1314 = vmatmul.mubr.bf16.gmra.mrb[0].mxu0 %v1279
      %v1315 = vpop.f32.mrb[0].mxu0
      %v1316 = vadd.f32 0.0, %v1315
      %v1317 = vpop.f32.mrb[0].mxu0
      %v1318 = vpop.f32.mrb[0].mxu0
      %v1319 = vpop.f32.mrb[0].mxu0
      %1320 = vdwg.mxu0
      %1322 = vrot.lane.b32.xlu0 %v971, 96
      %v1323 = vpop.permute.xlu0 %1322
      %v1328 = vunpack.c.l.b16 %v725
      %v1329 = vunpack.c.l.b16 %v726
      %v1330 = vunpack.c.l.b16 %v727
      %v1331 = vunpack.c.l.b16 %v728
      %v1332 = vpack.c.b16 %v1329, %v1328
      %v1333 = vpack.c.b16 %v1331, %v1330
      %v1337 = vsel %vm770, %v1323, 0
      %1339 = vmatprep.subr.bf16.mxu0 0
      %1340 = vmatpush1.bf16.msra.mxu0 %v1332
      %1341 = vmatprep.subr.bf16.mxu0 0
      %1342 = vmatpush1.bf16.msra.mxu0 %v1333
      %1343 = vmatprep.subr.bf16.mxu0 0
      %1344 = vmatpush1.bf16.msra.mxu0 0
      %1345 = vmatprep.subr.bf16.mxu0 0
      %1346 = vmatpush1.bf16.msra.mxu0 0
      %1347 = vmatprep.subr.bf16.mxu0 0
      %1348 = vmatpush1.bf16.msra.mxu0 0
      %1349 = vmatprep.subr.bf16.mxu0 0
      %1350 = vmatpush1.bf16.msra.mxu0 0
      %1351 = vmatprep.subr.bf16.mxu0 0
      %1352 = vmatpush1.bf16.msra.mxu0 0
      %1353 = vmatprep.subr.bf16.mxu0 0
      %1354 = vmatpush1.bf16.msra.mxu0 0
      %1355 = vmatprep.subr.bf16.mxu0 0
      %1356 = vmatpush1.bf16.msra.mxu0 0
      %1357 = vmatprep.subr.bf16.mxu0 0
      %1358 = vmatpush1.bf16.msra.mxu0 0
      %1359 = vmatprep.subr.bf16.mxu0 0
      %1360 = vmatpush1.bf16.msra.mxu0 0
      %1361 = vmatprep.subr.bf16.mxu0 0
      %1362 = vmatpush1.bf16.msra.mxu0 0
      %1363 = vmatprep.subr.bf16.mxu0 0
      %1364 = vmatpush1.bf16.msra.mxu0 0
      %1365 = vmatprep.subr.bf16.mxu0 0
      %1366 = vmatpush1.bf16.msra.mxu0 0
      %1367 = vmatprep.subr.bf16.mxu0 0
      %1368 = vmatpush1.bf16.msra.mxu0 0
      %1369 = vmatprep.subr.bf16.mxu0 0
      %1370 = vmatpush1.bf16.msra.mxu0 0
      %1371 = vmatprep.mubr.bf16.mxu0 0
      %1372 = vmatmul.mubr.bf16.gmra.mrb[0].mxu0 %v1337
      %v1373 = vpop.f32.mrb[0].mxu0
      %v1374 = vadd.f32 0.0, %v1373
      %v1375 = vpop.f32.mrb[0].mxu0
      %v1376 = vpop.f32.mrb[0].mxu0
      %v1377 = vpop.f32.mrb[0].mxu0
      %1378 = vdwg.mxu0
      %1380 = vrot.lane.b32.xlu0 %v972, 96
      %v1381 = vpop.permute.xlu0 %1380
      %v1386 = vunpack.c.l.b16 %v729
      %v1387 = vunpack.c.l.b16 %v730
      %v1388 = vunpack.c.l.b16 %v731
      %v1389 = vunpack.c.l.b16 %v732
      %v1390 = vpack.c.b16 %v1387, %v1386
      %v1391 = vpack.c.b16 %v1389, %v1388
      %v1395 = vsel %vm770, %v1381, 0
      %1397 = vmatprep.subr.bf16.mxu0 0
      %1398 = vmatpush1.bf16.msra.mxu0 %v1390
      %1399 = vmatprep.subr.bf16.mxu0 0
      %1400 = vmatpush1.bf16.msra.mxu0 %v1391
      %1401 = vmatprep.subr.bf16.mxu0 0
      %1402 = vmatpush1.bf16.msra.mxu0 0
      %1403 = vmatprep.subr.bf16.mxu0 0
      %1404 = vmatpush1.bf16.msra.mxu0 0
      %1405 = vmatprep.subr.bf16.mxu0 0
      %1406 = vmatpush1.bf16.msra.mxu0 0
      %1407 = vmatprep.subr.bf16.mxu0 0
      %1408 = vmatpush1.bf16.msra.mxu0 0
      %1409 = vmatprep.subr.bf16.mxu0 0
      %1410 = vmatpush1.bf16.msra.mxu0 0
      %1411 = vmatprep.subr.bf16.mxu0 0
      %1412 = vmatpush1.bf16.msra.mxu0 0
      %1413 = vmatprep.subr.bf16.mxu0 0
      %1414 = vmatpush1.bf16.msra.mxu0 0
      %1415 = vmatprep.subr.bf16.mxu0 0
      %1416 = vmatpush1.bf16.msra.mxu0 0
      %1417 = vmatprep.subr.bf16.mxu0 0
      %1418 = vmatpush1.bf16.msra.mxu0 0
      %1419 = vmatprep.subr.bf16.mxu0 0
      %1420 = vmatpush1.bf16.msra.mxu0 0
      %1421 = vmatprep.subr.bf16.mxu0 0
      %1422 = vmatpush1.bf16.msra.mxu0 0
      %1423 = vmatprep.subr.bf16.mxu0 0
      %1424 = vmatpush1.bf16.msra.mxu0 0
      %1425 = vmatprep.subr.bf16.mxu0 0
      %1426 = vmatpush1.bf16.msra.mxu0 0
      %1427 = vmatprep.subr.bf16.mxu0 0
      %1428 = vmatpush1.bf16.msra.mxu0 0
      %1429 = vmatprep.mubr.bf16.mxu0 0
      %1430 = vmatmul.mubr.bf16.gmra.mrb[0].mxu0 %v1395
      %v1431 = vpop.f32.mrb[0].mxu0
      %v1432 = vadd.f32 0.0, %v1431
      %v1433 = vpop.f32.mrb[0].mxu0
      %v1434 = vpop.f32.mrb[0].mxu0
      %v1435 = vpop.f32.mrb[0].mxu0
      %1436 = vdwg.mxu0
      %v1438 = vlaneseq
      %v1439 = vshrl.u32 %v1438, 7
      %v1440 = vsub.s32 0, %v1439
      %v1441 = vrot.slane %v751, %v1440
      %v1443 = vadd.f32 %v1026, %v1441
      %v1444 = vadd.f32 %v1084, %v1441
      %v1445 = vadd.f32 %v1142, %v1441
      %v1446 = vadd.f32 %v1200, %v1441
      %v1447 = vadd.f32 %v1258, %v1441
      %v1448 = vadd.f32 %v1316, %v1441
      %v1449 = vadd.f32 %v1374, %v1441
      %v1450 = vadd.f32 %v1432, %v1441
      %v1459 = vrot.slane %v1444, 7
      %vm1460 = vcmask 1041409
      %v1461 = vsel %vm1460, %v1459, %v1443
      %v1462 = vrot.slane %v1445, 6
      %vm1463 = vcmask 1042434
      %v1464 = vsel %vm1463, %v1462, %v1461
      %v1465 = vrot.slane %v1446, 5
      %vm1466 = vcmask 1043459
      %v1467 = vsel %vm1466, %v1465, %v1464
      %v1468 = vrot.slane %v1447, 4
      %vm1469 = vcmask 1044484
      %v1470 = vsel %vm1469, %v1468, %v1467
      %v1471 = vrot.slane %v1448, 3
      %vm1472 = vcmask 1045509
      %v1473 = vsel %vm1472, %v1471, %v1470
      %v1474 = vrot.slane %v1449, 2
      %vm1475 = vcmask 1046534
      %v1476 = vsel %vm1475, %v1474, %v1473
      %v1477 = vrot.slane %v1450, 1
      %vm1478 = vcmask 1047559
      %v1479 = vsel %vm1478, %v1477, %v1476
      %1481 = vmax.xlane.f32.xlu0 %v1479
      %v1482 = vpop.xlane.xlu0 %1481
      %v1484 = vrot.slane %v1482, 1
      %v1485 = vrot.slane %v1482, 2
      %v1486 = vrot.slane %v1482, 3
      %v1487 = vrot.slane %v1482, 4
      %v1488 = vrot.slane %v1482, 5
      %v1489 = vrot.slane %v1482, 6
      %v1490 = vrot.slane %v1482, 7
      %v1499 = vsub.f32 %v1443, %v1482
      %v1500 = vsub.f32 %v1444, %v1484
      %v1501 = vsub.f32 %v1445, %v1485
      %v1502 = vsub.f32 %v1446, %v1486
      %v1503 = vsub.f32 %v1447, %v1487
      %v1504 = vsub.f32 %v1448, %v1488
      %v1505 = vsub.f32 %v1449, %v1489
      %v1506 = vsub.f32 %v1450, %v1490
      %v1507 = vmul.f32 %v1499, 1.442695
      %v1508 = vpow.pop %v1507
      %v1509 = vmul.f32 %v1500, 1.442695
      %v1510 = vpow.pop %v1509
      %v1511 = vmul.f32 %v1501, 1.442695
      %v1512 = vpow.pop %v1511
      %v1513 = vmul.f32 %v1502, 1.442695
      %v1514 = vpow.pop %v1513
      %v1515 = vmul.f32 %v1503, 1.442695
      %v1516 = vpow.pop %v1515
      %v1517 = vmul.f32 %v1504, 1.442695
      %v1518 = vpow.pop %v1517
      %v1519 = vmul.f32 %v1505, 1.442695
      %v1520 = vpow.pop %v1519
      %v1521 = vmul.f32 %v1506, 1.442695
      %v1522 = vpow.pop %v1521
      %v1531 = vrot.slane %v1510, 7
      %v1532 = vsel %vm1460, %v1531, %v1508
      %v1533 = vrot.slane %v1512, 6
      %v1534 = vsel %vm1463, %v1533, %v1532
      %v1535 = vrot.slane %v1514, 5
      %v1536 = vsel %vm1466, %v1535, %v1534
      %v1537 = vrot.slane %v1516, 4
      %v1538 = vsel %vm1469, %v1537, %v1536
      %v1539 = vrot.slane %v1518, 3
      %v1540 = vsel %vm1472, %v1539, %v1538
      %v1541 = vrot.slane %v1520, 2
      %v1542 = vsel %vm1475, %v1541, %v1540
      %v1543 = vrot.slane %v1522, 1
      %v1544 = vsel %vm1478, %v1543, %v1542
      %1546 = vadd.xlane.f32.xlu0 %v1544
      %v1547 = vpop.xlane.xlu0 %1546
      %v1548 = vrcp.pop %v1547
      %v1549 = vmul.f32 %v1547, %v1548
      %v1550 = vsub.f32 2.0, %v1549
      %v1551 = vmul.f32 %v1548, %v1550
      %v1553 = vrot.slane %v1551, 1
      %v1554 = vrot.slane %v1551, 2
      %v1555 = vrot.slane %v1551, 3
      %v1556 = vrot.slane %v1551, 4
      %v1557 = vrot.slane %v1551, 5
      %v1558 = vrot.slane %v1551, 6
      %v1559 = vrot.slane %v1551, 7
      %v1568 = vmul.f32 %v1508, %v1551
      %v1569 = vmul.f32 %v1510, %v1553
      %v1570 = vmul.f32 %v1512, %v1554
      %v1571 = vmul.f32 %v1514, %v1555
      %v1572 = vmul.f32 %v1516, %v1556
      %v1573 = vmul.f32 %v1518, %v1557
      %v1574 = vmul.f32 %v1520, %v1558
      %v1575 = vmul.f32 %v1522, %v1559
      %v1576 = vpack.c.bf16 %v1568, %v1568
      %v1577 = vpack.c.bf16 %v1569, %v1569
      %v1578 = vpack.c.bf16 %v1570, %v1570
      %v1579 = vpack.c.bf16 %v1571, %v1571
      %v1580 = vpack.c.bf16 %v1572, %v1572
      %v1581 = vpack.c.bf16 %v1573, %v1573
      %v1582 = vpack.c.bf16 %v1574, %v1574
      %v1583 = vpack.c.bf16 %v1575, %v1575
      %v1600 = vunpack.c.l.b16 %v573
      %v1601 = vunpack.c.l.b16 %v574
      %v1602 = vunpack.c.l.b16 %v575
      %v1603 = vunpack.c.l.b16 %v576
      %v1604 = vunpack.c.l.b16 %v577
      %v1605 = vunpack.c.l.b16 %v578
      %v1606 = vunpack.c.l.b16 %v579
      %v1607 = vunpack.c.l.b16 %v580
      %v1608 = vunpack.c.l.b16 %v581
      %v1609 = vunpack.c.l.b16 %v582
      %v1610 = vunpack.c.l.b16 %v583
      %v1611 = vunpack.c.l.b16 %v584
      %v1612 = vunpack.c.l.b16 %v585
      %v1613 = vunpack.c.l.b16 %v586
      %v1614 = vunpack.c.l.b16 %v587
      %v1615 = vunpack.c.l.b16 %v588
      %v1616 = vpack.c.b16 %v1601, %v1600
      %v1617 = vpack.c.b16 %v1603, %v1602
      %v1618 = vpack.c.b16 %v1605, %v1604
      %v1619 = vpack.c.b16 %v1607, %v1606
      %v1620 = vpack.c.b16 %v1609, %v1608
      %v1621 = vpack.c.b16 %v1611, %v1610
      %v1622 = vpack.c.b16 %v1613, %v1612
      %v1623 = vpack.c.b16 %v1615, %v1614
      %1632 = vmatprep.subr.bf16.mxu0 0
      %1633 = vmatpush1.bf16.msra.mxu0 %v1616
      %1634 = vmatprep.subr.bf16.mxu0 0
      %1635 = vmatpush1.bf16.msra.mxu0 %v1617
      %1636 = vmatprep.subr.bf16.mxu0 0
      %1637 = vmatpush1.bf16.msra.mxu0 %v1618
      %1638 = vmatprep.subr.bf16.mxu0 0
      %1639 = vmatpush1.bf16.msra.mxu0 %v1619
      %1640 = vmatprep.subr.bf16.mxu0 0
      %1641 = vmatpush1.bf16.msra.mxu0 %v1620
      %1642 = vmatprep.subr.bf16.mxu0 0
      %1643 = vmatpush1.bf16.msra.mxu0 %v1621
      %1644 = vmatprep.subr.bf16.mxu0 0
      %1645 = vmatpush1.bf16.msra.mxu0 %v1622
      %1646 = vmatprep.subr.bf16.mxu0 0
      %1647 = vmatpush1.bf16.msra.mxu0 %v1623
      %1648 = vmatprep.subr.bf16.mxu0 0
      %1649 = vmatpush1.bf16.msra.mxu0 0
      %1650 = vmatprep.subr.bf16.mxu0 0
      %1651 = vmatpush1.bf16.msra.mxu0 0
      %1652 = vmatprep.subr.bf16.mxu0 0
      %1653 = vmatpush1.bf16.msra.mxu0 0
      %1654 = vmatprep.subr.bf16.mxu0 0
      %1655 = vmatpush1.bf16.msra.mxu0 0
      %1656 = vmatprep.subr.bf16.mxu0 0
      %1657 = vmatpush1.bf16.msra.mxu0 0
      %1658 = vmatprep.subr.bf16.mxu0 0
      %1659 = vmatpush1.bf16.msra.mxu0 0
      %1660 = vmatprep.subr.bf16.mxu0 0
      %1661 = vmatpush1.bf16.msra.mxu0 0
      %1662 = vmatprep.subr.bf16.mxu0 0
      %1663 = vmatpush1.bf16.msra.mxu0 0
      %1664 = vmatprep.mubr.bf16.mxu0 0
      %1665 = vmatmul.mubr.bf16.gmra.mrb[0].mxu0 %v1576
      %v1666 = vpop.f32.mrb[0].mxu0
      %v1667 = vadd.f32 0.0, %v1666
      %v1668 = vpop.f32.mrb[0].mxu0
      %v1669 = vpop.f32.mrb[0].mxu0
      %v1670 = vpop.f32.mrb[0].mxu0
      %1671 = vdwg.mxu0
      %v1688 = vunpack.c.l.b16 %v589
      %v1689 = vunpack.c.l.b16 %v590
      %v1690 = vunpack.c.l.b16 %v591
      %v1691 = vunpack.c.l.b16 %v592
      %v1692 = vunpack.c.l.b16 %v593
      %v1693 = vunpack.c.l.b16 %v594
      %v1694 = vunpack.c.l.b16 %v595
      %v1695 = vunpack.c.l.b16 %v596
      %v1696 = vunpack.c.l.b16 %v597
      %v1697 = vunpack.c.l.b16 %v598
      %v1698 = vunpack.c.l.b16 %v599
      %v1699 = vunpack.c.l.b16 %v600
      %v1700 = vunpack.c.l.b16 %v601
      %v1701 = vunpack.c.l.b16 %v602
      %v1702 = vunpack.c.l.b16 %v603
      %v1703 = vunpack.c.l.b16 %v604
      %v1704 = vpack.c.b16 %v1689, %v1688
      %v1705 = vpack.c.b16 %v1691, %v1690
      %v1706 = vpack.c.b16 %v1693, %v1692
      %v1707 = vpack.c.b16 %v1695, %v1694
      %v1708 = vpack.c.b16 %v1697, %v1696
      %v1709 = vpack.c.b16 %v1699, %v1698
      %v1710 = vpack.c.b16 %v1701, %v1700
      %v1711 = vpack.c.b16 %v1703, %v1702
      %1720 = vmatprep.subr.bf16.mxu0 0
      %1721 = vmatpush1.bf16.msra.mxu0 %v1704
      %1722 = vmatprep.subr.bf16.mxu0 0
      %1723 = vmatpush1.bf16.msra.mxu0 %v1705
      %1724 = vmatprep.subr.bf16.mxu0 0
      %1725 = vmatpush1.bf16.msra.mxu0 %v1706
      %1726 = vmatprep.subr.bf16.mxu0 0
      %1727 = vmatpush1.bf16.msra.mxu0 %v1707
      %1728 = vmatprep.subr.bf16.mxu0 0
      %1729 = vmatpush1.bf16.msra.mxu0 %v1708
      %1730 = vmatprep.subr.bf16.mxu0 0
      %1731 = vmatpush1.bf16.msra.mxu0 %v1709
      %1732 = vmatprep.subr.bf16.mxu0 0
      %1733 = vmatpush1.bf16.msra.mxu0 %v1710
      %1734 = vmatprep.subr.bf16.mxu0 0
      %1735 = vmatpush1.bf16.msra.mxu0 %v1711
      %1736 = vmatprep.subr.bf16.mxu0 0
      %1737 = vmatpush1.bf16.msra.mxu0 0
      %1738 = vmatprep.subr.bf16.mxu0 0
      %1739 = vmatpush1.bf16.msra.mxu0 0
      %1740 = vmatprep.subr.bf16.mxu0 0
      %1741 = vmatpush1.bf16.msra.mxu0 0
      %1742 = vmatprep.subr.bf16.mxu0 0
      %1743 = vmatpush1.bf16.msra.mxu0 0
      %1744 = vmatprep.subr.bf16.mxu0 0
      %1745 = vmatpush1.bf16.msra.mxu0 0
      %1746 = vmatprep.subr.bf16.mxu0 0
      %1747 = vmatpush1.bf16.msra.mxu0 0
      %1748 = vmatprep.subr.bf16.mxu0 0
      %1749 = vmatpush1.bf16.msra.mxu0 0
      %1750 = vmatprep.subr.bf16.mxu0 0
      %1751 = vmatpush1.bf16.msra.mxu0 0
      %1752 = vmatprep.mubr.bf16.mxu0 0
      %1753 = vmatmul.mubr.bf16.gmra.mrb[0].mxu0 %v1577
      %v1754 = vpop.f32.mrb[0].mxu0
      %v1755 = vadd.f32 0.0, %v1754
      %v1756 = vpop.f32.mrb[0].mxu0
      %v1757 = vpop.f32.mrb[0].mxu0
      %v1758 = vpop.f32.mrb[0].mxu0
      %1759 = vdwg.mxu0
      %v1776 = vunpack.c.l.b16 %v605
      %v1777 = vunpack.c.l.b16 %v606
      %v1778 = vunpack.c.l.b16 %v607
      %v1779 = vunpack.c.l.b16 %v608
      %v1780 = vunpack.c.l.b16 %v609
      %v1781 = vunpack.c.l.b16 %v610
      %v1782 = vunpack.c.l.b16 %v611
      %v1783 = vunpack.c.l.b16 %v612
      %v1784 = vunpack.c.l.b16 %v613
      %v1785 = vunpack.c.l.b16 %v614
      %v1786 = vunpack.c.l.b16 %v615
      %v1787 = vunpack.c.l.b16 %v616
      %v1788 = vunpack.c.l.b16 %v617
      %v1789 = vunpack.c.l.b16 %v618
      %v1790 = vunpack.c.l.b16 %v619
      %v1791 = vunpack.c.l.b16 %v620
      %v1792 = vpack.c.b16 %v1777, %v1776
      %v1793 = vpack.c.b16 %v1779, %v1778
      %v1794 = vpack.c.b16 %v1781, %v1780
      %v1795 = vpack.c.b16 %v1783, %v1782
      %v1796 = vpack.c.b16 %v1785, %v1784
      %v1797 = vpack.c.b16 %v1787, %v1786
      %v1798 = vpack.c.b16 %v1789, %v1788
      %v1799 = vpack.c.b16 %v1791, %v1790
      %1808 = vmatprep.subr.bf16.mxu0 0
      %1809 = vmatpush1.bf16.msra.mxu0 %v1792
      %1810 = vmatprep.subr.bf16.mxu0 0
      %1811 = vmatpush1.bf16.msra.mxu0 %v1793
      %1812 = vmatprep.subr.bf16.mxu0 0
      %1813 = vmatpush1.bf16.msra.mxu0 %v1794
      %1814 = vmatprep.subr.bf16.mxu0 0
      %1815 = vmatpush1.bf16.msra.mxu0 %v1795
      %1816 = vmatprep.subr.bf16.mxu0 0
      %1817 = vmatpush1.bf16.msra.mxu0 %v1796
      %1818 = vmatprep.subr.bf16.mxu0 0
      %1819 = vmatpush1.bf16.msra.mxu0 %v1797
      %1820 = vmatprep.subr.bf16.mxu0 0
      %1821 = vmatpush1.bf16.msra.mxu0 %v1798
      %1822 = vmatprep.subr.bf16.mxu0 0
      %1823 = vmatpush1.bf16.msra.mxu0 %v1799
      %1824 = vmatprep.subr.bf16.mxu0 0
      %1825 = vmatpush1.bf16.msra.mxu0 0
      %1826 = vmatprep.subr.bf16.mxu0 0
      %1827 = vmatpush1.bf16.msra.mxu0 0
      %1828 = vmatprep.subr.bf16.mxu0 0
      %1829 = vmatpush1.bf16.msra.mxu0 0
      %1830 = vmatprep.subr.bf16.mxu0 0
      %1831 = vmatpush1.bf16.msra.mxu0 0
      %1832 = vmatprep.subr.bf16.mxu0 0
      %1833 = vmatpush1.bf16.msra.mxu0 0
      %1834 = vmatprep.subr.bf16.mxu0 0
      %1835 = vmatpush1.bf16.msra.mxu0 0
      %1836 = vmatprep.subr.bf16.mxu0 0
      %1837 = vmatpush1.bf16.msra.mxu0 0
      %1838 = vmatprep.subr.bf16.mxu0 0
      %1839 = vmatpush1.bf16.msra.mxu0 0
      %1840 = vmatprep.mubr.bf16.mxu0 0
      %1841 = vmatmul.mubr.bf16.gmra.mrb[0].mxu0 %v1578
      %v1842 = vpop.f32.mrb[0].mxu0
      %v1843 = vadd.f32 0.0, %v1842
      %v1844 = vpop.f32.mrb[0].mxu0
      %v1845 = vpop.f32.mrb[0].mxu0
      %v1846 = vpop.f32.mrb[0].mxu0
      %1847 = vdwg.mxu0
      %v1864 = vunpack.c.l.b16 %v621
      %v1865 = vunpack.c.l.b16 %v622
      %v1866 = vunpack.c.l.b16 %v623
      %v1867 = vunpack.c.l.b16 %v624
      %v1868 = vunpack.c.l.b16 %v625
      %v1869 = vunpack.c.l.b16 %v626
      %v1870 = vunpack.c.l.b16 %v627
      %v1871 = vunpack.c.l.b16 %v628
      %v1872 = vunpack.c.l.b16 %v629
      %v1873 = vunpack.c.l.b16 %v630
      %v1874 = vunpack.c.l.b16 %v631
      %v1875 = vunpack.c.l.b16 %v632
      %v1876 = vunpack.c.l.b16 %v633
      %v1877 = vunpack.c.l.b16 %v634
      %v1878 = vunpack.c.l.b16 %v635
      %v1879 = vunpack.c.l.b16 %v636
      %v1880 = vpack.c.b16 %v1865, %v1864
      %v1881 = vpack.c.b16 %v1867, %v1866
      %v1882 = vpack.c.b16 %v1869, %v1868
      %v1883 = vpack.c.b16 %v1871, %v1870
      %v1884 = vpack.c.b16 %v1873, %v1872
      %v1885 = vpack.c.b16 %v1875, %v1874
      %v1886 = vpack.c.b16 %v1877, %v1876
      %v1887 = vpack.c.b16 %v1879, %v1878
      %1896 = vmatprep.subr.bf16.mxu0 0
      %1897 = vmatpush1.bf16.msra.mxu0 %v1880
      %1898 = vmatprep.subr.bf16.mxu0 0
      %1899 = vmatpush1.bf16.msra.mxu0 %v1881
      %1900 = vmatprep.subr.bf16.mxu0 0
      %1901 = vmatpush1.bf16.msra.mxu0 %v1882
      %1902 = vmatprep.subr.bf16.mxu0 0
      %1903 = vmatpush1.bf16.msra.mxu0 %v1883
      %1904 = vmatprep.subr.bf16.mxu0 0
      %1905 = vmatpush1.bf16.msra.mxu0 %v1884
      %1906 = vmatprep.subr.bf16.mxu0 0
      %1907 = vmatpush1.bf16.msra.mxu0 %v1885
      %1908 = vmatprep.subr.bf16.mxu0 0
      %1909 = vmatpush1.bf16.msra.mxu0 %v1886
      %1910 = vmatprep.subr.bf16.mxu0 0
      %1911 = vmatpush1.bf16.msra.mxu0 %v1887
      %1912 = vmatprep.subr.bf16.mxu0 0
      %1913 = vmatpush1.bf16.msra.mxu0 0
      %1914 = vmatprep.subr.bf16.mxu0 0
      %1915 = vmatpush1.bf16.msra.mxu0 0
      %1916 = vmatprep.subr.bf16.mxu0 0
      %1917 = vmatpush1.bf16.msra.mxu0 0
      %1918 = vmatprep.subr.bf16.mxu0 0
      %1919 = vmatpush1.bf16.msra.mxu0 0
      %1920 = vmatprep.subr.bf16.mxu0 0
      %1921 = vmatpush1.bf16.msra.mxu0 0
      %1922 = vmatprep.subr.bf16.mxu0 0
      %1923 = vmatpush1.bf16.msra.mxu0 0
      %1924 = vmatprep.subr.bf16.mxu0 0
      %1925 = vmatpush1.bf16.msra.mxu0 0
      %1926 = vmatprep.subr.bf16.mxu0 0
      %1927 = vmatpush1.bf16.msra.mxu0 0
      %1928 = vmatprep.mubr.bf16.mxu0 0
      %1929 = vmatmul.mubr.bf16.gmra.mrb[0].mxu0 %v1579
      %v1930 = vpop.f32.mrb[0].mxu0
      %v1931 = vadd.f32 0.0, %v1930
      %v1932 = vpop.f32.mrb[0].mxu0
      %v1933 = vpop.f32.mrb[0].mxu0
      %v1934 = vpop.f32.mrb[0].mxu0
      %1935 = vdwg.mxu0
      %v1952 = vunpack.c.l.b16 %v637
      %v1953 = vunpack.c.l.b16 %v638
      %v1954 = vunpack.c.l.b16 %v639
      %v1955 = vunpack.c.l.b16 %v640
      %v1956 = vunpack.c.l.b16 %v641
      %v1957 = vunpack.c.l.b16 %v642
      %v1958 = vunpack.c.l.b16 %v643
      %v1959 = vunpack.c.l.b16 %v644
      %v1960 = vunpack.c.l.b16 %v645
      %v1961 = vunpack.c.l.b16 %v646
      %v1962 = vunpack.c.l.b16 %v647
      %v1963 = vunpack.c.l.b16 %v648
      %v1964 = vunpack.c.l.b16 %v649
      %v1965 = vunpack.c.l.b16 %v650
      %v1966 = vunpack.c.l.b16 %v651
      %v1967 = vunpack.c.l.b16 %v652
      %v1968 = vpack.c.b16 %v1953, %v1952
      %v1969 = vpack.c.b16 %v1955, %v1954
      %v1970 = vpack.c.b16 %v1957, %v1956
      %v1971 = vpack.c.b16 %v1959, %v1958
      %v1972 = vpack.c.b16 %v1961, %v1960
      %v1973 = vpack.c.b16 %v1963, %v1962
      %v1974 = vpack.c.b16 %v1965, %v1964
      %v1975 = vpack.c.b16 %v1967, %v1966
      %1984 = vmatprep.subr.bf16.mxu0 0
      %1985 = vmatpush1.bf16.msra.mxu0 %v1968
      %1986 = vmatprep.subr.bf16.mxu0 0
      %1987 = vmatpush1.bf16.msra.mxu0 %v1969
      %1988 = vmatprep.subr.bf16.mxu0 0
      %1989 = vmatpush1.bf16.msra.mxu0 %v1970
      %1990 = vmatprep.subr.bf16.mxu0 0
      %1991 = vmatpush1.bf16.msra.mxu0 %v1971
      %1992 = vmatprep.subr.bf16.mxu0 0
      %1993 = vmatpush1.bf16.msra.mxu0 %v1972
      %1994 = vmatprep.subr.bf16.mxu0 0
      %1995 = vmatpush1.bf16.msra.mxu0 %v1973
      %1996 = vmatprep.subr.bf16.mxu0 0
      %1997 = vmatpush1.bf16.msra.mxu0 %v1974
      %1998 = vmatprep.subr.bf16.mxu0 0
      %1999 = vmatpush1.bf16.msra.mxu0 %v1975
      %2000 = vmatprep.subr.bf16.mxu0 0
      %2001 = vmatpush1.bf16.msra.mxu0 0
      %2002 = vmatprep.subr.bf16.mxu0 0
      %2003 = vmatpush1.bf16.msra.mxu0 0
      %2004 = vmatprep.subr.bf16.mxu0 0
      %2005 = vmatpush1.bf16.msra.mxu0 0
      %2006 = vmatprep.subr.bf16.mxu0 0
      %2007 = vmatpush1.bf16.msra.mxu0 0
      %2008 = vmatprep.subr.bf16.mxu0 0
      %2009 = vmatpush1.bf16.msra.mxu0 0
      %2010 = vmatprep.subr.bf16.mxu0 0
      %2011 = vmatpush1.bf16.msra.mxu0 0
      %2012 = vmatprep.subr.bf16.mxu0 0
      %2013 = vmatpush1.bf16.msra.mxu0 0
      %2014 = vmatprep.subr.bf16.mxu0 0
      %2015 = vmatpush1.bf16.msra.mxu0 0
      %2016 = vmatprep.mubr.bf16.mxu0 0
      %2017 = vmatmul.mubr.bf16.gmra.mrb[0].mxu0 %v1580
      %v2018 = vpop.f32.mrb[0].mxu0
      %v2019 = vadd.f32 0.0, %v2018
      %v2020 = vpop.f32.mrb[0].mxu0
      %v2021 = vpop.f32.mrb[0].mxu0
      %v2022 = vpop.f32.mrb[0].mxu0
      %2023 = vdwg.mxu0
      %v2040 = vunpack.c.l.b16 %v653
      %v2041 = vunpack.c.l.b16 %v654
      %v2042 = vunpack.c.l.b16 %v655
      %v2043 = vunpack.c.l.b16 %v656
      %v2044 = vunpack.c.l.b16 %v657
      %v2045 = vunpack.c.l.b16 %v658
      %v2046 = vunpack.c.l.b16 %v659
      %v2047 = vunpack.c.l.b16 %v660
      %v2048 = vunpack.c.l.b16 %v661
      %v2049 = vunpack.c.l.b16 %v662
      %v2050 = vunpack.c.l.b16 %v663
      %v2051 = vunpack.c.l.b16 %v664
      %v2052 = vunpack.c.l.b16 %v665
      %v2053 = vunpack.c.l.b16 %v666
      %v2054 = vunpack.c.l.b16 %v667
      %v2055 = vunpack.c.l.b16 %v668
      %v2056 = vpack.c.b16 %v2041, %v2040
      %v2057 = vpack.c.b16 %v2043, %v2042
      %v2058 = vpack.c.b16 %v2045, %v2044
      %v2059 = vpack.c.b16 %v2047, %v2046
      %v2060 = vpack.c.b16 %v2049, %v2048
      %v2061 = vpack.c.b16 %v2051, %v2050
      %v2062 = vpack.c.b16 %v2053, %v2052
      %v2063 = vpack.c.b16 %v2055, %v2054
      %2072 = vmatprep.subr.bf16.mxu0 0
      %2073 = vmatpush1.bf16.msra.mxu0 %v2056
      %2074 = vmatprep.subr.bf16.mxu0 0
      %2075 = vmatpush1.bf16.msra.mxu0 %v2057
      %2076 = vmatprep.subr.bf16.mxu0 0
      %2077 = vmatpush1.bf16.msra.mxu0 %v2058
      %2078 = vmatprep.subr.bf16.mxu0 0
      %2079 = vmatpush1.bf16.msra.mxu0 %v2059
      %2080 = vmatprep.subr.bf16.mxu0 0
      %2081 = vmatpush1.bf16.msra.mxu0 %v2060
      %2082 = vmatprep.subr.bf16.mxu0 0
      %2083 = vmatpush1.bf16.msra.mxu0 %v2061
      %2084 = vmatprep.subr.bf16.mxu0 0
      %2085 = vmatpush1.bf16.msra.mxu0 %v2062
      %2086 = vmatprep.subr.bf16.mxu0 0
      %2087 = vmatpush1.bf16.msra.mxu0 %v2063
      %2088 = vmatprep.subr.bf16.mxu0 0
      %2089 = vmatpush1.bf16.msra.mxu0 0
      %2090 = vmatprep.subr.bf16.mxu0 0
      %2091 = vmatpush1.bf16.msra.mxu0 0
      %2092 = vmatprep.subr.bf16.mxu0 0
      %2093 = vmatpush1.bf16.msra.mxu0 0
      %2094 = vmatprep.subr.bf16.mxu0 0
      %2095 = vmatpush1.bf16.msra.mxu0 0
      %2096 = vmatprep.subr.bf16.mxu0 0
      %2097 = vmatpush1.bf16.msra.mxu0 0
      %2098 = vmatprep.subr.bf16.mxu0 0
      %2099 = vmatpush1.bf16.msra.mxu0 0
      %2100 = vmatprep.subr.bf16.mxu0 0
      %2101 = vmatpush1.bf16.msra.mxu0 0
      %2102 = vmatprep.subr.bf16.mxu0 0
      %2103 = vmatpush1.bf16.msra.mxu0 0
      %2104 = vmatprep.mubr.bf16.mxu0 0
      %2105 = vmatmul.mubr.bf16.gmra.mrb[0].mxu0 %v1581
      %v2106 = vpop.f32.mrb[0].mxu0
      %v2107 = vadd.f32 0.0, %v2106
      %v2108 = vpop.f32.mrb[0].mxu0
      %v2109 = vpop.f32.mrb[0].mxu0
      %v2110 = vpop.f32.mrb[0].mxu0
      %2111 = vdwg.mxu0
      %v2128 = vunpack.c.l.b16 %v669
      %v2129 = vunpack.c.l.b16 %v670
      %v2130 = vunpack.c.l.b16 %v671
      %v2131 = vunpack.c.l.b16 %v672
      %v2132 = vunpack.c.l.b16 %v673
      %v2133 = vunpack.c.l.b16 %v674
      %v2134 = vunpack.c.l.b16 %v675
      %v2135 = vunpack.c.l.b16 %v676
      %v2136 = vunpack.c.l.b16 %v677
      %v2137 = vunpack.c.l.b16 %v678
      %v2138 = vunpack.c.l.b16 %v679
      %v2139 = vunpack.c.l.b16 %v680
      %v2140 = vunpack.c.l.b16 %v681
      %v2141 = vunpack.c.l.b16 %v682
      %v2142 = vunpack.c.l.b16 %v683
      %v2143 = vunpack.c.l.b16 %v684
      %v2144 = vpack.c.b16 %v2129, %v2128
      %v2145 = vpack.c.b16 %v2131, %v2130
      %v2146 = vpack.c.b16 %v2133, %v2132
      %v2147 = vpack.c.b16 %v2135, %v2134
      %v2148 = vpack.c.b16 %v2137, %v2136
      %v2149 = vpack.c.b16 %v2139, %v2138
      %v2150 = vpack.c.b16 %v2141, %v2140
      %v2151 = vpack.c.b16 %v2143, %v2142
      %2160 = vmatprep.subr.bf16.mxu0 0
      %2161 = vmatpush1.bf16.msra.mxu0 %v2144
      %2162 = vmatprep.subr.bf16.mxu0 0
      %2163 = vmatpush1.bf16.msra.mxu0 %v2145
      %2164 = vmatprep.subr.bf16.mxu0 0
      %2165 = vmatpush1.bf16.msra.mxu0 %v2146
      %2166 = vmatprep.subr.bf16.mxu0 0
      %2167 = vmatpush1.bf16.msra.mxu0 %v2147
      %2168 = vmatprep.subr.bf16.mxu0 0
      %2169 = vmatpush1.bf16.msra.mxu0 %v2148
      %2170 = vmatprep.subr.bf16.mxu0 0
      %2171 = vmatpush1.bf16.msra.mxu0 %v2149
      %2172 = vmatprep.subr.bf16.mxu0 0
      %2173 = vmatpush1.bf16.msra.mxu0 %v2150
      %2174 = vmatprep.subr.bf16.mxu0 0
      %2175 = vmatpush1.bf16.msra.mxu0 %v2151
      %2176 = vmatprep.subr.bf16.mxu0 0
      %2177 = vmatpush1.bf16.msra.mxu0 0
      %2178 = vmatprep.subr.bf16.mxu0 0
      %2179 = vmatpush1.bf16.msra.mxu0 0
      %2180 = vmatprep.subr.bf16.mxu0 0
      %2181 = vmatpush1.bf16.msra.mxu0 0
      %2182 = vmatprep.subr.bf16.mxu0 0
      %2183 = vmatpush1.bf16.msra.mxu0 0
      %2184 = vmatprep.subr.bf16.mxu0 0
      %2185 = vmatpush1.bf16.msra.mxu0 0
      %2186 = vmatprep.subr.bf16.mxu0 0
      %2187 = vmatpush1.bf16.msra.mxu0 0
      %2188 = vmatprep.subr.bf16.mxu0 0
      %2189 = vmatpush1.bf16.msra.mxu0 0
      %2190 = vmatprep.subr.bf16.mxu0 0
      %2191 = vmatpush1.bf16.msra.mxu0 0
      %2192 = vmatprep.mubr.bf16.mxu0 0
      %2193 = vmatmul.mubr.bf16.gmra.mrb[0].mxu0 %v1582
      %v2194 = vpop.f32.mrb[0].mxu0
      %v2195 = vadd.f32 0.0, %v2194
      %v2196 = vpop.f32.mrb[0].mxu0
      %v2197 = vpop.f32.mrb[0].mxu0
      %v2198 = vpop.f32.mrb[0].mxu0
      %2199 = vdwg.mxu0
      %v2216 = vunpack.c.l.b16 %v685
      %v2217 = vunpack.c.l.b16 %v686
      %v2218 = vunpack.c.l.b16 %v687
      %v2219 = vunpack.c.l.b16 %v688
      %v2220 = vunpack.c.l.b16 %v689
      %v2221 = vunpack.c.l.b16 %v690
      %v2222 = vunpack.c.l.b16 %v691
      %v2223 = vunpack.c.l.b16 %v692
      %v2224 = vunpack.c.l.b16 %v693
      %v2225 = vunpack.c.l.b16 %v694
      %v2226 = vunpack.c.l.b16 %v695
      %v2227 = vunpack.c.l.b16 %v696
      %v2228 = vunpack.c.l.b16 %v697
      %v2229 = vunpack.c.l.b16 %v698
      %v2230 = vunpack.c.l.b16 %v699
      %v2231 = vunpack.c.l.b16 %v700
      %v2232 = vpack.c.b16 %v2217, %v2216
      %v2233 = vpack.c.b16 %v2219, %v2218
      %v2234 = vpack.c.b16 %v2221, %v2220
      %v2235 = vpack.c.b16 %v2223, %v2222
      %v2236 = vpack.c.b16 %v2225, %v2224
      %v2237 = vpack.c.b16 %v2227, %v2226
      %v2238 = vpack.c.b16 %v2229, %v2228
      %v2239 = vpack.c.b16 %v2231, %v2230
      %2248 = vmatprep.subr.bf16.mxu0 0
      %2249 = vmatpush1.bf16.msra.mxu0 %v2232
      %2250 = vmatprep.subr.bf16.mxu0 0
      %2251 = vmatpush1.bf16.msra.mxu0 %v2233
      %2252 = vmatprep.subr.bf16.mxu0 0
      %2253 = vmatpush1.bf16.msra.mxu0 %v2234
      %2254 = vmatprep.subr.bf16.mxu0 0
      %2255 = vmatpush1.bf16.msra.mxu0 %v2235
      %2256 = vmatprep.subr.bf16.mxu0 0
      %2257 = vmatpush1.bf16.msra.mxu0 %v2236
      %2258 = vmatprep.subr.bf16.mxu0 0
      %2259 = vmatpush1.bf16.msra.mxu0 %v2237
      %2260 = vmatprep.subr.bf16.mxu0 0
      %2261 = vmatpush1.bf16.msra.mxu0 %v2238
      %2262 = vmatprep.subr.bf16.mxu0 0
      %2263 = vmatpush1.bf16.msra.mxu0 %v2239
      %2264 = vmatprep.subr.bf16.mxu0 0
      %2265 = vmatpush1.bf16.msra.mxu0 0
      %2266 = vmatprep.subr.bf16.mxu0 0
      %2267 = vmatpush1.bf16.msra.mxu0 0
      %2268 = vmatprep.subr.bf16.mxu0 0
      %2269 = vmatpush1.bf16.msra.mxu0 0
      %2270 = vmatprep.subr.bf16.mxu0 0
      %2271 = vmatpush1.bf16.msra.mxu0 0
      %2272 = vmatprep.subr.bf16.mxu0 0
      %2273 = vmatpush1.bf16.msra.mxu0 0
      %2274 = vmatprep.subr.bf16.mxu0 0
      %2275 = vmatpush1.bf16.msra.mxu0 0
      %2276 = vmatprep.subr.bf16.mxu0 0
      %2277 = vmatpush1.bf16.msra.mxu0 0
      %2278 = vmatprep.subr.bf16.mxu0 0
      %2279 = vmatpush1.bf16.msra.mxu0 0
      %2280 = vmatprep.mubr.bf16.mxu0 0
      %2281 = vmatmul.mubr.bf16.gmra.mrb[0].mxu0 %v1583
      %v2282 = vpop.f32.mrb[0].mxu0
      %v2283 = vadd.f32 0.0, %v2282
      %v2284 = vpop.f32.mrb[0].mxu0
      %v2285 = vpop.f32.mrb[0].mxu0
      %v2286 = vpop.f32.mrb[0].mxu0
      %2287 = vdwg.mxu0
      %v2288 = vpack.c.bf16 %v906, %v906
      %v2290 = vlaneseq
      %v2291 = vshrl.u32 %v2290, 7
      %v2292 = vsub.s32 0, %v2291
      %v2293 = vrot.slane %v750, %v2292
      %2296 = vrot.lane.b32.xlu0 %v2288, 96
      %v2297 = vpop.permute.xlu0 %2296
      %v2302 = vunpack.c.l.b16 %v746
      %v2303 = vunpack.c.l.b16 %v747
      %v2304 = vunpack.c.l.b16 %v748
      %v2305 = vunpack.c.l.b16 %v749
      %v2306 = vpack.c.b16 %v2303, %v2302
      %v2307 = vpack.c.b16 %v2305, %v2304
      %v2311 = vsel %vm770, %v2297, 0
      %2313 = vmatprep.subr.bf16.mxu0 0
      %2314 = vmatpush1.bf16.msra.mxu0 %v2306
      %2315 = vmatprep.subr.bf16.mxu0 0
      %2316 = vmatpush1.bf16.msra.mxu0 %v2307
      %2317 = vmatprep.subr.bf16.mxu0 0
      %2318 = vmatpush1.bf16.msra.mxu0 0
      %2319 = vmatprep.subr.bf16.mxu0 0
      %2320 = vmatpush1.bf16.msra.mxu0 0
      %2321 = vmatprep.subr.bf16.mxu0 0
      %2322 = vmatpush1.bf16.msra.mxu0 0
      %2323 = vmatprep.subr.bf16.mxu0 0
      %2324 = vmatpush1.bf16.msra.mxu0 0
      %2325 = vmatprep.subr.bf16.mxu0 0
      %2326 = vmatpush1.bf16.msra.mxu0 0
      %2327 = vmatprep.subr.bf16.mxu0 0
      %2328 = vmatpush1.bf16.msra.mxu0 0
      %2329 = vmatprep.subr.bf16.mxu0 0
      %2330 = vmatpush1.bf16.msra.mxu0 0
      %2331 = vmatprep.subr.bf16.mxu0 0
      %2332 = vmatpush1.bf16.msra.mxu0 0
      %2333 = vmatprep.subr.bf16.mxu0 0
      %2334 = vmatpush1.bf16.msra.mxu0 0
      %2335 = vmatprep.subr.bf16.mxu0 0
      %2336 = vmatpush1.bf16.msra.mxu0 0
      %2337 = vmatprep.subr.bf16.mxu0 0
      %2338 = vmatpush1.bf16.msra.mxu0 0
      %2339 = vmatprep.subr.bf16.mxu0 0
      %2340 = vmatpush1.bf16.msra.mxu0 0
      %2341 = vmatprep.subr.bf16.mxu0 0
      %2342 = vmatpush1.bf16.msra.mxu0 0
      %2343 = vmatprep.subr.bf16.mxu0 0
      %2344 = vmatpush1.bf16.msra.mxu0 0
      %2345 = vmatprep.mubr.bf16.mxu0 0
      %2346 = vmatmul.mubr.bf16.gmra.mrb[0].mxu0 %v2311
      %v2347 = vpop.f32.mrb[0].mxu0
      %v2348 = vadd.f32 %v2293, %v2347
      %v2349 = vpop.f32.mrb[0].mxu0
      %v2350 = vpop.f32.mrb[0].mxu0
      %v2351 = vpop.f32.mrb[0].mxu0
      %2352 = vdwg.mxu0
      %v2353 = vpack.c.bf16 %v2348, %v2348
      %v2355 = vlaneseq
      %v2356 = vshrl.u32 %v2355, 7
      %v2357 = vsub.s32 0, %v2356
      %v2358 = vrot.slane %v752, %v2357
      %v2364 = vunpack.c.l.b16 %v733
      %v2365 = vunpack.c.l.b16 %v734
      %v2366 = vunpack.c.l.b16 %v735
      %v2367 = vunpack.c.l.b16 %v736
      %v2368 = vpack.c.b16 %v2365, %v2364
      %v2369 = vpack.c.b16 %v2367, %v2366
      %v2373 = vsel %vm770, %v2353, 0
      %2375 = vmatprep.subr.bf16.mxu0 0
      %2376 = vmatpush1.bf16.msra.mxu0 %v2368
      %2377 = vmatprep.subr.bf16.mxu0 0
      %2378 = vmatpush1.bf16.msra.mxu0 %v2369
      %2379 = vmatprep.subr.bf16.mxu0 0
      %2380 = vmatpush1.bf16.msra.mxu0 0
      %2381 = vmatprep.subr.bf16.mxu0 0
      %2382 = vmatpush1.bf16.msra.mxu0 0
      %2383 = vmatprep.subr.bf16.mxu0 0
      %2384 = vmatpush1.bf16.msra.mxu0 0
      %2385 = vmatprep.subr.bf16.mxu0 0
      %2386 = vmatpush1.bf16.msra.mxu0 0
      %2387 = vmatprep.subr.bf16.mxu0 0
      %2388 = vmatpush1.bf16.msra.mxu0 0
      %2389 = vmatprep.subr.bf16.mxu0 0
      %2390 = vmatpush1.bf16.msra.mxu0 0
      %2391 = vmatprep.subr.bf16.mxu0 0
      %2392 = vmatpush1.bf16.msra.mxu0 0
      %2393 = vmatprep.subr.bf16.mxu0 0
      %2394 = vmatpush1.bf16.msra.mxu0 0
      %2395 = vmatprep.subr.bf16.mxu0 0
      %2396 = vmatpush1.bf16.msra.mxu0 0
      %2397 = vmatprep.subr.bf16.mxu0 0
      %2398 = vmatpush1.bf16.msra.mxu0 0
      %2399 = vmatprep.subr.bf16.mxu0 0
      %2400 = vmatpush1.bf16.msra.mxu0 0
      %2401 = vmatprep.subr.bf16.mxu0 0
      %2402 = vmatpush1.bf16.msra.mxu0 0
      %2403 = vmatprep.subr.bf16.mxu0 0
      %2404 = vmatpush1.bf16.msra.mxu0 0
      %2405 = vmatprep.subr.bf16.mxu0 0
      %2406 = vmatpush1.bf16.msra.mxu0 0
      %2407 = vmatprep.mubr.bf16.mxu0 0
      %2408 = vmatmul.mubr.bf16.gmra.mrb[0].mxu0 %v2373
      %v2409 = vpop.f32.mrb[0].mxu0
      %v2410 = vadd.f32 %v2358, %v2409
      %v2411 = vpop.f32.mrb[0].mxu0
      %v2412 = vpop.f32.mrb[0].mxu0
      %v2413 = vpop.f32.mrb[0].mxu0
      %2414 = vdwg.mxu0
      %2415 = vmax.xlane.f32.xlu0 %v2410
      %v2416 = vpop.xlane.xlu0 %2415
      %v2417 = vsub.f32 %v2416, 1.0
      %v2418 = vadd.f32 %v2417, %v2416
      %v2419 = vmul.f32 %v2418, 0.5
      %v2420 = vsub.f32 %v2410, %v2419
      %v2421 = vmax.f32 %v2420, 0.0
      %2422 = vadd.xlane.f32.xlu0 %v2421
      %v2423 = vpop.xlane.xlu0 %2422
      %v2424 = vsub.f32 %v2423, 1.0
      %vm2425 = vcmp.gt.f32.partialorder %v2424, 0.0
      %v2426 = vsel %vm2425, %v2419, %v2417
      %v2427 = vsel %vm2425, %v2416, %v2419
      %v2428 = vadd.f32 %v2426, %v2427
      %v2429 = vmul.f32 %v2428, 0.5
      %v2430 = vsub.f32 %v2410, %v2429
      %v2431 = vmax.f32 %v2430, 0.0
      %2432 = vadd.xlane.f32.xlu0 %v2431
      %v2433 = vpop.xlane.xlu0 %2432
      %v2434 = vsub.f32 %v2433, 1.0
      %vm2435 = vcmp.gt.f32.partialorder %v2434, 0.0
      %v2436 = vsel %vm2435, %v2429, %v2426
      %v2437 = vsel %vm2435, %v2427, %v2429
      %v2438 = vadd.f32 %v2436, %v2437
      %v2439 = vmul.f32 %v2438, 0.5
      %v2440 = vsub.f32 %v2410, %v2439
      %v2441 = vmax.f32 %v2440, 0.0
      %2442 = vadd.xlane.f32.xlu0 %v2441
      %v2443 = vpop.xlane.xlu0 %2442
      %v2444 = vsub.f32 %v2443, 1.0
      %vm2445 = vcmp.gt.f32.partialorder %v2444, 0.0
      %v2446 = vsel %vm2445, %v2439, %v2436
      %v2447 = vsel %vm2445, %v2437, %v2439
      %v2448 = vadd.f32 %v2446, %v2447
      %v2449 = vmul.f32 %v2448, 0.5
      %v2450 = vsub.f32 %v2410, %v2449
      %v2451 = vmax.f32 %v2450, 0.0
      %2452 = vadd.xlane.f32.xlu0 %v2451
      %v2453 = vpop.xlane.xlu0 %2452
      %v2454 = vsub.f32 %v2453, 1.0
      %vm2455 = vcmp.gt.f32.partialorder %v2454, 0.0
      %v2456 = vsel %vm2455, %v2449, %v2446
      %v2457 = vsel %vm2455, %v2447, %v2449
      %v2458 = vadd.f32 %v2456, %v2457
      %v2459 = vmul.f32 %v2458, 0.5
      %v2460 = vsub.f32 %v2410, %v2459
      %v2461 = vmax.f32 %v2460, 0.0
      %2462 = vadd.xlane.f32.xlu0 %v2461
      %v2463 = vpop.xlane.xlu0 %2462
      %v2464 = vsub.f32 %v2463, 1.0
      %vm2465 = vcmp.gt.f32.partialorder %v2464, 0.0
      %v2466 = vsel %vm2465, %v2459, %v2456
      %v2467 = vsel %vm2465, %v2457, %v2459
      %v2468 = vadd.f32 %v2466, %v2467
      %v2469 = vmul.f32 %v2468, 0.5
      %v2470 = vsub.f32 %v2410, %v2469
      %v2471 = vmax.f32 %v2470, 0.0
      %2472 = vadd.xlane.f32.xlu0 %v2471
      %v2473 = vpop.xlane.xlu0 %2472
      %v2474 = vsub.f32 %v2473, 1.0
      %vm2475 = vcmp.gt.f32.partialorder %v2474, 0.0
      %v2476 = vsel %vm2475, %v2469, %v2466
      %v2477 = vsel %vm2475, %v2467, %v2469
      %v2478 = vadd.f32 %v2476, %v2477
      %v2479 = vmul.f32 %v2478, 0.5
      %v2480 = vsub.f32 %v2410, %v2479
      %v2481 = vmax.f32 %v2480, 0.0
      %2482 = vadd.xlane.f32.xlu0 %v2481
      %v2483 = vpop.xlane.xlu0 %2482
      %v2484 = vsub.f32 %v2483, 1.0
      %vm2485 = vcmp.gt.f32.partialorder %v2484, 0.0
      %v2486 = vsel %vm2485, %v2479, %v2476
      %v2487 = vsel %vm2485, %v2477, %v2479
      %v2488 = vadd.f32 %v2486, %v2487
      %v2489 = vmul.f32 %v2488, 0.5
      %v2490 = vsub.f32 %v2410, %v2489
      %v2491 = vmax.f32 %v2490, 0.0
      %2492 = vadd.xlane.f32.xlu0 %v2491
      %v2493 = vpop.xlane.xlu0 %2492
      %v2494 = vsub.f32 %v2493, 1.0
      %vm2495 = vcmp.gt.f32.partialorder %v2494, 0.0
      %v2496 = vsel %vm2495, %v2489, %v2486
      %v2497 = vsel %vm2495, %v2487, %v2489
      %v2498 = vadd.f32 %v2496, %v2497
      %v2499 = vmul.f32 %v2498, 0.5
      %v2500 = vsub.f32 %v2410, %v2499
      %v2501 = vmax.f32 %v2500, 0.0
      %2502 = vadd.xlane.f32.xlu0 %v2501
      %v2503 = vpop.xlane.xlu0 %2502
      %v2504 = vsub.f32 %v2503, 1.0
      %vm2505 = vcmp.gt.f32.partialorder %v2504, 0.0
      %v2506 = vsel %vm2505, %v2499, %v2496
      %v2507 = vsel %vm2505, %v2497, %v2499
      %v2508 = vadd.f32 %v2506, %v2507
      %v2509 = vmul.f32 %v2508, 0.5
      %v2510 = vsub.f32 %v2410, %v2509
      %v2511 = vmax.f32 %v2510, 0.0
      %2512 = vadd.xlane.f32.xlu0 %v2511
      %v2513 = vpop.xlane.xlu0 %2512
      %v2514 = vsub.f32 %v2513, 1.0
      %vm2515 = vcmp.gt.f32.partialorder %v2514, 0.0
      %v2516 = vsel %vm2515, %v2509, %v2506
      %v2517 = vsel %vm2515, %v2507, %v2509
      %v2518 = vadd.f32 %v2516, %v2517
      %v2519 = vmul.f32 %v2518, 0.5
      %v2520 = vsub.f32 %v2410, %v2519
      %v2521 = vmax.f32 %v2520, 0.0
      %2522 = vadd.xlane.f32.xlu0 %v2521
      %v2523 = vpop.xlane.xlu0 %2522
      %v2524 = vsub.f32 %v2523, 1.0
      %vm2525 = vcmp.gt.f32.partialorder %v2524, 0.0
      %v2526 = vsel %vm2525, %v2519, %v2516
      %v2527 = vsel %vm2525, %v2517, %v2519
      %v2528 = vadd.f32 %v2526, %v2527
      %v2529 = vmul.f32 %v2528, 0.5
      %v2530 = vsub.f32 %v2410, %v2529
      %v2531 = vmax.f32 %v2530, 0.0
      %2532 = vadd.xlane.f32.xlu0 %v2531
      %v2533 = vpop.xlane.xlu0 %2532
      %v2534 = vsub.f32 %v2533, 1.0
      %vm2535 = vcmp.gt.f32.partialorder %v2534, 0.0
      %v2536 = vsel %vm2535, %v2529, %v2526
      %v2537 = vsel %vm2535, %v2527, %v2529
      %v2538 = vadd.f32 %v2536, %v2537
      %v2539 = vmul.f32 %v2538, 0.5
      %v2540 = vsub.f32 %v2410, %v2539
      %v2541 = vmax.f32 %v2540, 0.0
      %2542 = vadd.xlane.f32.xlu0 %v2541
      %v2543 = vpop.xlane.xlu0 %2542
      %v2544 = vsub.f32 %v2543, 1.0
      %vm2545 = vcmp.gt.f32.partialorder %v2544, 0.0
      %v2546 = vsel %vm2545, %v2539, %v2536
      %v2547 = vsel %vm2545, %v2537, %v2539
      %v2548 = vadd.f32 %v2546, %v2547
      %v2549 = vmul.f32 %v2548, 0.5
      %v2550 = vsub.f32 %v2410, %v2549
      %v2551 = vmax.f32 %v2550, 0.0
      %2552 = vadd.xlane.f32.xlu0 %v2551
      %v2553 = vpop.xlane.xlu0 %2552
      %v2554 = vsub.f32 %v2553, 1.0
      %vm2555 = vcmp.gt.f32.partialorder %v2554, 0.0
      %v2556 = vsel %vm2555, %v2549, %v2546
      %v2557 = vsel %vm2555, %v2547, %v2549
      %v2558 = vadd.f32 %v2556, %v2557
      %v2559 = vmul.f32 %v2558, 0.5
      %v2560 = vsub.f32 %v2410, %v2559
      %v2561 = vmax.f32 %v2560, 0.0
      %2562 = vadd.xlane.f32.xlu0 %v2561
      %v2563 = vpop.xlane.xlu0 %2562
      %v2564 = vsub.f32 %v2563, 1.0
      %vm2565 = vcmp.gt.f32.partialorder %v2564, 0.0
      %v2566 = vsel %vm2565, %v2559, %v2556
      %v2567 = vsel %vm2565, %v2557, %v2559
      %v2568 = vadd.f32 %v2566, %v2567
      %v2569 = vmul.f32 %v2568, 0.5
      %v2570 = vsub.f32 %v2410, %v2569
      %v2571 = vmax.f32 %v2570, 0.0
      %2572 = vadd.xlane.f32.xlu0 %v2571
      %v2573 = vpop.xlane.xlu0 %2572
      %v2574 = vsub.f32 %v2573, 1.0
      %vm2575 = vcmp.gt.f32.partialorder %v2574, 0.0
      %v2576 = vsel %vm2575, %v2569, %v2566
      %v2577 = vsel %vm2575, %v2567, %v2569
      %v2578 = vadd.f32 %v2576, %v2577
      %v2579 = vmul.f32 %v2578, 0.5
      %vm2580 = vcmp.ge.f32.partialorder %v2410, %v2579
      %v2581 = vsel %vm2580, 1, 0
      %v2582 = vcvt.s32.f32 %v2581
      %2583 = vadd.xlane.f32.xlu0 %v2582
      %v2584 = vpop.xlane.xlu0 %2583
      %v2585 = vmax.f32 %v2584, 1.0
      %v2586 = vmul.f32 %v2410, %v2582
      %2587 = vadd.xlane.f32.xlu0 %v2586
      %v2588 = vpop.xlane.xlu0 %2587
      %v2589 = vsub.f32 %v2588, 1.0
      %v2590 = vrcp.pop %v2585
      %v2591 = vmul.f32 %v2589, %v2590
      %vm2592 = vcmp.ge.f32.partialorder %v2410, %v2591
      %v2593 = vsel %vm2592, 1, 0
      %v2594 = vcvt.s32.f32 %v2593
      %2595 = vadd.xlane.f32.xlu0 %v2594
      %v2596 = vpop.xlane.xlu0 %2595
      %v2597 = vmax.f32 %v2596, 1.0
      %v2598 = vmul.f32 %v2410, %v2594
      %2599 = vadd.xlane.f32.xlu0 %v2598
      %v2600 = vpop.xlane.xlu0 %2599
      %v2601 = vsub.f32 %v2600, 1.0
      %v2602 = vrcp.pop %v2597
      %v2603 = vmul.f32 %v2601, %v2602
      %v2604 = vsub.f32 %v2410, %v2603
      %v2605 = vmax.f32 %v2604, 0.0
      %2606 = vst [vmem:[%s553] sm:$0xff] %v2605
      %v2615 = vrot.slane %v1569, 7
      %v2616 = vsel %vm1460, %v2615, %v1568
      %v2617 = vrot.slane %v1570, 6
      %v2618 = vsel %vm1463, %v2617, %v2616
      %v2619 = vrot.slane %v1571, 5
      %v2620 = vsel %vm1466, %v2619, %v2618
      %v2621 = vrot.slane %v1572, 4
      %v2622 = vsel %vm1469, %v2621, %v2620
      %v2623 = vrot.slane %v1573, 3
      %v2624 = vsel %vm1472, %v2623, %v2622
      %v2625 = vrot.slane %v1574, 2
      %v2626 = vsel %vm1475, %v2625, %v2624
      %v2627 = vrot.slane %v1575, 1
      %v2628 = vsel %vm1478, %v2627, %v2626
      %2630 = vst [vmem:[%s562] sm:$0xff] %v2628
      %s2631 = scalar_lea.vmem %s526, 4
      %v2632 = vld [vmem:[%s2631] sm:$0xf]
      %v2633 = vunpack.c.l.bf16 %v2632
      %v2634 = vpack.c.bf16 %v1667, %v1667
      %v2635 = vpack.c.bf16 %v1755, %v1755
      %v2636 = vpack.c.bf16 %v1843, %v1843
      %v2637 = vpack.c.bf16 %v1931, %v1931
      %v2638 = vpack.c.bf16 %v2019, %v2019
      %v2639 = vpack.c.bf16 %v2107, %v2107
      %v2640 = vpack.c.bf16 %v2195, %v2195
      %v2641 = vpack.c.bf16 %v2283, %v2283
      %v2650 = vunpack.c.l.b16 %v2634
      %v2651 = vunpack.c.l.b16 %v2635
      %v2652 = vunpack.c.l.b16 %v2636
      %v2653 = vunpack.c.l.b16 %v2637
      %v2654 = vunpack.c.l.b16 %v2638
      %v2655 = vunpack.c.l.b16 %v2639
      %v2656 = vunpack.c.l.b16 %v2640
      %v2657 = vunpack.c.l.b16 %v2641
      %v2658 = vrot.slane %v2651, 7
      %v2659 = vsel %vm1460, %v2658, %v2650
      %v2660 = vrot.slane %v2652, 6
      %v2661 = vsel %vm1463, %v2660, %v2659
      %v2662 = vrot.slane %v2653, 5
      %v2663 = vsel %vm1466, %v2662, %v2661
      %v2664 = vrot.slane %v2654, 4
      %v2665 = vsel %vm1469, %v2664, %v2663
      %v2666 = vrot.slane %v2655, 3
      %v2667 = vsel %vm1472, %v2666, %v2665
      %v2668 = vrot.slane %v2656, 2
      %v2669 = vsel %vm1475, %v2668, %v2667
      %v2670 = vrot.slane %v2657, 1
      %v2671 = vsel %vm1478, %v2670, %v2669
      %v2672 = vpack.c.b16 %v2671, %v2671
      %v2674 = vsel %vm770, %v2672, 0
      %2676 = vmatprep.subr.bf16.mxu0 0
      %2677 = vmatpush1.bf16.msra.mxu0 %v766
      %2678 = vmatprep.subr.bf16.mxu0 0
      %2679 = vmatpush1.bf16.msra.mxu0 %v767
      %2680 = vmatprep.subr.bf16.mxu0 0
      %2681 = vmatpush1.bf16.msra.mxu0 0
      %2682 = vmatprep.subr.bf16.mxu0 0
      %2683 = vmatpush1.bf16.msra.mxu0 0
      %2684 = vmatprep.subr.bf16.mxu0 0
      %2685 = vmatpush1.bf16.msra.mxu0 0
      %2686 = vmatprep.subr.bf16.mxu0 0
      %2687 = vmatpush1.bf16.msra.mxu0 0
      %2688 = vmatprep.subr.bf16.mxu0 0
      %2689 = vmatpush1.bf16.msra.mxu0 0
      %2690 = vmatprep.subr.bf16.mxu0 0
      %2691 = vmatpush1.bf16.msra.mxu0 0
      %2692 = vmatprep.subr.bf16.mxu0 0
      %2693 = vmatpush1.bf16.msra.mxu0 0
      %2694 = vmatprep.subr.bf16.mxu0 0
      %2695 = vmatpush1.bf16.msra.mxu0 0
      %2696 = vmatprep.subr.bf16.mxu0 0
      %2697 = vmatpush1.bf16.msra.mxu0 0
      %2698 = vmatprep.subr.bf16.mxu0 0
      %2699 = vmatpush1.bf16.msra.mxu0 0
      %2700 = vmatprep.subr.bf16.mxu0 0
      %2701 = vmatpush1.bf16.msra.mxu0 0
      %2702 = vmatprep.subr.bf16.mxu0 0
      %2703 = vmatpush1.bf16.msra.mxu0 0
      %2704 = vmatprep.subr.bf16.mxu0 0
      %2705 = vmatpush1.bf16.msra.mxu0 0
      %2706 = vmatprep.subr.bf16.mxu0 0
      %2707 = vmatpush1.bf16.msra.mxu0 0
      %2708 = vmatprep.mubr.bf16.mxu0 0
      %2709 = vmatmul.mubr.bf16.gmra.mrb[0].mxu0 %v2674
      %v2710 = vpop.f32.mrb[0].mxu0
      %v2711 = vadd.f32 0.0, %v2710
      %v2712 = vpop.f32.mrb[0].mxu0
      %v2713 = vpop.f32.mrb[0].mxu0
      %v2714 = vpop.f32.mrb[0].mxu0
      %2715 = vdwg.mxu0
      %v2716 = vadd.f32 %v2633, %v2711
      %2717 = vmatprep.subr.bf16.mxu0 0
      %2718 = vmatpush1.bf16.msra.mxu0 %v830
      %2719 = vmatprep.subr.bf16.mxu0 0
      %2720 = vmatpush1.bf16.msra.mxu0 %v831
      %2721 = vmatprep.subr.bf16.mxu0 0
      %2722 = vmatpush1.bf16.msra.mxu0 0
      %2723 = vmatprep.subr.bf16.mxu0 0
      %2724 = vmatpush1.bf16.msra.mxu0 0
      %2725 = vmatprep.subr.bf16.mxu0 0
      %2726 = vmatpush1.bf16.msra.mxu0 0
      %2727 = vmatprep.subr.bf16.mxu0 0
      %2728 = vmatpush1.bf16.msra.mxu0 0
      %2729 = vmatprep.subr.bf16.mxu0 0
      %2730 = vmatpush1.bf16.msra.mxu0 0
      %2731 = vmatprep.subr.bf16.mxu0 0
      %2732 = vmatpush1.bf16.msra.mxu0 0
      %2733 = vmatprep.subr.bf16.mxu0 0
      %2734 = vmatpush1.bf16.msra.mxu0 0
      %2735 = vmatprep.subr.bf16.mxu0 0
      %2736 = vmatpush1.bf16.msra.mxu0 0
      %2737 = vmatprep.subr.bf16.mxu0 0
      %2738 = vmatpush1.bf16.msra.mxu0 0
      %2739 = vmatprep.subr.bf16.mxu0 0
      %2740 = vmatpush1.bf16.msra.mxu0 0
      %2741 = vmatprep.subr.bf16.mxu0 0
      %2742 = vmatpush1.bf16.msra.mxu0 0
      %2743 = vmatprep.subr.bf16.mxu0 0
      %2744 = vmatpush1.bf16.msra.mxu0 0
      %2745 = vmatprep.subr.bf16.mxu0 0
      %2746 = vmatpush1.bf16.msra.mxu0 0
      %2747 = vmatprep.subr.bf16.mxu0 0
      %2748 = vmatpush1.bf16.msra.mxu0 0
      %2749 = vmatprep.mubr.bf16.mxu0 0
      %2750 = vmatmul.mubr.bf16.gmra.mrb[0].mxu0 %v2311
      %v2751 = vpop.f32.mrb[0].mxu0
      %v2752 = vadd.f32 %v820, %v2751
      %v2753 = vpop.f32.mrb[0].mxu0
      %v2754 = vpop.f32.mrb[0].mxu0
      %v2755 = vpop.f32.mrb[0].mxu0
      %2756 = vdwg.mxu0
      %v2757 = vadd.f32 %v2716, %v2752
      %v2758 = vxor.u32 %v2757, 2147483648
      %v2759 = vmul.f32 %v2758, 1.442695
      %v2760 = vpow.pop %v2759
      %v2761 = vadd.f32 %v2760, 1.0
      %v2762 = vrcp.pop %v2761
      %v2763 = vmul.f32 1.0, %v2762
      %2765 = vrot.lane.b32.xlu0 %v2752, 64
      %v2766 = vpop.permute.xlu0 %2765
      %v2768 = vmul.f32 %v2763, %v2766
      %2770 = vrot.lane.b32.xlu0 %v2768, 64
      %v2771 = vpop.permute.xlu0 %2770
      %v2773 = vadd.f32 %v2716, %v2771
      %v2774 = vtanh.pop %v2773
      %v2775 = vsub.f32 1.0, %v2763
      %2777 = vrot.lane.b32.xlu0 %v2774, 96
      %v2778 = vpop.permute.xlu0 %2777
      %v2780 = vmul.f32 %v2775, %v2778
      %v2781 = vmul.f32 %v2763, %v906
      %v2782 = vadd.f32 %v2780, %v2781
      %v2784 = vcombine.high %v2782, %v2782
      %v2786 = vunpack.c.l.s4 1966171168
      %v2787 = vunpack.c.0.s8 %v2786
      %v2788 = vlaneseq
      %v2789 = vshrl.u32 %v2788, 7
      %v2790 = vsub.s32 %v2787, %v2789
      %v2791 = vrot.slane %v2782, %v2790
      %v2793 = vunpack.c.l.s4 1966171168
      %v2794 = vunpack.c.0.s8 %v2793
      %v2795 = vlaneseq
      %v2796 = vshrl.u32 %v2795, 7
      %v2797 = vsub.s32 %v2794, %v2796
      %v2798 = vrot.slane %v2784, %v2797
      %v2799 = vcombine.high %v2791, %v2791
      %v2800 = vcombine.high %v2798, %v2798
      %v2802 = vunpack.c.l.s4 1966171168
      %v2803 = vunpack.c.0.s8 %v2802
      %v2804 = vlaneseq
      %v2805 = vshrl.u32 %v2804, 7
      %v2806 = vsub.s32 %v2803, %v2805
      %v2807 = vrot.slane %v2791, %v2806
      %v2809 = vunpack.c.l.s4 1966171168
      %v2810 = vunpack.c.0.s8 %v2809
      %v2811 = vlaneseq
      %v2812 = vshrl.u32 %v2811, 7
      %v2813 = vsub.s32 %v2810, %v2812
      %v2814 = vrot.slane %v2798, %v2813
      %v2816 = vunpack.c.l.s4 1966171168
      %v2817 = vunpack.c.0.s8 %v2816
      %v2818 = vlaneseq
      %v2819 = vshrl.u32 %v2818, 7
      %v2820 = vsub.s32 %v2817, %v2819
      %v2821 = vrot.slane %v2799, %v2820
      %v2823 = vunpack.c.l.s4 1966171168
      %v2824 = vunpack.c.0.s8 %v2823
      %v2825 = vlaneseq
      %v2826 = vshrl.u32 %v2825, 7
      %v2827 = vsub.s32 %v2824, %v2826
      %v2828 = vrot.slane %v2800, %v2827
      %v2829 = vcombine.high %v2807, %v2807
      %v2830 = vcombine.high %v2814, %v2814
      %v2831 = vcombine.high %v2821, %v2821
      %v2832 = vcombine.high %v2828, %v2828
      %v2841 = vpack.c.bf16 %v2807, %v2807
      %v2842 = vpack.c.bf16 %v2821, %v2821
      %v2843 = vpack.c.bf16 %v2829, %v2829
      %v2844 = vpack.c.bf16 %v2831, %v2831
      %v2845 = vpack.c.bf16 %v2814, %v2814
      %v2846 = vpack.c.bf16 %v2828, %v2828
      %v2847 = vpack.c.bf16 %v2830, %v2830
      %v2848 = vpack.c.bf16 %v2832, %v2832
      %2850 = vrot.lane.b32.xlu0 %v2841, 96
      %v2851 = vpop.permute.xlu0 %2850
      %v2853 = vsel %vm770, %v2851, 0
      %2855 = vmatprep.subr.bf16.mxu0 0
      %2856 = vmatpush1.bf16.msra.mxu0 %v984
      %2857 = vmatprep.subr.bf16.mxu0 0
      %2858 = vmatpush1.bf16.msra.mxu0 %v985
      %2859 = vmatprep.subr.bf16.mxu0 0
      %2860 = vmatpush1.bf16.msra.mxu0 0
      %2861 = vmatprep.subr.bf16.mxu0 0
      %2862 = vmatpush1.bf16.msra.mxu0 0
      %2863 = vmatprep.subr.bf16.mxu0 0
      %2864 = vmatpush1.bf16.msra.mxu0 0
      %2865 = vmatprep.subr.bf16.mxu0 0
      %2866 = vmatpush1.bf16.msra.mxu0 0
      %2867 = vmatprep.subr.bf16.mxu0 0
      %2868 = vmatpush1.bf16.msra.mxu0 0
      %2869 = vmatprep.subr.bf16.mxu0 0
      %2870 = vmatpush1.bf16.msra.mxu0 0
      %2871 = vmatprep.subr.bf16.mxu0 0
      %2872 = vmatpush1.bf16.msra.mxu0 0
      %2873 = vmatprep.subr.bf16.mxu0 0
      %2874 = vmatpush1.bf16.msra.mxu0 0
      %2875 = vmatprep.subr.bf16.mxu0 0
      %2876 = vmatpush1.bf16.msra.mxu0 0
      %2877 = vmatprep.subr.bf16.mxu0 0
      %2878 = vmatpush1.bf16.msra.mxu0 0
      %2879 = vmatprep.subr.bf16.mxu0 0
      %2880 = vmatpush1.bf16.msra.mxu0 0
      %2881 = vmatprep.subr.bf16.mxu0 0
      %2882 = vmatpush1.bf16.msra.mxu0 0
      %2883 = vmatprep.subr.bf16.mxu0 0
      %2884 = vmatpush1.bf16.msra.mxu0 0
      %2885 = vmatprep.subr.bf16.mxu0 0
      %2886 = vmatpush1.bf16.msra.mxu0 0
      %2887 = vmatprep.mubr.bf16.mxu0 0
      %2888 = vmatmul.mubr.bf16.gmra.mrb[0].mxu0 %v2853
      %v2889 = vpop.f32.mrb[0].mxu0
      %v2890 = vadd.f32 0.0, %v2889
      %v2891 = vpop.f32.mrb[0].mxu0
      %v2892 = vpop.f32.mrb[0].mxu0
      %v2893 = vpop.f32.mrb[0].mxu0
      %2894 = vdwg.mxu0
      %2896 = vrot.lane.b32.xlu0 %v2842, 96
      %v2897 = vpop.permute.xlu0 %2896
      %v2899 = vsel %vm770, %v2897, 0
      %2901 = vmatprep.subr.bf16.mxu0 0
      %2902 = vmatpush1.bf16.msra.mxu0 %v1042
      %2903 = vmatprep.subr.bf16.mxu0 0
      %2904 = vmatpush1.bf16.msra.mxu0 %v1043
      %2905 = vmatprep.subr.bf16.mxu0 0
      %2906 = vmatpush1.bf16.msra.mxu0 0
      %2907 = vmatprep.subr.bf16.mxu0 0
      %2908 = vmatpush1.bf16.msra.mxu0 0
      %2909 = vmatprep.subr.bf16.mxu0 0
      %2910 = vmatpush1.bf16.msra.mxu0 0
      %2911 = vmatprep.subr.bf16.mxu0 0
      %2912 = vmatpush1.bf16.msra.mxu0 0
      %2913 = vmatprep.subr.bf16.mxu0 0
      %2914 = vmatpush1.bf16.msra.mxu0 0
      %2915 = vmatprep.subr.bf16.mxu0 0
      %2916 = vmatpush1.bf16.msra.mxu0 0
      %2917 = vmatprep.subr.bf16.mxu0 0
      %2918 = vmatpush1.bf16.msra.mxu0 0
      %2919 = vmatprep.subr.bf16.mxu0 0
      %2920 = vmatpush1.bf16.msra.mxu0 0
      %2921 = vmatprep.subr.bf16.mxu0 0
      %2922 = vmatpush1.bf16.msra.mxu0 0
      %2923 = vmatprep.subr.bf16.mxu0 0
      %2924 = vmatpush1.bf16.msra.mxu0 0
      %2925 = vmatprep.subr.bf16.mxu0 0
      %2926 = vmatpush1.bf16.msra.mxu0 0
      %2927 = vmatprep.subr.bf16.mxu0 0
      %2928 = vmatpush1.bf16.msra.mxu0 0
      %2929 = vmatprep.subr.bf16.mxu0 0
      %2930 = vmatpush1.bf16.msra.mxu0 0
      %2931 = vmatprep.subr.bf16.mxu0 0
      %2932 = vmatpush1.bf16.msra.mxu0 0
      %2933 = vmatprep.mubr.bf16.mxu0 0
      %2934 = vmatmul.mubr.bf16.gmra.mrb[0].mxu0 %v2899
      %v2935 = vpop.f32.mrb[0].mxu0
      %v2936 = vadd.f32 0.0, %v2935
      %v2937 = vpop.f32.mrb[0].mxu0
      %v2938 = vpop.f32.mrb[0].mxu0
      %v2939 = vpop.f32.mrb[0].mxu0
      %2940 = vdwg.mxu0
      %2942 = vrot.lane.b32.xlu0 %v2843, 96
      %v2943 = vpop.permute.xlu0 %2942
      %v2945 = vsel %vm770, %v2943, 0
      %2947 = vmatprep.subr.bf16.mxu0 0
      %2948 = vmatpush1.bf16.msra.mxu0 %v1100
      %2949 = vmatprep.subr.bf16.mxu0 0
      %2950 = vmatpush1.bf16.msra.mxu0 %v1101
      %2951 = vmatprep.subr.bf16.mxu0 0
      %2952 = vmatpush1.bf16.msra.mxu0 0
      %2953 = vmatprep.subr.bf16.mxu0 0
      %2954 = vmatpush1.bf16.msra.mxu0 0
      %2955 = vmatprep.subr.bf16.mxu0 0
      %2956 = vmatpush1.bf16.msra.mxu0 0
      %2957 = vmatprep.subr.bf16.mxu0 0
      %2958 = vmatpush1.bf16.msra.mxu0 0
      %2959 = vmatprep.subr.bf16.mxu0 0
      %2960 = vmatpush1.bf16.msra.mxu0 0
      %2961 = vmatprep.subr.bf16.mxu0 0
      %2962 = vmatpush1.bf16.msra.mxu0 0
      %2963 = vmatprep.subr.bf16.mxu0 0
      %2964 = vmatpush1.bf16.msra.mxu0 0
      %2965 = vmatprep.subr.bf16.mxu0 0
      %2966 = vmatpush1.bf16.msra.mxu0 0
      %2967 = vmatprep.subr.bf16.mxu0 0
      %2968 = vmatpush1.bf16.msra.mxu0 0
      %2969 = vmatprep.subr.bf16.mxu0 0
      %2970 = vmatpush1.bf16.msra.mxu0 0
      %2971 = vmatprep.subr.bf16.mxu0 0
      %2972 = vmatpush1.bf16.msra.mxu0 0
      %2973 = vmatprep.subr.bf16.mxu0 0
      %2974 = vmatpush1.bf16.msra.mxu0 0
      %2975 = vmatprep.subr.bf16.mxu0 0
      %2976 = vmatpush1.bf16.msra.mxu0 0
      %2977 = vmatprep.subr.bf16.mxu0 0
      %2978 = vmatpush1.bf16.msra.mxu0 0
      %2979 = vmatprep.mubr.bf16.mxu0 0
      %2980 = vmatmul.mubr.bf16.gmra.mrb[0].mxu0 %v2945
      %v2981 = vpop.f32.mrb[0].mxu0
      %v2982 = vadd.f32 0.0, %v2981
      %v2983 = vpop.f32.mrb[0].mxu0
      %v2984 = vpop.f32.mrb[0].mxu0
      %v2985 = vpop.f32.mrb[0].mxu0
      %2986 = vdwg.mxu0
      %2988 = vrot.lane.b32.xlu0 %v2844, 96
      %v2989 = vpop.permute.xlu0 %2988
      %v2991 = vsel %vm770, %v2989, 0
      %2993 = vmatprep.subr.bf16.mxu0 0
      %2994 = vmatpush1.bf16.msra.mxu0 %v1158
      %2995 = vmatprep.subr.bf16.mxu0 0
      %2996 = vmatpush1.bf16.msra.mxu0 %v1159
      %2997 = vmatprep.subr.bf16.mxu0 0
      %2998 = vmatpush1.bf16.msra.mxu0 0
      %2999 = vmatprep.subr.bf16.mxu0 0
      %3000 = vmatpush1.bf16.msra.mxu0 0
      %3001 = vmatprep.subr.bf16.mxu0 0
      %3002 = vmatpush1.bf16.msra.mxu0 0
      %3003 = vmatprep.subr.bf16.mxu0 0
      %3004 = vmatpush1.bf16.msra.mxu0 0
      %3005 = vmatprep.subr.bf16.mxu0 0
      %3006 = vmatpush1.bf16.msra.mxu0 0
      %3007 = vmatprep.subr.bf16.mxu0 0
      %3008 = vmatpush1.bf16.msra.mxu0 0
      %3009 = vmatprep.subr.bf16.mxu0 0
      %3010 = vmatpush1.bf16.msra.mxu0 0
      %3011 = vmatprep.subr.bf16.mxu0 0
      %3012 = vmatpush1.bf16.msra.mxu0 0
      %3013 = vmatprep.subr.bf16.mxu0 0
      %3014 = vmatpush1.bf16.msra.mxu0 0
      %3015 = vmatprep.subr.bf16.mxu0 0
      %3016 = vmatpush1.bf16.msra.mxu0 0
      %3017 = vmatprep.subr.bf16.mxu0 0
      %3018 = vmatpush1.bf16.msra.mxu0 0
      %3019 = vmatprep.subr.bf16.mxu0 0
      %3020 = vmatpush1.bf16.msra.mxu0 0
      %3021 = vmatprep.subr.bf16.mxu0 0
      %3022 = vmatpush1.bf16.msra.mxu0 0
      %3023 = vmatprep.subr.bf16.mxu0 0
      %3024 = vmatpush1.bf16.msra.mxu0 0
      %3025 = vmatprep.mubr.bf16.mxu0 0
      %3026 = vmatmul.mubr.bf16.gmra.mrb[0].mxu0 %v2991
      %v3027 = vpop.f32.mrb[0].mxu0
      %v3028 = vadd.f32 0.0, %v3027
      %v3029 = vpop.f32.mrb[0].mxu0
      %v3030 = vpop.f32.mrb[0].mxu0
      %v3031 = vpop.f32.mrb[0].mxu0
      %3032 = vdwg.mxu0
      %3034 = vrot.lane.b32.xlu0 %v2845, 96
      %v3035 = vpop.permute.xlu0 %3034
      %v3037 = vsel %vm770, %v3035, 0
      %3039 = vmatprep.subr.bf16.mxu0 0
      %3040 = vmatpush1.bf16.msra.mxu0 %v1216
      %3041 = vmatprep.subr.bf16.mxu0 0
      %3042 = vmatpush1.bf16.msra.mxu0 %v1217
      %3043 = vmatprep.subr.bf16.mxu0 0
      %3044 = vmatpush1.bf16.msra.mxu0 0
      %3045 = vmatprep.subr.bf16.mxu0 0
      %3046 = vmatpush1.bf16.msra.mxu0 0
      %3047 = vmatprep.subr.bf16.mxu0 0
      %3048 = vmatpush1.bf16.msra.mxu0 0
      %3049 = vmatprep.subr.bf16.mxu0 0
      %3050 = vmatpush1.bf16.msra.mxu0 0
      %3051 = vmatprep.subr.bf16.mxu0 0
      %3052 = vmatpush1.bf16.msra.mxu0 0
      %3053 = vmatprep.subr.bf16.mxu0 0
      %3054 = vmatpush1.bf16.msra.mxu0 0
      %3055 = vmatprep.subr.bf16.mxu0 0
      %3056 = vmatpush1.bf16.msra.mxu0 0
      %3057 = vmatprep.subr.bf16.mxu0 0
      %3058 = vmatpush1.bf16.msra.mxu0 0
      %3059 = vmatprep.subr.bf16.mxu0 0
      %3060 = vmatpush1.bf16.msra.mxu0 0
      %3061 = vmatprep.subr.bf16.mxu0 0
      %3062 = vmatpush1.bf16.msra.mxu0 0
      %3063 = vmatprep.subr.bf16.mxu0 0
      %3064 = vmatpush1.bf16.msra.mxu0 0
      %3065 = vmatprep.subr.bf16.mxu0 0
      %3066 = vmatpush1.bf16.msra.mxu0 0
      %3067 = vmatprep.subr.bf16.mxu0 0
      %3068 = vmatpush1.bf16.msra.mxu0 0
      %3069 = vmatprep.subr.bf16.mxu0 0
      %3070 = vmatpush1.bf16.msra.mxu0 0
      %3071 = vmatprep.mubr.bf16.mxu0 0
      %3072 = vmatmul.mubr.bf16.gmra.mrb[0].mxu0 %v3037
      %v3073 = vpop.f32.mrb[0].mxu0
      %v3074 = vadd.f32 0.0, %v3073
      %v3075 = vpop.f32.mrb[0].mxu0
      %v3076 = vpop.f32.mrb[0].mxu0
      %v3077 = vpop.f32.mrb[0].mxu0
      %3078 = vdwg.mxu0
      %3080 = vrot.lane.b32.xlu0 %v2846, 96
      %v3081 = vpop.permute.xlu0 %3080
      %v3083 = vsel %vm770, %v3081, 0
      %3085 = vmatprep.subr.bf16.mxu0 0
      %3086 = vmatpush1.bf16.msra.mxu0 %v1274
      %3087 = vmatprep.subr.bf16.mxu0 0
      %3088 = vmatpush1.bf16.msra.mxu0 %v1275
      %3089 = vmatprep.subr.bf16.mxu0 0
      %3090 = vmatpush1.bf16.msra.mxu0 0
      %3091 = vmatprep.subr.bf16.mxu0 0
      %3092 = vmatpush1.bf16.msra.mxu0 0
      %3093 = vmatprep.subr.bf16.mxu0 0
      %3094 = vmatpush1.bf16.msra.mxu0 0
      %3095 = vmatprep.subr.bf16.mxu0 0
      %3096 = vmatpush1.bf16.msra.mxu0 0
      %3097 = vmatprep.subr.bf16.mxu0 0
      %3098 = vmatpush1.bf16.msra.mxu0 0
      %3099 = vmatprep.subr.bf16.mxu0 0
      %3100 = vmatpush1.bf16.msra.mxu0 0
      %3101 = vmatprep.subr.bf16.mxu0 0
      %3102 = vmatpush1.bf16.msra.mxu0 0
      %3103 = vmatprep.subr.bf16.mxu0 0
      %3104 = vmatpush1.bf16.msra.mxu0 0
      %3105 = vmatprep.subr.bf16.mxu0 0
      %3106 = vmatpush1.bf16.msra.mxu0 0
      %3107 = vmatprep.subr.bf16.mxu0 0
      %3108 = vmatpush1.bf16.msra.mxu0 0
      %3109 = vmatprep.subr.bf16.mxu0 0
      %3110 = vmatpush1.bf16.msra.mxu0 0
      %3111 = vmatprep.subr.bf16.mxu0 0
      %3112 = vmatpush1.bf16.msra.mxu0 0
      %3113 = vmatprep.subr.bf16.mxu0 0
      %3114 = vmatpush1.bf16.msra.mxu0 0
      %3115 = vmatprep.subr.bf16.mxu0 0
      %3116 = vmatpush1.bf16.msra.mxu0 0
      %3117 = vmatprep.mubr.bf16.mxu0 0
      %3118 = vmatmul.mubr.bf16.gmra.mrb[0].mxu0 %v3083
      %v3119 = vpop.f32.mrb[0].mxu0
      %v3120 = vadd.f32 0.0, %v3119
      %v3121 = vpop.f32.mrb[0].mxu0
      %v3122 = vpop.f32.mrb[0].mxu0
      %v3123 = vpop.f32.mrb[0].mxu0
      %3124 = vdwg.mxu0
      %3126 = vrot.lane.b32.xlu0 %v2847, 96
      %v3127 = vpop.permute.xlu0 %3126
      %v3129 = vsel %vm770, %v3127, 0
      %3131 = vmatprep.subr.bf16.mxu0 0
      %3132 = vmatpush1.bf16.msra.mxu0 %v1332
      %3133 = vmatprep.subr.bf16.mxu0 0
      %3134 = vmatpush1.bf16.msra.mxu0 %v1333
      %3135 = vmatprep.subr.bf16.mxu0 0
      %3136 = vmatpush1.bf16.msra.mxu0 0
      %3137 = vmatprep.subr.bf16.mxu0 0
      %3138 = vmatpush1.bf16.msra.mxu0 0
      %3139 = vmatprep.subr.bf16.mxu0 0
      %3140 = vmatpush1.bf16.msra.mxu0 0
      %3141 = vmatprep.subr.bf16.mxu0 0
      %3142 = vmatpush1.bf16.msra.mxu0 0
      %3143 = vmatprep.subr.bf16.mxu0 0
      %3144 = vmatpush1.bf16.msra.mxu0 0
      %3145 = vmatprep.subr.bf16.mxu0 0
      %3146 = vmatpush1.bf16.msra.mxu0 0
      %3147 = vmatprep.subr.bf16.mxu0 0
      %3148 = vmatpush1.bf16.msra.mxu0 0
      %3149 = vmatprep.subr.bf16.mxu0 0
      %3150 = vmatpush1.bf16.msra.mxu0 0
      %3151 = vmatprep.subr.bf16.mxu0 0
      %3152 = vmatpush1.bf16.msra.mxu0 0
      %3153 = vmatprep.subr.bf16.mxu0 0
      %3154 = vmatpush1.bf16.msra.mxu0 0
      %3155 = vmatprep.subr.bf16.mxu0 0
      %3156 = vmatpush1.bf16.msra.mxu0 0
      %3157 = vmatprep.subr.bf16.mxu0 0
      %3158 = vmatpush1.bf16.msra.mxu0 0
      %3159 = vmatprep.subr.bf16.mxu0 0
      %3160 = vmatpush1.bf16.msra.mxu0 0
      %3161 = vmatprep.subr.bf16.mxu0 0
      %3162 = vmatpush1.bf16.msra.mxu0 0
      %3163 = vmatprep.mubr.bf16.mxu0 0
      %3164 = vmatmul.mubr.bf16.gmra.mrb[0].mxu0 %v3129
      %v3165 = vpop.f32.mrb[0].mxu0
      %v3166 = vadd.f32 0.0, %v3165
      %v3167 = vpop.f32.mrb[0].mxu0
      %v3168 = vpop.f32.mrb[0].mxu0
      %v3169 = vpop.f32.mrb[0].mxu0
      %3170 = vdwg.mxu0
      %3172 = vrot.lane.b32.xlu0 %v2848, 96
      %v3173 = vpop.permute.xlu0 %3172
      %v3175 = vsel %vm770, %v3173, 0
      %3177 = vmatprep.subr.bf16.mxu0 0
      %3178 = vmatpush1.bf16.msra.mxu0 %v1390
      %3179 = vmatprep.subr.bf16.mxu0 0
      %3180 = vmatpush1.bf16.msra.mxu0 %v1391
      %3181 = vmatprep.subr.bf16.mxu0 0
      %3182 = vmatpush1.bf16.msra.mxu0 0
      %3183 = vmatprep.subr.bf16.mxu0 0
      %3184 = vmatpush1.bf16.msra.mxu0 0
      %3185 = vmatprep.subr.bf16.mxu0 0
      %3186 = vmatpush1.bf16.msra.mxu0 0
      %3187 = vmatprep.subr.bf16.mxu0 0
      %3188 = vmatpush1.bf16.msra.mxu0 0
      %3189 = vmatprep.subr.bf16.mxu0 0
      %3190 = vmatpush1.bf16.msra.mxu0 0
      %3191 = vmatprep.subr.bf16.mxu0 0
      %3192 = vmatpush1.bf16.msra.mxu0 0
      %3193 = vmatprep.subr.bf16.mxu0 0
      %3194 = vmatpush1.bf16.msra.mxu0 0
      %3195 = vmatprep.subr.bf16.mxu0 0
      %3196 = vmatpush1.bf16.msra.mxu0 0
      %3197 = vmatprep.subr.bf16.mxu0 0
      %3198 = vmatpush1.bf16.msra.mxu0 0
      %3199 = vmatprep.subr.bf16.mxu0 0
      %3200 = vmatpush1.bf16.msra.mxu0 0
      %3201 = vmatprep.subr.bf16.mxu0 0
      %3202 = vmatpush1.bf16.msra.mxu0 0
      %3203 = vmatprep.subr.bf16.mxu0 0
      %3204 = vmatpush1.bf16.msra.mxu0 0
      %3205 = vmatprep.subr.bf16.mxu0 0
      %3206 = vmatpush1.bf16.msra.mxu0 0
      %3207 = vmatprep.subr.bf16.mxu0 0
      %3208 = vmatpush1.bf16.msra.mxu0 0
      %3209 = vmatprep.mubr.bf16.mxu0 0
      %3210 = vmatmul.mubr.bf16.gmra.mrb[0].mxu0 %v3175
      %v3211 = vpop.f32.mrb[0].mxu0
      %v3212 = vadd.f32 0.0, %v3211
      %v3213 = vpop.f32.mrb[0].mxu0
      %v3214 = vpop.f32.mrb[0].mxu0
      %v3215 = vpop.f32.mrb[0].mxu0
      %3216 = vdwg.mxu0
      %v3217 = vadd.f32 %v2890, %v1441
      %v3218 = vadd.f32 %v2936, %v1441
      %v3219 = vadd.f32 %v2982, %v1441
      %v3220 = vadd.f32 %v3028, %v1441
      %v3221 = vadd.f32 %v3074, %v1441
      %v3222 = vadd.f32 %v3120, %v1441
      %v3223 = vadd.f32 %v3166, %v1441
      %v3224 = vadd.f32 %v3212, %v1441
      %v3233 = vrot.slane %v3218, 7
      %v3234 = vsel %vm1460, %v3233, %v3217
      %v3235 = vrot.slane %v3219, 6
      %v3236 = vsel %vm1463, %v3235, %v3234
      %v3237 = vrot.slane %v3220, 5
      %v3238 = vsel %vm1466, %v3237, %v3236
      %v3239 = vrot.slane %v3221, 4
      %v3240 = vsel %vm1469, %v3239, %v3238
      %v3241 = vrot.slane %v3222, 3
      %v3242 = vsel %vm1472, %v3241, %v3240
      %v3243 = vrot.slane %v3223, 2
      %v3244 = vsel %vm1475, %v3243, %v3242
      %v3245 = vrot.slane %v3224, 1
      %v3246 = vsel %vm1478, %v3245, %v3244
      %3248 = vmax.xlane.f32.xlu0 %v3246
      %v3249 = vpop.xlane.xlu0 %3248
      %v3251 = vrot.slane %v3249, 1
      %v3252 = vrot.slane %v3249, 2
      %v3253 = vrot.slane %v3249, 3
      %v3254 = vrot.slane %v3249, 4
      %v3255 = vrot.slane %v3249, 5
      %v3256 = vrot.slane %v3249, 6
      %v3257 = vrot.slane %v3249, 7
      %v3266 = vsub.f32 %v3217, %v3249
      %v3267 = vsub.f32 %v3218, %v3251
      %v3268 = vsub.f32 %v3219, %v3252
      %v3269 = vsub.f32 %v3220, %v3253
      %v3270 = vsub.f32 %v3221, %v3254
      %v3271 = vsub.f32 %v3222, %v3255
      %v3272 = vsub.f32 %v3223, %v3256
      %v3273 = vsub.f32 %v3224, %v3257
      %v3274 = vmul.f32 %v3266, 1.442695
      %v3275 = vpow.pop %v3274
      %v3276 = vmul.f32 %v3267, 1.442695
      %v3277 = vpow.pop %v3276
      %v3278 = vmul.f32 %v3268, 1.442695
      %v3279 = vpow.pop %v3278
      %v3280 = vmul.f32 %v3269, 1.442695
      %v3281 = vpow.pop %v3280
      %v3282 = vmul.f32 %v3270, 1.442695
      %v3283 = vpow.pop %v3282
      %v3284 = vmul.f32 %v3271, 1.442695
      %v3285 = vpow.pop %v3284
      %v3286 = vmul.f32 %v3272, 1.442695
      %v3287 = vpow.pop %v3286
      %v3288 = vmul.f32 %v3273, 1.442695
      %v3289 = vpow.pop %v3288
      %v3298 = vrot.slane %v3277, 7
      %v3299 = vsel %vm1460, %v3298, %v3275
      %v3300 = vrot.slane %v3279, 6
      %v3301 = vsel %vm1463, %v3300, %v3299
      %v3302 = vrot.slane %v3281, 5
      %v3303 = vsel %vm1466, %v3302, %v3301
      %v3304 = vrot.slane %v3283, 4
      %v3305 = vsel %vm1469, %v3304, %v3303
      %v3306 = vrot.slane %v3285, 3
      %v3307 = vsel %vm1472, %v3306, %v3305
      %v3308 = vrot.slane %v3287, 2
      %v3309 = vsel %vm1475, %v3308, %v3307
      %v3310 = vrot.slane %v3289, 1
      %v3311 = vsel %vm1478, %v3310, %v3309
      %3313 = vadd.xlane.f32.xlu0 %v3311
      %v3314 = vpop.xlane.xlu0 %3313
      %v3315 = vrcp.pop %v3314
      %v3316 = vmul.f32 %v3314, %v3315
      %v3317 = vsub.f32 2.0, %v3316
      %v3318 = vmul.f32 %v3315, %v3317
      %v3320 = vrot.slane %v3318, 1
      %v3321 = vrot.slane %v3318, 2
      %v3322 = vrot.slane %v3318, 3
      %v3323 = vrot.slane %v3318, 4
      %v3324 = vrot.slane %v3318, 5
      %v3325 = vrot.slane %v3318, 6
      %v3326 = vrot.slane %v3318, 7
      %v3335 = vmul.f32 %v3275, %v3318
      %v3336 = vmul.f32 %v3277, %v3320
      %v3337 = vmul.f32 %v3279, %v3321
      %v3338 = vmul.f32 %v3281, %v3322
      %v3339 = vmul.f32 %v3283, %v3323
      %v3340 = vmul.f32 %v3285, %v3324
      %v3341 = vmul.f32 %v3287, %v3325
      %v3342 = vmul.f32 %v3289, %v3326
      %v3343 = vpack.c.bf16 %v3335, %v3335
      %v3344 = vpack.c.bf16 %v3336, %v3336
      %v3345 = vpack.c.bf16 %v3337, %v3337
      %v3346 = vpack.c.bf16 %v3338, %v3338
      %v3347 = vpack.c.bf16 %v3339, %v3339
      %v3348 = vpack.c.bf16 %v3340, %v3340
      %v3349 = vpack.c.bf16 %v3341, %v3341
      %v3350 = vpack.c.bf16 %v3342, %v3342
      %3351 = vmatprep.subr.bf16.mxu0 0
      %3352 = vmatpush1.bf16.msra.mxu0 %v1616
      %3353 = vmatprep.subr.bf16.mxu0 0
      %3354 = vmatpush1.bf16.msra.mxu0 %v1617
      %3355 = vmatprep.subr.bf16.mxu0 0
      %3356 = vmatpush1.bf16.msra.mxu0 %v1618
      %3357 = vmatprep.subr.bf16.mxu0 0
      %3358 = vmatpush1.bf16.msra.mxu0 %v1619
      %3359 = vmatprep.subr.bf16.mxu0 0
      %3360 = vmatpush1.bf16.msra.mxu0 %v1620
      %3361 = vmatprep.subr.bf16.mxu0 0
      %3362 = vmatpush1.bf16.msra.mxu0 %v1621
      %3363 = vmatprep.subr.bf16.mxu0 0
      %3364 = vmatpush1.bf16.msra.mxu0 %v1622
      %3365 = vmatprep.subr.bf16.mxu0 0
      %3366 = vmatpush1.bf16.msra.mxu0 %v1623
      %3367 = vmatprep.subr.bf16.mxu0 0
      %3368 = vmatpush1.bf16.msra.mxu0 0
      %3369 = vmatprep.subr.bf16.mxu0 0
      %3370 = vmatpush1.bf16.msra.mxu0 0
      %3371 = vmatprep.subr.bf16.mxu0 0
      %3372 = vmatpush1.bf16.msra.mxu0 0
      %3373 = vmatprep.subr.bf16.mxu0 0
      %3374 = vmatpush1.bf16.msra.mxu0 0
      %3375 = vmatprep.subr.bf16.mxu0 0
      %3376 = vmatpush1.bf16.msra.mxu0 0
      %3377 = vmatprep.subr.bf16.mxu0 0
      %3378 = vmatpush1.bf16.msra.mxu0 0
      %3379 = vmatprep.subr.bf16.mxu0 0
      %3380 = vmatpush1.bf16.msra.mxu0 0
      %3381 = vmatprep.subr.bf16.mxu0 0
      %3382 = vmatpush1.bf16.msra.mxu0 0
      %3383 = vmatprep.mubr.bf16.mxu0 0
      %3384 = vmatmul.mubr.bf16.gmra.mrb[0].mxu0 %v3343
      %v3385 = vpop.f32.mrb[0].mxu0
      %v3386 = vadd.f32 0.0, %v3385
      %v3387 = vpop.f32.mrb[0].mxu0
      %v3388 = vpop.f32.mrb[0].mxu0
      %v3389 = vpop.f32.mrb[0].mxu0
      %3390 = vdwg.mxu0
      %3391 = vmatprep.subr.bf16.mxu0 0
      %3392 = vmatpush1.bf16.msra.mxu0 %v1704
      %3393 = vmatprep.subr.bf16.mxu0 0
      %3394 = vmatpush1.bf16.msra.mxu0 %v1705
      %3395 = vmatprep.subr.bf16.mxu0 0
      %3396 = vmatpush1.bf16.msra.mxu0 %v1706
      %3397 = vmatprep.subr.bf16.mxu0 0
      %3398 = vmatpush1.bf16.msra.mxu0 %v1707
      %3399 = vmatprep.subr.bf16.mxu0 0
      %3400 = vmatpush1.bf16.msra.mxu0 %v1708
      %3401 = vmatprep.subr.bf16.mxu0 0
      %3402 = vmatpush1.bf16.msra.mxu0 %v1709
      %3403 = vmatprep.subr.bf16.mxu0 0
      %3404 = vmatpush1.bf16.msra.mxu0 %v1710
      %3405 = vmatprep.subr.bf16.mxu0 0
      %3406 = vmatpush1.bf16.msra.mxu0 %v1711
      %3407 = vmatprep.subr.bf16.mxu0 0
      %3408 = vmatpush1.bf16.msra.mxu0 0
      %3409 = vmatprep.subr.bf16.mxu0 0
      %3410 = vmatpush1.bf16.msra.mxu0 0
      %3411 = vmatprep.subr.bf16.mxu0 0
      %3412 = vmatpush1.bf16.msra.mxu0 0
      %3413 = vmatprep.subr.bf16.mxu0 0
      %3414 = vmatpush1.bf16.msra.mxu0 0
      %3415 = vmatprep.subr.bf16.mxu0 0
      %3416 = vmatpush1.bf16.msra.mxu0 0
      %3417 = vmatprep.subr.bf16.mxu0 0
      %3418 = vmatpush1.bf16.msra.mxu0 0
      %3419 = vmatprep.subr.bf16.mxu0 0
      %3420 = vmatpush1.bf16.msra.mxu0 0
      %3421 = vmatprep.subr.bf16.mxu0 0
      %3422 = vmatpush1.bf16.msra.mxu0 0
      %3423 = vmatprep.mubr.bf16.mxu0 0
      %3424 = vmatmul.mubr.bf16.gmra.mrb[0].mxu0 %v3344
      %v3425 = vpop.f32.mrb[0].mxu0
      %v3426 = vadd.f32 0.0, %v3425
      %v3427 = vpop.f32.mrb[0].mxu0
      %v3428 = vpop.f32.mrb[0].mxu0
      %v3429 = vpop.f32.mrb[0].mxu0
      %3430 = vdwg.mxu0
      %3431 = vmatprep.subr.bf16.mxu0 0
      %3432 = vmatpush1.bf16.msra.mxu0 %v1792
      %3433 = vmatprep.subr.bf16.mxu0 0
      %3434 = vmatpush1.bf16.msra.mxu0 %v1793
      %3435 = vmatprep.subr.bf16.mxu0 0
      %3436 = vmatpush1.bf16.msra.mxu0 %v1794
      %3437 = vmatprep.subr.bf16.mxu0 0
      %3438 = vmatpush1.bf16.msra.mxu0 %v1795
      %3439 = vmatprep.subr.bf16.mxu0 0
      %3440 = vmatpush1.bf16.msra.mxu0 %v1796
      %3441 = vmatprep.subr.bf16.mxu0 0
      %3442 = vmatpush1.bf16.msra.mxu0 %v1797
      %3443 = vmatprep.subr.bf16.mxu0 0
      %3444 = vmatpush1.bf16.msra.mxu0 %v1798
      %3445 = vmatprep.subr.bf16.mxu0 0
      %3446 = vmatpush1.bf16.msra.mxu0 %v1799
      %3447 = vmatprep.subr.bf16.mxu0 0
      %3448 = vmatpush1.bf16.msra.mxu0 0
      %3449 = vmatprep.subr.bf16.mxu0 0
      %3450 = vmatpush1.bf16.msra.mxu0 0
      %3451 = vmatprep.subr.bf16.mxu0 0
      %3452 = vmatpush1.bf16.msra.mxu0 0
      %3453 = vmatprep.subr.bf16.mxu0 0
      %3454 = vmatpush1.bf16.msra.mxu0 0
      %3455 = vmatprep.subr.bf16.mxu0 0
      %3456 = vmatpush1.bf16.msra.mxu0 0
      %3457 = vmatprep.subr.bf16.mxu0 0
      %3458 = vmatpush1.bf16.msra.mxu0 0
      %3459 = vmatprep.subr.bf16.mxu0 0
      %3460 = vmatpush1.bf16.msra.mxu0 0
      %3461 = vmatprep.subr.bf16.mxu0 0
      %3462 = vmatpush1.bf16.msra.mxu0 0
      %3463 = vmatprep.mubr.bf16.mxu0 0
      %3464 = vmatmul.mubr.bf16.gmra.mrb[0].mxu0 %v3345
      %v3465 = vpop.f32.mrb[0].mxu0
      %v3466 = vadd.f32 0.0, %v3465
      %v3467 = vpop.f32.mrb[0].mxu0
      %v3468 = vpop.f32.mrb[0].mxu0
      %v3469 = vpop.f32.mrb[0].mxu0
      %3470 = vdwg.mxu0
      %3471 = vmatprep.subr.bf16.mxu0 0
      %3472 = vmatpush1.bf16.msra.mxu0 %v1880
      %3473 = vmatprep.subr.bf16.mxu0 0
      %3474 = vmatpush1.bf16.msra.mxu0 %v1881
      %3475 = vmatprep.subr.bf16.mxu0 0
      %3476 = vmatpush1.bf16.msra.mxu0 %v1882
      %3477 = vmatprep.subr.bf16.mxu0 0
      %3478 = vmatpush1.bf16.msra.mxu0 %v1883
      %3479 = vmatprep.subr.bf16.mxu0 0
      %3480 = vmatpush1.bf16.msra.mxu0 %v1884
      %3481 = vmatprep.subr.bf16.mxu0 0
      %3482 = vmatpush1.bf16.msra.mxu0 %v1885
      %3483 = vmatprep.subr.bf16.mxu0 0
      %3484 = vmatpush1.bf16.msra.mxu0 %v1886
      %3485 = vmatprep.subr.bf16.mxu0 0
      %3486 = vmatpush1.bf16.msra.mxu0 %v1887
      %3487 = vmatprep.subr.bf16.mxu0 0
      %3488 = vmatpush1.bf16.msra.mxu0 0
      %3489 = vmatprep.subr.bf16.mxu0 0
      %3490 = vmatpush1.bf16.msra.mxu0 0
      %3491 = vmatprep.subr.bf16.mxu0 0
      %3492 = vmatpush1.bf16.msra.mxu0 0
      %3493 = vmatprep.subr.bf16.mxu0 0
      %3494 = vmatpush1.bf16.msra.mxu0 0
      %3495 = vmatprep.subr.bf16.mxu0 0
      %3496 = vmatpush1.bf16.msra.mxu0 0
      %3497 = vmatprep.subr.bf16.mxu0 0
      %3498 = vmatpush1.bf16.msra.mxu0 0
      %3499 = vmatprep.subr.bf16.mxu0 0
      %3500 = vmatpush1.bf16.msra.mxu0 0
      %3501 = vmatprep.subr.bf16.mxu0 0
      %3502 = vmatpush1.bf16.msra.mxu0 0
      %3503 = vmatprep.mubr.bf16.mxu0 0
      %3504 = vmatmul.mubr.bf16.gmra.mrb[0].mxu0 %v3346
      %v3505 = vpop.f32.mrb[0].mxu0
      %v3506 = vadd.f32 0.0, %v3505
      %v3507 = vpop.f32.mrb[0].mxu0
      %v3508 = vpop.f32.mrb[0].mxu0
      %v3509 = vpop.f32.mrb[0].mxu0
      %3510 = vdwg.mxu0
      %3511 = vmatprep.subr.bf16.mxu0 0
      %3512 = vmatpush1.bf16.msra.mxu0 %v1968
      %3513 = vmatprep.subr.bf16.mxu0 0
      %3514 = vmatpush1.bf16.msra.mxu0 %v1969
      %3515 = vmatprep.subr.bf16.mxu0 0
      %3516 = vmatpush1.bf16.msra.mxu0 %v1970
      %3517 = vmatprep.subr.bf16.mxu0 0
      %3518 = vmatpush1.bf16.msra.mxu0 %v1971
      %3519 = vmatprep.subr.bf16.mxu0 0
      %3520 = vmatpush1.bf16.msra.mxu0 %v1972
      %3521 = vmatprep.subr.bf16.mxu0 0
      %3522 = vmatpush1.bf16.msra.mxu0 %v1973
      %3523 = vmatprep.subr.bf16.mxu0 0
      %3524 = vmatpush1.bf16.msra.mxu0 %v1974
      %3525 = vmatprep.subr.bf16.mxu0 0
      %3526 = vmatpush1.bf16.msra.mxu0 %v1975
      %3527 = vmatprep.subr.bf16.mxu0 0
      %3528 = vmatpush1.bf16.msra.mxu0 0
      %3529 = vmatprep.subr.bf16.mxu0 0
      %3530 = vmatpush1.bf16.msra.mxu0 0
      %3531 = vmatprep.subr.bf16.mxu0 0
      %3532 = vmatpush1.bf16.msra.mxu0 0
      %3533 = vmatprep.subr.bf16.mxu0 0
      %3534 = vmatpush1.bf16.msra.mxu0 0
      %3535 = vmatprep.subr.bf16.mxu0 0
      %3536 = vmatpush1.bf16.msra.mxu0 0
      %3537 = vmatprep.subr.bf16.mxu0 0
      %3538 = vmatpush1.bf16.msra.mxu0 0
      %3539 = vmatprep.subr.bf16.mxu0 0
      %3540 = vmatpush1.bf16.msra.mxu0 0
      %3541 = vmatprep.subr.bf16.mxu0 0
      %3542 = vmatpush1.bf16.msra.mxu0 0
      %3543 = vmatprep.mubr.bf16.mxu0 0
      %3544 = vmatmul.mubr.bf16.gmra.mrb[0].mxu0 %v3347
      %v3545 = vpop.f32.mrb[0].mxu0
      %v3546 = vadd.f32 0.0, %v3545
      %v3547 = vpop.f32.mrb[0].mxu0
      %v3548 = vpop.f32.mrb[0].mxu0
      %v3549 = vpop.f32.mrb[0].mxu0
      %3550 = vdwg.mxu0
      %3551 = vmatprep.subr.bf16.mxu0 0
      %3552 = vmatpush1.bf16.msra.mxu0 %v2056
      %3553 = vmatprep.subr.bf16.mxu0 0
      %3554 = vmatpush1.bf16.msra.mxu0 %v2057
      %3555 = vmatprep.subr.bf16.mxu0 0
      %3556 = vmatpush1.bf16.msra.mxu0 %v2058
      %3557 = vmatprep.subr.bf16.mxu0 0
      %3558 = vmatpush1.bf16.msra.mxu0 %v2059
      %3559 = vmatprep.subr.bf16.mxu0 0
      %3560 = vmatpush1.bf16.msra.mxu0 %v2060
      %3561 = vmatprep.subr.bf16.mxu0 0
      %3562 = vmatpush1.bf16.msra.mxu0 %v2061
      %3563 = vmatprep.subr.bf16.mxu0 0
      %3564 = vmatpush1.bf16.msra.mxu0 %v2062
      %3565 = vmatprep.subr.bf16.mxu0 0
      %3566 = vmatpush1.bf16.msra.mxu0 %v2063
      %3567 = vmatprep.subr.bf16.mxu0 0
      %3568 = vmatpush1.bf16.msra.mxu0 0
      %3569 = vmatprep.subr.bf16.mxu0 0
      %3570 = vmatpush1.bf16.msra.mxu0 0
      %3571 = vmatprep.subr.bf16.mxu0 0
      %3572 = vmatpush1.bf16.msra.mxu0 0
      %3573 = vmatprep.subr.bf16.mxu0 0
      %3574 = vmatpush1.bf16.msra.mxu0 0
      %3575 = vmatprep.subr.bf16.mxu0 0
      %3576 = vmatpush1.bf16.msra.mxu0 0
      %3577 = vmatprep.subr.bf16.mxu0 0
      %3578 = vmatpush1.bf16.msra.mxu0 0
      %3579 = vmatprep.subr.bf16.mxu0 0
      %3580 = vmatpush1.bf16.msra.mxu0 0
      %3581 = vmatprep.subr.bf16.mxu0 0
      %3582 = vmatpush1.bf16.msra.mxu0 0
      %3583 = vmatprep.mubr.bf16.mxu0 0
      %3584 = vmatmul.mubr.bf16.gmra.mrb[0].mxu0 %v3348
      %v3585 = vpop.f32.mrb[0].mxu0
      %v3586 = vadd.f32 0.0, %v3585
      %v3587 = vpop.f32.mrb[0].mxu0
      %v3588 = vpop.f32.mrb[0].mxu0
      %v3589 = vpop.f32.mrb[0].mxu0
      %3590 = vdwg.mxu0
      %3591 = vmatprep.subr.bf16.mxu0 0
      %3592 = vmatpush1.bf16.msra.mxu0 %v2144
      %3593 = vmatprep.subr.bf16.mxu0 0
      %3594 = vmatpush1.bf16.msra.mxu0 %v2145
      %3595 = vmatprep.subr.bf16.mxu0 0
      %3596 = vmatpush1.bf16.msra.mxu0 %v2146
      %3597 = vmatprep.subr.bf16.mxu0 0
      %3598 = vmatpush1.bf16.msra.mxu0 %v2147
      %3599 = vmatprep.subr.bf16.mxu0 0
      %3600 = vmatpush1.bf16.msra.mxu0 %v2148
      %3601 = vmatprep.subr.bf16.mxu0 0
      %3602 = vmatpush1.bf16.msra.mxu0 %v2149
      %3603 = vmatprep.subr.bf16.mxu0 0
      %3604 = vmatpush1.bf16.msra.mxu0 %v2150
      %3605 = vmatprep.subr.bf16.mxu0 0
      %3606 = vmatpush1.bf16.msra.mxu0 %v2151
      %3607 = vmatprep.subr.bf16.mxu0 0
      %3608 = vmatpush1.bf16.msra.mxu0 0
      %3609 = vmatprep.subr.bf16.mxu0 0
      %3610 = vmatpush1.bf16.msra.mxu0 0
      %3611 = vmatprep.subr.bf16.mxu0 0
      %3612 = vmatpush1.bf16.msra.mxu0 0
      %3613 = vmatprep.subr.bf16.mxu0 0
      %3614 = vmatpush1.bf16.msra.mxu0 0
      %3615 = vmatprep.subr.bf16.mxu0 0
      %3616 = vmatpush1.bf16.msra.mxu0 0
      %3617 = vmatprep.subr.bf16.mxu0 0
      %3618 = vmatpush1.bf16.msra.mxu0 0
      %3619 = vmatprep.subr.bf16.mxu0 0
      %3620 = vmatpush1.bf16.msra.mxu0 0
      %3621 = vmatprep.subr.bf16.mxu0 0
      %3622 = vmatpush1.bf16.msra.mxu0 0
      %3623 = vmatprep.mubr.bf16.mxu0 0
      %3624 = vmatmul.mubr.bf16.gmra.mrb[0].mxu0 %v3349
      %v3625 = vpop.f32.mrb[0].mxu0
      %v3626 = vadd.f32 0.0, %v3625
      %v3627 = vpop.f32.mrb[0].mxu0
      %v3628 = vpop.f32.mrb[0].mxu0
      %v3629 = vpop.f32.mrb[0].mxu0
      %3630 = vdwg.mxu0
      %3631 = vmatprep.subr.bf16.mxu0 0
      %3632 = vmatpush1.bf16.msra.mxu0 %v2232
      %3633 = vmatprep.subr.bf16.mxu0 0
      %3634 = vmatpush1.bf16.msra.mxu0 %v2233
      %3635 = vmatprep.subr.bf16.mxu0 0
      %3636 = vmatpush1.bf16.msra.mxu0 %v2234
      %3637 = vmatprep.subr.bf16.mxu0 0
      %3638 = vmatpush1.bf16.msra.mxu0 %v2235
      %3639 = vmatprep.subr.bf16.mxu0 0
      %3640 = vmatpush1.bf16.msra.mxu0 %v2236
      %3641 = vmatprep.subr.bf16.mxu0 0
      %3642 = vmatpush1.bf16.msra.mxu0 %v2237
      %3643 = vmatprep.subr.bf16.mxu0 0
      %3644 = vmatpush1.bf16.msra.mxu0 %v2238
      %3645 = vmatprep.subr.bf16.mxu0 0
      %3646 = vmatpush1.bf16.msra.mxu0 %v2239
      %3647 = vmatprep.subr.bf16.mxu0 0
      %3648 = vmatpush1.bf16.msra.mxu0 0
      %3649 = vmatprep.subr.bf16.mxu0 0
      %3650 = vmatpush1.bf16.msra.mxu0 0
      %3651 = vmatprep.subr.bf16.mxu0 0
      %3652 = vmatpush1.bf16.msra.mxu0 0
      %3653 = vmatprep.subr.bf16.mxu0 0
      %3654 = vmatpush1.bf16.msra.mxu0 0
      %3655 = vmatprep.subr.bf16.mxu0 0
      %3656 = vmatpush1.bf16.msra.mxu0 0
      %3657 = vmatprep.subr.bf16.mxu0 0
      %3658 = vmatpush1.bf16.msra.mxu0 0
      %3659 = vmatprep.subr.bf16.mxu0 0
      %3660 = vmatpush1.bf16.msra.mxu0 0
      %3661 = vmatprep.subr.bf16.mxu0 0
      %3662 = vmatpush1.bf16.msra.mxu0 0
      %3663 = vmatprep.mubr.bf16.mxu0 0
      %3664 = vmatmul.mubr.bf16.gmra.mrb[0].mxu0 %v3350
      %v3665 = vpop.f32.mrb[0].mxu0
      %v3666 = vadd.f32 0.0, %v3665
      %v3667 = vpop.f32.mrb[0].mxu0
      %v3668 = vpop.f32.mrb[0].mxu0
      %v3669 = vpop.f32.mrb[0].mxu0
      %3670 = vdwg.mxu0
      %v3671 = vpack.c.bf16 %v2782, %v2782
      %3673 = vrot.lane.b32.xlu0 %v3671, 96
      %v3674 = vpop.permute.xlu0 %3673
      %v3676 = vsel %vm770, %v3674, 0
      %3678 = vmatprep.subr.bf16.mxu0 0
      %3679 = vmatpush1.bf16.msra.mxu0 %v2306
      %3680 = vmatprep.subr.bf16.mxu0 0
      %3681 = vmatpush1.bf16.msra.mxu0 %v2307
      %3682 = vmatprep.subr.bf16.mxu0 0
      %3683 = vmatpush1.bf16.msra.mxu0 0
      %3684 = vmatprep.subr.bf16.mxu0 0
      %3685 = vmatpush1.bf16.msra.mxu0 0
      %3686 = vmatprep.subr.bf16.mxu0 0
      %3687 = vmatpush1.bf16.msra.mxu0 0
      %3688 = vmatprep.subr.bf16.mxu0 0
      %3689 = vmatpush1.bf16.msra.mxu0 0
      %3690 = vmatprep.subr.bf16.mxu0 0
      %3691 = vmatpush1.bf16.msra.mxu0 0
      %3692 = vmatprep.subr.bf16.mxu0 0
      %3693 = vmatpush1.bf16.msra.mxu0 0
      %3694 = vmatprep.subr.bf16.mxu0 0
      %3695 = vmatpush1.bf16.msra.mxu0 0
      %3696 = vmatprep.subr.bf16.mxu0 0
      %3697 = vmatpush1.bf16.msra.mxu0 0
      %3698 = vmatprep.subr.bf16.mxu0 0
      %3699 = vmatpush1.bf16.msra.mxu0 0
      %3700 = vmatprep.subr.bf16.mxu0 0
      %3701 = vmatpush1.bf16.msra.mxu0 0
      %3702 = vmatprep.subr.bf16.mxu0 0
      %3703 = vmatpush1.bf16.msra.mxu0 0
      %3704 = vmatprep.subr.bf16.mxu0 0
      %3705 = vmatpush1.bf16.msra.mxu0 0
      %3706 = vmatprep.subr.bf16.mxu0 0
      %3707 = vmatpush1.bf16.msra.mxu0 0
      %3708 = vmatprep.subr.bf16.mxu0 0
      %3709 = vmatpush1.bf16.msra.mxu0 0
      %3710 = vmatprep.mubr.bf16.mxu0 0
      %3711 = vmatmul.mubr.bf16.gmra.mrb[0].mxu0 %v3676
      %v3712 = vpop.f32.mrb[0].mxu0
      %v3713 = vadd.f32 %v2293, %v3712
      %v3714 = vpop.f32.mrb[0].mxu0
      %v3715 = vpop.f32.mrb[0].mxu0
      %v3716 = vpop.f32.mrb[0].mxu0
      %3717 = vdwg.mxu0
      %v3718 = vpack.c.bf16 %v3713, %v3713
      %v3720 = vsel %vm770, %v3718, 0
      %3722 = vmatprep.subr.bf16.mxu0 0
      %3723 = vmatpush1.bf16.msra.mxu0 %v2368
      %3724 = vmatprep.subr.bf16.mxu0 0
      %3725 = vmatpush1.bf16.msra.mxu0 %v2369
      %3726 = vmatprep.subr.bf16.mxu0 0
      %3727 = vmatpush1.bf16.msra.mxu0 0
      %3728 = vmatprep.subr.bf16.mxu0 0
      %3729 = vmatpush1.bf16.msra.mxu0 0
      %3730 = vmatprep.subr.bf16.mxu0 0
      %3731 = vmatpush1.bf16.msra.mxu0 0
      %3732 = vmatprep.subr.bf16.mxu0 0
      %3733 = vmatpush1.bf16.msra.mxu0 0
      %3734 = vmatprep.subr.bf16.mxu0 0
      %3735 = vmatpush1.bf16.msra.mxu0 0
      %3736 = vmatprep.subr.bf16.mxu0 0
      %3737 = vmatpush1.bf16.msra.mxu0 0
      %3738 = vmatprep.subr.bf16.mxu0 0
      %3739 = vmatpush1.bf16.msra.mxu0 0
      %3740 = vmatprep.subr.bf16.mxu0 0
      %3741 = vmatpush1.bf16.msra.mxu0 0
      %3742 = vmatprep.subr.bf16.mxu0 0
      %3743 = vmatpush1.bf16.msra.mxu0 0
      %3744 = vmatprep.subr.bf16.mxu0 0
      %3745 = vmatpush1.bf16.msra.mxu0 0
      %3746 = vmatprep.subr.bf16.mxu0 0
      %3747 = vmatpush1.bf16.msra.mxu0 0
      %3748 = vmatprep.subr.bf16.mxu0 0
      %3749 = vmatpush1.bf16.msra.mxu0 0
      %3750 = vmatprep.subr.bf16.mxu0 0
      %3751 = vmatpush1.bf16.msra.mxu0 0
      %3752 = vmatprep.subr.bf16.mxu0 0
      %3753 = vmatpush1.bf16.msra.mxu0 0
      %3754 = vmatprep.mubr.bf16.mxu0 0
      %3755 = vmatmul.mubr.bf16.gmra.mrb[0].mxu0 %v3720
      %v3756 = vpop.f32.mrb[0].mxu0
      %v3757 = vadd.f32 %v2358, %v3756
      %v3758 = vpop.f32.mrb[0].mxu0
      %v3759 = vpop.f32.mrb[0].mxu0
      %v3760 = vpop.f32.mrb[0].mxu0
      %3761 = vdwg.mxu0
      %3762 = vmax.xlane.f32.xlu0 %v3757
      %v3763 = vpop.xlane.xlu0 %3762
      %v3764 = vsub.f32 %v3763, 1.0
      %v3765 = vadd.f32 %v3764, %v3763
      %v3766 = vmul.f32 %v3765, 0.5
      %v3767 = vsub.f32 %v3757, %v3766
      %v3768 = vmax.f32 %v3767, 0.0
      %3769 = vadd.xlane.f32.xlu0 %v3768
      %v3770 = vpop.xlane.xlu0 %3769
      %v3771 = vsub.f32 %v3770, 1.0
      %vm3772 = vcmp.gt.f32.partialorder %v3771, 0.0
      %v3773 = vsel %vm3772, %v3766, %v3764
      %v3774 = vsel %vm3772, %v3763, %v3766
      %v3775 = vadd.f32 %v3773, %v3774
      %v3776 = vmul.f32 %v3775, 0.5
      %v3777 = vsub.f32 %v3757, %v3776
      %v3778 = vmax.f32 %v3777, 0.0
      %3779 = vadd.xlane.f32.xlu0 %v3778
      %v3780 = vpop.xlane.xlu0 %3779
      %v3781 = vsub.f32 %v3780, 1.0
      %vm3782 = vcmp.gt.f32.partialorder %v3781, 0.0
      %v3783 = vsel %vm3782, %v3776, %v3773
      %v3784 = vsel %vm3782, %v3774, %v3776
      %v3785 = vadd.f32 %v3783, %v3784
      %v3786 = vmul.f32 %v3785, 0.5
      %v3787 = vsub.f32 %v3757, %v3786
      %v3788 = vmax.f32 %v3787, 0.0
      %3789 = vadd.xlane.f32.xlu0 %v3788
      %v3790 = vpop.xlane.xlu0 %3789
      %v3791 = vsub.f32 %v3790, 1.0
      %vm3792 = vcmp.gt.f32.partialorder %v3791, 0.0
      %v3793 = vsel %vm3792, %v3786, %v3783
      %v3794 = vsel %vm3792, %v3784, %v3786
      %v3795 = vadd.f32 %v3793, %v3794
      %v3796 = vmul.f32 %v3795, 0.5
      %v3797 = vsub.f32 %v3757, %v3796
      %v3798 = vmax.f32 %v3797, 0.0
      %3799 = vadd.xlane.f32.xlu0 %v3798
      %v3800 = vpop.xlane.xlu0 %3799
      %v3801 = vsub.f32 %v3800, 1.0
      %vm3802 = vcmp.gt.f32.partialorder %v3801, 0.0
      %v3803 = vsel %vm3802, %v3796, %v3793
      %v3804 = vsel %vm3802, %v3794, %v3796
      %v3805 = vadd.f32 %v3803, %v3804
      %v3806 = vmul.f32 %v3805, 0.5
      %v3807 = vsub.f32 %v3757, %v3806
      %v3808 = vmax.f32 %v3807, 0.0
      %3809 = vadd.xlane.f32.xlu0 %v3808
      %v3810 = vpop.xlane.xlu0 %3809
      %v3811 = vsub.f32 %v3810, 1.0
      %vm3812 = vcmp.gt.f32.partialorder %v3811, 0.0
      %v3813 = vsel %vm3812, %v3806, %v3803
      %v3814 = vsel %vm3812, %v3804, %v3806
      %v3815 = vadd.f32 %v3813, %v3814
      %v3816 = vmul.f32 %v3815, 0.5
      %v3817 = vsub.f32 %v3757, %v3816
      %v3818 = vmax.f32 %v3817, 0.0
      %3819 = vadd.xlane.f32.xlu0 %v3818
      %v3820 = vpop.xlane.xlu0 %3819
      %v3821 = vsub.f32 %v3820, 1.0
      %vm3822 = vcmp.gt.f32.partialorder %v3821, 0.0
      %v3823 = vsel %vm3822, %v3816, %v3813
      %v3824 = vsel %vm3822, %v3814, %v3816
      %v3825 = vadd.f32 %v3823, %v3824
      %v3826 = vmul.f32 %v3825, 0.5
      %v3827 = vsub.f32 %v3757, %v3826
      %v3828 = vmax.f32 %v3827, 0.0
      %3829 = vadd.xlane.f32.xlu0 %v3828
      %v3830 = vpop.xlane.xlu0 %3829
      %v3831 = vsub.f32 %v3830, 1.0
      %vm3832 = vcmp.gt.f32.partialorder %v3831, 0.0
      %v3833 = vsel %vm3832, %v3826, %v3823
      %v3834 = vsel %vm3832, %v3824, %v3826
      %v3835 = vadd.f32 %v3833, %v3834
      %v3836 = vmul.f32 %v3835, 0.5
      %v3837 = vsub.f32 %v3757, %v3836
      %v3838 = vmax.f32 %v3837, 0.0
      %3839 = vadd.xlane.f32.xlu0 %v3838
      %v3840 = vpop.xlane.xlu0 %3839
      %v3841 = vsub.f32 %v3840, 1.0
      %vm3842 = vcmp.gt.f32.partialorder %v3841, 0.0
      %v3843 = vsel %vm3842, %v3836, %v3833
      %v3844 = vsel %vm3842, %v3834, %v3836
      %v3845 = vadd.f32 %v3843, %v3844
      %v3846 = vmul.f32 %v3845, 0.5
      %v3847 = vsub.f32 %v3757, %v3846
      %v3848 = vmax.f32 %v3847, 0.0
      %3849 = vadd.xlane.f32.xlu0 %v3848
      %v3850 = vpop.xlane.xlu0 %3849
      %v3851 = vsub.f32 %v3850, 1.0
      %vm3852 = vcmp.gt.f32.partialorder %v3851, 0.0
      %v3853 = vsel %vm3852, %v3846, %v3843
      %v3854 = vsel %vm3852, %v3844, %v3846
      %v3855 = vadd.f32 %v3853, %v3854
      %v3856 = vmul.f32 %v3855, 0.5
      %v3857 = vsub.f32 %v3757, %v3856
      %v3858 = vmax.f32 %v3857, 0.0
      %3859 = vadd.xlane.f32.xlu0 %v3858
      %v3860 = vpop.xlane.xlu0 %3859
      %v3861 = vsub.f32 %v3860, 1.0
      %vm3862 = vcmp.gt.f32.partialorder %v3861, 0.0
      %v3863 = vsel %vm3862, %v3856, %v3853
      %v3864 = vsel %vm3862, %v3854, %v3856
      %v3865 = vadd.f32 %v3863, %v3864
      %v3866 = vmul.f32 %v3865, 0.5
      %v3867 = vsub.f32 %v3757, %v3866
      %v3868 = vmax.f32 %v3867, 0.0
      %3869 = vadd.xlane.f32.xlu0 %v3868
      %v3870 = vpop.xlane.xlu0 %3869
      %v3871 = vsub.f32 %v3870, 1.0
      %vm3872 = vcmp.gt.f32.partialorder %v3871, 0.0
      %v3873 = vsel %vm3872, %v3866, %v3863
      %v3874 = vsel %vm3872, %v3864, %v3866
      %v3875 = vadd.f32 %v3873, %v3874
      %v3876 = vmul.f32 %v3875, 0.5
      %v3877 = vsub.f32 %v3757, %v3876
      %v3878 = vmax.f32 %v3877, 0.0
      %3879 = vadd.xlane.f32.xlu0 %v3878
      %v3880 = vpop.xlane.xlu0 %3879
      %v3881 = vsub.f32 %v3880, 1.0
      %vm3882 = vcmp.gt.f32.partialorder %v3881, 0.0
      %v3883 = vsel %vm3882, %v3876, %v3873
      %v3884 = vsel %vm3882, %v3874, %v3876
      %v3885 = vadd.f32 %v3883, %v3884
      %v3886 = vmul.f32 %v3885, 0.5
      %v3887 = vsub.f32 %v3757, %v3886
      %v3888 = vmax.f32 %v3887, 0.0
      %3889 = vadd.xlane.f32.xlu0 %v3888
      %v3890 = vpop.xlane.xlu0 %3889
      %v3891 = vsub.f32 %v3890, 1.0
      %vm3892 = vcmp.gt.f32.partialorder %v3891, 0.0
      %v3893 = vsel %vm3892, %v3886, %v3883
      %v3894 = vsel %vm3892, %v3884, %v3886
      %v3895 = vadd.f32 %v3893, %v3894
      %v3896 = vmul.f32 %v3895, 0.5
      %v3897 = vsub.f32 %v3757, %v3896
      %v3898 = vmax.f32 %v3897, 0.0
      %3899 = vadd.xlane.f32.xlu0 %v3898
      %v3900 = vpop.xlane.xlu0 %3899
      %v3901 = vsub.f32 %v3900, 1.0
      %vm3902 = vcmp.gt.f32.partialorder %v3901, 0.0
      %v3903 = vsel %vm3902, %v3896, %v3893
      %v3904 = vsel %vm3902, %v3894, %v3896
      %v3905 = vadd.f32 %v3903, %v3904
      %v3906 = vmul.f32 %v3905, 0.5
      %v3907 = vsub.f32 %v3757, %v3906
      %v3908 = vmax.f32 %v3907, 0.0
      %3909 = vadd.xlane.f32.xlu0 %v3908
      %v3910 = vpop.xlane.xlu0 %3909
      %v3911 = vsub.f32 %v3910, 1.0
      %vm3912 = vcmp.gt.f32.partialorder %v3911, 0.0
      %v3913 = vsel %vm3912, %v3906, %v3903
      %v3914 = vsel %vm3912, %v3904, %v3906
      %v3915 = vadd.f32 %v3913, %v3914
      %v3916 = vmul.f32 %v3915, 0.5
      %v3917 = vsub.f32 %v3757, %v3916
      %v3918 = vmax.f32 %v3917, 0.0
      %3919 = vadd.xlane.f32.xlu0 %v3918
      %v3920 = vpop.xlane.xlu0 %3919
      %v3921 = vsub.f32 %v3920, 1.0
      %vm3922 = vcmp.gt.f32.partialorder %v3921, 0.0
      %v3923 = vsel %vm3922, %v3916, %v3913
      %v3924 = vsel %vm3922, %v3914, %v3916
      %v3925 = vadd.f32 %v3923, %v3924
      %v3926 = vmul.f32 %v3925, 0.5
      %vm3927 = vcmp.ge.f32.partialorder %v3757, %v3926
      %v3928 = vsel %vm3927, 1, 0
      %v3929 = vcvt.s32.f32 %v3928
      %3930 = vadd.xlane.f32.xlu0 %v3929
      %v3931 = vpop.xlane.xlu0 %3930
      %v3932 = vmax.f32 %v3931, 1.0
      %v3933 = vmul.f32 %v3757, %v3929
      %3934 = vadd.xlane.f32.xlu0 %v3933
      %v3935 = vpop.xlane.xlu0 %3934
      %v3936 = vsub.f32 %v3935, 1.0
      %v3937 = vrcp.pop %v3932
      %v3938 = vmul.f32 %v3936, %v3937
      %vm3939 = vcmp.ge.f32.partialorder %v3757, %v3938
      %v3940 = vsel %vm3939, 1, 0
      %v3941 = vcvt.s32.f32 %v3940
      %3942 = vadd.xlane.f32.xlu0 %v3941
      %v3943 = vpop.xlane.xlu0 %3942
      %v3944 = vmax.f32 %v3943, 1.0
      %v3945 = vmul.f32 %v3757, %v3941
      %3946 = vadd.xlane.f32.xlu0 %v3945
      %v3947 = vpop.xlane.xlu0 %3946
      %v3948 = vsub.f32 %v3947, 1.0
      %v3949 = vrcp.pop %v3944
      %v3950 = vmul.f32 %v3948, %v3949
      %v3951 = vsub.f32 %v3757, %v3950
      %v3952 = vmax.f32 %v3951, 0.0
      %s3953 = scalar_lea.vmem %s553, 8
      %3954 = vst [vmem:[%s3953] sm:$0xff] %v3952
      %v3963 = vrot.slane %v3336, 7
      %v3964 = vsel %vm1460, %v3963, %v3335
      %v3965 = vrot.slane %v3337, 6
      %v3966 = vsel %vm1463, %v3965, %v3964
      %v3967 = vrot.slane %v3338, 5
      %v3968 = vsel %vm1466, %v3967, %v3966
      %v3969 = vrot.slane %v3339, 4
      %v3970 = vsel %vm1469, %v3969, %v3968
      %v3971 = vrot.slane %v3340, 3
      %v3972 = vsel %vm1472, %v3971, %v3970
      %v3973 = vrot.slane %v3341, 2
      %v3974 = vsel %vm1475, %v3973, %v3972
      %v3975 = vrot.slane %v3342, 1
      %v3976 = vsel %vm1478, %v3975, %v3974
      %s3978 = scalar_lea.vmem %s562, 8
      %3979 = vst [vmem:[%s3978] sm:$0xff] %v3976
      %s3980 = scalar_lea.vmem %s526, 8
      %v3981 = vld [vmem:[%s3980] sm:$0xf]
      %v3982 = vunpack.c.l.bf16 %v3981
      %v3983 = vpack.c.bf16 %v3386, %v3386
      %v3984 = vpack.c.bf16 %v3426, %v3426
      %v3985 = vpack.c.bf16 %v3466, %v3466
      %v3986 = vpack.c.bf16 %v3506, %v3506
      %v3987 = vpack.c.bf16 %v3546, %v3546
      %v3988 = vpack.c.bf16 %v3586, %v3586
      %v3989 = vpack.c.bf16 %v3626, %v3626
      %v3990 = vpack.c.bf16 %v3666, %v3666
      %v3999 = vunpack.c.l.b16 %v3983
      %v4000 = vunpack.c.l.b16 %v3984
      %v4001 = vunpack.c.l.b16 %v3985
      %v4002 = vunpack.c.l.b16 %v3986
      %v4003 = vunpack.c.l.b16 %v3987
      %v4004 = vunpack.c.l.b16 %v3988
      %v4005 = vunpack.c.l.b16 %v3989
      %v4006 = vunpack.c.l.b16 %v3990
      %v4007 = vrot.slane %v4000, 7
      %v4008 = vsel %vm1460, %v4007, %v3999
      %v4009 = vrot.slane %v4001, 6
      %v4010 = vsel %vm1463, %v4009, %v4008
      %v4011 = vrot.slane %v4002, 5
      %v4012 = vsel %vm1466, %v4011, %v4010
      %v4013 = vrot.slane %v4003, 4
      %v4014 = vsel %vm1469, %v4013, %v4012
      %v4015 = vrot.slane %v4004, 3
      %v4016 = vsel %vm1472, %v4015, %v4014
      %v4017 = vrot.slane %v4005, 2
      %v4018 = vsel %vm1475, %v4017, %v4016
      %v4019 = vrot.slane %v4006, 1
      %v4020 = vsel %vm1478, %v4019, %v4018
      %v4021 = vpack.c.b16 %v4020, %v4020
      %v4023 = vsel %vm770, %v4021, 0
      %4025 = vmatprep.subr.bf16.mxu0 0
      %4026 = vmatpush1.bf16.msra.mxu0 %v766
      %4027 = vmatprep.subr.bf16.mxu0 0
      %4028 = vmatpush1.bf16.msra.mxu0 %v767
      %4029 = vmatprep.subr.bf16.mxu0 0
      %4030 = vmatpush1.bf16.msra.mxu0 0
      %4031 = vmatprep.subr.bf16.mxu0 0
      %4032 = vmatpush1.bf16.msra.mxu0 0
      %4033 = vmatprep.subr.bf16.mxu0 0
      %4034 = vmatpush1.bf16.msra.mxu0 0
      %4035 = vmatprep.subr.bf16.mxu0 0
      %4036 = vmatpush1.bf16.msra.mxu0 0
      %4037 = vmatprep.subr.bf16.mxu0 0
      %4038 = vmatpush1.bf16.msra.mxu0 0
      %4039 = vmatprep.subr.bf16.mxu0 0
      %4040 = vmatpush1.bf16.msra.mxu0 0
      %4041 = vmatprep.subr.bf16.mxu0 0
      %4042 = vmatpush1.bf16.msra.mxu0 0
      %4043 = vmatprep.subr.bf16.mxu0 0
      %4044 = vmatpush1.bf16.msra.mxu0 0
      %4045 = vmatprep.subr.bf16.mxu0 0
      %4046 = vmatpush1.bf16.msra.mxu0 0
      %4047 = vmatprep.subr.bf16.mxu0 0
      %4048 = vmatpush1.bf16.msra.mxu0 0
      %4049 = vmatprep.subr.bf16.mxu0 0
      %4050 = vmatpush1.bf16.msra.mxu0 0
      %4051 = vmatprep.subr.bf16.mxu0 0
      %4052 = vmatpush1.bf16.msra.mxu0 0
      %4053 = vmatprep.subr.bf16.mxu0 0
      %4054 = vmatpush1.bf16.msra.mxu0 0
      %4055 = vmatprep.subr.bf16.mxu0 0
      %4056 = vmatpush1.bf16.msra.mxu0 0
      %4057 = vmatprep.mubr.bf16.mxu0 0
      %4058 = vmatmul.mubr.bf16.gmra.mrb[0].mxu0 %v4023
      %v4059 = vpop.f32.mrb[0].mxu0
      %v4060 = vadd.f32 0.0, %v4059
      %v4061 = vpop.f32.mrb[0].mxu0
      %v4062 = vpop.f32.mrb[0].mxu0
      %v4063 = vpop.f32.mrb[0].mxu0
      %4064 = vdwg.mxu0
      %v4065 = vadd.f32 %v3982, %v4060
      %4066 = vmatprep.subr.bf16.mxu0 0
      %4067 = vmatpush1.bf16.msra.mxu0 %v830
      %4068 = vmatprep.subr.bf16.mxu0 0
      %4069 = vmatpush1.bf16.msra.mxu0 %v831
      %4070 = vmatprep.subr.bf16.mxu0 0
      %4071 = vmatpush1.bf16.msra.mxu0 0
      %4072 = vmatprep.subr.bf16.mxu0 0
      %4073 = vmatpush1.bf16.msra.mxu0 0
      %4074 = vmatprep.subr.bf16.mxu0 0
      %4075 = vmatpush1.bf16.msra.mxu0 0
      %4076 = vmatprep.subr.bf16.mxu0 0
      %4077 = vmatpush1.bf16.msra.mxu0 0
      %4078 = vmatprep.subr.bf16.mxu0 0
      %4079 = vmatpush1.bf16.msra.mxu0 0
      %4080 = vmatprep.subr.bf16.mxu0 0
      %4081 = vmatpush1.bf16.msra.mxu0 0
      %4082 = vmatprep.subr.bf16.mxu0 0
      %4083 = vmatpush1.bf16.msra.mxu0 0
      %4084 = vmatprep.subr.bf16.mxu0 0
      %4085 = vmatpush1.bf16.msra.mxu0 0
      %4086 = vmatprep.subr.bf16.mxu0 0
      %4087 = vmatpush1.bf16.msra.mxu0 0
      %4088 = vmatprep.subr.bf16.mxu0 0
      %4089 = vmatpush1.bf16.msra.mxu0 0
      %4090 = vmatprep.subr.bf16.mxu0 0
      %4091 = vmatpush1.bf16.msra.mxu0 0
      %4092 = vmatprep.subr.bf16.mxu0 0
      %4093 = vmatpush1.bf16.msra.mxu0 0
      %4094 = vmatprep.subr.bf16.mxu0 0
      %4095 = vmatpush1.bf16.msra.mxu0 0
      %4096 = vmatprep.subr.bf16.mxu0 0
      %4097 = vmatpush1.bf16.msra.mxu0 0
      %4098 = vmatprep.mubr.bf16.mxu0 0
      %4099 = vmatmul.mubr.bf16.gmra.mrb[0].mxu0 %v3676
      %v4100 = vpop.f32.mrb[0].mxu0
      %v4101 = vadd.f32 %v820, %v4100
      %v4102 = vpop.f32.mrb[0].mxu0
      %v4103 = vpop.f32.mrb[0].mxu0
      %v4104 = vpop.f32.mrb[0].mxu0
      %4105 = vdwg.mxu0
      %v4106 = vadd.f32 %v4065, %v4101
      %v4107 = vxor.u32 %v4106, 2147483648
      %v4108 = vmul.f32 %v4107, 1.442695
      %v4109 = vpow.pop %v4108
      %v4110 = vadd.f32 %v4109, 1.0
      %v4111 = vrcp.pop %v4110
      %v4112 = vmul.f32 1.0, %v4111
      %4114 = vrot.lane.b32.xlu0 %v4101, 64
      %v4115 = vpop.permute.xlu0 %4114
      %v4117 = vmul.f32 %v4112, %v4115
      %4119 = vrot.lane.b32.xlu0 %v4117, 64
      %v4120 = vpop.permute.xlu0 %4119
      %v4122 = vadd.f32 %v4065, %v4120
      %v4123 = vtanh.pop %v4122
      %v4124 = vsub.f32 1.0, %v4112
      %4126 = vrot.lane.b32.xlu0 %v4123, 96
      %v4127 = vpop.permute.xlu0 %4126
      %v4129 = vmul.f32 %v4124, %v4127
      %v4130 = vmul.f32 %v4112, %v2782
      %v4131 = vadd.f32 %v4129, %v4130
      %v4133 = vcombine.high %v4131, %v4131
      %v4135 = vunpack.c.l.s4 1966171168
      %v4136 = vunpack.c.0.s8 %v4135
      %v4137 = vlaneseq
      %v4138 = vshrl.u32 %v4137, 7
      %v4139 = vsub.s32 %v4136, %v4138
      %v4140 = vrot.slane %v4131, %v4139
      %v4142 = vunpack.c.l.s4 1966171168
      %v4143 = vunpack.c.0.s8 %v4142
      %v4144 = vlaneseq
      %v4145 = vshrl.u32 %v4144, 7
      %v4146 = vsub.s32 %v4143, %v4145
      %v4147 = vrot.slane %v4133, %v4146
      %v4148 = vcombine.high %v4140, %v4140
      %v4149 = vcombine.high %v4147, %v4147
      %v4151 = vunpack.c.l.s4 1966171168
      %v4152 = vunpack.c.0.s8 %v4151
      %v4153 = vlaneseq
      %v4154 = vshrl.u32 %v4153, 7
      %v4155 = vsub.s32 %v4152, %v4154
      %v4156 = vrot.slane %v4140, %v4155
      %v4158 = vunpack.c.l.s4 1966171168
      %v4159 = vunpack.c.0.s8 %v4158
      %v4160 = vlaneseq
      %v4161 = vshrl.u32 %v4160, 7
      %v4162 = vsub.s32 %v4159, %v4161
      %v4163 = vrot.slane %v4147, %v4162
      %v4165 = vunpack.c.l.s4 1966171168
      %v4166 = vunpack.c.0.s8 %v4165
      %v4167 = vlaneseq
      %v4168 = vshrl.u32 %v4167, 7
      %v4169 = vsub.s32 %v4166, %v4168
      %v4170 = vrot.slane %v4148, %v4169
      %v4172 = vunpack.c.l.s4 1966171168
      %v4173 = vunpack.c.0.s8 %v4172
      %v4174 = vlaneseq
      %v4175 = vshrl.u32 %v4174, 7
      %v4176 = vsub.s32 %v4173, %v4175
      %v4177 = vrot.slane %v4149, %v4176
      %v4178 = vcombine.high %v4156, %v4156
      %v4179 = vcombine.high %v4163, %v4163
      %v4180 = vcombine.high %v4170, %v4170
      %v4181 = vcombine.high %v4177, %v4177
      %v4190 = vpack.c.bf16 %v4156, %v4156
      %v4191 = vpack.c.bf16 %v4170, %v4170
      %v4192 = vpack.c.bf16 %v4178, %v4178
      %v4193 = vpack.c.bf16 %v4180, %v4180
      %v4194 = vpack.c.bf16 %v4163, %v4163
      %v4195 = vpack.c.bf16 %v4177, %v4177
      %v4196 = vpack.c.bf16 %v4179, %v4179
      %v4197 = vpack.c.bf16 %v4181, %v4181
      %4199 = vrot.lane.b32.xlu0 %v4190, 96
      %v4200 = vpop.permute.xlu0 %4199
      %v4202 = vsel %vm770, %v4200, 0
      %4204 = vmatprep.subr.bf16.mxu0 0
      %4205 = vmatpush1.bf16.msra.mxu0 %v984
      %4206 = vmatprep.subr.bf16.mxu0 0
      %4207 = vmatpush1.bf16.msra.mxu0 %v985
      %4208 = vmatprep.subr.bf16.mxu0 0
      %4209 = vmatpush1.bf16.msra.mxu0 0
      %4210 = vmatprep.subr.bf16.mxu0 0
      %4211 = vmatpush1.bf16.msra.mxu0 0
      %4212 = vmatprep.subr.bf16.mxu0 0
      %4213 = vmatpush1.bf16.msra.mxu0 0
      %4214 = vmatprep.subr.bf16.mxu0 0
      %4215 = vmatpush1.bf16.msra.mxu0 0
      %4216 = vmatprep.subr.bf16.mxu0 0
      %4217 = vmatpush1.bf16.msra.mxu0 0
      %4218 = vmatprep.subr.bf16.mxu0 0
      %4219 = vmatpush1.bf16.msra.mxu0 0
      %4220 = vmatprep.subr.bf16.mxu0 0
      %4221 = vmatpush1.bf16.msra.mxu0 0
      %4222 = vmatprep.subr.bf16.mxu0 0
      %4223 = vmatpush1.bf16.msra.mxu0 0
      %4224 = vmatprep.subr.bf16.mxu0 0
      %4225 = vmatpush1.bf16.msra.mxu0 0
      %4226 = vmatprep.subr.bf16.mxu0 0
      %4227 = vmatpush1.bf16.msra.mxu0 0
      %4228 = vmatprep.subr.bf16.mxu0 0
      %4229 = vmatpush1.bf16.msra.mxu0 0
      %4230 = vmatprep.subr.bf16.mxu0 0
      %4231 = vmatpush1.bf16.msra.mxu0 0
      %4232 = vmatprep.subr.bf16.mxu0 0
      %4233 = vmatpush1.bf16.msra.mxu0 0
      %4234 = vmatprep.subr.bf16.mxu0 0
      %4235 = vmatpush1.bf16.msra.mxu0 0
      %4236 = vmatprep.mubr.bf16.mxu0 0
      %4237 = vmatmul.mubr.bf16.gmra.mrb[0].mxu0 %v4202
      %v4238 = vpop.f32.mrb[0].mxu0
      %v4239 = vadd.f32 0.0, %v4238
      %v4240 = vpop.f32.mrb[0].mxu0
      %v4241 = vpop.f32.mrb[0].mxu0
      %v4242 = vpop.f32.mrb[0].mxu0
      %4243 = vdwg.mxu0
      %4245 = vrot.lane.b32.xlu0 %v4191, 96
      %v4246 = vpop.permute.xlu0 %4245
      %v4248 = vsel %vm770, %v4246, 0
      %4250 = vmatprep.subr.bf16.mxu0 0
      %4251 = vmatpush1.bf16.msra.mxu0 %v1042
      %4252 = vmatprep.subr.bf16.mxu0 0
      %4253 = vmatpush1.bf16.msra.mxu0 %v1043
      %4254 = vmatprep.subr.bf16.mxu0 0
      %4255 = vmatpush1.bf16.msra.mxu0 0
      %4256 = vmatprep.subr.bf16.mxu0 0
      %4257 = vmatpush1.bf16.msra.mxu0 0
      %4258 = vmatprep.subr.bf16.mxu0 0
      %4259 = vmatpush1.bf16.msra.mxu0 0
      %4260 = vmatprep.subr.bf16.mxu0 0
      %4261 = vmatpush1.bf16.msra.mxu0 0
      %4262 = vmatprep.subr.bf16.mxu0 0
      %4263 = vmatpush1.bf16.msra.mxu0 0
      %4264 = vmatprep.subr.bf16.mxu0 0
      %4265 = vmatpush1.bf16.msra.mxu0 0
      %4266 = vmatprep.subr.bf16.mxu0 0
      %4267 = vmatpush1.bf16.msra.mxu0 0
      %4268 = vmatprep.subr.bf16.mxu0 0
      %4269 = vmatpush1.bf16.msra.mxu0 0
      %4270 = vmatprep.subr.bf16.mxu0 0
      %4271 = vmatpush1.bf16.msra.mxu0 0
      %4272 = vmatprep.subr.bf16.mxu0 0
      %4273 = vmatpush1.bf16.msra.mxu0 0
      %4274 = vmatprep.subr.bf16.mxu0 0
      %4275 = vmatpush1.bf16.msra.mxu0 0
      %4276 = vmatprep.subr.bf16.mxu0 0
      %4277 = vmatpush1.bf16.msra.mxu0 0
      %4278 = vmatprep.subr.bf16.mxu0 0
      %4279 = vmatpush1.bf16.msra.mxu0 0
      %4280 = vmatprep.subr.bf16.mxu0 0
      %4281 = vmatpush1.bf16.msra.mxu0 0
      %4282 = vmatprep.mubr.bf16.mxu0 0
      %4283 = vmatmul.mubr.bf16.gmra.mrb[0].mxu0 %v4248
      %v4284 = vpop.f32.mrb[0].mxu0
      %v4285 = vadd.f32 0.0, %v4284
      %v4286 = vpop.f32.mrb[0].mxu0
      %v4287 = vpop.f32.mrb[0].mxu0
      %v4288 = vpop.f32.mrb[0].mxu0
      %4289 = vdwg.mxu0
      %4291 = vrot.lane.b32.xlu0 %v4192, 96
      %v4292 = vpop.permute.xlu0 %4291
      %v4294 = vsel %vm770, %v4292, 0
      %4296 = vmatprep.subr.bf16.mxu0 0
      %4297 = vmatpush1.bf16.msra.mxu0 %v1100
      %4298 = vmatprep.subr.bf16.mxu0 0
      %4299 = vmatpush1.bf16.msra.mxu0 %v1101
      %4300 = vmatprep.subr.bf16.mxu0 0
      %4301 = vmatpush1.bf16.msra.mxu0 0
      %4302 = vmatprep.subr.bf16.mxu0 0
      %4303 = vmatpush1.bf16.msra.mxu0 0
      %4304 = vmatprep.subr.bf16.mxu0 0
      %4305 = vmatpush1.bf16.msra.mxu0 0
      %4306 = vmatprep.subr.bf16.mxu0 0
      %4307 = vmatpush1.bf16.msra.mxu0 0
      %4308 = vmatprep.subr.bf16.mxu0 0
      %4309 = vmatpush1.bf16.msra.mxu0 0
      %4310 = vmatprep.subr.bf16.mxu0 0
      %4311 = vmatpush1.bf16.msra.mxu0 0
      %4312 = vmatprep.subr.bf16.mxu0 0
      %4313 = vmatpush1.bf16.msra.mxu0 0
      %4314 = vmatprep.subr.bf16.mxu0 0
      %4315 = vmatpush1.bf16.msra.mxu0 0
      %4316 = vmatprep.subr.bf16.mxu0 0
      %4317 = vmatpush1.bf16.msra.mxu0 0
      %4318 = vmatprep.subr.bf16.mxu0 0
      %4319 = vmatpush1.bf16.msra.mxu0 0
      %4320 = vmatprep.subr.bf16.mxu0 0
      %4321 = vmatpush1.bf16.msra.mxu0 0
      %4322 = vmatprep.subr.bf16.mxu0 0
      %4323 = vmatpush1.bf16.msra.mxu0 0
      %4324 = vmatprep.subr.bf16.mxu0 0
      %4325 = vmatpush1.bf16.msra.mxu0 0
      %4326 = vmatprep.subr.bf16.mxu0 0
      %4327 = vmatpush1.bf16.msra.mxu0 0
      %4328 = vmatprep.mubr.bf16.mxu0 0
      %4329 = vmatmul.mubr.bf16.gmra.mrb[0].mxu0 %v4294
      %v4330 = vpop.f32.mrb[0].mxu0
      %v4331 = vadd.f32 0.0, %v4330
      %v4332 = vpop.f32.mrb[0].mxu0
      %v4333 = vpop.f32.mrb[0].mxu0
      %v4334 = vpop.f32.mrb[0].mxu0
      %4335 = vdwg.mxu0
      %4337 = vrot.lane.b32.xlu0 %v4193, 96
      %v4338 = vpop.permute.xlu0 %4337
      %v4340 = vsel %vm770, %v4338, 0
      %4342 = vmatprep.subr.bf16.mxu0 0
      %4343 = vmatpush1.bf16.msra.mxu0 %v1158
      %4344 = vmatprep.subr.bf16.mxu0 0
      %4345 = vmatpush1.bf16.msra.mxu0 %v1159
      %4346 = vmatprep.subr.bf16.mxu0 0
      %4347 = vmatpush1.bf16.msra.mxu0 0
      %4348 = vmatprep.subr.bf16.mxu0 0
      %4349 = vmatpush1.bf16.msra.mxu0 0
      %4350 = vmatprep.subr.bf16.mxu0 0
      %4351 = vmatpush1.bf16.msra.mxu0 0
      %4352 = vmatprep.subr.bf16.mxu0 0
      %4353 = vmatpush1.bf16.msra.mxu0 0
      %4354 = vmatprep.subr.bf16.mxu0 0
      %4355 = vmatpush1.bf16.msra.mxu0 0
      %4356 = vmatprep.subr.bf16.mxu0 0
      %4357 = vmatpush1.bf16.msra.mxu0 0
      %4358 = vmatprep.subr.bf16.mxu0 0
      %4359 = vmatpush1.bf16.msra.mxu0 0
      %4360 = vmatprep.subr.bf16.mxu0 0
      %4361 = vmatpush1.bf16.msra.mxu0 0
      %4362 = vmatprep.subr.bf16.mxu0 0
      %4363 = vmatpush1.bf16.msra.mxu0 0
      %4364 = vmatprep.subr.bf16.mxu0 0
      %4365 = vmatpush1.bf16.msra.mxu0 0
      %4366 = vmatprep.subr.bf16.mxu0 0
      %4367 = vmatpush1.bf16.msra.mxu0 0
      %4368 = vmatprep.subr.bf16.mxu0 0
      %4369 = vmatpush1.bf16.msra.mxu0 0
      %4370 = vmatprep.subr.bf16.mxu0 0
      %4371 = vmatpush1.bf16.msra.mxu0 0
      %4372 = vmatprep.subr.bf16.mxu0 0
      %4373 = vmatpush1.bf16.msra.mxu0 0
      %4374 = vmatprep.mubr.bf16.mxu0 0
      %4375 = vmatmul.mubr.bf16.gmra.mrb[0].mxu0 %v4340
      %v4376 = vpop.f32.mrb[0].mxu0
      %v4377 = vadd.f32 0.0, %v4376
      %v4378 = vpop.f32.mrb[0].mxu0
      %v4379 = vpop.f32.mrb[0].mxu0
      %v4380 = vpop.f32.mrb[0].mxu0
      %4381 = vdwg.mxu0
      %4383 = vrot.lane.b32.xlu0 %v4194, 96
      %v4384 = vpop.permute.xlu0 %4383
      %v4386 = vsel %vm770, %v4384, 0
      %4388 = vmatprep.subr.bf16.mxu0 0
      %4389 = vmatpush1.bf16.msra.mxu0 %v1216
      %4390 = vmatprep.subr.bf16.mxu0 0
      %4391 = vmatpush1.bf16.msra.mxu0 %v1217
      %4392 = vmatprep.subr.bf16.mxu0 0
      %4393 = vmatpush1.bf16.msra.mxu0 0
      %4394 = vmatprep.subr.bf16.mxu0 0
      %4395 = vmatpush1.bf16.msra.mxu0 0
      %4396 = vmatprep.subr.bf16.mxu0 0
      %4397 = vmatpush1.bf16.msra.mxu0 0
      %4398 = vmatprep.subr.bf16.mxu0 0
      %4399 = vmatpush1.bf16.msra.mxu0 0
      %4400 = vmatprep.subr.bf16.mxu0 0
      %4401 = vmatpush1.bf16.msra.mxu0 0
      %4402 = vmatprep.subr.bf16.mxu0 0
      %4403 = vmatpush1.bf16.msra.mxu0 0
      %4404 = vmatprep.subr.bf16.mxu0 0
      %4405 = vmatpush1.bf16.msra.mxu0 0
      %4406 = vmatprep.subr.bf16.mxu0 0
      %4407 = vmatpush1.bf16.msra.mxu0 0
      %4408 = vmatprep.subr.bf16.mxu0 0
      %4409 = vmatpush1.bf16.msra.mxu0 0
      %4410 = vmatprep.subr.bf16.mxu0 0
      %4411 = vmatpush1.bf16.msra.mxu0 0
      %4412 = vmatprep.subr.bf16.mxu0 0
      %4413 = vmatpush1.bf16.msra.mxu0 0
      %4414 = vmatprep.subr.bf16.mxu0 0
      %4415 = vmatpush1.bf16.msra.mxu0 0
      %4416 = vmatprep.subr.bf16.mxu0 0
      %4417 = vmatpush1.bf16.msra.mxu0 0
      %4418 = vmatprep.subr.bf16.mxu0 0
      %4419 = vmatpush1.bf16.msra.mxu0 0
      %4420 = vmatprep.mubr.bf16.mxu0 0
      %4421 = vmatmul.mubr.bf16.gmra.mrb[0].mxu0 %v4386
      %v4422 = vpop.f32.mrb[0].mxu0
      %v4423 = vadd.f32 0.0, %v4422
      %v4424 = vpop.f32.mrb[0].mxu0
      %v4425 = vpop.f32.mrb[0].mxu0
      %v4426 = vpop.f32.mrb[0].mxu0
      %4427 = vdwg.mxu0
      %4429 = vrot.lane.b32.xlu0 %v4195, 96
      %v4430 = vpop.permute.xlu0 %4429
      %v4432 = vsel %vm770, %v4430, 0
      %4434 = vmatprep.subr.bf16.mxu0 0
      %4435 = vmatpush1.bf16.msra.mxu0 %v1274
      %4436 = vmatprep.subr.bf16.mxu0 0
      %4437 = vmatpush1.bf16.msra.mxu0 %v1275
      %4438 = vmatprep.subr.bf16.mxu0 0
      %4439 = vmatpush1.bf16.msra.mxu0 0
      %4440 = vmatprep.subr.bf16.mxu0 0
      %4441 = vmatpush1.bf16.msra.mxu0 0
      %4442 = vmatprep.subr.bf16.mxu0 0
      %4443 = vmatpush1.bf16.msra.mxu0 0
      %4444 = vmatprep.subr.bf16.mxu0 0
      %4445 = vmatpush1.bf16.msra.mxu0 0
      %4446 = vmatprep.subr.bf16.mxu0 0
      %4447 = vmatpush1.bf16.msra.mxu0 0
      %4448 = vmatprep.subr.bf16.mxu0 0
      %4449 = vmatpush1.bf16.msra.mxu0 0
      %4450 = vmatprep.subr.bf16.mxu0 0
      %4451 = vmatpush1.bf16.msra.mxu0 0
      %4452 = vmatprep.subr.bf16.mxu0 0
      %4453 = vmatpush1.bf16.msra.mxu0 0
      %4454 = vmatprep.subr.bf16.mxu0 0
      %4455 = vmatpush1.bf16.msra.mxu0 0
      %4456 = vmatprep.subr.bf16.mxu0 0
      %4457 = vmatpush1.bf16.msra.mxu0 0
      %4458 = vmatprep.subr.bf16.mxu0 0
      %4459 = vmatpush1.bf16.msra.mxu0 0
      %4460 = vmatprep.subr.bf16.mxu0 0
      %4461 = vmatpush1.bf16.msra.mxu0 0
      %4462 = vmatprep.subr.bf16.mxu0 0
      %4463 = vmatpush1.bf16.msra.mxu0 0
      %4464 = vmatprep.subr.bf16.mxu0 0
      %4465 = vmatpush1.bf16.msra.mxu0 0
      %4466 = vmatprep.mubr.bf16.mxu0 0
      %4467 = vmatmul.mubr.bf16.gmra.mrb[0].mxu0 %v4432
      %v4468 = vpop.f32.mrb[0].mxu0
      %v4469 = vadd.f32 0.0, %v4468
      %v4470 = vpop.f32.mrb[0].mxu0
      %v4471 = vpop.f32.mrb[0].mxu0
      %v4472 = vpop.f32.mrb[0].mxu0
      %4473 = vdwg.mxu0
      %4475 = vrot.lane.b32.xlu0 %v4196, 96
      %v4476 = vpop.permute.xlu0 %4475
      %v4478 = vsel %vm770, %v4476, 0
      %4480 = vmatprep.subr.bf16.mxu0 0
      %4481 = vmatpush1.bf16.msra.mxu0 %v1332
      %4482 = vmatprep.subr.bf16.mxu0 0
      %4483 = vmatpush1.bf16.msra.mxu0 %v1333
      %4484 = vmatprep.subr.bf16.mxu0 0
      %4485 = vmatpush1.bf16.msra.mxu0 0
      %4486 = vmatprep.subr.bf16.mxu0 0
      %4487 = vmatpush1.bf16.msra.mxu0 0
      %4488 = vmatprep.subr.bf16.mxu0 0
      %4489 = vmatpush1.bf16.msra.mxu0 0
      %4490 = vmatprep.subr.bf16.mxu0 0
      %4491 = vmatpush1.bf16.msra.mxu0 0
      %4492 = vmatprep.subr.bf16.mxu0 0
      %4493 = vmatpush1.bf16.msra.mxu0 0
      %4494 = vmatprep.subr.bf16.mxu0 0
      %4495 = vmatpush1.bf16.msra.mxu0 0
      %4496 = vmatprep.subr.bf16.mxu0 0
      %4497 = vmatpush1.bf16.msra.mxu0 0
      %4498 = vmatprep.subr.bf16.mxu0 0
      %4499 = vmatpush1.bf16.msra.mxu0 0
      %4500 = vmatprep.subr.bf16.mxu0 0
      %4501 = vmatpush1.bf16.msra.mxu0 0
      %4502 = vmatprep.subr.bf16.mxu0 0
      %4503 = vmatpush1.bf16.msra.mxu0 0
      %4504 = vmatprep.subr.bf16.mxu0 0
      %4505 = vmatpush1.bf16.msra.mxu0 0
      %4506 = vmatprep.subr.bf16.mxu0 0
      %4507 = vmatpush1.bf16.msra.mxu0 0
      %4508 = vmatprep.subr.bf16.mxu0 0
      %4509 = vmatpush1.bf16.msra.mxu0 0
      %4510 = vmatprep.subr.bf16.mxu0 0
      %4511 = vmatpush1.bf16.msra.mxu0 0
      %4512 = vmatprep.mubr.bf16.mxu0 0
      %4513 = vmatmul.mubr.bf16.gmra.mrb[0].mxu0 %v4478
      %v4514 = vpop.f32.mrb[0].mxu0
      %v4515 = vadd.f32 0.0, %v4514
      %v4516 = vpop.f32.mrb[0].mxu0
      %v4517 = vpop.f32.mrb[0].mxu0
      %v4518 = vpop.f32.mrb[0].mxu0
      %4519 = vdwg.mxu0
      %4521 = vrot.lane.b32.xlu0 %v4197, 96
      %v4522 = vpop.permute.xlu0 %4521
      %v4524 = vsel %vm770, %v4522, 0
      %4526 = vmatprep.subr.bf16.mxu0 0
      %4527 = vmatpush1.bf16.msra.mxu0 %v1390
      %4528 = vmatprep.subr.bf16.mxu0 0
      %4529 = vmatpush1.bf16.msra.mxu0 %v1391
      %4530 = vmatprep.subr.bf16.mxu0 0
      %4531 = vmatpush1.bf16.msra.mxu0 0
      %4532 = vmatprep.subr.bf16.mxu0 0
      %4533 = vmatpush1.bf16.msra.mxu0 0
      %4534 = vmatprep.subr.bf16.mxu0 0
      %4535 = vmatpush1.bf16.msra.mxu0 0
      %4536 = vmatprep.subr.bf16.mxu0 0
      %4537 = vmatpush1.bf16.msra.mxu0 0
      %4538 = vmatprep.subr.bf16.mxu0 0
      %4539 = vmatpush1.bf16.msra.mxu0 0
      %4540 = vmatprep.subr.bf16.mxu0 0
      %4541 = vmatpush1.bf16.msra.mxu0 0
      %4542 = vmatprep.subr.bf16.mxu0 0
      %4543 = vmatpush1.bf16.msra.mxu0 0
      %4544 = vmatprep.subr.bf16.mxu0 0
      %4545 = vmatpush1.bf16.msra.mxu0 0
      %4546 = vmatprep.subr.bf16.mxu0 0
      %4547 = vmatpush1.bf16.msra.mxu0 0
      %4548 = vmatprep.subr.bf16.mxu0 0
      %4549 = vmatpush1.bf16.msra.mxu0 0
      %4550 = vmatprep.subr.bf16.mxu0 0
      %4551 = vmatpush1.bf16.msra.mxu0 0
      %4552 = vmatprep.subr.bf16.mxu0 0
      %4553 = vmatpush1.bf16.msra.mxu0 0
      %4554 = vmatprep.subr.bf16.mxu0 0
      %4555 = vmatpush1.bf16.msra.mxu0 0
      %4556 = vmatprep.subr.bf16.mxu0 0
      %4557 = vmatpush1.bf16.msra.mxu0 0
      %4558 = vmatprep.mubr.bf16.mxu0 0
      %4559 = vmatmul.mubr.bf16.gmra.mrb[0].mxu0 %v4524
      %v4560 = vpop.f32.mrb[0].mxu0
      %v4561 = vadd.f32 0.0, %v4560
      %v4562 = vpop.f32.mrb[0].mxu0
      %v4563 = vpop.f32.mrb[0].mxu0
      %v4564 = vpop.f32.mrb[0].mxu0
      %4565 = vdwg.mxu0
      %v4566 = vadd.f32 %v4239, %v1441
      %v4567 = vadd.f32 %v4285, %v1441
      %v4568 = vadd.f32 %v4331, %v1441
      %v4569 = vadd.f32 %v4377, %v1441
      %v4570 = vadd.f32 %v4423, %v1441
      %v4571 = vadd.f32 %v4469, %v1441
      %v4572 = vadd.f32 %v4515, %v1441
      %v4573 = vadd.f32 %v4561, %v1441
      %v4582 = vrot.slane %v4567, 7
      %v4583 = vsel %vm1460, %v4582, %v4566
      %v4584 = vrot.slane %v4568, 6
      %v4585 = vsel %vm1463, %v4584, %v4583
      %v4586 = vrot.slane %v4569, 5
      %v4587 = vsel %vm1466, %v4586, %v4585
      %v4588 = vrot.slane %v4570, 4
      %v4589 = vsel %vm1469, %v4588, %v4587
      %v4590 = vrot.slane %v4571, 3
      %v4591 = vsel %vm1472, %v4590, %v4589
      %v4592 = vrot.slane %v4572, 2
      %v4593 = vsel %vm1475, %v4592, %v4591
      %v4594 = vrot.slane %v4573, 1
      %v4595 = vsel %vm1478, %v4594, %v4593
      %4597 = vmax.xlane.f32.xlu0 %v4595
      %v4598 = vpop.xlane.xlu0 %4597
      %v4600 = vrot.slane %v4598, 1
      %v4601 = vrot.slane %v4598, 2
      %v4602 = vrot.slane %v4598, 3
      %v4603 = vrot.slane %v4598, 4
      %v4604 = vrot.slane %v4598, 5
      %v4605 = vrot.slane %v4598, 6
      %v4606 = vrot.slane %v4598, 7
      %v4615 = vsub.f32 %v4566, %v4598
      %v4616 = vsub.f32 %v4567, %v4600
      %v4617 = vsub.f32 %v4568, %v4601
      %v4618 = vsub.f32 %v4569, %v4602
      %v4619 = vsub.f32 %v4570, %v4603
      %v4620 = vsub.f32 %v4571, %v4604
      %v4621 = vsub.f32 %v4572, %v4605
      %v4622 = vsub.f32 %v4573, %v4606
      %v4623 = vmul.f32 %v4615, 1.442695
      %v4624 = vpow.pop %v4623
      %v4625 = vmul.f32 %v4616, 1.442695
      %v4626 = vpow.pop %v4625
      %v4627 = vmul.f32 %v4617, 1.442695
      %v4628 = vpow.pop %v4627
      %v4629 = vmul.f32 %v4618, 1.442695
      %v4630 = vpow.pop %v4629
      %v4631 = vmul.f32 %v4619, 1.442695
      %v4632 = vpow.pop %v4631
      %v4633 = vmul.f32 %v4620, 1.442695
      %v4634 = vpow.pop %v4633
      %v4635 = vmul.f32 %v4621, 1.442695
      %v4636 = vpow.pop %v4635
      %v4637 = vmul.f32 %v4622, 1.442695
      %v4638 = vpow.pop %v4637
      %v4647 = vrot.slane %v4626, 7
      %v4648 = vsel %vm1460, %v4647, %v4624
      %v4649 = vrot.slane %v4628, 6
      %v4650 = vsel %vm1463, %v4649, %v4648
      %v4651 = vrot.slane %v4630, 5
      %v4652 = vsel %vm1466, %v4651, %v4650
      %v4653 = vrot.slane %v4632, 4
      %v4654 = vsel %vm1469, %v4653, %v4652
      %v4655 = vrot.slane %v4634, 3
      %v4656 = vsel %vm1472, %v4655, %v4654
      %v4657 = vrot.slane %v4636, 2
      %v4658 = vsel %vm1475, %v4657, %v4656
      %v4659 = vrot.slane %v4638, 1
      %v4660 = vsel %vm1478, %v4659, %v4658
      %4662 = vadd.xlane.f32.xlu0 %v4660
      %v4663 = vpop.xlane.xlu0 %4662
      %v4664 = vrcp.pop %v4663
      %v4665 = vmul.f32 %v4663, %v4664
      %v4666 = vsub.f32 2.0, %v4665
      %v4667 = vmul.f32 %v4664, %v4666
      %v4669 = vrot.slane %v4667, 1
      %v4670 = vrot.slane %v4667, 2
      %v4671 = vrot.slane %v4667, 3
      %v4672 = vrot.slane %v4667, 4
      %v4673 = vrot.slane %v4667, 5
      %v4674 = vrot.slane %v4667, 6
      %v4675 = vrot.slane %v4667, 7
      %v4684 = vmul.f32 %v4624, %v4667
      %v4685 = vmul.f32 %v4626, %v4669
      %v4686 = vmul.f32 %v4628, %v4670
      %v4687 = vmul.f32 %v4630, %v4671
      %v4688 = vmul.f32 %v4632, %v4672
      %v4689 = vmul.f32 %v4634, %v4673
      %v4690 = vmul.f32 %v4636, %v4674
      %v4691 = vmul.f32 %v4638, %v4675
      %v4692 = vpack.c.bf16 %v4684, %v4684
      %v4693 = vpack.c.bf16 %v4685, %v4685
      %v4694 = vpack.c.bf16 %v4686, %v4686
      %v4695 = vpack.c.bf16 %v4687, %v4687
      %v4696 = vpack.c.bf16 %v4688, %v4688
      %v4697 = vpack.c.bf16 %v4689, %v4689
      %v4698 = vpack.c.bf16 %v4690, %v4690
      %v4699 = vpack.c.bf16 %v4691, %v4691
      %4700 = vmatprep.subr.bf16.mxu0 0
      %4701 = vmatpush1.bf16.msra.mxu0 %v1616
      %4702 = vmatprep.subr.bf16.mxu0 0
      %4703 = vmatpush1.bf16.msra.mxu0 %v1617
      %4704 = vmatprep.subr.bf16.mxu0 0
      %4705 = vmatpush1.bf16.msra.mxu0 %v1618
      %4706 = vmatprep.subr.bf16.mxu0 0
      %4707 = vmatpush1.bf16.msra.mxu0 %v1619
      %4708 = vmatprep.subr.bf16.mxu0 0
      %4709 = vmatpush1.bf16.msra.mxu0 %v1620
      %4710 = vmatprep.subr.bf16.mxu0 0
      %4711 = vmatpush1.bf16.msra.mxu0 %v1621
      %4712 = vmatprep.subr.bf16.mxu0 0
      %4713 = vmatpush1.bf16.msra.mxu0 %v1622
      %4714 = vmatprep.subr.bf16.mxu0 0
      %4715 = vmatpush1.bf16.msra.mxu0 %v1623
      %4716 = vmatprep.subr.bf16.mxu0 0
      %4717 = vmatpush1.bf16.msra.mxu0 0
      %4718 = vmatprep.subr.bf16.mxu0 0
      %4719 = vmatpush1.bf16.msra.mxu0 0
      %4720 = vmatprep.subr.bf16.mxu0 0
      %4721 = vmatpush1.bf16.msra.mxu0 0
      %4722 = vmatprep.subr.bf16.mxu0 0
      %4723 = vmatpush1.bf16.msra.mxu0 0
      %4724 = vmatprep.subr.bf16.mxu0 0
      %4725 = vmatpush1.bf16.msra.mxu0 0
      %4726 = vmatprep.subr.bf16.mxu0 0
      %4727 = vmatpush1.bf16.msra.mxu0 0
      %4728 = vmatprep.subr.bf16.mxu0 0
      %4729 = vmatpush1.bf16.msra.mxu0 0
      %4730 = vmatprep.subr.bf16.mxu0 0
      %4731 = vmatpush1.bf16.msra.mxu0 0
      %4732 = vmatprep.mubr.bf16.mxu0 0
      %4733 = vmatmul.mubr.bf16.gmra.mrb[0].mxu0 %v4692
      %v4734 = vpop.f32.mrb[0].mxu0
      %v4735 = vadd.f32 0.0, %v4734
      %v4736 = vpop.f32.mrb[0].mxu0
      %v4737 = vpop.f32.mrb[0].mxu0
      %v4738 = vpop.f32.mrb[0].mxu0
      %4739 = vdwg.mxu0
      %4740 = vmatprep.subr.bf16.mxu0 0
      %4741 = vmatpush1.bf16.msra.mxu0 %v1704
      %4742 = vmatprep.subr.bf16.mxu0 0
      %4743 = vmatpush1.bf16.msra.mxu0 %v1705
      %4744 = vmatprep.subr.bf16.mxu0 0
      %4745 = vmatpush1.bf16.msra.mxu0 %v1706
      %4746 = vmatprep.subr.bf16.mxu0 0
      %4747 = vmatpush1.bf16.msra.mxu0 %v1707
      %4748 = vmatprep.subr.bf16.mxu0 0
      %4749 = vmatpush1.bf16.msra.mxu0 %v1708
      %4750 = vmatprep.subr.bf16.mxu0 0
      %4751 = vmatpush1.bf16.msra.mxu0 %v1709
      %4752 = vmatprep.subr.bf16.mxu0 0
      %4753 = vmatpush1.bf16.msra.mxu0 %v1710
      %4754 = vmatprep.subr.bf16.mxu0 0
      %4755 = vmatpush1.bf16.msra.mxu0 %v1711
      %4756 = vmatprep.subr.bf16.mxu0 0
      %4757 = vmatpush1.bf16.msra.mxu0 0
      %4758 = vmatprep.subr.bf16.mxu0 0
      %4759 = vmatpush1.bf16.msra.mxu0 0
      %4760 = vmatprep.subr.bf16.mxu0 0
      %4761 = vmatpush1.bf16.msra.mxu0 0
      %4762 = vmatprep.subr.bf16.mxu0 0
      %4763 = vmatpush1.bf16.msra.mxu0 0
      %4764 = vmatprep.subr.bf16.mxu0 0
      %4765 = vmatpush1.bf16.msra.mxu0 0
      %4766 = vmatprep.subr.bf16.mxu0 0
      %4767 = vmatpush1.bf16.msra.mxu0 0
      %4768 = vmatprep.subr.bf16.mxu0 0
      %4769 = vmatpush1.bf16.msra.mxu0 0
      %4770 = vmatprep.subr.bf16.mxu0 0
      %4771 = vmatpush1.bf16.msra.mxu0 0
      %4772 = vmatprep.mubr.bf16.mxu0 0
      %4773 = vmatmul.mubr.bf16.gmra.mrb[0].mxu0 %v4693
      %v4774 = vpop.f32.mrb[0].mxu0
      %v4775 = vadd.f32 0.0, %v4774
      %v4776 = vpop.f32.mrb[0].mxu0
      %v4777 = vpop.f32.mrb[0].mxu0
      %v4778 = vpop.f32.mrb[0].mxu0
      %4779 = vdwg.mxu0
      %4780 = vmatprep.subr.bf16.mxu0 0
      %4781 = vmatpush1.bf16.msra.mxu0 %v1792
      %4782 = vmatprep.subr.bf16.mxu0 0
      %4783 = vmatpush1.bf16.msra.mxu0 %v1793
      %4784 = vmatprep.subr.bf16.mxu0 0
      %4785 = vmatpush1.bf16.msra.mxu0 %v1794
      %4786 = vmatprep.subr.bf16.mxu0 0
      %4787 = vmatpush1.bf16.msra.mxu0 %v1795
      %4788 = vmatprep.subr.bf16.mxu0 0
      %4789 = vmatpush1.bf16.msra.mxu0 %v1796
      %4790 = vmatprep.subr.bf16.mxu0 0
      %4791 = vmatpush1.bf16.msra.mxu0 %v1797
      %4792 = vmatprep.subr.bf16.mxu0 0
      %4793 = vmatpush1.bf16.msra.mxu0 %v1798
      %4794 = vmatprep.subr.bf16.mxu0 0
      %4795 = vmatpush1.bf16.msra.mxu0 %v1799
      %4796 = vmatprep.subr.bf16.mxu0 0
      %4797 = vmatpush1.bf16.msra.mxu0 0
      %4798 = vmatprep.subr.bf16.mxu0 0
      %4799 = vmatpush1.bf16.msra.mxu0 0
      %4800 = vmatprep.subr.bf16.mxu0 0
      %4801 = vmatpush1.bf16.msra.mxu0 0
      %4802 = vmatprep.subr.bf16.mxu0 0
      %4803 = vmatpush1.bf16.msra.mxu0 0
      %4804 = vmatprep.subr.bf16.mxu0 0
      %4805 = vmatpush1.bf16.msra.mxu0 0
      %4806 = vmatprep.subr.bf16.mxu0 0
      %4807 = vmatpush1.bf16.msra.mxu0 0
      %4808 = vmatprep.subr.bf16.mxu0 0
      %4809 = vmatpush1.bf16.msra.mxu0 0
      %4810 = vmatprep.subr.bf16.mxu0 0
      %4811 = vmatpush1.bf16.msra.mxu0 0
      %4812 = vmatprep.mubr.bf16.mxu0 0
      %4813 = vmatmul.mubr.bf16.gmra.mrb[0].mxu0 %v4694
      %v4814 = vpop.f32.mrb[0].mxu0
      %v4815 = vadd.f32 0.0, %v4814
      %v4816 = vpop.f32.mrb[0].mxu0
      %v4817 = vpop.f32.mrb[0].mxu0
      %v4818 = vpop.f32.mrb[0].mxu0
      %4819 = vdwg.mxu0
      %4820 = vmatprep.subr.bf16.mxu0 0
      %4821 = vmatpush1.bf16.msra.mxu0 %v1880
      %4822 = vmatprep.subr.bf16.mxu0 0
      %4823 = vmatpush1.bf16.msra.mxu0 %v1881
      %4824 = vmatprep.subr.bf16.mxu0 0
      %4825 = vmatpush1.bf16.msra.mxu0 %v1882
      %4826 = vmatprep.subr.bf16.mxu0 0
      %4827 = vmatpush1.bf16.msra.mxu0 %v1883
      %4828 = vmatprep.subr.bf16.mxu0 0
      %4829 = vmatpush1.bf16.msra.mxu0 %v1884
      %4830 = vmatprep.subr.bf16.mxu0 0
      %4831 = vmatpush1.bf16.msra.mxu0 %v1885
      %4832 = vmatprep.subr.bf16.mxu0 0
      %4833 = vmatpush1.bf16.msra.mxu0 %v1886
      %4834 = vmatprep.subr.bf16.mxu0 0
      %4835 = vmatpush1.bf16.msra.mxu0 %v1887
      %4836 = vmatprep.subr.bf16.mxu0 0
      %4837 = vmatpush1.bf16.msra.mxu0 0
      %4838 = vmatprep.subr.bf16.mxu0 0
      %4839 = vmatpush1.bf16.msra.mxu0 0
      %4840 = vmatprep.subr.bf16.mxu0 0
      %4841 = vmatpush1.bf16.msra.mxu0 0
      %4842 = vmatprep.subr.bf16.mxu0 0
      %4843 = vmatpush1.bf16.msra.mxu0 0
      %4844 = vmatprep.subr.bf16.mxu0 0
      %4845 = vmatpush1.bf16.msra.mxu0 0
      %4846 = vmatprep.subr.bf16.mxu0 0
      %4847 = vmatpush1.bf16.msra.mxu0 0
      %4848 = vmatprep.subr.bf16.mxu0 0
      %4849 = vmatpush1.bf16.msra.mxu0 0
      %4850 = vmatprep.subr.bf16.mxu0 0
      %4851 = vmatpush1.bf16.msra.mxu0 0
      %4852 = vmatprep.mubr.bf16.mxu0 0
      %4853 = vmatmul.mubr.bf16.gmra.mrb[0].mxu0 %v4695
      %v4854 = vpop.f32.mrb[0].mxu0
      %v4855 = vadd.f32 0.0, %v4854
      %v4856 = vpop.f32.mrb[0].mxu0
      %v4857 = vpop.f32.mrb[0].mxu0
      %v4858 = vpop.f32.mrb[0].mxu0
      %4859 = vdwg.mxu0
      %4860 = vmatprep.subr.bf16.mxu0 0
      %4861 = vmatpush1.bf16.msra.mxu0 %v1968
      %4862 = vmatprep.subr.bf16.mxu0 0
      %4863 = vmatpush1.bf16.msra.mxu0 %v1969
      %4864 = vmatprep.subr.bf16.mxu0 0
      %4865 = vmatpush1.bf16.msra.mxu0 %v1970
      %4866 = vmatprep.subr.bf16.mxu0 0
      %4867 = vmatpush1.bf16.msra.mxu0 %v1971
      %4868 = vmatprep.subr.bf16.mxu0 0
      %4869 = vmatpush1.bf16.msra.mxu0 %v1972
      %4870 = vmatprep.subr.bf16.mxu0 0
      %4871 = vmatpush1.bf16.msra.mxu0 %v1973
      %4872 = vmatprep.subr.bf16.mxu0 0
      %4873 = vmatpush1.bf16.msra.mxu0 %v1974
      %4874 = vmatprep.subr.bf16.mxu0 0
      %4875 = vmatpush1.bf16.msra.mxu0 %v1975
      %4876 = vmatprep.subr.bf16.mxu0 0
      %4877 = vmatpush1.bf16.msra.mxu0 0
      %4878 = vmatprep.subr.bf16.mxu0 0
      %4879 = vmatpush1.bf16.msra.mxu0 0
      %4880 = vmatprep.subr.bf16.mxu0 0
      %4881 = vmatpush1.bf16.msra.mxu0 0
      %4882 = vmatprep.subr.bf16.mxu0 0
      %4883 = vmatpush1.bf16.msra.mxu0 0
      %4884 = vmatprep.subr.bf16.mxu0 0
      %4885 = vmatpush1.bf16.msra.mxu0 0
      %4886 = vmatprep.subr.bf16.mxu0 0
      %4887 = vmatpush1.bf16.msra.mxu0 0
      %4888 = vmatprep.subr.bf16.mxu0 0
      %4889 = vmatpush1.bf16.msra.mxu0 0
      %4890 = vmatprep.subr.bf16.mxu0 0
      %4891 = vmatpush1.bf16.msra.mxu0 0
      %4892 = vmatprep.mubr.bf16.mxu0 0
      %4893 = vmatmul.mubr.bf16.gmra.mrb[0].mxu0 %v4696
      %v4894 = vpop.f32.mrb[0].mxu0
      %v4895 = vadd.f32 0.0, %v4894
      %v4896 = vpop.f32.mrb[0].mxu0
      %v4897 = vpop.f32.mrb[0].mxu0
      %v4898 = vpop.f32.mrb[0].mxu0
      %4899 = vdwg.mxu0
      %4900 = vmatprep.subr.bf16.mxu0 0
      %4901 = vmatpush1.bf16.msra.mxu0 %v2056
      %4902 = vmatprep.subr.bf16.mxu0 0
      %4903 = vmatpush1.bf16.msra.mxu0 %v2057
      %4904 = vmatprep.subr.bf16.mxu0 0
      %4905 = vmatpush1.bf16.msra.mxu0 %v2058
      %4906 = vmatprep.subr.bf16.mxu0 0
      %4907 = vmatpush1.bf16.msra.mxu0 %v2059
      %4908 = vmatprep.subr.bf16.mxu0 0
      %4909 = vmatpush1.bf16.msra.mxu0 %v2060
      %4910 = vmatprep.subr.bf16.mxu0 0
      %4911 = vmatpush1.bf16.msra.mxu0 %v2061
      %4912 = vmatprep.subr.bf16.mxu0 0
      %4913 = vmatpush1.bf16.msra.mxu0 %v2062
      %4914 = vmatprep.subr.bf16.mxu0 0
      %4915 = vmatpush1.bf16.msra.mxu0 %v2063
      %4916 = vmatprep.subr.bf16.mxu0 0
      %4917 = vmatpush1.bf16.msra.mxu0 0
      %4918 = vmatprep.subr.bf16.mxu0 0
      %4919 = vmatpush1.bf16.msra.mxu0 0
      %4920 = vmatprep.subr.bf16.mxu0 0
      %4921 = vmatpush1.bf16.msra.mxu0 0
      %4922 = vmatprep.subr.bf16.mxu0 0
      %4923 = vmatpush1.bf16.msra.mxu0 0
      %4924 = vmatprep.subr.bf16.mxu0 0
      %4925 = vmatpush1.bf16.msra.mxu0 0
      %4926 = vmatprep.subr.bf16.mxu0 0
      %4927 = vmatpush1.bf16.msra.mxu0 0
      %4928 = vmatprep.subr.bf16.mxu0 0
      %4929 = vmatpush1.bf16.msra.mxu0 0
      %4930 = vmatprep.subr.bf16.mxu0 0
      %4931 = vmatpush1.bf16.msra.mxu0 0
      %4932 = vmatprep.mubr.bf16.mxu0 0
      %4933 = vmatmul.mubr.bf16.gmra.mrb[0].mxu0 %v4697
      %v4934 = vpop.f32.mrb[0].mxu0
      %v4935 = vadd.f32 0.0, %v4934
      %v4936 = vpop.f32.mrb[0].mxu0
      %v4937 = vpop.f32.mrb[0].mxu0
      %v4938 = vpop.f32.mrb[0].mxu0
      %4939 = vdwg.mxu0
      %4940 = vmatprep.subr.bf16.mxu0 0
      %4941 = vmatpush1.bf16.msra.mxu0 %v2144
      %4942 = vmatprep.subr.bf16.mxu0 0
      %4943 = vmatpush1.bf16.msra.mxu0 %v2145
      %4944 = vmatprep.subr.bf16.mxu0 0
      %4945 = vmatpush1.bf16.msra.mxu0 %v2146
      %4946 = vmatprep.subr.bf16.mxu0 0
      %4947 = vmatpush1.bf16.msra.mxu0 %v2147
      %4948 = vmatprep.subr.bf16.mxu0 0
      %4949 = vmatpush1.bf16.msra.mxu0 %v2148
      %4950 = vmatprep.subr.bf16.mxu0 0
      %4951 = vmatpush1.bf16.msra.mxu0 %v2149
      %4952 = vmatprep.subr.bf16.mxu0 0
      %4953 = vmatpush1.bf16.msra.mxu0 %v2150
      %4954 = vmatprep.subr.bf16.mxu0 0
      %4955 = vmatpush1.bf16.msra.mxu0 %v2151
      %4956 = vmatprep.subr.bf16.mxu0 0
      %4957 = vmatpush1.bf16.msra.mxu0 0
      %4958 = vmatprep.subr.bf16.mxu0 0
      %4959 = vmatpush1.bf16.msra.mxu0 0
      %4960 = vmatprep.subr.bf16.mxu0 0
      %4961 = vmatpush1.bf16.msra.mxu0 0
      %4962 = vmatprep.subr.bf16.mxu0 0
      %4963 = vmatpush1.bf16.msra.mxu0 0
      %4964 = vmatprep.subr.bf16.mxu0 0
      %4965 = vmatpush1.bf16.msra.mxu0 0
      %4966 = vmatprep.subr.bf16.mxu0 0
      %4967 = vmatpush1.bf16.msra.mxu0 0
      %4968 = vmatprep.subr.bf16.mxu0 0
      %4969 = vmatpush1.bf16.msra.mxu0 0
      %4970 = vmatprep.subr.bf16.mxu0 0
      %4971 = vmatpush1.bf16.msra.mxu0 0
      %4972 = vmatprep.mubr.bf16.mxu0 0
      %4973 = vmatmul.mubr.bf16.gmra.mrb[0].mxu0 %v4698
      %v4974 = vpop.f32.mrb[0].mxu0
      %v4975 = vadd.f32 0.0, %v4974
      %v4976 = vpop.f32.mrb[0].mxu0
      %v4977 = vpop.f32.mrb[0].mxu0
      %v4978 = vpop.f32.mrb[0].mxu0
      %4979 = vdwg.mxu0
      %4980 = vmatprep.subr.bf16.mxu0 0
      %4981 = vmatpush1.bf16.msra.mxu0 %v2232
      %4982 = vmatprep.subr.bf16.mxu0 0
      %4983 = vmatpush1.bf16.msra.mxu0 %v2233
      %4984 = vmatprep.subr.bf16.mxu0 0
      %4985 = vmatpush1.bf16.msra.mxu0 %v2234
      %4986 = vmatprep.subr.bf16.mxu0 0
      %4987 = vmatpush1.bf16.msra.mxu0 %v2235
      %4988 = vmatprep.subr.bf16.mxu0 0
      %4989 = vmatpush1.bf16.msra.mxu0 %v2236
      %4990 = vmatprep.subr.bf16.mxu0 0
      %4991 = vmatpush1.bf16.msra.mxu0 %v2237
      %4992 = vmatprep.subr.bf16.mxu0 0
      %4993 = vmatpush1.bf16.msra.mxu0 %v2238
      %4994 = vmatprep.subr.bf16.mxu0 0
      %4995 = vmatpush1.bf16.msra.mxu0 %v2239
      %4996 = vmatprep.subr.bf16.mxu0 0
      %4997 = vmatpush1.bf16.msra.mxu0 0
      %4998 = vmatprep.subr.bf16.mxu0 0
      %4999 = vmatpush1.bf16.msra.mxu0 0
      %5000 = vmatprep.subr.bf16.mxu0 0
      %5001 = vmatpush1.bf16.msra.mxu0 0
      %5002 = vmatprep.subr.bf16.mxu0 0
      %5003 = vmatpush1.bf16.msra.mxu0 0
      %5004 = vmatprep.subr.bf16.mxu0 0
      %5005 = vmatpush1.bf16.msra.mxu0 0
      %5006 = vmatprep.subr.bf16.mxu0 0
      %5007 = vmatpush1.bf16.msra.mxu0 0
      %5008 = vmatprep.subr.bf16.mxu0 0
      %5009 = vmatpush1.bf16.msra.mxu0 0
      %5010 = vmatprep.subr.bf16.mxu0 0
      %5011 = vmatpush1.bf16.msra.mxu0 0
      %5012 = vmatprep.mubr.bf16.mxu0 0
      %5013 = vmatmul.mubr.bf16.gmra.mrb[0].mxu0 %v4699
      %v5014 = vpop.f32.mrb[0].mxu0
      %v5015 = vadd.f32 0.0, %v5014
      %v5016 = vpop.f32.mrb[0].mxu0
      %v5017 = vpop.f32.mrb[0].mxu0
      %v5018 = vpop.f32.mrb[0].mxu0
      %5019 = vdwg.mxu0
      %v5020 = vpack.c.bf16 %v4131, %v4131
      %5022 = vrot.lane.b32.xlu0 %v5020, 96
      %v5023 = vpop.permute.xlu0 %5022
      %v5025 = vsel %vm770, %v5023, 0
      %5027 = vmatprep.subr.bf16.mxu0 0
      %5028 = vmatpush1.bf16.msra.mxu0 %v2306
      %5029 = vmatprep.subr.bf16.mxu0 0
      %5030 = vmatpush1.bf16.msra.mxu0 %v2307
      %5031 = vmatprep.subr.bf16.mxu0 0
      %5032 = vmatpush1.bf16.msra.mxu0 0
      %5033 = vmatprep.subr.bf16.mxu0 0
      %5034 = vmatpush1.bf16.msra.mxu0 0
      %5035 = vmatprep.subr.bf16.mxu0 0
      %5036 = vmatpush1.bf16.msra.mxu0 0
      %5037 = vmatprep.subr.bf16.mxu0 0
      %5038 = vmatpush1.bf16.msra.mxu0 0
      %5039 = vmatprep.subr.bf16.mxu0 0
      %5040 = vmatpush1.bf16.msra.mxu0 0
      %5041 = vmatprep.subr.bf16.mxu0 0
      %5042 = vmatpush1.bf16.msra.mxu0 0
      %5043 = vmatprep.subr.bf16.mxu0 0
      %5044 = vmatpush1.bf16.msra.mxu0 0
      %5045 = vmatprep.subr.bf16.mxu0 0
      %5046 = vmatpush1.bf16.msra.mxu0 0
      %5047 = vmatprep.subr.bf16.mxu0 0
      %5048 = vmatpush1.bf16.msra.mxu0 0
      %5049 = vmatprep.subr.bf16.mxu0 0
      %5050 = vmatpush1.bf16.msra.mxu0 0
      %5051 = vmatprep.subr.bf16.mxu0 0
      %5052 = vmatpush1.bf16.msra.mxu0 0
      %5053 = vmatprep.subr.bf16.mxu0 0
      %5054 = vmatpush1.bf16.msra.mxu0 0
      %5055 = vmatprep.subr.bf16.mxu0 0
      %5056 = vmatpush1.bf16.msra.mxu0 0
      %5057 = vmatprep.subr.bf16.mxu0 0
      %5058 = vmatpush1.bf16.msra.mxu0 0
      %5059 = vmatprep.mubr.bf16.mxu0 0
      %5060 = vmatmul.mubr.bf16.gmra.mrb[0].mxu0 %v5025
      %v5061 = vpop.f32.mrb[0].mxu0
      %v5062 = vadd.f32 %v2293, %v5061
      %v5063 = vpop.f32.mrb[0].mxu0
      %v5064 = vpop.f32.mrb[0].mxu0
      %v5065 = vpop.f32.mrb[0].mxu0
      %5066 = vdwg.mxu0
      %v5067 = vpack.c.bf16 %v5062, %v5062
      %v5069 = vsel %vm770, %v5067, 0
      %5071 = vmatprep.subr.bf16.mxu0 0
      %5072 = vmatpush1.bf16.msra.mxu0 %v2368
      %5073 = vmatprep.subr.bf16.mxu0 0
      %5074 = vmatpush1.bf16.msra.mxu0 %v2369
      %5075 = vmatprep.subr.bf16.mxu0 0
      %5076 = vmatpush1.bf16.msra.mxu0 0
      %5077 = vmatprep.subr.bf16.mxu0 0
      %5078 = vmatpush1.bf16.msra.mxu0 0
      %5079 = vmatprep.subr.bf16.mxu0 0
      %5080 = vmatpush1.bf16.msra.mxu0 0
      %5081 = vmatprep.subr.bf16.mxu0 0
      %5082 = vmatpush1.bf16.msra.mxu0 0
      %5083 = vmatprep.subr.bf16.mxu0 0
      %5084 = vmatpush1.bf16.msra.mxu0 0
      %5085 = vmatprep.subr.bf16.mxu0 0
      %5086 = vmatpush1.bf16.msra.mxu0 0
      %5087 = vmatprep.subr.bf16.mxu0 0
      %5088 = vmatpush1.bf16.msra.mxu0 0
      %5089 = vmatprep.subr.bf16.mxu0 0
      %5090 = vmatpush1.bf16.msra.mxu0 0
      %5091 = vmatprep.subr.bf16.mxu0 0
      %5092 = vmatpush1.bf16.msra.mxu0 0
      %5093 = vmatprep.subr.bf16.mxu0 0
      %5094 = vmatpush1.bf16.msra.mxu0 0
      %5095 = vmatprep.subr.bf16.mxu0 0
      %5096 = vmatpush1.bf16.msra.mxu0 0
      %5097 = vmatprep.subr.bf16.mxu0 0
      %5098 = vmatpush1.bf16.msra.mxu0 0
      %5099 = vmatprep.subr.bf16.mxu0 0
      %5100 = vmatpush1.bf16.msra.mxu0 0
      %5101 = vmatprep.subr.bf16.mxu0 0
      %5102 = vmatpush1.bf16.msra.mxu0 0
      %5103 = vmatprep.mubr.bf16.mxu0 0
      %5104 = vmatmul.mubr.bf16.gmra.mrb[0].mxu0 %v5069
      %v5105 = vpop.f32.mrb[0].mxu0
      %v5106 = vadd.f32 %v2358, %v5105
      %v5107 = vpop.f32.mrb[0].mxu0
      %v5108 = vpop.f32.mrb[0].mxu0
      %v5109 = vpop.f32.mrb[0].mxu0
      %5110 = vdwg.mxu0
      %5111 = vmax.xlane.f32.xlu0 %v5106
      %v5112 = vpop.xlane.xlu0 %5111
      %v5113 = vsub.f32 %v5112, 1.0
      %v5114 = vadd.f32 %v5113, %v5112
      %v5115 = vmul.f32 %v5114, 0.5
      %v5116 = vsub.f32 %v5106, %v5115
      %v5117 = vmax.f32 %v5116, 0.0
      %5118 = vadd.xlane.f32.xlu0 %v5117
      %v5119 = vpop.xlane.xlu0 %5118
      %v5120 = vsub.f32 %v5119, 1.0
      %vm5121 = vcmp.gt.f32.partialorder %v5120, 0.0
      %v5122 = vsel %vm5121, %v5115, %v5113
      %v5123 = vsel %vm5121, %v5112, %v5115
      %v5124 = vadd.f32 %v5122, %v5123
      %v5125 = vmul.f32 %v5124, 0.5
      %v5126 = vsub.f32 %v5106, %v5125
      %v5127 = vmax.f32 %v5126, 0.0
      %5128 = vadd.xlane.f32.xlu0 %v5127
      %v5129 = vpop.xlane.xlu0 %5128
      %v5130 = vsub.f32 %v5129, 1.0
      %vm5131 = vcmp.gt.f32.partialorder %v5130, 0.0
      %v5132 = vsel %vm5131, %v5125, %v5122
      %v5133 = vsel %vm5131, %v5123, %v5125
      %v5134 = vadd.f32 %v5132, %v5133
      %v5135 = vmul.f32 %v5134, 0.5
      %v5136 = vsub.f32 %v5106, %v5135
      %v5137 = vmax.f32 %v5136, 0.0
      %5138 = vadd.xlane.f32.xlu0 %v5137
      %v5139 = vpop.xlane.xlu0 %5138
      %v5140 = vsub.f32 %v5139, 1.0
      %vm5141 = vcmp.gt.f32.partialorder %v5140, 0.0
      %v5142 = vsel %vm5141, %v5135, %v5132
      %v5143 = vsel %vm5141, %v5133, %v5135
      %v5144 = vadd.f32 %v5142, %v5143
      %v5145 = vmul.f32 %v5144, 0.5
      %v5146 = vsub.f32 %v5106, %v5145
      %v5147 = vmax.f32 %v5146, 0.0
      %5148 = vadd.xlane.f32.xlu0 %v5147
      %v5149 = vpop.xlane.xlu0 %5148
      %v5150 = vsub.f32 %v5149, 1.0
      %vm5151 = vcmp.gt.f32.partialorder %v5150, 0.0
      %v5152 = vsel %vm5151, %v5145, %v5142
      %v5153 = vsel %vm5151, %v5143, %v5145
      %v5154 = vadd.f32 %v5152, %v5153
      %v5155 = vmul.f32 %v5154, 0.5
      %v5156 = vsub.f32 %v5106, %v5155
      %v5157 = vmax.f32 %v5156, 0.0
      %5158 = vadd.xlane.f32.xlu0 %v5157
      %v5159 = vpop.xlane.xlu0 %5158
      %v5160 = vsub.f32 %v5159, 1.0
      %vm5161 = vcmp.gt.f32.partialorder %v5160, 0.0
      %v5162 = vsel %vm5161, %v5155, %v5152
      %v5163 = vsel %vm5161, %v5153, %v5155
      %v5164 = vadd.f32 %v5162, %v5163
      %v5165 = vmul.f32 %v5164, 0.5
      %v5166 = vsub.f32 %v5106, %v5165
      %v5167 = vmax.f32 %v5166, 0.0
      %5168 = vadd.xlane.f32.xlu0 %v5167
      %v5169 = vpop.xlane.xlu0 %5168
      %v5170 = vsub.f32 %v5169, 1.0
      %vm5171 = vcmp.gt.f32.partialorder %v5170, 0.0
      %v5172 = vsel %vm5171, %v5165, %v5162
      %v5173 = vsel %vm5171, %v5163, %v5165
      %v5174 = vadd.f32 %v5172, %v5173
      %v5175 = vmul.f32 %v5174, 0.5
      %v5176 = vsub.f32 %v5106, %v5175
      %v5177 = vmax.f32 %v5176, 0.0
      %5178 = vadd.xlane.f32.xlu0 %v5177
      %v5179 = vpop.xlane.xlu0 %5178
      %v5180 = vsub.f32 %v5179, 1.0
      %vm5181 = vcmp.gt.f32.partialorder %v5180, 0.0
      %v5182 = vsel %vm5181, %v5175, %v5172
      %v5183 = vsel %vm5181, %v5173, %v5175
      %v5184 = vadd.f32 %v5182, %v5183
      %v5185 = vmul.f32 %v5184, 0.5
      %v5186 = vsub.f32 %v5106, %v5185
      %v5187 = vmax.f32 %v5186, 0.0
      %5188 = vadd.xlane.f32.xlu0 %v5187
      %v5189 = vpop.xlane.xlu0 %5188
      %v5190 = vsub.f32 %v5189, 1.0
      %vm5191 = vcmp.gt.f32.partialorder %v5190, 0.0
      %v5192 = vsel %vm5191, %v5185, %v5182
      %v5193 = vsel %vm5191, %v5183, %v5185
      %v5194 = vadd.f32 %v5192, %v5193
      %v5195 = vmul.f32 %v5194, 0.5
      %v5196 = vsub.f32 %v5106, %v5195
      %v5197 = vmax.f32 %v5196, 0.0
      %5198 = vadd.xlane.f32.xlu0 %v5197
      %v5199 = vpop.xlane.xlu0 %5198
      %v5200 = vsub.f32 %v5199, 1.0
      %vm5201 = vcmp.gt.f32.partialorder %v5200, 0.0
      %v5202 = vsel %vm5201, %v5195, %v5192
      %v5203 = vsel %vm5201, %v5193, %v5195
      %v5204 = vadd.f32 %v5202, %v5203
      %v5205 = vmul.f32 %v5204, 0.5
      %v5206 = vsub.f32 %v5106, %v5205
      %v5207 = vmax.f32 %v5206, 0.0
      %5208 = vadd.xlane.f32.xlu0 %v5207
      %v5209 = vpop.xlane.xlu0 %5208
      %v5210 = vsub.f32 %v5209, 1.0
      %vm5211 = vcmp.gt.f32.partialorder %v5210, 0.0
      %v5212 = vsel %vm5211, %v5205, %v5202
      %v5213 = vsel %vm5211, %v5203, %v5205
      %v5214 = vadd.f32 %v5212, %v5213
      %v5215 = vmul.f32 %v5214, 0.5
      %v5216 = vsub.f32 %v5106, %v5215
      %v5217 = vmax.f32 %v5216, 0.0
      %5218 = vadd.xlane.f32.xlu0 %v5217
      %v5219 = vpop.xlane.xlu0 %5218
      %v5220 = vsub.f32 %v5219, 1.0
      %vm5221 = vcmp.gt.f32.partialorder %v5220, 0.0
      %v5222 = vsel %vm5221, %v5215, %v5212
      %v5223 = vsel %vm5221, %v5213, %v5215
      %v5224 = vadd.f32 %v5222, %v5223
      %v5225 = vmul.f32 %v5224, 0.5
      %v5226 = vsub.f32 %v5106, %v5225
      %v5227 = vmax.f32 %v5226, 0.0
      %5228 = vadd.xlane.f32.xlu0 %v5227
      %v5229 = vpop.xlane.xlu0 %5228
      %v5230 = vsub.f32 %v5229, 1.0
      %vm5231 = vcmp.gt.f32.partialorder %v5230, 0.0
      %v5232 = vsel %vm5231, %v5225, %v5222
      %v5233 = vsel %vm5231, %v5223, %v5225
      %v5234 = vadd.f32 %v5232, %v5233
      %v5235 = vmul.f32 %v5234, 0.5
      %v5236 = vsub.f32 %v5106, %v5235
      %v5237 = vmax.f32 %v5236, 0.0
      %5238 = vadd.xlane.f32.xlu0 %v5237
      %v5239 = vpop.xlane.xlu0 %5238
      %v5240 = vsub.f32 %v5239, 1.0
      %vm5241 = vcmp.gt.f32.partialorder %v5240, 0.0
      %v5242 = vsel %vm5241, %v5235, %v5232
      %v5243 = vsel %vm5241, %v5233, %v5235
      %v5244 = vadd.f32 %v5242, %v5243
      %v5245 = vmul.f32 %v5244, 0.5
      %v5246 = vsub.f32 %v5106, %v5245
      %v5247 = vmax.f32 %v5246, 0.0
      %5248 = vadd.xlane.f32.xlu0 %v5247
      %v5249 = vpop.xlane.xlu0 %5248
      %v5250 = vsub.f32 %v5249, 1.0
      %vm5251 = vcmp.gt.f32.partialorder %v5250, 0.0
      %v5252 = vsel %vm5251, %v5245, %v5242
      %v5253 = vsel %vm5251, %v5243, %v5245
      %v5254 = vadd.f32 %v5252, %v5253
      %v5255 = vmul.f32 %v5254, 0.5
      %v5256 = vsub.f32 %v5106, %v5255
      %v5257 = vmax.f32 %v5256, 0.0
      %5258 = vadd.xlane.f32.xlu0 %v5257
      %v5259 = vpop.xlane.xlu0 %5258
      %v5260 = vsub.f32 %v5259, 1.0
      %vm5261 = vcmp.gt.f32.partialorder %v5260, 0.0
      %v5262 = vsel %vm5261, %v5255, %v5252
      %v5263 = vsel %vm5261, %v5253, %v5255
      %v5264 = vadd.f32 %v5262, %v5263
      %v5265 = vmul.f32 %v5264, 0.5
      %v5266 = vsub.f32 %v5106, %v5265
      %v5267 = vmax.f32 %v5266, 0.0
      %5268 = vadd.xlane.f32.xlu0 %v5267
      %v5269 = vpop.xlane.xlu0 %5268
      %v5270 = vsub.f32 %v5269, 1.0
      %vm5271 = vcmp.gt.f32.partialorder %v5270, 0.0
      %v5272 = vsel %vm5271, %v5265, %v5262
      %v5273 = vsel %vm5271, %v5263, %v5265
      %v5274 = vadd.f32 %v5272, %v5273
      %v5275 = vmul.f32 %v5274, 0.5
      %vm5276 = vcmp.ge.f32.partialorder %v5106, %v5275
      %v5277 = vsel %vm5276, 1, 0
      %v5278 = vcvt.s32.f32 %v5277
      %5279 = vadd.xlane.f32.xlu0 %v5278
      %v5280 = vpop.xlane.xlu0 %5279
      %v5281 = vmax.f32 %v5280, 1.0
      %v5282 = vmul.f32 %v5106, %v5278
      %5283 = vadd.xlane.f32.xlu0 %v5282
      %v5284 = vpop.xlane.xlu0 %5283
      %v5285 = vsub.f32 %v5284, 1.0
      %v5286 = vrcp.pop %v5281
      %v5287 = vmul.f32 %v5285, %v5286
      %vm5288 = vcmp.ge.f32.partialorder %v5106, %v5287
      %v5289 = vsel %vm5288, 1, 0
      %v5290 = vcvt.s32.f32 %v5289
      %5291 = vadd.xlane.f32.xlu0 %v5290
      %v5292 = vpop.xlane.xlu0 %5291
      %v5293 = vmax.f32 %v5292, 1.0
      %v5294 = vmul.f32 %v5106, %v5290
      %5295 = vadd.xlane.f32.xlu0 %v5294
      %v5296 = vpop.xlane.xlu0 %5295
      %v5297 = vsub.f32 %v5296, 1.0
      %v5298 = vrcp.pop %v5293
      %v5299 = vmul.f32 %v5297, %v5298
      %v5300 = vsub.f32 %v5106, %v5299
      %v5301 = vmax.f32 %v5300, 0.0
      %s5302 = scalar_lea.vmem %s553, 16
      %5303 = vst [vmem:[%s5302] sm:$0xff] %v5301
      %v5312 = vrot.slane %v4685, 7
      %v5313 = vsel %vm1460, %v5312, %v4684
      %v5314 = vrot.slane %v4686, 6
      %v5315 = vsel %vm1463, %v5314, %v5313
      %v5316 = vrot.slane %v4687, 5
      %v5317 = vsel %vm1466, %v5316, %v5315
      %v5318 = vrot.slane %v4688, 4
      %v5319 = vsel %vm1469, %v5318, %v5317
      %v5320 = vrot.slane %v4689, 3
      %v5321 = vsel %vm1472, %v5320, %v5319
      %v5322 = vrot.slane %v4690, 2
      %v5323 = vsel %vm1475, %v5322, %v5321
      %v5324 = vrot.slane %v4691, 1
      %v5325 = vsel %vm1478, %v5324, %v5323
      %s5327 = scalar_lea.vmem %s562, 16
      %5328 = vst [vmem:[%s5327] sm:$0xff] %v5325
      %s5329 = scalar_lea.vmem %s526, 12
      %v5330 = vld [vmem:[%s5329] sm:$0xf]
      %v5331 = vunpack.c.l.bf16 %v5330
      %v5332 = vpack.c.bf16 %v4735, %v4735
      %v5333 = vpack.c.bf16 %v4775, %v4775
      %v5334 = vpack.c.bf16 %v4815, %v4815
      %v5335 = vpack.c.bf16 %v4855, %v4855
      %v5336 = vpack.c.bf16 %v4895, %v4895
      %v5337 = vpack.c.bf16 %v4935, %v4935
      %v5338 = vpack.c.bf16 %v4975, %v4975
      %v5339 = vpack.c.bf16 %v5015, %v5015
      %v5348 = vunpack.c.l.b16 %v5332
      %v5349 = vunpack.c.l.b16 %v5333
      %v5350 = vunpack.c.l.b16 %v5334
      %v5351 = vunpack.c.l.b16 %v5335
      %v5352 = vunpack.c.l.b16 %v5336
      %v5353 = vunpack.c.l.b16 %v5337
      %v5354 = vunpack.c.l.b16 %v5338
      %v5355 = vunpack.c.l.b16 %v5339
      %v5356 = vrot.slane %v5349, 7
      %v5357 = vsel %vm1460, %v5356, %v5348
      %v5358 = vrot.slane %v5350, 6
      %v5359 = vsel %vm1463, %v5358, %v5357
      %v5360 = vrot.slane %v5351, 5
      %v5361 = vsel %vm1466, %v5360, %v5359
      %v5362 = vrot.slane %v5352, 4
      %v5363 = vsel %vm1469, %v5362, %v5361
      %v5364 = vrot.slane %v5353, 3
      %v5365 = vsel %vm1472, %v5364, %v5363
      %v5366 = vrot.slane %v5354, 2
      %v5367 = vsel %vm1475, %v5366, %v5365
      %v5368 = vrot.slane %v5355, 1
      %v5369 = vsel %vm1478, %v5368, %v5367
      %v5370 = vpack.c.b16 %v5369, %v5369
      %v5372 = vsel %vm770, %v5370, 0
      %5374 = vmatprep.subr.bf16.mxu0 0
      %5375 = vmatpush1.bf16.msra.mxu0 %v766
      %5376 = vmatprep.subr.bf16.mxu0 0
      %5377 = vmatpush1.bf16.msra.mxu0 %v767
      %5378 = vmatprep.subr.bf16.mxu0 0
      %5379 = vmatpush1.bf16.msra.mxu0 0
      %5380 = vmatprep.subr.bf16.mxu0 0
      %5381 = vmatpush1.bf16.msra.mxu0 0
      %5382 = vmatprep.subr.bf16.mxu0 0
      %5383 = vmatpush1.bf16.msra.mxu0 0
      %5384 = vmatprep.subr.bf16.mxu0 0
      %5385 = vmatpush1.bf16.msra.mxu0 0
      %5386 = vmatprep.subr.bf16.mxu0 0
      %5387 = vmatpush1.bf16.msra.mxu0 0
      %5388 = vmatprep.subr.bf16.mxu0 0
      %5389 = vmatpush1.bf16.msra.mxu0 0
      %5390 = vmatprep.subr.bf16.mxu0 0
      %5391 = vmatpush1.bf16.msra.mxu0 0
      %5392 = vmatprep.subr.bf16.mxu0 0
      %5393 = vmatpush1.bf16.msra.mxu0 0
      %5394 = vmatprep.subr.bf16.mxu0 0
      %5395 = vmatpush1.bf16.msra.mxu0 0
      %5396 = vmatprep.subr.bf16.mxu0 0
      %5397 = vmatpush1.bf16.msra.mxu0 0
      %5398 = vmatprep.subr.bf16.mxu0 0
      %5399 = vmatpush1.bf16.msra.mxu0 0
      %5400 = vmatprep.subr.bf16.mxu0 0
      %5401 = vmatpush1.bf16.msra.mxu0 0
      %5402 = vmatprep.subr.bf16.mxu0 0
      %5403 = vmatpush1.bf16.msra.mxu0 0
      %5404 = vmatprep.subr.bf16.mxu0 0
      %5405 = vmatpush1.bf16.msra.mxu0 0
      %5406 = vmatprep.mubr.bf16.mxu0 0
      %5407 = vmatmul.mubr.bf16.gmra.mrb[0].mxu0 %v5372
      %v5408 = vpop.f32.mrb[0].mxu0
      %v5409 = vadd.f32 0.0, %v5408
      %v5410 = vpop.f32.mrb[0].mxu0
      %v5411 = vpop.f32.mrb[0].mxu0
      %v5412 = vpop.f32.mrb[0].mxu0
      %5413 = vdwg.mxu0
      %v5414 = vadd.f32 %v5331, %v5409
      %5415 = vmatprep.subr.bf16.mxu0 0
      %5416 = vmatpush1.bf16.msra.mxu0 %v830
      %5417 = vmatprep.subr.bf16.mxu0 0
      %5418 = vmatpush1.bf16.msra.mxu0 %v831
      %5419 = vmatprep.subr.bf16.mxu0 0
      %5420 = vmatpush1.bf16.msra.mxu0 0
      %5421 = vmatprep.subr.bf16.mxu0 0
      %5422 = vmatpush1.bf16.msra.mxu0 0
      %5423 = vmatprep.subr.bf16.mxu0 0
      %5424 = vmatpush1.bf16.msra.mxu0 0
      %5425 = vmatprep.subr.bf16.mxu0 0
      %5426 = vmatpush1.bf16.msra.mxu0 0
      %5427 = vmatprep.subr.bf16.mxu0 0
      %5428 = vmatpush1.bf16.msra.mxu0 0
      %5429 = vmatprep.subr.bf16.mxu0 0
      %5430 = vmatpush1.bf16.msra.mxu0 0
      %5431 = vmatprep.subr.bf16.mxu0 0
      %5432 = vmatpush1.bf16.msra.mxu0 0
      %5433 = vmatprep.subr.bf16.mxu0 0
      %5434 = vmatpush1.bf16.msra.mxu0 0
      %5435 = vmatprep.subr.bf16.mxu0 0
      %5436 = vmatpush1.bf16.msra.mxu0 0
      %5437 = vmatprep.subr.bf16.mxu0 0
      %5438 = vmatpush1.bf16.msra.mxu0 0
      %5439 = vmatprep.subr.bf16.mxu0 0
      %5440 = vmatpush1.bf16.msra.mxu0 0
      %5441 = vmatprep.subr.bf16.mxu0 0
      %5442 = vmatpush1.bf16.msra.mxu0 0
      %5443 = vmatprep.subr.bf16.mxu0 0
      %5444 = vmatpush1.bf16.msra.mxu0 0
      %5445 = vmatprep.subr.bf16.mxu0 0
      %5446 = vmatpush1.bf16.msra.mxu0 0
      %5447 = vmatprep.mubr.bf16.mxu0 0
      %5448 = vmatmul.mubr.bf16.gmra.mrb[0].mxu0 %v5025
      %v5449 = vpop.f32.mrb[0].mxu0
      %v5450 = vadd.f32 %v820, %v5449
      %v5451 = vpop.f32.mrb[0].mxu0
      %v5452 = vpop.f32.mrb[0].mxu0
      %v5453 = vpop.f32.mrb[0].mxu0
      %5454 = vdwg.mxu0
      %v5455 = vadd.f32 %v5414, %v5450
      %v5456 = vxor.u32 %v5455, 2147483648
      %v5457 = vmul.f32 %v5456, 1.442695
      %v5458 = vpow.pop %v5457
      %v5459 = vadd.f32 %v5458, 1.0
      %v5460 = vrcp.pop %v5459
      %v5461 = vmul.f32 1.0, %v5460
      %5463 = vrot.lane.b32.xlu0 %v5450, 64
      %v5464 = vpop.permute.xlu0 %5463
      %v5466 = vmul.f32 %v5461, %v5464
      %5468 = vrot.lane.b32.xlu0 %v5466, 64
      %v5469 = vpop.permute.xlu0 %5468
      %v5471 = vadd.f32 %v5414, %v5469
      %v5472 = vtanh.pop %v5471
      %v5473 = vsub.f32 1.0, %v5461
      %5475 = vrot.lane.b32.xlu0 %v5472, 96
      %v5476 = vpop.permute.xlu0 %5475
      %v5478 = vmul.f32 %v5473, %v5476
      %v5479 = vmul.f32 %v5461, %v4131
      %v5480 = vadd.f32 %v5478, %v5479
      %v5482 = vcombine.high %v5480, %v5480
      %v5484 = vunpack.c.l.s4 1966171168
      %v5485 = vunpack.c.0.s8 %v5484
      %v5486 = vlaneseq
      %v5487 = vshrl.u32 %v5486, 7
      %v5488 = vsub.s32 %v5485, %v5487
      %v5489 = vrot.slane %v5480, %v5488
      %v5491 = vunpack.c.l.s4 1966171168
      %v5492 = vunpack.c.0.s8 %v5491
      %v5493 = vlaneseq
      %v5494 = vshrl.u32 %v5493, 7
      %v5495 = vsub.s32 %v5492, %v5494
      %v5496 = vrot.slane %v5482, %v5495
      %v5497 = vcombine.high %v5489, %v5489
      %v5498 = vcombine.high %v5496, %v5496
      %v5500 = vunpack.c.l.s4 1966171168
      %v5501 = vunpack.c.0.s8 %v5500
      %v5502 = vlaneseq
      %v5503 = vshrl.u32 %v5502, 7
      %v5504 = vsub.s32 %v5501, %v5503
      %v5505 = vrot.slane %v5489, %v5504
      %v5507 = vunpack.c.l.s4 1966171168
      %v5508 = vunpack.c.0.s8 %v5507
      %v5509 = vlaneseq
      %v5510 = vshrl.u32 %v5509, 7
      %v5511 = vsub.s32 %v5508, %v5510
      %v5512 = vrot.slane %v5496, %v5511
      %v5514 = vunpack.c.l.s4 1966171168
      %v5515 = vunpack.c.0.s8 %v5514
      %v5516 = vlaneseq
      %v5517 = vshrl.u32 %v5516, 7
      %v5518 = vsub.s32 %v5515, %v5517
      %v5519 = vrot.slane %v5497, %v5518
      %v5521 = vunpack.c.l.s4 1966171168
      %v5522 = vunpack.c.0.s8 %v5521
      %v5523 = vlaneseq
      %v5524 = vshrl.u32 %v5523, 7
      %v5525 = vsub.s32 %v5522, %v5524
      %v5526 = vrot.slane %v5498, %v5525
      %v5527 = vcombine.high %v5505, %v5505
      %v5528 = vcombine.high %v5512, %v5512
      %v5529 = vcombine.high %v5519, %v5519
      %v5530 = vcombine.high %v5526, %v5526
      %v5539 = vpack.c.bf16 %v5505, %v5505
      %v5540 = vpack.c.bf16 %v5519, %v5519
      %v5541 = vpack.c.bf16 %v5527, %v5527
      %v5542 = vpack.c.bf16 %v5529, %v5529
      %v5543 = vpack.c.bf16 %v5512, %v5512
      %v5544 = vpack.c.bf16 %v5526, %v5526
      %v5545 = vpack.c.bf16 %v5528, %v5528
      %v5546 = vpack.c.bf16 %v5530, %v5530
      %5548 = vrot.lane.b32.xlu0 %v5539, 96
      %v5549 = vpop.permute.xlu0 %5548
      %v5551 = vsel %vm770, %v5549, 0
      %5553 = vmatprep.subr.bf16.mxu0 0
      %5554 = vmatpush1.bf16.msra.mxu0 %v984
      %5555 = vmatprep.subr.bf16.mxu0 0
      %5556 = vmatpush1.bf16.msra.mxu0 %v985
      %5557 = vmatprep.subr.bf16.mxu0 0
      %5558 = vmatpush1.bf16.msra.mxu0 0
      %5559 = vmatprep.subr.bf16.mxu0 0
      %5560 = vmatpush1.bf16.msra.mxu0 0
      %5561 = vmatprep.subr.bf16.mxu0 0
      %5562 = vmatpush1.bf16.msra.mxu0 0
      %5563 = vmatprep.subr.bf16.mxu0 0
      %5564 = vmatpush1.bf16.msra.mxu0 0
      %5565 = vmatprep.subr.bf16.mxu0 0
      %5566 = vmatpush1.bf16.msra.mxu0 0
      %5567 = vmatprep.subr.bf16.mxu0 0
      %5568 = vmatpush1.bf16.msra.mxu0 0
      %5569 = vmatprep.subr.bf16.mxu0 0
      %5570 = vmatpush1.bf16.msra.mxu0 0
      %5571 = vmatprep.subr.bf16.mxu0 0
      %5572 = vmatpush1.bf16.msra.mxu0 0
      %5573 = vmatprep.subr.bf16.mxu0 0
      %5574 = vmatpush1.bf16.msra.mxu0 0
      %5575 = vmatprep.subr.bf16.mxu0 0
      %5576 = vmatpush1.bf16.msra.mxu0 0
      %5577 = vmatprep.subr.bf16.mxu0 0
      %5578 = vmatpush1.bf16.msra.mxu0 0
      %5579 = vmatprep.subr.bf16.mxu0 0
      %5580 = vmatpush1.bf16.msra.mxu0 0
      %5581 = vmatprep.subr.bf16.mxu0 0
      %5582 = vmatpush1.bf16.msra.mxu0 0
      %5583 = vmatprep.subr.bf16.mxu0 0
      %5584 = vmatpush1.bf16.msra.mxu0 0
      %5585 = vmatprep.mubr.bf16.mxu0 0
      %5586 = vmatmul.mubr.bf16.gmra.mrb[0].mxu0 %v5551
      %v5587 = vpop.f32.mrb[0].mxu0
      %v5588 = vadd.f32 0.0, %v5587
      %v5589 = vpop.f32.mrb[0].mxu0
      %v5590 = vpop.f32.mrb[0].mxu0
      %v5591 = vpop.f32.mrb[0].mxu0
      %5592 = vdwg.mxu0
      %5594 = vrot.lane.b32.xlu0 %v5540, 96
      %v5595 = vpop.permute.xlu0 %5594
      %v5597 = vsel %vm770, %v5595, 0
      %5599 = vmatprep.subr.bf16.mxu0 0
      %5600 = vmatpush1.bf16.msra.mxu0 %v1042
      %5601 = vmatprep.subr.bf16.mxu0 0
      %5602 = vmatpush1.bf16.msra.mxu0 %v1043
      %5603 = vmatprep.subr.bf16.mxu0 0
      %5604 = vmatpush1.bf16.msra.mxu0 0
      %5605 = vmatprep.subr.bf16.mxu0 0
      %5606 = vmatpush1.bf16.msra.mxu0 0
      %5607 = vmatprep.subr.bf16.mxu0 0
      %5608 = vmatpush1.bf16.msra.mxu0 0
      %5609 = vmatprep.subr.bf16.mxu0 0
      %5610 = vmatpush1.bf16.msra.mxu0 0
      %5611 = vmatprep.subr.bf16.mxu0 0
      %5612 = vmatpush1.bf16.msra.mxu0 0
      %5613 = vmatprep.subr.bf16.mxu0 0
      %5614 = vmatpush1.bf16.msra.mxu0 0
      %5615 = vmatprep.subr.bf16.mxu0 0
      %5616 = vmatpush1.bf16.msra.mxu0 0
      %5617 = vmatprep.subr.bf16.mxu0 0
      %5618 = vmatpush1.bf16.msra.mxu0 0
      %5619 = vmatprep.subr.bf16.mxu0 0
      %5620 = vmatpush1.bf16.msra.mxu0 0
      %5621 = vmatprep.subr.bf16.mxu0 0
      %5622 = vmatpush1.bf16.msra.mxu0 0
      %5623 = vmatprep.subr.bf16.mxu0 0
      %5624 = vmatpush1.bf16.msra.mxu0 0
      %5625 = vmatprep.subr.bf16.mxu0 0
      %5626 = vmatpush1.bf16.msra.mxu0 0
      %5627 = vmatprep.subr.bf16.mxu0 0
      %5628 = vmatpush1.bf16.msra.mxu0 0
      %5629 = vmatprep.subr.bf16.mxu0 0
      %5630 = vmatpush1.bf16.msra.mxu0 0
      %5631 = vmatprep.mubr.bf16.mxu0 0
      %5632 = vmatmul.mubr.bf16.gmra.mrb[0].mxu0 %v5597
      %v5633 = vpop.f32.mrb[0].mxu0
      %v5634 = vadd.f32 0.0, %v5633
      %v5635 = vpop.f32.mrb[0].mxu0
      %v5636 = vpop.f32.mrb[0].mxu0
      %v5637 = vpop.f32.mrb[0].mxu0
      %5638 = vdwg.mxu0
      %5640 = vrot.lane.b32.xlu0 %v5541, 96
      %v5641 = vpop.permute.xlu0 %5640
      %v5643 = vsel %vm770, %v5641, 0
      %5645 = vmatprep.subr.bf16.mxu0 0
      %5646 = vmatpush1.bf16.msra.mxu0 %v1100
      %5647 = vmatprep.subr.bf16.mxu0 0
      %5648 = vmatpush1.bf16.msra.mxu0 %v1101
      %5649 = vmatprep.subr.bf16.mxu0 0
      %5650 = vmatpush1.bf16.msra.mxu0 0
      %5651 = vmatprep.subr.bf16.mxu0 0
      %5652 = vmatpush1.bf16.msra.mxu0 0
      %5653 = vmatprep.subr.bf16.mxu0 0
      %5654 = vmatpush1.bf16.msra.mxu0 0
      %5655 = vmatprep.subr.bf16.mxu0 0
      %5656 = vmatpush1.bf16.msra.mxu0 0
      %5657 = vmatprep.subr.bf16.mxu0 0
      %5658 = vmatpush1.bf16.msra.mxu0 0
      %5659 = vmatprep.subr.bf16.mxu0 0
      %5660 = vmatpush1.bf16.msra.mxu0 0
      %5661 = vmatprep.subr.bf16.mxu0 0
      %5662 = vmatpush1.bf16.msra.mxu0 0
      %5663 = vmatprep.subr.bf16.mxu0 0
      %5664 = vmatpush1.bf16.msra.mxu0 0
      %5665 = vmatprep.subr.bf16.mxu0 0
      %5666 = vmatpush1.bf16.msra.mxu0 0
      %5667 = vmatprep.subr.bf16.mxu0 0
      %5668 = vmatpush1.bf16.msra.mxu0 0
      %5669 = vmatprep.subr.bf16.mxu0 0
      %5670 = vmatpush1.bf16.msra.mxu0 0
      %5671 = vmatprep.subr.bf16.mxu0 0
      %5672 = vmatpush1.bf16.msra.mxu0 0
      %5673 = vmatprep.subr.bf16.mxu0 0
      %5674 = vmatpush1.bf16.msra.mxu0 0
      %5675 = vmatprep.subr.bf16.mxu0 0
      %5676 = vmatpush1.bf16.msra.mxu0 0
      %5677 = vmatprep.mubr.bf16.mxu0 0
      %5678 = vmatmul.mubr.bf16.gmra.mrb[0].mxu0 %v5643
      %v5679 = vpop.f32.mrb[0].mxu0
      %v5680 = vadd.f32 0.0, %v5679
      %v5681 = vpop.f32.mrb[0].mxu0
      %v5682 = vpop.f32.mrb[0].mxu0
      %v5683 = vpop.f32.mrb[0].mxu0
      %5684 = vdwg.mxu0
      %5686 = vrot.lane.b32.xlu0 %v5542, 96
      %v5687 = vpop.permute.xlu0 %5686
      %v5689 = vsel %vm770, %v5687, 0
      %5691 = vmatprep.subr.bf16.mxu0 0
      %5692 = vmatpush1.bf16.msra.mxu0 %v1158
      %5693 = vmatprep.subr.bf16.mxu0 0
      %5694 = vmatpush1.bf16.msra.mxu0 %v1159
      %5695 = vmatprep.subr.bf16.mxu0 0
      %5696 = vmatpush1.bf16.msra.mxu0 0
      %5697 = vmatprep.subr.bf16.mxu0 0
      %5698 = vmatpush1.bf16.msra.mxu0 0
      %5699 = vmatprep.subr.bf16.mxu0 0
      %5700 = vmatpush1.bf16.msra.mxu0 0
      %5701 = vmatprep.subr.bf16.mxu0 0
      %5702 = vmatpush1.bf16.msra.mxu0 0
      %5703 = vmatprep.subr.bf16.mxu0 0
      %5704 = vmatpush1.bf16.msra.mxu0 0
      %5705 = vmatprep.subr.bf16.mxu0 0
      %5706 = vmatpush1.bf16.msra.mxu0 0
      %5707 = vmatprep.subr.bf16.mxu0 0
      %5708 = vmatpush1.bf16.msra.mxu0 0
      %5709 = vmatprep.subr.bf16.mxu0 0
      %5710 = vmatpush1.bf16.msra.mxu0 0
      %5711 = vmatprep.subr.bf16.mxu0 0
      %5712 = vmatpush1.bf16.msra.mxu0 0
      %5713 = vmatprep.subr.bf16.mxu0 0
      %5714 = vmatpush1.bf16.msra.mxu0 0
      %5715 = vmatprep.subr.bf16.mxu0 0
      %5716 = vmatpush1.bf16.msra.mxu0 0
      %5717 = vmatprep.subr.bf16.mxu0 0
      %5718 = vmatpush1.bf16.msra.mxu0 0
      %5719 = vmatprep.subr.bf16.mxu0 0
      %5720 = vmatpush1.bf16.msra.mxu0 0
      %5721 = vmatprep.subr.bf16.mxu0 0
      %5722 = vmatpush1.bf16.msra.mxu0 0
      %5723 = vmatprep.mubr.bf16.mxu0 0
      %5724 = vmatmul.mubr.bf16.gmra.mrb[0].mxu0 %v5689
      %v5725 = vpop.f32.mrb[0].mxu0
      %v5726 = vadd.f32 0.0, %v5725
      %v5727 = vpop.f32.mrb[0].mxu0
      %v5728 = vpop.f32.mrb[0].mxu0
      %v5729 = vpop.f32.mrb[0].mxu0
      %5730 = vdwg.mxu0
      %5732 = vrot.lane.b32.xlu0 %v5543, 96
      %v5733 = vpop.permute.xlu0 %5732
      %v5735 = vsel %vm770, %v5733, 0
      %5737 = vmatprep.subr.bf16.mxu0 0
      %5738 = vmatpush1.bf16.msra.mxu0 %v1216
      %5739 = vmatprep.subr.bf16.mxu0 0
      %5740 = vmatpush1.bf16.msra.mxu0 %v1217
      %5741 = vmatprep.subr.bf16.mxu0 0
      %5742 = vmatpush1.bf16.msra.mxu0 0
      %5743 = vmatprep.subr.bf16.mxu0 0
      %5744 = vmatpush1.bf16.msra.mxu0 0
      %5745 = vmatprep.subr.bf16.mxu0 0
      %5746 = vmatpush1.bf16.msra.mxu0 0
      %5747 = vmatprep.subr.bf16.mxu0 0
      %5748 = vmatpush1.bf16.msra.mxu0 0
      %5749 = vmatprep.subr.bf16.mxu0 0
      %5750 = vmatpush1.bf16.msra.mxu0 0
      %5751 = vmatprep.subr.bf16.mxu0 0
      %5752 = vmatpush1.bf16.msra.mxu0 0
      %5753 = vmatprep.subr.bf16.mxu0 0
      %5754 = vmatpush1.bf16.msra.mxu0 0
      %5755 = vmatprep.subr.bf16.mxu0 0
      %5756 = vmatpush1.bf16.msra.mxu0 0
      %5757 = vmatprep.subr.bf16.mxu0 0
      %5758 = vmatpush1.bf16.msra.mxu0 0
      %5759 = vmatprep.subr.bf16.mxu0 0
      %5760 = vmatpush1.bf16.msra.mxu0 0
      %5761 = vmatprep.subr.bf16.mxu0 0
      %5762 = vmatpush1.bf16.msra.mxu0 0
      %5763 = vmatprep.subr.bf16.mxu0 0
      %5764 = vmatpush1.bf16.msra.mxu0 0
      %5765 = vmatprep.subr.bf16.mxu0 0
      %5766 = vmatpush1.bf16.msra.mxu0 0
      %5767 = vmatprep.subr.bf16.mxu0 0
      %5768 = vmatpush1.bf16.msra.mxu0 0
      %5769 = vmatprep.mubr.bf16.mxu0 0
      %5770 = vmatmul.mubr.bf16.gmra.mrb[0].mxu0 %v5735
      %v5771 = vpop.f32.mrb[0].mxu0
      %v5772 = vadd.f32 0.0, %v5771
      %v5773 = vpop.f32.mrb[0].mxu0
      %v5774 = vpop.f32.mrb[0].mxu0
      %v5775 = vpop.f32.mrb[0].mxu0
      %5776 = vdwg.mxu0
      %5778 = vrot.lane.b32.xlu0 %v5544, 96
      %v5779 = vpop.permute.xlu0 %5778
      %v5781 = vsel %vm770, %v5779, 0
      %5783 = vmatprep.subr.bf16.mxu0 0
      %5784 = vmatpush1.bf16.msra.mxu0 %v1274
      %5785 = vmatprep.subr.bf16.mxu0 0
      %5786 = vmatpush1.bf16.msra.mxu0 %v1275
      %5787 = vmatprep.subr.bf16.mxu0 0
      %5788 = vmatpush1.bf16.msra.mxu0 0
      %5789 = vmatprep.subr.bf16.mxu0 0
      %5790 = vmatpush1.bf16.msra.mxu0 0
      %5791 = vmatprep.subr.bf16.mxu0 0
      %5792 = vmatpush1.bf16.msra.mxu0 0
      %5793 = vmatprep.subr.bf16.mxu0 0
      %5794 = vmatpush1.bf16.msra.mxu0 0
      %5795 = vmatprep.subr.bf16.mxu0 0
      %5796 = vmatpush1.bf16.msra.mxu0 0
      %5797 = vmatprep.subr.bf16.mxu0 0
      %5798 = vmatpush1.bf16.msra.mxu0 0
      %5799 = vmatprep.subr.bf16.mxu0 0
      %5800 = vmatpush1.bf16.msra.mxu0 0
      %5801 = vmatprep.subr.bf16.mxu0 0
      %5802 = vmatpush1.bf16.msra.mxu0 0
      %5803 = vmatprep.subr.bf16.mxu0 0
      %5804 = vmatpush1.bf16.msra.mxu0 0
      %5805 = vmatprep.subr.bf16.mxu0 0
      %5806 = vmatpush1.bf16.msra.mxu0 0
      %5807 = vmatprep.subr.bf16.mxu0 0
      %5808 = vmatpush1.bf16.msra.mxu0 0
      %5809 = vmatprep.subr.bf16.mxu0 0
      %5810 = vmatpush1.bf16.msra.mxu0 0
      %5811 = vmatprep.subr.bf16.mxu0 0
      %5812 = vmatpush1.bf16.msra.mxu0 0
      %5813 = vmatprep.subr.bf16.mxu0 0
      %5814 = vmatpush1.bf16.msra.mxu0 0
      %5815 = vmatprep.mubr.bf16.mxu0 0
      %5816 = vmatmul.mubr.bf16.gmra.mrb[0].mxu0 %v5781
      %v5817 = vpop.f32.mrb[0].mxu0
      %v5818 = vadd.f32 0.0, %v5817
      %v5819 = vpop.f32.mrb[0].mxu0
      %v5820 = vpop.f32.mrb[0].mxu0
      %v5821 = vpop.f32.mrb[0].mxu0
      %5822 = vdwg.mxu0
      %5824 = vrot.lane.b32.xlu0 %v5545, 96
      %v5825 = vpop.permute.xlu0 %5824
      %v5827 = vsel %vm770, %v5825, 0
      %5829 = vmatprep.subr.bf16.mxu0 0
      %5830 = vmatpush1.bf16.msra.mxu0 %v1332
      %5831 = vmatprep.subr.bf16.mxu0 0
      %5832 = vmatpush1.bf16.msra.mxu0 %v1333
      %5833 = vmatprep.subr.bf16.mxu0 0
      %5834 = vmatpush1.bf16.msra.mxu0 0
      %5835 = vmatprep.subr.bf16.mxu0 0
      %5836 = vmatpush1.bf16.msra.mxu0 0
      %5837 = vmatprep.subr.bf16.mxu0 0
      %5838 = vmatpush1.bf16.msra.mxu0 0
      %5839 = vmatprep.subr.bf16.mxu0 0
      %5840 = vmatpush1.bf16.msra.mxu0 0
      %5841 = vmatprep.subr.bf16.mxu0 0
      %5842 = vmatpush1.bf16.msra.mxu0 0
      %5843 = vmatprep.subr.bf16.mxu0 0
      %5844 = vmatpush1.bf16.msra.mxu0 0
      %5845 = vmatprep.subr.bf16.mxu0 0
      %5846 = vmatpush1.bf16.msra.mxu0 0
      %5847 = vmatprep.subr.bf16.mxu0 0
      %5848 = vmatpush1.bf16.msra.mxu0 0
      %5849 = vmatprep.subr.bf16.mxu0 0
      %5850 = vmatpush1.bf16.msra.mxu0 0
      %5851 = vmatprep.subr.bf16.mxu0 0
      %5852 = vmatpush1.bf16.msra.mxu0 0
      %5853 = vmatprep.subr.bf16.mxu0 0
      %5854 = vmatpush1.bf16.msra.mxu0 0
      %5855 = vmatprep.subr.bf16.mxu0 0
      %5856 = vmatpush1.bf16.msra.mxu0 0
      %5857 = vmatprep.subr.bf16.mxu0 0
      %5858 = vmatpush1.bf16.msra.mxu0 0
      %5859 = vmatprep.subr.bf16.mxu0 0
      %5860 = vmatpush1.bf16.msra.mxu0 0
      %5861 = vmatprep.mubr.bf16.mxu0 0
      %5862 = vmatmul.mubr.bf16.gmra.mrb[0].mxu0 %v5827
      %v5863 = vpop.f32.mrb[0].mxu0
      %v5864 = vadd.f32 0.0, %v5863
      %v5865 = vpop.f32.mrb[0].mxu0
      %v5866 = vpop.f32.mrb[0].mxu0
      %v5867 = vpop.f32.mrb[0].mxu0
      %5868 = vdwg.mxu0
      %5870 = vrot.lane.b32.xlu0 %v5546, 96
      %v5871 = vpop.permute.xlu0 %5870
      %v5873 = vsel %vm770, %v5871, 0
      %5875 = vmatprep.subr.bf16.mxu0 0
      %5876 = vmatpush1.bf16.msra.mxu0 %v1390
      %5877 = vmatprep.subr.bf16.mxu0 0
      %5878 = vmatpush1.bf16.msra.mxu0 %v1391
      %5879 = vmatprep.subr.bf16.mxu0 0
      %5880 = vmatpush1.bf16.msra.mxu0 0
      %5881 = vmatprep.subr.bf16.mxu0 0
      %5882 = vmatpush1.bf16.msra.mxu0 0
      %5883 = vmatprep.subr.bf16.mxu0 0
      %5884 = vmatpush1.bf16.msra.mxu0 0
      %5885 = vmatprep.subr.bf16.mxu0 0
      %5886 = vmatpush1.bf16.msra.mxu0 0
      %5887 = vmatprep.subr.bf16.mxu0 0
      %5888 = vmatpush1.bf16.msra.mxu0 0
      %5889 = vmatprep.subr.bf16.mxu0 0
      %5890 = vmatpush1.bf16.msra.mxu0 0
      %5891 = vmatprep.subr.bf16.mxu0 0
      %5892 = vmatpush1.bf16.msra.mxu0 0
      %5893 = vmatprep.subr.bf16.mxu0 0
      %5894 = vmatpush1.bf16.msra.mxu0 0
      %5895 = vmatprep.subr.bf16.mxu0 0
      %5896 = vmatpush1.bf16.msra.mxu0 0
      %5897 = vmatprep.subr.bf16.mxu0 0
      %5898 = vmatpush1.bf16.msra.mxu0 0
      %5899 = vmatprep.subr.bf16.mxu0 0
      %5900 = vmatpush1.bf16.msra.mxu0 0
      %5901 = vmatprep.subr.bf16.mxu0 0
      %5902 = vmatpush1.bf16.msra.mxu0 0
      %5903 = vmatprep.subr.bf16.mxu0 0
      %5904 = vmatpush1.bf16.msra.mxu0 0
      %5905 = vmatprep.subr.bf16.mxu0 0
      %5906 = vmatpush1.bf16.msra.mxu0 0
      %5907 = vmatprep.mubr.bf16.mxu0 0
      %5908 = vmatmul.mubr.bf16.gmra.mrb[0].mxu0 %v5873
      %v5909 = vpop.f32.mrb[0].mxu0
      %v5910 = vadd.f32 0.0, %v5909
      %v5911 = vpop.f32.mrb[0].mxu0
      %v5912 = vpop.f32.mrb[0].mxu0
      %v5913 = vpop.f32.mrb[0].mxu0
      %5914 = vdwg.mxu0
      %v5915 = vadd.f32 %v5588, %v1441
      %v5916 = vadd.f32 %v5634, %v1441
      %v5917 = vadd.f32 %v5680, %v1441
      %v5918 = vadd.f32 %v5726, %v1441
      %v5919 = vadd.f32 %v5772, %v1441
      %v5920 = vadd.f32 %v5818, %v1441
      %v5921 = vadd.f32 %v5864, %v1441
      %v5922 = vadd.f32 %v5910, %v1441
      %v5931 = vrot.slane %v5916, 7
      %v5932 = vsel %vm1460, %v5931, %v5915
      %v5933 = vrot.slane %v5917, 6
      %v5934 = vsel %vm1463, %v5933, %v5932
      %v5935 = vrot.slane %v5918, 5
      %v5936 = vsel %vm1466, %v5935, %v5934
      %v5937 = vrot.slane %v5919, 4
      %v5938 = vsel %vm1469, %v5937, %v5936
      %v5939 = vrot.slane %v5920, 3
      %v5940 = vsel %vm1472, %v5939, %v5938
      %v5941 = vrot.slane %v5921, 2
      %v5942 = vsel %vm1475, %v5941, %v5940
      %v5943 = vrot.slane %v5922, 1
      %v5944 = vsel %vm1478, %v5943, %v5942
      %5946 = vmax.xlane.f32.xlu0 %v5944
      %v5947 = vpop.xlane.xlu0 %5946
      %v5949 = vrot.slane %v5947, 1
      %v5950 = vrot.slane %v5947, 2
      %v5951 = vrot.slane %v5947, 3
      %v5952 = vrot.slane %v5947, 4
      %v5953 = vrot.slane %v5947, 5
      %v5954 = vrot.slane %v5947, 6
      %v5955 = vrot.slane %v5947, 7
      %v5964 = vsub.f32 %v5915, %v5947
      %v5965 = vsub.f32 %v5916, %v5949
      %v5966 = vsub.f32 %v5917, %v5950
      %v5967 = vsub.f32 %v5918, %v5951
      %v5968 = vsub.f32 %v5919, %v5952
      %v5969 = vsub.f32 %v5920, %v5953
      %v5970 = vsub.f32 %v5921, %v5954
      %v5971 = vsub.f32 %v5922, %v5955
      %v5972 = vmul.f32 %v5964, 1.442695
      %v5973 = vpow.pop %v5972
      %v5974 = vmul.f32 %v5965, 1.442695
      %v5975 = vpow.pop %v5974
      %v5976 = vmul.f32 %v5966, 1.442695
      %v5977 = vpow.pop %v5976
      %v5978 = vmul.f32 %v5967, 1.442695
      %v5979 = vpow.pop %v5978
      %v5980 = vmul.f32 %v5968, 1.442695
      %v5981 = vpow.pop %v5980
      %v5982 = vmul.f32 %v5969, 1.442695
      %v5983 = vpow.pop %v5982
      %v5984 = vmul.f32 %v5970, 1.442695
      %v5985 = vpow.pop %v5984
      %v5986 = vmul.f32 %v5971, 1.442695
      %v5987 = vpow.pop %v5986
      %v5996 = vrot.slane %v5975, 7
      %v5997 = vsel %vm1460, %v5996, %v5973
      %v5998 = vrot.slane %v5977, 6
      %v5999 = vsel %vm1463, %v5998, %v5997
      %v6000 = vrot.slane %v5979, 5
      %v6001 = vsel %vm1466, %v6000, %v5999
      %v6002 = vrot.slane %v5981, 4
      %v6003 = vsel %vm1469, %v6002, %v6001
      %v6004 = vrot.slane %v5983, 3
      %v6005 = vsel %vm1472, %v6004, %v6003
      %v6006 = vrot.slane %v5985, 2
      %v6007 = vsel %vm1475, %v6006, %v6005
      %v6008 = vrot.slane %v5987, 1
      %v6009 = vsel %vm1478, %v6008, %v6007
      %6011 = vadd.xlane.f32.xlu0 %v6009
      %v6012 = vpop.xlane.xlu0 %6011
      %v6013 = vrcp.pop %v6012
      %v6014 = vmul.f32 %v6012, %v6013
      %v6015 = vsub.f32 2.0, %v6014
      %v6016 = vmul.f32 %v6013, %v6015
      %v6018 = vrot.slane %v6016, 1
      %v6019 = vrot.slane %v6016, 2
      %v6020 = vrot.slane %v6016, 3
      %v6021 = vrot.slane %v6016, 4
      %v6022 = vrot.slane %v6016, 5
      %v6023 = vrot.slane %v6016, 6
      %v6024 = vrot.slane %v6016, 7
      %v6033 = vmul.f32 %v5973, %v6016
      %v6034 = vmul.f32 %v5975, %v6018
      %v6035 = vmul.f32 %v5977, %v6019
      %v6036 = vmul.f32 %v5979, %v6020
      %v6037 = vmul.f32 %v5981, %v6021
      %v6038 = vmul.f32 %v5983, %v6022
      %v6039 = vmul.f32 %v5985, %v6023
      %v6040 = vmul.f32 %v5987, %v6024
      %v6041 = vpack.c.bf16 %v6033, %v6033
      %v6042 = vpack.c.bf16 %v6034, %v6034
      %v6043 = vpack.c.bf16 %v6035, %v6035
      %v6044 = vpack.c.bf16 %v6036, %v6036
      %v6045 = vpack.c.bf16 %v6037, %v6037
      %v6046 = vpack.c.bf16 %v6038, %v6038
      %v6047 = vpack.c.bf16 %v6039, %v6039
      %v6048 = vpack.c.bf16 %v6040, %v6040
      %6049 = vmatprep.subr.bf16.mxu0 0
      %6050 = vmatpush1.bf16.msra.mxu0 %v1616
      %6051 = vmatprep.subr.bf16.mxu0 0
      %6052 = vmatpush1.bf16.msra.mxu0 %v1617
      %6053 = vmatprep.subr.bf16.mxu0 0
      %6054 = vmatpush1.bf16.msra.mxu0 %v1618
      %6055 = vmatprep.subr.bf16.mxu0 0
      %6056 = vmatpush1.bf16.msra.mxu0 %v1619
      %6057 = vmatprep.subr.bf16.mxu0 0
      %6058 = vmatpush1.bf16.msra.mxu0 %v1620
      %6059 = vmatprep.subr.bf16.mxu0 0
      %6060 = vmatpush1.bf16.msra.mxu0 %v1621
      %6061 = vmatprep.subr.bf16.mxu0 0
      %6062 = vmatpush1.bf16.msra.mxu0 %v1622
      %6063 = vmatprep.subr.bf16.mxu0 0
      %6064 = vmatpush1.bf16.msra.mxu0 %v1623
      %6065 = vmatprep.subr.bf16.mxu0 0
      %6066 = vmatpush1.bf16.msra.mxu0 0
      %6067 = vmatprep.subr.bf16.mxu0 0
      %6068 = vmatpush1.bf16.msra.mxu0 0
      %6069 = vmatprep.subr.bf16.mxu0 0
      %6070 = vmatpush1.bf16.msra.mxu0 0
      %6071 = vmatprep.subr.bf16.mxu0 0
      %6072 = vmatpush1.bf16.msra.mxu0 0
      %6073 = vmatprep.subr.bf16.mxu0 0
      %6074 = vmatpush1.bf16.msra.mxu0 0
      %6075 = vmatprep.subr.bf16.mxu0 0
      %6076 = vmatpush1.bf16.msra.mxu0 0
      %6077 = vmatprep.subr.bf16.mxu0 0
      %6078 = vmatpush1.bf16.msra.mxu0 0
      %6079 = vmatprep.subr.bf16.mxu0 0
      %6080 = vmatpush1.bf16.msra.mxu0 0
      %6081 = vmatprep.mubr.bf16.mxu0 0
      %6082 = vmatmul.mubr.bf16.gmra.mrb[0].mxu0 %v6041
      %v6083 = vpop.f32.mrb[0].mxu0
      %v6084 = vadd.f32 0.0, %v6083
      %v6085 = vpop.f32.mrb[0].mxu0
      %v6086 = vpop.f32.mrb[0].mxu0
      %v6087 = vpop.f32.mrb[0].mxu0
      %6088 = vdwg.mxu0
      %6089 = vmatprep.subr.bf16.mxu0 0
      %6090 = vmatpush1.bf16.msra.mxu0 %v1704
      %6091 = vmatprep.subr.bf16.mxu0 0
      %6092 = vmatpush1.bf16.msra.mxu0 %v1705
      %6093 = vmatprep.subr.bf16.mxu0 0
      %6094 = vmatpush1.bf16.msra.mxu0 %v1706
      %6095 = vmatprep.subr.bf16.mxu0 0
      %6096 = vmatpush1.bf16.msra.mxu0 %v1707
      %6097 = vmatprep.subr.bf16.mxu0 0
      %6098 = vmatpush1.bf16.msra.mxu0 %v1708
      %6099 = vmatprep.subr.bf16.mxu0 0
      %6100 = vmatpush1.bf16.msra.mxu0 %v1709
      %6101 = vmatprep.subr.bf16.mxu0 0
      %6102 = vmatpush1.bf16.msra.mxu0 %v1710
      %6103 = vmatprep.subr.bf16.mxu0 0
      %6104 = vmatpush1.bf16.msra.mxu0 %v1711
      %6105 = vmatprep.subr.bf16.mxu0 0
      %6106 = vmatpush1.bf16.msra.mxu0 0
      %6107 = vmatprep.subr.bf16.mxu0 0
      %6108 = vmatpush1.bf16.msra.mxu0 0
      %6109 = vmatprep.subr.bf16.mxu0 0
      %6110 = vmatpush1.bf16.msra.mxu0 0
      %6111 = vmatprep.subr.bf16.mxu0 0
      %6112 = vmatpush1.bf16.msra.mxu0 0
      %6113 = vmatprep.subr.bf16.mxu0 0
      %6114 = vmatpush1.bf16.msra.mxu0 0
      %6115 = vmatprep.subr.bf16.mxu0 0
      %6116 = vmatpush1.bf16.msra.mxu0 0
      %6117 = vmatprep.subr.bf16.mxu0 0
      %6118 = vmatpush1.bf16.msra.mxu0 0
      %6119 = vmatprep.subr.bf16.mxu0 0
      %6120 = vmatpush1.bf16.msra.mxu0 0
      %6121 = vmatprep.mubr.bf16.mxu0 0
      %6122 = vmatmul.mubr.bf16.gmra.mrb[0].mxu0 %v6042
      %v6123 = vpop.f32.mrb[0].mxu0
      %v6124 = vadd.f32 0.0, %v6123
      %v6125 = vpop.f32.mrb[0].mxu0
      %v6126 = vpop.f32.mrb[0].mxu0
      %v6127 = vpop.f32.mrb[0].mxu0
      %6128 = vdwg.mxu0
      %6129 = vmatprep.subr.bf16.mxu0 0
      %6130 = vmatpush1.bf16.msra.mxu0 %v1792
      %6131 = vmatprep.subr.bf16.mxu0 0
      %6132 = vmatpush1.bf16.msra.mxu0 %v1793
      %6133 = vmatprep.subr.bf16.mxu0 0
      %6134 = vmatpush1.bf16.msra.mxu0 %v1794
      %6135 = vmatprep.subr.bf16.mxu0 0
      %6136 = vmatpush1.bf16.msra.mxu0 %v1795
      %6137 = vmatprep.subr.bf16.mxu0 0
      %6138 = vmatpush1.bf16.msra.mxu0 %v1796
      %6139 = vmatprep.subr.bf16.mxu0 0
      %6140 = vmatpush1.bf16.msra.mxu0 %v1797
      %6141 = vmatprep.subr.bf16.mxu0 0
      %6142 = vmatpush1.bf16.msra.mxu0 %v1798
      %6143 = vmatprep.subr.bf16.mxu0 0
      %6144 = vmatpush1.bf16.msra.mxu0 %v1799
      %6145 = vmatprep.subr.bf16.mxu0 0
      %6146 = vmatpush1.bf16.msra.mxu0 0
      %6147 = vmatprep.subr.bf16.mxu0 0
      %6148 = vmatpush1.bf16.msra.mxu0 0
      %6149 = vmatprep.subr.bf16.mxu0 0
      %6150 = vmatpush1.bf16.msra.mxu0 0
      %6151 = vmatprep.subr.bf16.mxu0 0
      %6152 = vmatpush1.bf16.msra.mxu0 0
      %6153 = vmatprep.subr.bf16.mxu0 0
      %6154 = vmatpush1.bf16.msra.mxu0 0
      %6155 = vmatprep.subr.bf16.mxu0 0
      %6156 = vmatpush1.bf16.msra.mxu0 0
      %6157 = vmatprep.subr.bf16.mxu0 0
      %6158 = vmatpush1.bf16.msra.mxu0 0
      %6159 = vmatprep.subr.bf16.mxu0 0
      %6160 = vmatpush1.bf16.msra.mxu0 0
      %6161 = vmatprep.mubr.bf16.mxu0 0
      %6162 = vmatmul.mubr.bf16.gmra.mrb[0].mxu0 %v6043
      %v6163 = vpop.f32.mrb[0].mxu0
      %v6164 = vadd.f32 0.0, %v6163
      %v6165 = vpop.f32.mrb[0].mxu0
      %v6166 = vpop.f32.mrb[0].mxu0
      %v6167 = vpop.f32.mrb[0].mxu0
      %6168 = vdwg.mxu0
      %6169 = vmatprep.subr.bf16.mxu0 0
      %6170 = vmatpush1.bf16.msra.mxu0 %v1880
      %6171 = vmatprep.subr.bf16.mxu0 0
      %6172 = vmatpush1.bf16.msra.mxu0 %v1881
      %6173 = vmatprep.subr.bf16.mxu0 0
      %6174 = vmatpush1.bf16.msra.mxu0 %v1882
      %6175 = vmatprep.subr.bf16.mxu0 0
      %6176 = vmatpush1.bf16.msra.mxu0 %v1883
      %6177 = vmatprep.subr.bf16.mxu0 0
      %6178 = vmatpush1.bf16.msra.mxu0 %v1884
      %6179 = vmatprep.subr.bf16.mxu0 0
      %6180 = vmatpush1.bf16.msra.mxu0 %v1885
      %6181 = vmatprep.subr.bf16.mxu0 0
      %6182 = vmatpush1.bf16.msra.mxu0 %v1886
      %6183 = vmatprep.subr.bf16.mxu0 0
      %6184 = vmatpush1.bf16.msra.mxu0 %v1887
      %6185 = vmatprep.subr.bf16.mxu0 0
      %6186 = vmatpush1.bf16.msra.mxu0 0
      %6187 = vmatprep.subr.bf16.mxu0 0
      %6188 = vmatpush1.bf16.msra.mxu0 0
      %6189 = vmatprep.subr.bf16.mxu0 0
      %6190 = vmatpush1.bf16.msra.mxu0 0
      %6191 = vmatprep.subr.bf16.mxu0 0
      %6192 = vmatpush1.bf16.msra.mxu0 0
      %6193 = vmatprep.subr.bf16.mxu0 0
      %6194 = vmatpush1.bf16.msra.mxu0 0
      %6195 = vmatprep.subr.bf16.mxu0 0
      %6196 = vmatpush1.bf16.msra.mxu0 0
      %6197 = vmatprep.subr.bf16.mxu0 0
      %6198 = vmatpush1.bf16.msra.mxu0 0
      %6199 = vmatprep.subr.bf16.mxu0 0
      %6200 = vmatpush1.bf16.msra.mxu0 0
      %6201 = vmatprep.mubr.bf16.mxu0 0
      %6202 = vmatmul.mubr.bf16.gmra.mrb[0].mxu0 %v6044
      %v6203 = vpop.f32.mrb[0].mxu0
      %v6204 = vadd.f32 0.0, %v6203
      %v6205 = vpop.f32.mrb[0].mxu0
      %v6206 = vpop.f32.mrb[0].mxu0
      %v6207 = vpop.f32.mrb[0].mxu0
      %6208 = vdwg.mxu0
      %6209 = vmatprep.subr.bf16.mxu0 0
      %6210 = vmatpush1.bf16.msra.mxu0 %v1968
      %6211 = vmatprep.subr.bf16.mxu0 0
      %6212 = vmatpush1.bf16.msra.mxu0 %v1969
      %6213 = vmatprep.subr.bf16.mxu0 0
      %6214 = vmatpush1.bf16.msra.mxu0 %v1970
      %6215 = vmatprep.subr.bf16.mxu0 0
      %6216 = vmatpush1.bf16.msra.mxu0 %v1971
      %6217 = vmatprep.subr.bf16.mxu0 0
      %6218 = vmatpush1.bf16.msra.mxu0 %v1972
      %6219 = vmatprep.subr.bf16.mxu0 0
      %6220 = vmatpush1.bf16.msra.mxu0 %v1973
      %6221 = vmatprep.subr.bf16.mxu0 0
      %6222 = vmatpush1.bf16.msra.mxu0 %v1974
      %6223 = vmatprep.subr.bf16.mxu0 0
      %6224 = vmatpush1.bf16.msra.mxu0 %v1975
      %6225 = vmatprep.subr.bf16.mxu0 0
      %6226 = vmatpush1.bf16.msra.mxu0 0
      %6227 = vmatprep.subr.bf16.mxu0 0
      %6228 = vmatpush1.bf16.msra.mxu0 0
      %6229 = vmatprep.subr.bf16.mxu0 0
      %6230 = vmatpush1.bf16.msra.mxu0 0
      %6231 = vmatprep.subr.bf16.mxu0 0
      %6232 = vmatpush1.bf16.msra.mxu0 0
      %6233 = vmatprep.subr.bf16.mxu0 0
      %6234 = vmatpush1.bf16.msra.mxu0 0
      %6235 = vmatprep.subr.bf16.mxu0 0
      %6236 = vmatpush1.bf16.msra.mxu0 0
      %6237 = vmatprep.subr.bf16.mxu0 0
      %6238 = vmatpush1.bf16.msra.mxu0 0
      %6239 = vmatprep.subr.bf16.mxu0 0
      %6240 = vmatpush1.bf16.msra.mxu0 0
      %6241 = vmatprep.mubr.bf16.mxu0 0
      %6242 = vmatmul.mubr.bf16.gmra.mrb[0].mxu0 %v6045
      %v6243 = vpop.f32.mrb[0].mxu0
      %v6244 = vadd.f32 0.0, %v6243
      %v6245 = vpop.f32.mrb[0].mxu0
      %v6246 = vpop.f32.mrb[0].mxu0
      %v6247 = vpop.f32.mrb[0].mxu0
      %6248 = vdwg.mxu0
      %6249 = vmatprep.subr.bf16.mxu0 0
      %6250 = vmatpush1.bf16.msra.mxu0 %v2056
      %6251 = vmatprep.subr.bf16.mxu0 0
      %6252 = vmatpush1.bf16.msra.mxu0 %v2057
      %6253 = vmatprep.subr.bf16.mxu0 0
      %6254 = vmatpush1.bf16.msra.mxu0 %v2058
      %6255 = vmatprep.subr.bf16.mxu0 0
      %6256 = vmatpush1.bf16.msra.mxu0 %v2059
      %6257 = vmatprep.subr.bf16.mxu0 0
      %6258 = vmatpush1.bf16.msra.mxu0 %v2060
      %6259 = vmatprep.subr.bf16.mxu0 0
      %6260 = vmatpush1.bf16.msra.mxu0 %v2061
      %6261 = vmatprep.subr.bf16.mxu0 0
      %6262 = vmatpush1.bf16.msra.mxu0 %v2062
      %6263 = vmatprep.subr.bf16.mxu0 0
      %6264 = vmatpush1.bf16.msra.mxu0 %v2063
      %6265 = vmatprep.subr.bf16.mxu0 0
      %6266 = vmatpush1.bf16.msra.mxu0 0
      %6267 = vmatprep.subr.bf16.mxu0 0
      %6268 = vmatpush1.bf16.msra.mxu0 0
      %6269 = vmatprep.subr.bf16.mxu0 0
      %6270 = vmatpush1.bf16.msra.mxu0 0
      %6271 = vmatprep.subr.bf16.mxu0 0
      %6272 = vmatpush1.bf16.msra.mxu0 0
      %6273 = vmatprep.subr.bf16.mxu0 0
      %6274 = vmatpush1.bf16.msra.mxu0 0
      %6275 = vmatprep.subr.bf16.mxu0 0
      %6276 = vmatpush1.bf16.msra.mxu0 0
      %6277 = vmatprep.subr.bf16.mxu0 0
      %6278 = vmatpush1.bf16.msra.mxu0 0
      %6279 = vmatprep.subr.bf16.mxu0 0
      %6280 = vmatpush1.bf16.msra.mxu0 0
      %6281 = vmatprep.mubr.bf16.mxu0 0
      %6282 = vmatmul.mubr.bf16.gmra.mrb[0].mxu0 %v6046
      %v6283 = vpop.f32.mrb[0].mxu0
      %v6284 = vadd.f32 0.0, %v6283
      %v6285 = vpop.f32.mrb[0].mxu0
      %v6286 = vpop.f32.mrb[0].mxu0
      %v6287 = vpop.f32.mrb[0].mxu0
      %6288 = vdwg.mxu0
      %6289 = vmatprep.subr.bf16.mxu0 0
      %6290 = vmatpush1.bf16.msra.mxu0 %v2144
      %6291 = vmatprep.subr.bf16.mxu0 0
      %6292 = vmatpush1.bf16.msra.mxu0 %v2145
      %6293 = vmatprep.subr.bf16.mxu0 0
      %6294 = vmatpush1.bf16.msra.mxu0 %v2146
      %6295 = vmatprep.subr.bf16.mxu0 0
      %6296 = vmatpush1.bf16.msra.mxu0 %v2147
      %6297 = vmatprep.subr.bf16.mxu0 0
      %6298 = vmatpush1.bf16.msra.mxu0 %v2148
      %6299 = vmatprep.subr.bf16.mxu0 0
      %6300 = vmatpush1.bf16.msra.mxu0 %v2149
      %6301 = vmatprep.subr.bf16.mxu0 0
      %6302 = vmatpush1.bf16.msra.mxu0 %v2150
      %6303 = vmatprep.subr.bf16.mxu0 0
      %6304 = vmatpush1.bf16.msra.mxu0 %v2151
      %6305 = vmatprep.subr.bf16.mxu0 0
      %6306 = vmatpush1.bf16.msra.mxu0 0
      %6307 = vmatprep.subr.bf16.mxu0 0
      %6308 = vmatpush1.bf16.msra.mxu0 0
      %6309 = vmatprep.subr.bf16.mxu0 0
      %6310 = vmatpush1.bf16.msra.mxu0 0
      %6311 = vmatprep.subr.bf16.mxu0 0
      %6312 = vmatpush1.bf16.msra.mxu0 0
      %6313 = vmatprep.subr.bf16.mxu0 0
      %6314 = vmatpush1.bf16.msra.mxu0 0
      %6315 = vmatprep.subr.bf16.mxu0 0
      %6316 = vmatpush1.bf16.msra.mxu0 0
      %6317 = vmatprep.subr.bf16.mxu0 0
      %6318 = vmatpush1.bf16.msra.mxu0 0
      %6319 = vmatprep.subr.bf16.mxu0 0
      %6320 = vmatpush1.bf16.msra.mxu0 0
      %6321 = vmatprep.mubr.bf16.mxu0 0
      %6322 = vmatmul.mubr.bf16.gmra.mrb[0].mxu0 %v6047
      %v6323 = vpop.f32.mrb[0].mxu0
      %v6324 = vadd.f32 0.0, %v6323
      %v6325 = vpop.f32.mrb[0].mxu0
      %v6326 = vpop.f32.mrb[0].mxu0
      %v6327 = vpop.f32.mrb[0].mxu0
      %6328 = vdwg.mxu0
      %6329 = vmatprep.subr.bf16.mxu0 0
      %6330 = vmatpush1.bf16.msra.mxu0 %v2232
      %6331 = vmatprep.subr.bf16.mxu0 0
      %6332 = vmatpush1.bf16.msra.mxu0 %v2233
      %6333 = vmatprep.subr.bf16.mxu0 0
      %6334 = vmatpush1.bf16.msra.mxu0 %v2234
      %6335 = vmatprep.subr.bf16.mxu0 0
      %6336 = vmatpush1.bf16.msra.mxu0 %v2235
      %6337 = vmatprep.subr.bf16.mxu0 0
      %6338 = vmatpush1.bf16.msra.mxu0 %v2236
      %6339 = vmatprep.subr.bf16.mxu0 0
      %6340 = vmatpush1.bf16.msra.mxu0 %v2237
      %6341 = vmatprep.subr.bf16.mxu0 0
      %6342 = vmatpush1.bf16.msra.mxu0 %v2238
      %6343 = vmatprep.subr.bf16.mxu0 0
      %6344 = vmatpush1.bf16.msra.mxu0 %v2239
      %6345 = vmatprep.subr.bf16.mxu0 0
      %6346 = vmatpush1.bf16.msra.mxu0 0
      %6347 = vmatprep.subr.bf16.mxu0 0
      %6348 = vmatpush1.bf16.msra.mxu0 0
      %6349 = vmatprep.subr.bf16.mxu0 0
      %6350 = vmatpush1.bf16.msra.mxu0 0
      %6351 = vmatprep.subr.bf16.mxu0 0
      %6352 = vmatpush1.bf16.msra.mxu0 0
      %6353 = vmatprep.subr.bf16.mxu0 0
      %6354 = vmatpush1.bf16.msra.mxu0 0
      %6355 = vmatprep.subr.bf16.mxu0 0
      %6356 = vmatpush1.bf16.msra.mxu0 0
      %6357 = vmatprep.subr.bf16.mxu0 0
      %6358 = vmatpush1.bf16.msra.mxu0 0
      %6359 = vmatprep.subr.bf16.mxu0 0
      %6360 = vmatpush1.bf16.msra.mxu0 0
      %6361 = vmatprep.mubr.bf16.mxu0 0
      %6362 = vmatmul.mubr.bf16.gmra.mrb[0].mxu0 %v6048
      %v6363 = vpop.f32.mrb[0].mxu0
      %v6364 = vadd.f32 0.0, %v6363
      %v6365 = vpop.f32.mrb[0].mxu0
      %v6366 = vpop.f32.mrb[0].mxu0
      %v6367 = vpop.f32.mrb[0].mxu0
      %6368 = vdwg.mxu0
      %v6369 = vpack.c.bf16 %v5480, %v5480
      %6371 = vrot.lane.b32.xlu0 %v6369, 96
      %v6372 = vpop.permute.xlu0 %6371
      %v6374 = vsel %vm770, %v6372, 0
      %6376 = vmatprep.subr.bf16.mxu0 0
      %6377 = vmatpush1.bf16.msra.mxu0 %v2306
      %6378 = vmatprep.subr.bf16.mxu0 0
      %6379 = vmatpush1.bf16.msra.mxu0 %v2307
      %6380 = vmatprep.subr.bf16.mxu0 0
      %6381 = vmatpush1.bf16.msra.mxu0 0
      %6382 = vmatprep.subr.bf16.mxu0 0
      %6383 = vmatpush1.bf16.msra.mxu0 0
      %6384 = vmatprep.subr.bf16.mxu0 0
      %6385 = vmatpush1.bf16.msra.mxu0 0
      %6386 = vmatprep.subr.bf16.mxu0 0
      %6387 = vmatpush1.bf16.msra.mxu0 0
      %6388 = vmatprep.subr.bf16.mxu0 0
      %6389 = vmatpush1.bf16.msra.mxu0 0
      %6390 = vmatprep.subr.bf16.mxu0 0
      %6391 = vmatpush1.bf16.msra.mxu0 0
      %6392 = vmatprep.subr.bf16.mxu0 0
      %6393 = vmatpush1.bf16.msra.mxu0 0
      %6394 = vmatprep.subr.bf16.mxu0 0
      %6395 = vmatpush1.bf16.msra.mxu0 0
      %6396 = vmatprep.subr.bf16.mxu0 0
      %6397 = vmatpush1.bf16.msra.mxu0 0
      %6398 = vmatprep.subr.bf16.mxu0 0
      %6399 = vmatpush1.bf16.msra.mxu0 0
      %6400 = vmatprep.subr.bf16.mxu0 0
      %6401 = vmatpush1.bf16.msra.mxu0 0
      %6402 = vmatprep.subr.bf16.mxu0 0
      %6403 = vmatpush1.bf16.msra.mxu0 0
      %6404 = vmatprep.subr.bf16.mxu0 0
      %6405 = vmatpush1.bf16.msra.mxu0 0
      %6406 = vmatprep.subr.bf16.mxu0 0
      %6407 = vmatpush1.bf16.msra.mxu0 0
      %6408 = vmatprep.mubr.bf16.mxu0 0
      %6409 = vmatmul.mubr.bf16.gmra.mrb[0].mxu0 %v6374
      %v6410 = vpop.f32.mrb[0].mxu0
      %v6411 = vadd.f32 %v2293, %v6410
      %v6412 = vpop.f32.mrb[0].mxu0
      %v6413 = vpop.f32.mrb[0].mxu0
      %v6414 = vpop.f32.mrb[0].mxu0
      %6415 = vdwg.mxu0
      %v6416 = vpack.c.bf16 %v6411, %v6411
      %v6418 = vsel %vm770, %v6416, 0
      %6420 = vmatprep.subr.bf16.mxu0 0
      %6421 = vmatpush1.bf16.msra.mxu0 %v2368
      %6422 = vmatprep.subr.bf16.mxu0 0
      %6423 = vmatpush1.bf16.msra.mxu0 %v2369
      %6424 = vmatprep.subr.bf16.mxu0 0
      %6425 = vmatpush1.bf16.msra.mxu0 0
      %6426 = vmatprep.subr.bf16.mxu0 0
      %6427 = vmatpush1.bf16.msra.mxu0 0
      %6428 = vmatprep.subr.bf16.mxu0 0
      %6429 = vmatpush1.bf16.msra.mxu0 0
      %6430 = vmatprep.subr.bf16.mxu0 0
      %6431 = vmatpush1.bf16.msra.mxu0 0
      %6432 = vmatprep.subr.bf16.mxu0 0
      %6433 = vmatpush1.bf16.msra.mxu0 0
      %6434 = vmatprep.subr.bf16.mxu0 0
      %6435 = vmatpush1.bf16.msra.mxu0 0
      %6436 = vmatprep.subr.bf16.mxu0 0
      %6437 = vmatpush1.bf16.msra.mxu0 0
      %6438 = vmatprep.subr.bf16.mxu0 0
      %6439 = vmatpush1.bf16.msra.mxu0 0
      %6440 = vmatprep.subr.bf16.mxu0 0
      %6441 = vmatpush1.bf16.msra.mxu0 0
      %6442 = vmatprep.subr.bf16.mxu0 0
      %6443 = vmatpush1.bf16.msra.mxu0 0
      %6444 = vmatprep.subr.bf16.mxu0 0
      %6445 = vmatpush1.bf16.msra.mxu0 0
      %6446 = vmatprep.subr.bf16.mxu0 0
      %6447 = vmatpush1.bf16.msra.mxu0 0
      %6448 = vmatprep.subr.bf16.mxu0 0
      %6449 = vmatpush1.bf16.msra.mxu0 0
      %6450 = vmatprep.subr.bf16.mxu0 0
      %6451 = vmatpush1.bf16.msra.mxu0 0
      %6452 = vmatprep.mubr.bf16.mxu0 0
      %6453 = vmatmul.mubr.bf16.gmra.mrb[0].mxu0 %v6418
      %v6454 = vpop.f32.mrb[0].mxu0
      %v6455 = vadd.f32 %v2358, %v6454
      %v6456 = vpop.f32.mrb[0].mxu0
      %v6457 = vpop.f32.mrb[0].mxu0
      %v6458 = vpop.f32.mrb[0].mxu0
      %6459 = vdwg.mxu0
      %6460 = vmax.xlane.f32.xlu0 %v6455
      %v6461 = vpop.xlane.xlu0 %6460
      %v6462 = vsub.f32 %v6461, 1.0
      %v6463 = vadd.f32 %v6462, %v6461
      %v6464 = vmul.f32 %v6463, 0.5
      %v6465 = vsub.f32 %v6455, %v6464
      %v6466 = vmax.f32 %v6465, 0.0
      %6467 = vadd.xlane.f32.xlu0 %v6466
      %v6468 = vpop.xlane.xlu0 %6467
      %v6469 = vsub.f32 %v6468, 1.0
      %vm6470 = vcmp.gt.f32.partialorder %v6469, 0.0
      %v6471 = vsel %vm6470, %v6464, %v6462
      %v6472 = vsel %vm6470, %v6461, %v6464
      %v6473 = vadd.f32 %v6471, %v6472
      %v6474 = vmul.f32 %v6473, 0.5
      %v6475 = vsub.f32 %v6455, %v6474
      %v6476 = vmax.f32 %v6475, 0.0
      %6477 = vadd.xlane.f32.xlu0 %v6476
      %v6478 = vpop.xlane.xlu0 %6477
      %v6479 = vsub.f32 %v6478, 1.0
      %vm6480 = vcmp.gt.f32.partialorder %v6479, 0.0
      %v6481 = vsel %vm6480, %v6474, %v6471
      %v6482 = vsel %vm6480, %v6472, %v6474
      %v6483 = vadd.f32 %v6481, %v6482
      %v6484 = vmul.f32 %v6483, 0.5
      %v6485 = vsub.f32 %v6455, %v6484
      %v6486 = vmax.f32 %v6485, 0.0
      %6487 = vadd.xlane.f32.xlu0 %v6486
      %v6488 = vpop.xlane.xlu0 %6487
      %v6489 = vsub.f32 %v6488, 1.0
      %vm6490 = vcmp.gt.f32.partialorder %v6489, 0.0
      %v6491 = vsel %vm6490, %v6484, %v6481
      %v6492 = vsel %vm6490, %v6482, %v6484
      %v6493 = vadd.f32 %v6491, %v6492
      %v6494 = vmul.f32 %v6493, 0.5
      %v6495 = vsub.f32 %v6455, %v6494
      %v6496 = vmax.f32 %v6495, 0.0
      %6497 = vadd.xlane.f32.xlu0 %v6496
      %v6498 = vpop.xlane.xlu0 %6497
      %v6499 = vsub.f32 %v6498, 1.0
      %vm6500 = vcmp.gt.f32.partialorder %v6499, 0.0
      %v6501 = vsel %vm6500, %v6494, %v6491
      %v6502 = vsel %vm6500, %v6492, %v6494
      %v6503 = vadd.f32 %v6501, %v6502
      %v6504 = vmul.f32 %v6503, 0.5
      %v6505 = vsub.f32 %v6455, %v6504
      %v6506 = vmax.f32 %v6505, 0.0
      %6507 = vadd.xlane.f32.xlu0 %v6506
      %v6508 = vpop.xlane.xlu0 %6507
      %v6509 = vsub.f32 %v6508, 1.0
      %vm6510 = vcmp.gt.f32.partialorder %v6509, 0.0
      %v6511 = vsel %vm6510, %v6504, %v6501
      %v6512 = vsel %vm6510, %v6502, %v6504
      %v6513 = vadd.f32 %v6511, %v6512
      %v6514 = vmul.f32 %v6513, 0.5
      %v6515 = vsub.f32 %v6455, %v6514
      %v6516 = vmax.f32 %v6515, 0.0
      %6517 = vadd.xlane.f32.xlu0 %v6516
      %v6518 = vpop.xlane.xlu0 %6517
      %v6519 = vsub.f32 %v6518, 1.0
      %vm6520 = vcmp.gt.f32.partialorder %v6519, 0.0
      %v6521 = vsel %vm6520, %v6514, %v6511
      %v6522 = vsel %vm6520, %v6512, %v6514
      %v6523 = vadd.f32 %v6521, %v6522
      %v6524 = vmul.f32 %v6523, 0.5
      %v6525 = vsub.f32 %v6455, %v6524
      %v6526 = vmax.f32 %v6525, 0.0
      %6527 = vadd.xlane.f32.xlu0 %v6526
      %v6528 = vpop.xlane.xlu0 %6527
      %v6529 = vsub.f32 %v6528, 1.0
      %vm6530 = vcmp.gt.f32.partialorder %v6529, 0.0
      %v6531 = vsel %vm6530, %v6524, %v6521
      %v6532 = vsel %vm6530, %v6522, %v6524
      %v6533 = vadd.f32 %v6531, %v6532
      %v6534 = vmul.f32 %v6533, 0.5
      %v6535 = vsub.f32 %v6455, %v6534
      %v6536 = vmax.f32 %v6535, 0.0
      %6537 = vadd.xlane.f32.xlu0 %v6536
      %v6538 = vpop.xlane.xlu0 %6537
      %v6539 = vsub.f32 %v6538, 1.0
      %vm6540 = vcmp.gt.f32.partialorder %v6539, 0.0
      %v6541 = vsel %vm6540, %v6534, %v6531
      %v6542 = vsel %vm6540, %v6532, %v6534
      %v6543 = vadd.f32 %v6541, %v6542
      %v6544 = vmul.f32 %v6543, 0.5
      %v6545 = vsub.f32 %v6455, %v6544
      %v6546 = vmax.f32 %v6545, 0.0
      %6547 = vadd.xlane.f32.xlu0 %v6546
      %v6548 = vpop.xlane.xlu0 %6547
      %v6549 = vsub.f32 %v6548, 1.0
      %vm6550 = vcmp.gt.f32.partialorder %v6549, 0.0
      %v6551 = vsel %vm6550, %v6544, %v6541
      %v6552 = vsel %vm6550, %v6542, %v6544
      %v6553 = vadd.f32 %v6551, %v6552
      %v6554 = vmul.f32 %v6553, 0.5
      %v6555 = vsub.f32 %v6455, %v6554
      %v6556 = vmax.f32 %v6555, 0.0
      %6557 = vadd.xlane.f32.xlu0 %v6556
      %v6558 = vpop.xlane.xlu0 %6557
      %v6559 = vsub.f32 %v6558, 1.0
      %vm6560 = vcmp.gt.f32.partialorder %v6559, 0.0
      %v6561 = vsel %vm6560, %v6554, %v6551
      %v6562 = vsel %vm6560, %v6552, %v6554
      %v6563 = vadd.f32 %v6561, %v6562
      %v6564 = vmul.f32 %v6563, 0.5
      %v6565 = vsub.f32 %v6455, %v6564
      %v6566 = vmax.f32 %v6565, 0.0
      %6567 = vadd.xlane.f32.xlu0 %v6566
      %v6568 = vpop.xlane.xlu0 %6567
      %v6569 = vsub.f32 %v6568, 1.0
      %vm6570 = vcmp.gt.f32.partialorder %v6569, 0.0
      %v6571 = vsel %vm6570, %v6564, %v6561
      %v6572 = vsel %vm6570, %v6562, %v6564
      %v6573 = vadd.f32 %v6571, %v6572
      %v6574 = vmul.f32 %v6573, 0.5
      %v6575 = vsub.f32 %v6455, %v6574
      %v6576 = vmax.f32 %v6575, 0.0
      %6577 = vadd.xlane.f32.xlu0 %v6576
      %v6578 = vpop.xlane.xlu0 %6577
      %v6579 = vsub.f32 %v6578, 1.0
      %vm6580 = vcmp.gt.f32.partialorder %v6579, 0.0
      %v6581 = vsel %vm6580, %v6574, %v6571
      %v6582 = vsel %vm6580, %v6572, %v6574
      %v6583 = vadd.f32 %v6581, %v6582
      %v6584 = vmul.f32 %v6583, 0.5
      %v6585 = vsub.f32 %v6455, %v6584
      %v6586 = vmax.f32 %v6585, 0.0
      %6587 = vadd.xlane.f32.xlu0 %v6586
      %v6588 = vpop.xlane.xlu0 %6587
      %v6589 = vsub.f32 %v6588, 1.0
      %vm6590 = vcmp.gt.f32.partialorder %v6589, 0.0
      %v6591 = vsel %vm6590, %v6584, %v6581
      %v6592 = vsel %vm6590, %v6582, %v6584
      %v6593 = vadd.f32 %v6591, %v6592
      %v6594 = vmul.f32 %v6593, 0.5
      %v6595 = vsub.f32 %v6455, %v6594
      %v6596 = vmax.f32 %v6595, 0.0
      %6597 = vadd.xlane.f32.xlu0 %v6596
      %v6598 = vpop.xlane.xlu0 %6597
      %v6599 = vsub.f32 %v6598, 1.0
      %vm6600 = vcmp.gt.f32.partialorder %v6599, 0.0
      %v6601 = vsel %vm6600, %v6594, %v6591
      %v6602 = vsel %vm6600, %v6592, %v6594
      %v6603 = vadd.f32 %v6601, %v6602
      %v6604 = vmul.f32 %v6603, 0.5
      %v6605 = vsub.f32 %v6455, %v6604
      %v6606 = vmax.f32 %v6605, 0.0
      %6607 = vadd.xlane.f32.xlu0 %v6606
      %v6608 = vpop.xlane.xlu0 %6607
      %v6609 = vsub.f32 %v6608, 1.0
      %vm6610 = vcmp.gt.f32.partialorder %v6609, 0.0
      %v6611 = vsel %vm6610, %v6604, %v6601
      %v6612 = vsel %vm6610, %v6602, %v6604
      %v6613 = vadd.f32 %v6611, %v6612
      %v6614 = vmul.f32 %v6613, 0.5
      %v6615 = vsub.f32 %v6455, %v6614
      %v6616 = vmax.f32 %v6615, 0.0
      %6617 = vadd.xlane.f32.xlu0 %v6616
      %v6618 = vpop.xlane.xlu0 %6617
      %v6619 = vsub.f32 %v6618, 1.0
      %vm6620 = vcmp.gt.f32.partialorder %v6619, 0.0
      %v6621 = vsel %vm6620, %v6614, %v6611
      %v6622 = vsel %vm6620, %v6612, %v6614
      %v6623 = vadd.f32 %v6621, %v6622
      %v6624 = vmul.f32 %v6623, 0.5
      %vm6625 = vcmp.ge.f32.partialorder %v6455, %v6624
      %v6626 = vsel %vm6625, 1, 0
      %v6627 = vcvt.s32.f32 %v6626
      %6628 = vadd.xlane.f32.xlu0 %v6627
      %v6629 = vpop.xlane.xlu0 %6628
      %v6630 = vmax.f32 %v6629, 1.0
      %v6631 = vmul.f32 %v6455, %v6627
      %6632 = vadd.xlane.f32.xlu0 %v6631
      %v6633 = vpop.xlane.xlu0 %6632
      %v6634 = vsub.f32 %v6633, 1.0
      %v6635 = vrcp.pop %v6630
      %v6636 = vmul.f32 %v6634, %v6635
      %vm6637 = vcmp.ge.f32.partialorder %v6455, %v6636
      %v6638 = vsel %vm6637, 1, 0
      %v6639 = vcvt.s32.f32 %v6638
      %6640 = vadd.xlane.f32.xlu0 %v6639
      %v6641 = vpop.xlane.xlu0 %6640
      %v6642 = vmax.f32 %v6641, 1.0
      %v6643 = vmul.f32 %v6455, %v6639
      %6644 = vadd.xlane.f32.xlu0 %v6643
      %v6645 = vpop.xlane.xlu0 %6644
      %v6646 = vsub.f32 %v6645, 1.0
      %v6647 = vrcp.pop %v6642
      %v6648 = vmul.f32 %v6646, %v6647
      %v6649 = vsub.f32 %v6455, %v6648
      %v6650 = vmax.f32 %v6649, 0.0
      %s6651 = scalar_lea.vmem %s553, 24
      %6652 = vst [vmem:[%s6651] sm:$0xff] %v6650
      %v6661 = vrot.slane %v6034, 7
      %v6662 = vsel %vm1460, %v6661, %v6033
      %v6663 = vrot.slane %v6035, 6
      %v6664 = vsel %vm1463, %v6663, %v6662
      %v6665 = vrot.slane %v6036, 5
      %v6666 = vsel %vm1466, %v6665, %v6664
      %v6667 = vrot.slane %v6037, 4
      %v6668 = vsel %vm1469, %v6667, %v6666
      %v6669 = vrot.slane %v6038, 3
      %v6670 = vsel %vm1472, %v6669, %v6668
      %v6671 = vrot.slane %v6039, 2
      %v6672 = vsel %vm1475, %v6671, %v6670
      %v6673 = vrot.slane %v6040, 1
      %v6674 = vsel %vm1478, %v6673, %v6672
      %s6676 = scalar_lea.vmem %s562, 24
      %6677 = vst [vmem:[%s6676] sm:$0xff] %v6674
      %6678 = vrot.lane.b32.xlu0 %v5480, 96
      %v6679 = vpop.permute.xlu0 %6678
      %6681 = vst.msk [vmem:[#allocation2] sm:$0xff] %vm770, %v6679
      %v6690 = vrot.slane %v6124, 7
      %v6691 = vsel %vm1460, %v6690, %v6084
      %v6692 = vrot.slane %v6164, 6
      %v6693 = vsel %vm1463, %v6692, %v6691
      %v6694 = vrot.slane %v6204, 5
      %v6695 = vsel %vm1466, %v6694, %v6693
      %v6696 = vrot.slane %v6244, 4
      %v6697 = vsel %vm1469, %v6696, %v6695
      %v6698 = vrot.slane %v6284, 3
      %v6699 = vsel %vm1472, %v6698, %v6697
      %v6700 = vrot.slane %v6324, 2
      %v6701 = vsel %vm1475, %v6700, %v6699
      %v6702 = vrot.slane %v6364, 1
      %v6703 = vsel %vm1478, %v6702, %v6701
      %6705 = vst.msk [vmem:[#allocation3] sm:$0xff] %vm770, %v6703
      %s6706 = smul.u32 4, %s30
      %p6707 = scmp.lt.s32.totalorder %s6706, 7
      %s6708 = scalar_select %p6707, %s6706, 7
      %p6709 = scmp.lt.s32.totalorder %s29, 0
      %s6710 = scalar_select %p6709, %s29, 0
      %s6711 = sadd.s32 %s6710, %s6708
      %s6712 = smul.addr %s6711, 8
      %s6713 = scalar_lea.vmem %s12, %s6712
      %s6714 = smul.u32 4, %s30
      %p6715 = scmp.lt.s32.totalorder %s6714, 7
      %s6716 = scalar_select %p6715, %s6714, 7
      %p6717 = scmp.lt.s32.totalorder %s29, 0
      %s6718 = scalar_select %p6717, %s29, 0
      %s6719 = sadd.s32 %s6718, %s6716
      %s6720 = smul.addr %s6719, 8
      %s6721 = scalar_lea.vmem %s13, %s6720
      // Predicated region
      $region73: #{nmt_decoder_forward.1} parent=67 // pred_check
        %p6722 = pneg %p331
      $region74: #{nmt_decoder_forward.1} parent=67 // pred_check_branch
        %6724 = sbr.rel (%p6722) target = $region76
      $region75: #{nmt_decoder_forward.1} parent=67 // pred_region
        %s6725 = smul.u32 4, %s30
      $region76: #{nmt_decoder_forward.1} parent=67 // pred_fallthru
        _
      // Predicated region
      $region77: #{nmt_decoder_forward.1} parent=67 // pred_check
        %p6726 = pneg %p359
      $region78: #{nmt_decoder_forward.1} parent=67 // pred_check_branch
        %6728 = sbr.rel (%p6726) target = $region80
      $region79: #{nmt_decoder_forward.1} parent=67 // pred_region
        %s6729 = smul.u32 4, %s30
      $region80: #{nmt_decoder_forward.1} parent=67 // pred_fallthru
        _
    $region68: #{nmt_decoder_forward.1} parent=5 // pred_fallthru
      _
    %p6730 = scmp.le.s32.totalorder 2, %s20
    // Predicated region
    $region81: #{nmt_decoder_forward.1} parent=5 // pred_check
      %p6731 = pneg %p6730
    $region82: #{nmt_decoder_forward.1} parent=5 // pred_check_branch
      %6733 = sbr.rel (%p6731) target = $region84
    $region83: #{nmt_decoder_forward.1} parent=5 // pred_region
      %s6734 = ssub.s32 %s20, 2
      // Predicated region
      $region85: #{nmt_decoder_forward.1} parent=83 // pred_check
        %p6735 = pneg %p337
      $region86: #{nmt_decoder_forward.1} parent=83 // pred_check_branch
        %6737 = sbr.rel (%p6735) target = $region88
      $region87: #{nmt_decoder_forward.1} parent=83 // pred_region
        %s6738 = smul.u32 4, %s32
        %p6739 = scmp.lt.s32.totalorder %s6738, 7
        %s6740 = scalar_select %p6739, %s6738, 7
        %p6741 = scmp.lt.s32.totalorder %s31, 0
        %s6742 = scalar_select %p6741, %s31, 0
        %s6743 = sadd.s32 %s6742, %s6740
        %s6744 = smul.addr %s6743, 8
        %s6745 = scalar_lea.vmem %s12, %s6744
      $region88: #{nmt_decoder_forward.1} parent=83 // pred_fallthru
        _
      // Predicated region
      $region89: #{nmt_decoder_forward.1} parent=83 // pred_check
        %p6746 = pneg %p365
      $region90: #{nmt_decoder_forward.1} parent=83 // pred_check_branch
        %6748 = sbr.rel (%p6746) target = $region92
      $region91: #{nmt_decoder_forward.1} parent=83 // pred_region
        %s6749 = smul.u32 4, %s32
        %p6750 = scmp.lt.s32.totalorder %s6749, 7
        %s6751 = scalar_select %p6750, %s6749, 7
        %p6752 = scmp.lt.s32.totalorder %s31, 0
        %s6753 = scalar_select %p6752, %s31, 0
        %s6754 = sadd.s32 %s6753, %s6751
        %s6755 = smul.addr %s6754, 8
        %s6756 = scalar_lea.vmem %s13, %s6755
      $region92: #{nmt_decoder_forward.1} parent=83 // pred_fallthru
        _
    $region84: #{nmt_decoder_forward.1} parent=5 // pred_fallthru
      _
  $region6: #{nmt_decoder_forward.1} parent=0 // loop_footer
    %s24 = sadd.s32 1, %s20
  $region7: #{nmt_decoder_forward.1} parent=0 // loop_footer_branch
    %19 = sbr.rel target = $region3
  $region8: #{nmt_decoder_forward.1} parent=0 // loop_exit
    _

</llo_original>
